<compile_context>
chip_gen: v6e
topology: v6e:2x2x1
jax: 0.10.0
libtpu: 0.0.40
codegen_flags: <defaults>
</compile_context>

<pallas_src>
import functools

import jax
import jax.numpy as jnp
from jax.experimental import pallas as pl
from jax.experimental.pallas import tpu as pltpu


def outconv_kernel(x_ref, w1_ref, b1_ref, w2_ref, b2_ref, o_ref, *, H, W):
    # x_ref : (1, Cin, D+2, (H+4)*W)   VMEM  padded, (H,W)-flattened conv1 input
    # w1_ref: (2*Cin*27,)              SMEM  conv1 weight, flat [oc, ci, kd, kh, kw]
    # b1_ref: (2,)                     SMEM  conv1 bias
    # w2_ref: (Cout*2,)                SMEM  conv2 (1x1x1) weight, flat [oc, ci]
    # b2_ref: (Cout,)                  SMEM  conv2 bias
    # o_ref : (1, Cout, D, H*W)        VMEM  lane-dense output
    cin = x_ref.shape[1]
    cout = o_ref.shape[1]
    D = o_ref.shape[2]
    HW = H * W

    # Edge masks for the w-direction halo (W is NOT zero-padded; the +-1 lane
    # shifts of the flattened H*W axis wrap into the neighbouring H-row, so
    # those wrapped lanes must read zero).  Hoisted: built once per invocation.
    col = jax.lax.broadcasted_iota(jnp.int32, (D, HW), 1) % W
    mask_l = (col != 0).astype(jnp.float32)      # kw == 0 taps (read w-1)
    mask_r = (col != W - 1).astype(jnp.float32)  # kw == 2 taps (read w+1)

    # conv1 accumulators, zero-init (biases added once in the epilogue).
    acc0 = jnp.zeros((D, HW), jnp.float32)
    acc1 = jnp.zeros((D, HW), jnp.float32)

    # TODO(synk): if Cin grows beyond ~8, wrap the ci loop in
    # lax.fori_loop(..., unroll=True) to bound trace size / live ranges.
    for ci in range(cin):
        for kd in range(3):
            # Depth tap: ONE sublane-axis slice per (ci, kd); reused by all 9
            # (kh, kw) taps and both conv1 output channels.
            slab = x_ref[0, ci, pl.ds(kd, D), :]          # (D, (H+4)*W)
            for kh in range(3):
                for kw in range(3):
                    # (kh, kw) tap == static lane shift of the flattened axis:
                    # padded row (h+kh+1), column (w+kw-1)  ->  offset below.
                    off = (kh + 1) * W + (kw - 1)
                    view = slab[:, off:off + HW]          # (D, H*W)
                    if kw == 0:
                        view = view * mask_l
                    elif kw == 2:
                        view = view * mask_r
                    base = (ci * 3 + kd) * 9 + kh * 3 + kw
                    acc0 = acc0 + view * w1_ref[base]             # oc = 0
                    acc1 = acc1 + view * w1_ref[cin * 27 + base]  # oc = 1

    # Epilogue: conv1 bias + ReLU, fused with the 2 -> Cout 1x1x1 projection.
    h0 = jnp.maximum(acc0 + b1_ref[0], 0.0)
    h1 = jnp.maximum(acc1 + b1_ref[1], 0.0)
    for oc in range(cout):
        o_ref[0, oc] = (h0 * w2_ref[oc * 2 + 0]
                        + h1 * w2_ref[oc * 2 + 1]
                        + b2_ref[oc])


def out_conv(x, w1, b1, w2, b2):
    """x: (N, Cin, D, H, W) f32. w1: (2, Cin, 3,3,3). b1: (2,). w2: (Cout, 2, 1,1,1). b2: (Cout,)."""
    N, Cin, D, H, W = x.shape
    Cout = w2.shape[0]
    # The module hard-codes 2 mid channels; fail loudly if that ever changes.
    assert w1.shape == (2, Cin, 3, 3, 3), w1.shape
    assert w2.shape[1] == 2, w2.shape

    # Single fused pad (D halo = 1; H halo = 2 so every (kh,kw) tap is an
    # in-bounds static lane slice of the flattened axis; W halo handled by
    # in-kernel masks), then a free reshape flattening (H+4, W) into lanes.
    x_pad = jnp.pad(x, ((0, 0), (0, 0), (1, 1), (2, 2), (0, 0)))
    x_flat = x_pad.reshape(N, Cin, D + 2, (H + 4) * W)

    w1_flat = w1.reshape(-1).astype(jnp.float32)
    w2_flat = w2.reshape(Cout, 2).reshape(-1).astype(jnp.float32)

    kernel = functools.partial(outconv_kernel, H=H, W=W)

    out_flat = pl.pallas_call(
        kernel,
        out_shape=jax.ShapeDtypeStruct((N, Cout, D, H * W), jnp.float32),
        grid_spec=pltpu.PrefetchScalarGridSpec(
            num_scalar_prefetch=0,
            grid=(N,),
            in_specs=[
                pl.BlockSpec((1, Cin, D + 2, (H + 4) * W),
                             lambda n: (n, 0, 0, 0)),
                pl.BlockSpec(memory_space=pltpu.MemorySpace.SMEM),
                pl.BlockSpec(memory_space=pltpu.MemorySpace.SMEM),
                pl.BlockSpec(memory_space=pltpu.MemorySpace.SMEM),
                pl.BlockSpec(memory_space=pltpu.MemorySpace.SMEM),
            ],
            out_specs=pl.BlockSpec((1, Cout, D, H * W),
                                   lambda n: (n, 0, 0, 0)),
        ),
        compiler_params=pltpu.CompilerParams(
            dimension_semantics=("parallel",)),  # v7x: N=2 -> both TensorCores
    )(x_flat, w1_flat, b1.astype(jnp.float32), w2_flat, b2.astype(jnp.float32))

    # Free reshape: split the lane-flattened H*W back to (H, W) -> NCDHW.
    return out_flat.reshape(N, Cout, D, H, W)


def ref_forward(x, w1, b1, w2, b2):
    """Pure-JAX reference (lax conv) matching PyTorch semantics."""
    dn1 = jax.lax.conv_dimension_numbers(x.shape, w1.shape, ("NCDHW", "OIDHW", "NCDHW"))
    h = jax.lax.conv_general_dilated(x, w1, (1, 1, 1), [(1, 1)] * 3, dimension_numbers=dn1)
    h = jnp.maximum(h + b1.reshape(1, -1, 1, 1, 1), 0.0)
    dn2 = jax.lax.conv_dimension_numbers(h.shape, w2.shape, ("NCDHW", "OIDHW", "NCDHW"))
    o = jax.lax.conv_general_dilated(h, w2, (1, 1, 1), [(0, 0)] * 3, dimension_numbers=dn2)
    return o + b2.reshape(1, -1, 1, 1, 1)


if __name__ == "__main__":
    # Small shapes consistent with the module (5D volumetric input).
    N, Cin, D, H, W = 2, 4, 8, 16, 16
    Cout = 3

    key = jax.random.PRNGKey(0)
    k_x, k_w1, k_b1, k_w2, k_b2 = jax.random.split(key, 5)

    x = jax.random.normal(k_x, (N, Cin, D, H, W), dtype=jnp.float32)

    # Deterministic parameter init (PyTorch-like uniform scales; synthetic).
    fan1 = Cin * 27
    w1 = jax.random.uniform(k_w1, (2, Cin, 3, 3, 3), jnp.float32,
                            minval=-(fan1 ** -0.5), maxval=fan1 ** -0.5)
    b1 = jax.random.uniform(k_b1, (2,), jnp.float32,
                            minval=-(fan1 ** -0.5), maxval=fan1 ** -0.5)
    fan2 = 2
    w2 = jax.random.uniform(k_w2, (Cout, 2, 1, 1, 1), jnp.float32,
                            minval=-(fan2 ** -0.5), maxval=fan2 ** -0.5)
    b2 = jax.random.uniform(k_b2, (Cout,), jnp.float32,
                            minval=-(fan2 ** -0.5), maxval=fan2 ** -0.5)

    out = jax.block_until_ready(out_conv(x, w1, b1, w2, b2))
    ref = jax.block_until_ready(ref_forward(x, w1, b1, w2, b2))

    assert out.shape == (N, Cout, D, H, W), out.shape
    assert jnp.allclose(out, ref, atol=1e-4, rtol=1e-4), float(jnp.max(jnp.abs(out - ref)))

    print("KERNEL_OK")
</pallas_src>

<mosaic_0001>
module attributes {stable_mosaic.version = 11 : i64} {
  func.func @outconv_kernel(%arg0: i32, %arg1: memref<1x4x10x320xf32, #tpu.memory_space<vmem>>, %arg2: memref<216xf32, #tpu.memory_space<smem>>, %arg3: memref<2xf32, #tpu.memory_space<smem>>, %arg4: memref<6xf32, #tpu.memory_space<smem>>, %arg5: memref<3xf32, #tpu.memory_space<smem>>, %arg6: memref<1x3x8x256xf32, #tpu.memory_space<vmem>>) attributes {dimension_semantics = [#tpu.dimension_semantics<parallel>], iteration_bounds = array<i64: 2>, scalar_prefetch = 0 : i64, scratch_operands = 0 : i64, tpu.core_type = #tpu.core_type<tc>, window_params = [{transform_indices = @transform_0, window_bounds = array<i64: 1, 4, 10, 320>}, {transform_indices = @transform_1, window_bounds = array<i64: 216>}, {transform_indices = @transform_2, window_bounds = array<i64: 2>}, {transform_indices = @transform_3, window_bounds = array<i64: 6>}, {transform_indices = @transform_4, window_bounds = array<i64: 3>}, {transform_indices = @transform_5, window_bounds = array<i64: 1, 3, 8, 256>}]} {
    %0 = tpu.iota {dimensions = array<i32: 1>} : vector<8x256xi32>
    %c16_i32 = arith.constant 16 : i32
    %c0_i32 = arith.constant 0 : i32
    %1 = arith.cmpi eq, %c16_i32, %c0_i32 : i32
    %c1_i32 = arith.constant 1 : i32
    %2 = arith.select %1, %c1_i32, %c16_i32 : i32
    %3 = vector.broadcast %2 : i32 to vector<8x256xi32>
    %4 = arith.remsi %0, %3 : vector<8x256xi32>
    %c0_i32_0 = arith.constant 0 : i32
    %5 = vector.broadcast %c0_i32_0 : i32 to vector<8x256xi32>
    %6 = arith.cmpi ne, %4, %5 : vector<8x256xi32>
    %c0_i32_1 = arith.constant 0 : i32
    %7 = vector.broadcast %c0_i32_1 : i32 to vector<8x256xi32>
    %8 = arith.cmpi slt, %4, %7 : vector<8x256xi32>
    %c0_i32_2 = arith.constant 0 : i32
    %9 = arith.cmpi slt, %2, %c0_i32_2 : i32
    %10 = vector.broadcast %9 : i1 to vector<8x256xi1>
    %11 = vector.broadcast %10 : vector<8x256xi1> to vector<8x256xi1>
    %12 = arith.xori %8, %11 : vector<8x256xi1>
    %13 = arith.andi %12, %6 : vector<8x256xi1>
    %14 = vector.broadcast %2 : i32 to vector<8x256xi32>
    %15 = arith.addi %4, %14 : vector<8x256xi32>
    %16 = arith.select %13, %15, %4 : vector<8x256xi1>, vector<8x256xi32>
    %c0_i32_3 = arith.constant 0 : i32
    %17 = vector.broadcast %c0_i32_3 : i32 to vector<8x256xi32>
    %18 = arith.cmpi ne, %16, %17 : vector<8x256xi32>
    %19 = arith.extui %18 : vector<8x256xi1> to vector<8x256xi32>
    %20 = arith.sitofp %19 : vector<8x256xi32> to vector<8x256xf32>
    %c15_i32 = arith.constant 15 : i32
    %21 = vector.broadcast %c15_i32 : i32 to vector<8x256xi32>
    %22 = arith.cmpi ne, %16, %21 : vector<8x256xi32>
    %23 = arith.extui %22 : vector<8x256xi1> to vector<8x256xi32>
    %24 = arith.sitofp %23 : vector<8x256xi32> to vector<8x256xf32>
    %cst = arith.constant 0.000000e+00 : f32
    %25 = vector.broadcast %cst : f32 to vector<8x256xf32>
    %cst_4 = arith.constant 0.000000e+00 : f32
    %26 = vector.broadcast %cst_4 : f32 to vector<8x256xf32>
    %c0 = arith.constant 0 : index
    %c0_5 = arith.constant 0 : index
    %c0_6 = arith.constant 0 : index
    %c0_7 = arith.constant 0 : index
    %27 = vector.load %arg1[%c0, %c0_5, %c0_6, %c0_7] : memref<1x4x10x320xf32, #tpu.memory_space<vmem>>, vector<1x1x8x320xf32>
    %28 = vector.shape_cast %27 : vector<1x1x8x320xf32> to vector<8x320xf32>
    %29 = vector.extract_strided_slice %28 {offsets = [0, 15], sizes = [8, 256], strides = [1, 1]} : vector<8x320xf32> to vector<8x256xf32>
    %30 = arith.mulf %29, %20 : vector<8x256xf32>
    %c0_8 = arith.constant 0 : index
    %31 = memref.load %arg2[%c0_8] : memref<216xf32, #tpu.memory_space<smem>>
    %32 = vector.broadcast %31 : f32 to vector<8x256xf32>
    %33 = arith.mulf %30, %32 : vector<8x256xf32>
    %34 = arith.addf %25, %33 : vector<8x256xf32>
    %c108 = arith.constant 108 : index
    %35 = memref.load %arg2[%c108] : memref<216xf32, #tpu.memory_space<smem>>
    %36 = vector.broadcast %35 : f32 to vector<8x256xf32>
    %37 = arith.mulf %30, %36 : vector<8x256xf32>
    %38 = arith.addf %26, %37 : vector<8x256xf32>
    %39 = vector.extract_strided_slice %28 {offsets = [0, 16], sizes = [8, 256], strides = [1, 1]} : vector<8x320xf32> to vector<8x256xf32>
    %c1 = arith.constant 1 : index
    %40 = memref.load %arg2[%c1] : memref<216xf32, #tpu.memory_space<smem>>
    %41 = vector.broadcast %40 : f32 to vector<8x256xf32>
    %42 = arith.mulf %39, %41 : vector<8x256xf32>
    %43 = arith.addf %34, %42 : vector<8x256xf32>
    %c109 = arith.constant 109 : index
    %44 = memref.load %arg2[%c109] : memref<216xf32, #tpu.memory_space<smem>>
    %45 = vector.broadcast %44 : f32 to vector<8x256xf32>
    %46 = arith.mulf %39, %45 : vector<8x256xf32>
    %47 = arith.addf %38, %46 : vector<8x256xf32>
    %48 = vector.extract_strided_slice %28 {offsets = [0, 17], sizes = [8, 256], strides = [1, 1]} : vector<8x320xf32> to vector<8x256xf32>
    %49 = arith.mulf %48, %24 : vector<8x256xf32>
    %c2 = arith.constant 2 : index
    %50 = memref.load %arg2[%c2] : memref<216xf32, #tpu.memory_space<smem>>
    %51 = vector.broadcast %50 : f32 to vector<8x256xf32>
    %52 = arith.mulf %49, %51 : vector<8x256xf32>
    %53 = arith.addf %43, %52 : vector<8x256xf32>
    %c110 = arith.constant 110 : index
    %54 = memref.load %arg2[%c110] : memref<216xf32, #tpu.memory_space<smem>>
    %55 = vector.broadcast %54 : f32 to vector<8x256xf32>
    %56 = arith.mulf %49, %55 : vector<8x256xf32>
    %57 = arith.addf %47, %56 : vector<8x256xf32>
    %58 = vector.extract_strided_slice %28 {offsets = [0, 31], sizes = [8, 256], strides = [1, 1]} : vector<8x320xf32> to vector<8x256xf32>
    %59 = arith.mulf %58, %20 : vector<8x256xf32>
    %c3 = arith.constant 3 : index
    %60 = memref.load %arg2[%c3] : memref<216xf32, #tpu.memory_space<smem>>
    %61 = vector.broadcast %60 : f32 to vector<8x256xf32>
    %62 = arith.mulf %59, %61 : vector<8x256xf32>
    %63 = arith.addf %53, %62 : vector<8x256xf32>
    %c111 = arith.constant 111 : index
    %64 = memref.load %arg2[%c111] : memref<216xf32, #tpu.memory_space<smem>>
    %65 = vector.broadcast %64 : f32 to vector<8x256xf32>
    %66 = arith.mulf %59, %65 : vector<8x256xf32>
    %67 = arith.addf %57, %66 : vector<8x256xf32>
    %68 = vector.extract_strided_slice %28 {offsets = [0, 32], sizes = [8, 256], strides = [1, 1]} : vector<8x320xf32> to vector<8x256xf32>
    %c4 = arith.constant 4 : index
    %69 = memref.load %arg2[%c4] : memref<216xf32, #tpu.memory_space<smem>>
    %70 = vector.broadcast %69 : f32 to vector<8x256xf32>
    %71 = arith.mulf %68, %70 : vector<8x256xf32>
    %72 = arith.addf %63, %71 : vector<8x256xf32>
    %c112 = arith.constant 112 : index
    %73 = memref.load %arg2[%c112] : memref<216xf32, #tpu.memory_space<smem>>
    %74 = vector.broadcast %73 : f32 to vector<8x256xf32>
    %75 = arith.mulf %68, %74 : vector<8x256xf32>
    %76 = arith.addf %67, %75 : vector<8x256xf32>
    %77 = vector.extract_strided_slice %28 {offsets = [0, 33], sizes = [8, 256], strides = [1, 1]} : vector<8x320xf32> to vector<8x256xf32>
    %78 = arith.mulf %77, %24 : vector<8x256xf32>
    %c5 = arith.constant 5 : index
    %79 = memref.load %arg2[%c5] : memref<216xf32, #tpu.memory_space<smem>>
    %80 = vector.broadcast %79 : f32 to vector<8x256xf32>
    %81 = arith.mulf %78, %80 : vector<8x256xf32>
    %82 = arith.addf %72, %81 : vector<8x256xf32>
    %c113 = arith.constant 113 : index
    %83 = memref.load %arg2[%c113] : memref<216xf32, #tpu.memory_space<smem>>
    %84 = vector.broadcast %83 : f32 to vector<8x256xf32>
    %85 = arith.mulf %78, %84 : vector<8x256xf32>
    %86 = arith.addf %76, %85 : vector<8x256xf32>
    %87 = vector.extract_strided_slice %28 {offsets = [0, 47], sizes = [8, 256], strides = [1, 1]} : vector<8x320xf32> to vector<8x256xf32>
    %88 = arith.mulf %87, %20 : vector<8x256xf32>
    %c6 = arith.constant 6 : index
    %89 = memref.load %arg2[%c6] : memref<216xf32, #tpu.memory_space<smem>>
    %90 = vector.broadcast %89 : f32 to vector<8x256xf32>
    %91 = arith.mulf %88, %90 : vector<8x256xf32>
    %92 = arith.addf %82, %91 : vector<8x256xf32>
    %c114 = arith.constant 114 : index
    %93 = memref.load %arg2[%c114] : memref<216xf32, #tpu.memory_space<smem>>
    %94 = vector.broadcast %93 : f32 to vector<8x256xf32>
    %95 = arith.mulf %88, %94 : vector<8x256xf32>
    %96 = arith.addf %86, %95 : vector<8x256xf32>
    %97 = vector.extract_strided_slice %28 {offsets = [0, 48], sizes = [8, 256], strides = [1, 1]} : vector<8x320xf32> to vector<8x256xf32>
    %c7 = arith.constant 7 : index
    %98 = memref.load %arg2[%c7] : memref<216xf32, #tpu.memory_space<smem>>
    %99 = vector.broadcast %98 : f32 to vector<8x256xf32>
    %100 = arith.mulf %97, %99 : vector<8x256xf32>
    %101 = arith.addf %92, %100 : vector<8x256xf32>
    %c115 = arith.constant 115 : index
    %102 = memref.load %arg2[%c115] : memref<216xf32, #tpu.memory_space<smem>>
    %103 = vector.broadcast %102 : f32 to vector<8x256xf32>
    %104 = arith.mulf %97, %103 : vector<8x256xf32>
    %105 = arith.addf %96, %104 : vector<8x256xf32>
    %106 = vector.extract_strided_slice %28 {offsets = [0, 49], sizes = [8, 256], strides = [1, 1]} : vector<8x320xf32> to vector<8x256xf32>
    %107 = arith.mulf %106, %24 : vector<8x256xf32>
    %c8 = arith.constant 8 : index
    %108 = memref.load %arg2[%c8] : memref<216xf32, #tpu.memory_space<smem>>
    %109 = vector.broadcast %108 : f32 to vector<8x256xf32>
    %110 = arith.mulf %107, %109 : vector<8x256xf32>
    %111 = arith.addf %101, %110 : vector<8x256xf32>
    %c116 = arith.constant 116 : index
    %112 = memref.load %arg2[%c116] : memref<216xf32, #tpu.memory_space<smem>>
    %113 = vector.broadcast %112 : f32 to vector<8x256xf32>
    %114 = arith.mulf %107, %113 : vector<8x256xf32>
    %115 = arith.addf %105, %114 : vector<8x256xf32>
    %c0_9 = arith.constant 0 : index
    %c0_10 = arith.constant 0 : index
    %c1_11 = arith.constant 1 : index
    %c0_12 = arith.constant 0 : index
    %116 = vector.load %arg1[%c0_9, %c0_10, %c1_11, %c0_12] : memref<1x4x10x320xf32, #tpu.memory_space<vmem>>, vector<1x1x8x320xf32>
    %117 = vector.shape_cast %116 : vector<1x1x8x320xf32> to vector<8x320xf32>
    %118 = vector.extract_strided_slice %117 {offsets = [0, 15], sizes = [8, 256], strides = [1, 1]} : vector<8x320xf32> to vector<8x256xf32>
    %119 = arith.mulf %118, %20 : vector<8x256xf32>
    %c9 = arith.constant 9 : index
    %120 = memref.load %arg2[%c9] : memref<216xf32, #tpu.memory_space<smem>>
    %121 = vector.broadcast %120 : f32 to vector<8x256xf32>
    %122 = arith.mulf %119, %121 : vector<8x256xf32>
    %123 = arith.addf %111, %122 : vector<8x256xf32>
    %c117 = arith.constant 117 : index
    %124 = memref.load %arg2[%c117] : memref<216xf32, #tpu.memory_space<smem>>
    %125 = vector.broadcast %124 : f32 to vector<8x256xf32>
    %126 = arith.mulf %119, %125 : vector<8x256xf32>
    %127 = arith.addf %115, %126 : vector<8x256xf32>
    %128 = vector.extract_strided_slice %117 {offsets = [0, 16], sizes = [8, 256], strides = [1, 1]} : vector<8x320xf32> to vector<8x256xf32>
    %c10 = arith.constant 10 : index
    %129 = memref.load %arg2[%c10] : memref<216xf32, #tpu.memory_space<smem>>
    %130 = vector.broadcast %129 : f32 to vector<8x256xf32>
    %131 = arith.mulf %128, %130 : vector<8x256xf32>
    %132 = arith.addf %123, %131 : vector<8x256xf32>
    %c118 = arith.constant 118 : index
    %133 = memref.load %arg2[%c118] : memref<216xf32, #tpu.memory_space<smem>>
    %134 = vector.broadcast %133 : f32 to vector<8x256xf32>
    %135 = arith.mulf %128, %134 : vector<8x256xf32>
    %136 = arith.addf %127, %135 : vector<8x256xf32>
    %137 = vector.extract_strided_slice %117 {offsets = [0, 17], sizes = [8, 256], strides = [1, 1]} : vector<8x320xf32> to vector<8x256xf32>
    %138 = arith.mulf %137, %24 : vector<8x256xf32>
    %c11 = arith.constant 11 : index
    %139 = memref.load %arg2[%c11] : memref<216xf32, #tpu.memory_space<smem>>
    %140 = vector.broadcast %139 : f32 to vector<8x256xf32>
    %141 = arith.mulf %138, %140 : vector<8x256xf32>
    %142 = arith.addf %132, %141 : vector<8x256xf32>
    %c119 = arith.constant 119 : index
    %143 = memref.load %arg2[%c119] : memref<216xf32, #tpu.memory_space<smem>>
    %144 = vector.broadcast %143 : f32 to vector<8x256xf32>
    %145 = arith.mulf %138, %144 : vector<8x256xf32>
    %146 = arith.addf %136, %145 : vector<8x256xf32>
    %147 = vector.extract_strided_slice %117 {offsets = [0, 31], sizes = [8, 256], strides = [1, 1]} : vector<8x320xf32> to vector<8x256xf32>
    %148 = arith.mulf %147, %20 : vector<8x256xf32>
    %c12 = arith.constant 12 : index
    %149 = memref.load %arg2[%c12] : memref<216xf32, #tpu.memory_space<smem>>
    %150 = vector.broadcast %149 : f32 to vector<8x256xf32>
    %151 = arith.mulf %148, %150 : vector<8x256xf32>
    %152 = arith.addf %142, %151 : vector<8x256xf32>
    %c120 = arith.constant 120 : index
    %153 = memref.load %arg2[%c120] : memref<216xf32, #tpu.memory_space<smem>>
    %154 = vector.broadcast %153 : f32 to vector<8x256xf32>
    %155 = arith.mulf %148, %154 : vector<8x256xf32>
    %156 = arith.addf %146, %155 : vector<8x256xf32>
    %157 = vector.extract_strided_slice %117 {offsets = [0, 32], sizes = [8, 256], strides = [1, 1]} : vector<8x320xf32> to vector<8x256xf32>
    %c13 = arith.constant 13 : index
    %158 = memref.load %arg2[%c13] : memref<216xf32, #tpu.memory_space<smem>>
    %159 = vector.broadcast %158 : f32 to vector<8x256xf32>
    %160 = arith.mulf %157, %159 : vector<8x256xf32>
    %161 = arith.addf %152, %160 : vector<8x256xf32>
    %c121 = arith.constant 121 : index
    %162 = memref.load %arg2[%c121] : memref<216xf32, #tpu.memory_space<smem>>
    %163 = vector.broadcast %162 : f32 to vector<8x256xf32>
    %164 = arith.mulf %157, %163 : vector<8x256xf32>
    %165 = arith.addf %156, %164 : vector<8x256xf32>
    %166 = vector.extract_strided_slice %117 {offsets = [0, 33], sizes = [8, 256], strides = [1, 1]} : vector<8x320xf32> to vector<8x256xf32>
    %167 = arith.mulf %166, %24 : vector<8x256xf32>
    %c14 = arith.constant 14 : index
    %168 = memref.load %arg2[%c14] : memref<216xf32, #tpu.memory_space<smem>>
    %169 = vector.broadcast %168 : f32 to vector<8x256xf32>
    %170 = arith.mulf %167, %169 : vector<8x256xf32>
    %171 = arith.addf %161, %170 : vector<8x256xf32>
    %c122 = arith.constant 122 : index
    %172 = memref.load %arg2[%c122] : memref<216xf32, #tpu.memory_space<smem>>
    %173 = vector.broadcast %172 : f32 to vector<8x256xf32>
    %174 = arith.mulf %167, %173 : vector<8x256xf32>
    %175 = arith.addf %165, %174 : vector<8x256xf32>
    %176 = vector.extract_strided_slice %117 {offsets = [0, 47], sizes = [8, 256], strides = [1, 1]} : vector<8x320xf32> to vector<8x256xf32>
    %177 = arith.mulf %176, %20 : vector<8x256xf32>
    %c15 = arith.constant 15 : index
    %178 = memref.load %arg2[%c15] : memref<216xf32, #tpu.memory_space<smem>>
    %179 = vector.broadcast %178 : f32 to vector<8x256xf32>
    %180 = arith.mulf %177, %179 : vector<8x256xf32>
    %181 = arith.addf %171, %180 : vector<8x256xf32>
    %c123 = arith.constant 123 : index
    %182 = memref.load %arg2[%c123] : memref<216xf32, #tpu.memory_space<smem>>
    %183 = vector.broadcast %182 : f32 to vector<8x256xf32>
    %184 = arith.mulf %177, %183 : vector<8x256xf32>
    %185 = arith.addf %175, %184 : vector<8x256xf32>
    %186 = vector.extract_strided_slice %117 {offsets = [0, 48], sizes = [8, 256], strides = [1, 1]} : vector<8x320xf32> to vector<8x256xf32>
    %c16 = arith.constant 16 : index
    %187 = memref.load %arg2[%c16] : memref<216xf32, #tpu.memory_space<smem>>
    %188 = vector.broadcast %187 : f32 to vector<8x256xf32>
    %189 = arith.mulf %186, %188 : vector<8x256xf32>
    %190 = arith.addf %181, %189 : vector<8x256xf32>
    %c124 = arith.constant 124 : index
    %191 = memref.load %arg2[%c124] : memref<216xf32, #tpu.memory_space<smem>>
    %192 = vector.broadcast %191 : f32 to vector<8x256xf32>
    %193 = arith.mulf %186, %192 : vector<8x256xf32>
    %194 = arith.addf %185, %193 : vector<8x256xf32>
    %195 = vector.extract_strided_slice %117 {offsets = [0, 49], sizes = [8, 256], strides = [1, 1]} : vector<8x320xf32> to vector<8x256xf32>
    %196 = arith.mulf %195, %24 : vector<8x256xf32>
    %c17 = arith.constant 17 : index
    %197 = memref.load %arg2[%c17] : memref<216xf32, #tpu.memory_space<smem>>
    %198 = vector.broadcast %197 : f32 to vector<8x256xf32>
    %199 = arith.mulf %196, %198 : vector<8x256xf32>
    %200 = arith.addf %190, %199 : vector<8x256xf32>
    %c125 = arith.constant 125 : index
    %201 = memref.load %arg2[%c125] : memref<216xf32, #tpu.memory_space<smem>>
    %202 = vector.broadcast %201 : f32 to vector<8x256xf32>
    %203 = arith.mulf %196, %202 : vector<8x256xf32>
    %204 = arith.addf %194, %203 : vector<8x256xf32>
    %c0_13 = arith.constant 0 : index
    %c0_14 = arith.constant 0 : index
    %c2_15 = arith.constant 2 : index
    %c0_16 = arith.constant 0 : index
    %205 = vector.load %arg1[%c0_13, %c0_14, %c2_15, %c0_16] : memref<1x4x10x320xf32, #tpu.memory_space<vmem>>, vector<1x1x8x320xf32>
    %206 = vector.shape_cast %205 : vector<1x1x8x320xf32> to vector<8x320xf32>
    %207 = vector.extract_strided_slice %206 {offsets = [0, 15], sizes = [8, 256], strides = [1, 1]} : vector<8x320xf32> to vector<8x256xf32>
    %208 = arith.mulf %207, %20 : vector<8x256xf32>
    %c18 = arith.constant 18 : index
    %209 = memref.load %arg2[%c18] : memref<216xf32, #tpu.memory_space<smem>>
    %210 = vector.broadcast %209 : f32 to vector<8x256xf32>
    %211 = arith.mulf %208, %210 : vector<8x256xf32>
    %212 = arith.addf %200, %211 : vector<8x256xf32>
    %c126 = arith.constant 126 : index
    %213 = memref.load %arg2[%c126] : memref<216xf32, #tpu.memory_space<smem>>
    %214 = vector.broadcast %213 : f32 to vector<8x256xf32>
    %215 = arith.mulf %208, %214 : vector<8x256xf32>
    %216 = arith.addf %204, %215 : vector<8x256xf32>
    %217 = vector.extract_strided_slice %206 {offsets = [0, 16], sizes = [8, 256], strides = [1, 1]} : vector<8x320xf32> to vector<8x256xf32>
    %c19 = arith.constant 19 : index
    %218 = memref.load %arg2[%c19] : memref<216xf32, #tpu.memory_space<smem>>
    %219 = vector.broadcast %218 : f32 to vector<8x256xf32>
    %220 = arith.mulf %217, %219 : vector<8x256xf32>
    %221 = arith.addf %212, %220 : vector<8x256xf32>
    %c127 = arith.constant 127 : index
    %222 = memref.load %arg2[%c127] : memref<216xf32, #tpu.memory_space<smem>>
    %223 = vector.broadcast %222 : f32 to vector<8x256xf32>
    %224 = arith.mulf %217, %223 : vector<8x256xf32>
    %225 = arith.addf %216, %224 : vector<8x256xf32>
    %226 = vector.extract_strided_slice %206 {offsets = [0, 17], sizes = [8, 256], strides = [1, 1]} : vector<8x320xf32> to vector<8x256xf32>
    %227 = arith.mulf %226, %24 : vector<8x256xf32>
    %c20 = arith.constant 20 : index
    %228 = memref.load %arg2[%c20] : memref<216xf32, #tpu.memory_space<smem>>
    %229 = vector.broadcast %228 : f32 to vector<8x256xf32>
    %230 = arith.mulf %227, %229 : vector<8x256xf32>
    %231 = arith.addf %221, %230 : vector<8x256xf32>
    %c128 = arith.constant 128 : index
    %232 = memref.load %arg2[%c128] : memref<216xf32, #tpu.memory_space<smem>>
    %233 = vector.broadcast %232 : f32 to vector<8x256xf32>
    %234 = arith.mulf %227, %233 : vector<8x256xf32>
    %235 = arith.addf %225, %234 : vector<8x256xf32>
    %236 = vector.extract_strided_slice %206 {offsets = [0, 31], sizes = [8, 256], strides = [1, 1]} : vector<8x320xf32> to vector<8x256xf32>
    %237 = arith.mulf %236, %20 : vector<8x256xf32>
    %c21 = arith.constant 21 : index
    %238 = memref.load %arg2[%c21] : memref<216xf32, #tpu.memory_space<smem>>
    %239 = vector.broadcast %238 : f32 to vector<8x256xf32>
    %240 = arith.mulf %237, %239 : vector<8x256xf32>
    %241 = arith.addf %231, %240 : vector<8x256xf32>
    %c129 = arith.constant 129 : index
    %242 = memref.load %arg2[%c129] : memref<216xf32, #tpu.memory_space<smem>>
    %243 = vector.broadcast %242 : f32 to vector<8x256xf32>
    %244 = arith.mulf %237, %243 : vector<8x256xf32>
    %245 = arith.addf %235, %244 : vector<8x256xf32>
    %246 = vector.extract_strided_slice %206 {offsets = [0, 32], sizes = [8, 256], strides = [1, 1]} : vector<8x320xf32> to vector<8x256xf32>
    %c22 = arith.constant 22 : index
    %247 = memref.load %arg2[%c22] : memref<216xf32, #tpu.memory_space<smem>>
    %248 = vector.broadcast %247 : f32 to vector<8x256xf32>
    %249 = arith.mulf %246, %248 : vector<8x256xf32>
    %250 = arith.addf %241, %249 : vector<8x256xf32>
    %c130 = arith.constant 130 : index
    %251 = memref.load %arg2[%c130] : memref<216xf32, #tpu.memory_space<smem>>
    %252 = vector.broadcast %251 : f32 to vector<8x256xf32>
    %253 = arith.mulf %246, %252 : vector<8x256xf32>
    %254 = arith.addf %245, %253 : vector<8x256xf32>
    %255 = vector.extract_strided_slice %206 {offsets = [0, 33], sizes = [8, 256], strides = [1, 1]} : vector<8x320xf32> to vector<8x256xf32>
    %256 = arith.mulf %255, %24 : vector<8x256xf32>
    %c23 = arith.constant 23 : index
    %257 = memref.load %arg2[%c23] : memref<216xf32, #tpu.memory_space<smem>>
    %258 = vector.broadcast %257 : f32 to vector<8x256xf32>
    %259 = arith.mulf %256, %258 : vector<8x256xf32>
    %260 = arith.addf %250, %259 : vector<8x256xf32>
    %c131 = arith.constant 131 : index
    %261 = memref.load %arg2[%c131] : memref<216xf32, #tpu.memory_space<smem>>
    %262 = vector.broadcast %261 : f32 to vector<8x256xf32>
    %263 = arith.mulf %256, %262 : vector<8x256xf32>
    %264 = arith.addf %254, %263 : vector<8x256xf32>
    %265 = vector.extract_strided_slice %206 {offsets = [0, 47], sizes = [8, 256], strides = [1, 1]} : vector<8x320xf32> to vector<8x256xf32>
    %266 = arith.mulf %265, %20 : vector<8x256xf32>
    %c24 = arith.constant 24 : index
    %267 = memref.load %arg2[%c24] : memref<216xf32, #tpu.memory_space<smem>>
    %268 = vector.broadcast %267 : f32 to vector<8x256xf32>
    %269 = arith.mulf %266, %268 : vector<8x256xf32>
    %270 = arith.addf %260, %269 : vector<8x256xf32>
    %c132 = arith.constant 132 : index
    %271 = memref.load %arg2[%c132] : memref<216xf32, #tpu.memory_space<smem>>
    %272 = vector.broadcast %271 : f32 to vector<8x256xf32>
    %273 = arith.mulf %266, %272 : vector<8x256xf32>
    %274 = arith.addf %264, %273 : vector<8x256xf32>
    %275 = vector.extract_strided_slice %206 {offsets = [0, 48], sizes = [8, 256], strides = [1, 1]} : vector<8x320xf32> to vector<8x256xf32>
    %c25 = arith.constant 25 : index
    %276 = memref.load %arg2[%c25] : memref<216xf32, #tpu.memory_space<smem>>
    %277 = vector.broadcast %276 : f32 to vector<8x256xf32>
    %278 = arith.mulf %275, %277 : vector<8x256xf32>
    %279 = arith.addf %270, %278 : vector<8x256xf32>
    %c133 = arith.constant 133 : index
    %280 = memref.load %arg2[%c133] : memref<216xf32, #tpu.memory_space<smem>>
    %281 = vector.broadcast %280 : f32 to vector<8x256xf32>
    %282 = arith.mulf %275, %281 : vector<8x256xf32>
    %283 = arith.addf %274, %282 : vector<8x256xf32>
    %284 = vector.extract_strided_slice %206 {offsets = [0, 49], sizes = [8, 256], strides = [1, 1]} : vector<8x320xf32> to vector<8x256xf32>
    %285 = arith.mulf %284, %24 : vector<8x256xf32>
    %c26 = arith.constant 26 : index
    %286 = memref.load %arg2[%c26] : memref<216xf32, #tpu.memory_space<smem>>
    %287 = vector.broadcast %286 : f32 to vector<8x256xf32>
    %288 = arith.mulf %285, %287 : vector<8x256xf32>
    %289 = arith.addf %279, %288 : vector<8x256xf32>
    %c134 = arith.constant 134 : index
    %290 = memref.load %arg2[%c134] : memref<216xf32, #tpu.memory_space<smem>>
    %291 = vector.broadcast %290 : f32 to vector<8x256xf32>
    %292 = arith.mulf %285, %291 : vector<8x256xf32>
    %293 = arith.addf %283, %292 : vector<8x256xf32>
    %c0_17 = arith.constant 0 : index
    %c1_18 = arith.constant 1 : index
    %c0_19 = arith.constant 0 : index
    %c0_20 = arith.constant 0 : index
    %294 = vector.load %arg1[%c0_17, %c1_18, %c0_19, %c0_20] : memref<1x4x10x320xf32, #tpu.memory_space<vmem>>, vector<1x1x8x320xf32>
    %295 = vector.shape_cast %294 : vector<1x1x8x320xf32> to vector<8x320xf32>
    %296 = vector.extract_strided_slice %295 {offsets = [0, 15], sizes = [8, 256], strides = [1, 1]} : vector<8x320xf32> to vector<8x256xf32>
    %297 = arith.mulf %296, %20 : vector<8x256xf32>
    %c27 = arith.constant 27 : index
    %298 = memref.load %arg2[%c27] : memref<216xf32, #tpu.memory_space<smem>>
    %299 = vector.broadcast %298 : f32 to vector<8x256xf32>
    %300 = arith.mulf %297, %299 : vector<8x256xf32>
    %301 = arith.addf %289, %300 : vector<8x256xf32>
    %c135 = arith.constant 135 : index
    %302 = memref.load %arg2[%c135] : memref<216xf32, #tpu.memory_space<smem>>
    %303 = vector.broadcast %302 : f32 to vector<8x256xf32>
    %304 = arith.mulf %297, %303 : vector<8x256xf32>
    %305 = arith.addf %293, %304 : vector<8x256xf32>
    %306 = vector.extract_strided_slice %295 {offsets = [0, 16], sizes = [8, 256], strides = [1, 1]} : vector<8x320xf32> to vector<8x256xf32>
    %c28 = arith.constant 28 : index
    %307 = memref.load %arg2[%c28] : memref<216xf32, #tpu.memory_space<smem>>
    %308 = vector.broadcast %307 : f32 to vector<8x256xf32>
    %309 = arith.mulf %306, %308 : vector<8x256xf32>
    %310 = arith.addf %301, %309 : vector<8x256xf32>
    %c136 = arith.constant 136 : index
    %311 = memref.load %arg2[%c136] : memref<216xf32, #tpu.memory_space<smem>>
    %312 = vector.broadcast %311 : f32 to vector<8x256xf32>
    %313 = arith.mulf %306, %312 : vector<8x256xf32>
    %314 = arith.addf %305, %313 : vector<8x256xf32>
    %315 = vector.extract_strided_slice %295 {offsets = [0, 17], sizes = [8, 256], strides = [1, 1]} : vector<8x320xf32> to vector<8x256xf32>
    %316 = arith.mulf %315, %24 : vector<8x256xf32>
    %c29 = arith.constant 29 : index
    %317 = memref.load %arg2[%c29] : memref<216xf32, #tpu.memory_space<smem>>
    %318 = vector.broadcast %317 : f32 to vector<8x256xf32>
    %319 = arith.mulf %316, %318 : vector<8x256xf32>
    %320 = arith.addf %310, %319 : vector<8x256xf32>
    %c137 = arith.constant 137 : index
    %321 = memref.load %arg2[%c137] : memref<216xf32, #tpu.memory_space<smem>>
    %322 = vector.broadcast %321 : f32 to vector<8x256xf32>
    %323 = arith.mulf %316, %322 : vector<8x256xf32>
    %324 = arith.addf %314, %323 : vector<8x256xf32>
    %325 = vector.extract_strided_slice %295 {offsets = [0, 31], sizes = [8, 256], strides = [1, 1]} : vector<8x320xf32> to vector<8x256xf32>
    %326 = arith.mulf %325, %20 : vector<8x256xf32>
    %c30 = arith.constant 30 : index
    %327 = memref.load %arg2[%c30] : memref<216xf32, #tpu.memory_space<smem>>
    %328 = vector.broadcast %327 : f32 to vector<8x256xf32>
    %329 = arith.mulf %326, %328 : vector<8x256xf32>
    %330 = arith.addf %320, %329 : vector<8x256xf32>
    %c138 = arith.constant 138 : index
    %331 = memref.load %arg2[%c138] : memref<216xf32, #tpu.memory_space<smem>>
    %332 = vector.broadcast %331 : f32 to vector<8x256xf32>
    %333 = arith.mulf %326, %332 : vector<8x256xf32>
    %334 = arith.addf %324, %333 : vector<8x256xf32>
    %335 = vector.extract_strided_slice %295 {offsets = [0, 32], sizes = [8, 256], strides = [1, 1]} : vector<8x320xf32> to vector<8x256xf32>
    %c31 = arith.constant 31 : index
    %336 = memref.load %arg2[%c31] : memref<216xf32, #tpu.memory_space<smem>>
    %337 = vector.broadcast %336 : f32 to vector<8x256xf32>
    %338 = arith.mulf %335, %337 : vector<8x256xf32>
    %339 = arith.addf %330, %338 : vector<8x256xf32>
    %c139 = arith.constant 139 : index
    %340 = memref.load %arg2[%c139] : memref<216xf32, #tpu.memory_space<smem>>
    %341 = vector.broadcast %340 : f32 to vector<8x256xf32>
    %342 = arith.mulf %335, %341 : vector<8x256xf32>
    %343 = arith.addf %334, %342 : vector<8x256xf32>
    %344 = vector.extract_strided_slice %295 {offsets = [0, 33], sizes = [8, 256], strides = [1, 1]} : vector<8x320xf32> to vector<8x256xf32>
    %345 = arith.mulf %344, %24 : vector<8x256xf32>
    %c32 = arith.constant 32 : index
    %346 = memref.load %arg2[%c32] : memref<216xf32, #tpu.memory_space<smem>>
    %347 = vector.broadcast %346 : f32 to vector<8x256xf32>
    %348 = arith.mulf %345, %347 : vector<8x256xf32>
    %349 = arith.addf %339, %348 : vector<8x256xf32>
    %c140 = arith.constant 140 : index
    %350 = memref.load %arg2[%c140] : memref<216xf32, #tpu.memory_space<smem>>
    %351 = vector.broadcast %350 : f32 to vector<8x256xf32>
    %352 = arith.mulf %345, %351 : vector<8x256xf32>
    %353 = arith.addf %343, %352 : vector<8x256xf32>
    %354 = vector.extract_strided_slice %295 {offsets = [0, 47], sizes = [8, 256], strides = [1, 1]} : vector<8x320xf32> to vector<8x256xf32>
    %355 = arith.mulf %354, %20 : vector<8x256xf32>
    %c33 = arith.constant 33 : index
    %356 = memref.load %arg2[%c33] : memref<216xf32, #tpu.memory_space<smem>>
    %357 = vector.broadcast %356 : f32 to vector<8x256xf32>
    %358 = arith.mulf %355, %357 : vector<8x256xf32>
    %359 = arith.addf %349, %358 : vector<8x256xf32>
    %c141 = arith.constant 141 : index
    %360 = memref.load %arg2[%c141] : memref<216xf32, #tpu.memory_space<smem>>
    %361 = vector.broadcast %360 : f32 to vector<8x256xf32>
    %362 = arith.mulf %355, %361 : vector<8x256xf32>
    %363 = arith.addf %353, %362 : vector<8x256xf32>
    %364 = vector.extract_strided_slice %295 {offsets = [0, 48], sizes = [8, 256], strides = [1, 1]} : vector<8x320xf32> to vector<8x256xf32>
    %c34 = arith.constant 34 : index
    %365 = memref.load %arg2[%c34] : memref<216xf32, #tpu.memory_space<smem>>
    %366 = vector.broadcast %365 : f32 to vector<8x256xf32>
    %367 = arith.mulf %364, %366 : vector<8x256xf32>
    %368 = arith.addf %359, %367 : vector<8x256xf32>
    %c142 = arith.constant 142 : index
    %369 = memref.load %arg2[%c142] : memref<216xf32, #tpu.memory_space<smem>>
    %370 = vector.broadcast %369 : f32 to vector<8x256xf32>
    %371 = arith.mulf %364, %370 : vector<8x256xf32>
    %372 = arith.addf %363, %371 : vector<8x256xf32>
    %373 = vector.extract_strided_slice %295 {offsets = [0, 49], sizes = [8, 256], strides = [1, 1]} : vector<8x320xf32> to vector<8x256xf32>
    %374 = arith.mulf %373, %24 : vector<8x256xf32>
    %c35 = arith.constant 35 : index
    %375 = memref.load %arg2[%c35] : memref<216xf32, #tpu.memory_space<smem>>
    %376 = vector.broadcast %375 : f32 to vector<8x256xf32>
    %377 = arith.mulf %374, %376 : vector<8x256xf32>
    %378 = arith.addf %368, %377 : vector<8x256xf32>
    %c143 = arith.constant 143 : index
    %379 = memref.load %arg2[%c143] : memref<216xf32, #tpu.memory_space<smem>>
    %380 = vector.broadcast %379 : f32 to vector<8x256xf32>
    %381 = arith.mulf %374, %380 : vector<8x256xf32>
    %382 = arith.addf %372, %381 : vector<8x256xf32>
    %c0_21 = arith.constant 0 : index
    %c1_22 = arith.constant 1 : index
    %c1_23 = arith.constant 1 : index
    %c0_24 = arith.constant 0 : index
    %383 = vector.load %arg1[%c0_21, %c1_22, %c1_23, %c0_24] : memref<1x4x10x320xf32, #tpu.memory_space<vmem>>, vector<1x1x8x320xf32>
    %384 = vector.shape_cast %383 : vector<1x1x8x320xf32> to vector<8x320xf32>
    %385 = vector.extract_strided_slice %384 {offsets = [0, 15], sizes = [8, 256], strides = [1, 1]} : vector<8x320xf32> to vector<8x256xf32>
    %386 = arith.mulf %385, %20 : vector<8x256xf32>
    %c36 = arith.constant 36 : index
    %387 = memref.load %arg2[%c36] : memref<216xf32, #tpu.memory_space<smem>>
    %388 = vector.broadcast %387 : f32 to vector<8x256xf32>
    %389 = arith.mulf %386, %388 : vector<8x256xf32>
    %390 = arith.addf %378, %389 : vector<8x256xf32>
    %c144 = arith.constant 144 : index
    %391 = memref.load %arg2[%c144] : memref<216xf32, #tpu.memory_space<smem>>
    %392 = vector.broadcast %391 : f32 to vector<8x256xf32>
    %393 = arith.mulf %386, %392 : vector<8x256xf32>
    %394 = arith.addf %382, %393 : vector<8x256xf32>
    %395 = vector.extract_strided_slice %384 {offsets = [0, 16], sizes = [8, 256], strides = [1, 1]} : vector<8x320xf32> to vector<8x256xf32>
    %c37 = arith.constant 37 : index
    %396 = memref.load %arg2[%c37] : memref<216xf32, #tpu.memory_space<smem>>
    %397 = vector.broadcast %396 : f32 to vector<8x256xf32>
    %398 = arith.mulf %395, %397 : vector<8x256xf32>
    %399 = arith.addf %390, %398 : vector<8x256xf32>
    %c145 = arith.constant 145 : index
    %400 = memref.load %arg2[%c145] : memref<216xf32, #tpu.memory_space<smem>>
    %401 = vector.broadcast %400 : f32 to vector<8x256xf32>
    %402 = arith.mulf %395, %401 : vector<8x256xf32>
    %403 = arith.addf %394, %402 : vector<8x256xf32>
    %404 = vector.extract_strided_slice %384 {offsets = [0, 17], sizes = [8, 256], strides = [1, 1]} : vector<8x320xf32> to vector<8x256xf32>
    %405 = arith.mulf %404, %24 : vector<8x256xf32>
    %c38 = arith.constant 38 : index
    %406 = memref.load %arg2[%c38] : memref<216xf32, #tpu.memory_space<smem>>
    %407 = vector.broadcast %406 : f32 to vector<8x256xf32>
    %408 = arith.mulf %405, %407 : vector<8x256xf32>
    %409 = arith.addf %399, %408 : vector<8x256xf32>
    %c146 = arith.constant 146 : index
    %410 = memref.load %arg2[%c146] : memref<216xf32, #tpu.memory_space<smem>>
    %411 = vector.broadcast %410 : f32 to vector<8x256xf32>
    %412 = arith.mulf %405, %411 : vector<8x256xf32>
    %413 = arith.addf %403, %412 : vector<8x256xf32>
    %414 = vector.extract_strided_slice %384 {offsets = [0, 31], sizes = [8, 256], strides = [1, 1]} : vector<8x320xf32> to vector<8x256xf32>
    %415 = arith.mulf %414, %20 : vector<8x256xf32>
    %c39 = arith.constant 39 : index
    %416 = memref.load %arg2[%c39] : memref<216xf32, #tpu.memory_space<smem>>
    %417 = vector.broadcast %416 : f32 to vector<8x256xf32>
    %418 = arith.mulf %415, %417 : vector<8x256xf32>
    %419 = arith.addf %409, %418 : vector<8x256xf32>
    %c147 = arith.constant 147 : index
    %420 = memref.load %arg2[%c147] : memref<216xf32, #tpu.memory_space<smem>>
    %421 = vector.broadcast %420 : f32 to vector<8x256xf32>
    %422 = arith.mulf %415, %421 : vector<8x256xf32>
    %423 = arith.addf %413, %422 : vector<8x256xf32>
    %424 = vector.extract_strided_slice %384 {offsets = [0, 32], sizes = [8, 256], strides = [1, 1]} : vector<8x320xf32> to vector<8x256xf32>
    %c40 = arith.constant 40 : index
    %425 = memref.load %arg2[%c40] : memref<216xf32, #tpu.memory_space<smem>>
    %426 = vector.broadcast %425 : f32 to vector<8x256xf32>
    %427 = arith.mulf %424, %426 : vector<8x256xf32>
    %428 = arith.addf %419, %427 : vector<8x256xf32>
    %c148 = arith.constant 148 : index
    %429 = memref.load %arg2[%c148] : memref<216xf32, #tpu.memory_space<smem>>
    %430 = vector.broadcast %429 : f32 to vector<8x256xf32>
    %431 = arith.mulf %424, %430 : vector<8x256xf32>
    %432 = arith.addf %423, %431 : vector<8x256xf32>
    %433 = vector.extract_strided_slice %384 {offsets = [0, 33], sizes = [8, 256], strides = [1, 1]} : vector<8x320xf32> to vector<8x256xf32>
    %434 = arith.mulf %433, %24 : vector<8x256xf32>
    %c41 = arith.constant 41 : index
    %435 = memref.load %arg2[%c41] : memref<216xf32, #tpu.memory_space<smem>>
    %436 = vector.broadcast %435 : f32 to vector<8x256xf32>
    %437 = arith.mulf %434, %436 : vector<8x256xf32>
    %438 = arith.addf %428, %437 : vector<8x256xf32>
    %c149 = arith.constant 149 : index
    %439 = memref.load %arg2[%c149] : memref<216xf32, #tpu.memory_space<smem>>
    %440 = vector.broadcast %439 : f32 to vector<8x256xf32>
    %441 = arith.mulf %434, %440 : vector<8x256xf32>
    %442 = arith.addf %432, %441 : vector<8x256xf32>
    %443 = vector.extract_strided_slice %384 {offsets = [0, 47], sizes = [8, 256], strides = [1, 1]} : vector<8x320xf32> to vector<8x256xf32>
    %444 = arith.mulf %443, %20 : vector<8x256xf32>
    %c42 = arith.constant 42 : index
    %445 = memref.load %arg2[%c42] : memref<216xf32, #tpu.memory_space<smem>>
    %446 = vector.broadcast %445 : f32 to vector<8x256xf32>
    %447 = arith.mulf %444, %446 : vector<8x256xf32>
    %448 = arith.addf %438, %447 : vector<8x256xf32>
    %c150 = arith.constant 150 : index
    %449 = memref.load %arg2[%c150] : memref<216xf32, #tpu.memory_space<smem>>
    %450 = vector.broadcast %449 : f32 to vector<8x256xf32>
    %451 = arith.mulf %444, %450 : vector<8x256xf32>
    %452 = arith.addf %442, %451 : vector<8x256xf32>
    %453 = vector.extract_strided_slice %384 {offsets = [0, 48], sizes = [8, 256], strides = [1, 1]} : vector<8x320xf32> to vector<8x256xf32>
    %c43 = arith.constant 43 : index
    %454 = memref.load %arg2[%c43] : memref<216xf32, #tpu.memory_space<smem>>
    %455 = vector.broadcast %454 : f32 to vector<8x256xf32>
    %456 = arith.mulf %453, %455 : vector<8x256xf32>
    %457 = arith.addf %448, %456 : vector<8x256xf32>
    %c151 = arith.constant 151 : index
    %458 = memref.load %arg2[%c151] : memref<216xf32, #tpu.memory_space<smem>>
    %459 = vector.broadcast %458 : f32 to vector<8x256xf32>
    %460 = arith.mulf %453, %459 : vector<8x256xf32>
    %461 = arith.addf %452, %460 : vector<8x256xf32>
    %462 = vector.extract_strided_slice %384 {offsets = [0, 49], sizes = [8, 256], strides = [1, 1]} : vector<8x320xf32> to vector<8x256xf32>
    %463 = arith.mulf %462, %24 : vector<8x256xf32>
    %c44 = arith.constant 44 : index
    %464 = memref.load %arg2[%c44] : memref<216xf32, #tpu.memory_space<smem>>
    %465 = vector.broadcast %464 : f32 to vector<8x256xf32>
    %466 = arith.mulf %463, %465 : vector<8x256xf32>
    %467 = arith.addf %457, %466 : vector<8x256xf32>
    %c152 = arith.constant 152 : index
    %468 = memref.load %arg2[%c152] : memref<216xf32, #tpu.memory_space<smem>>
    %469 = vector.broadcast %468 : f32 to vector<8x256xf32>
    %470 = arith.mulf %463, %469 : vector<8x256xf32>
    %471 = arith.addf %461, %470 : vector<8x256xf32>
    %c0_25 = arith.constant 0 : index
    %c1_26 = arith.constant 1 : index
    %c2_27 = arith.constant 2 : index
    %c0_28 = arith.constant 0 : index
    %472 = vector.load %arg1[%c0_25, %c1_26, %c2_27, %c0_28] : memref<1x4x10x320xf32, #tpu.memory_space<vmem>>, vector<1x1x8x320xf32>
    %473 = vector.shape_cast %472 : vector<1x1x8x320xf32> to vector<8x320xf32>
    %474 = vector.extract_strided_slice %473 {offsets = [0, 15], sizes = [8, 256], strides = [1, 1]} : vector<8x320xf32> to vector<8x256xf32>
    %475 = arith.mulf %474, %20 : vector<8x256xf32>
    %c45 = arith.constant 45 : index
    %476 = memref.load %arg2[%c45] : memref<216xf32, #tpu.memory_space<smem>>
    %477 = vector.broadcast %476 : f32 to vector<8x256xf32>
    %478 = arith.mulf %475, %477 : vector<8x256xf32>
    %479 = arith.addf %467, %478 : vector<8x256xf32>
    %c153 = arith.constant 153 : index
    %480 = memref.load %arg2[%c153] : memref<216xf32, #tpu.memory_space<smem>>
    %481 = vector.broadcast %480 : f32 to vector<8x256xf32>
    %482 = arith.mulf %475, %481 : vector<8x256xf32>
    %483 = arith.addf %471, %482 : vector<8x256xf32>
    %484 = vector.extract_strided_slice %473 {offsets = [0, 16], sizes = [8, 256], strides = [1, 1]} : vector<8x320xf32> to vector<8x256xf32>
    %c46 = arith.constant 46 : index
    %485 = memref.load %arg2[%c46] : memref<216xf32, #tpu.memory_space<smem>>
    %486 = vector.broadcast %485 : f32 to vector<8x256xf32>
    %487 = arith.mulf %484, %486 : vector<8x256xf32>
    %488 = arith.addf %479, %487 : vector<8x256xf32>
    %c154 = arith.constant 154 : index
    %489 = memref.load %arg2[%c154] : memref<216xf32, #tpu.memory_space<smem>>
    %490 = vector.broadcast %489 : f32 to vector<8x256xf32>
    %491 = arith.mulf %484, %490 : vector<8x256xf32>
    %492 = arith.addf %483, %491 : vector<8x256xf32>
    %493 = vector.extract_strided_slice %473 {offsets = [0, 17], sizes = [8, 256], strides = [1, 1]} : vector<8x320xf32> to vector<8x256xf32>
    %494 = arith.mulf %493, %24 : vector<8x256xf32>
    %c47 = arith.constant 47 : index
    %495 = memref.load %arg2[%c47] : memref<216xf32, #tpu.memory_space<smem>>
    %496 = vector.broadcast %495 : f32 to vector<8x256xf32>
    %497 = arith.mulf %494, %496 : vector<8x256xf32>
    %498 = arith.addf %488, %497 : vector<8x256xf32>
    %c155 = arith.constant 155 : index
    %499 = memref.load %arg2[%c155] : memref<216xf32, #tpu.memory_space<smem>>
    %500 = vector.broadcast %499 : f32 to vector<8x256xf32>
    %501 = arith.mulf %494, %500 : vector<8x256xf32>
    %502 = arith.addf %492, %501 : vector<8x256xf32>
    %503 = vector.extract_strided_slice %473 {offsets = [0, 31], sizes = [8, 256], strides = [1, 1]} : vector<8x320xf32> to vector<8x256xf32>
    %504 = arith.mulf %503, %20 : vector<8x256xf32>
    %c48 = arith.constant 48 : index
    %505 = memref.load %arg2[%c48] : memref<216xf32, #tpu.memory_space<smem>>
    %506 = vector.broadcast %505 : f32 to vector<8x256xf32>
    %507 = arith.mulf %504, %506 : vector<8x256xf32>
    %508 = arith.addf %498, %507 : vector<8x256xf32>
    %c156 = arith.constant 156 : index
    %509 = memref.load %arg2[%c156] : memref<216xf32, #tpu.memory_space<smem>>
    %510 = vector.broadcast %509 : f32 to vector<8x256xf32>
    %511 = arith.mulf %504, %510 : vector<8x256xf32>
    %512 = arith.addf %502, %511 : vector<8x256xf32>
    %513 = vector.extract_strided_slice %473 {offsets = [0, 32], sizes = [8, 256], strides = [1, 1]} : vector<8x320xf32> to vector<8x256xf32>
    %c49 = arith.constant 49 : index
    %514 = memref.load %arg2[%c49] : memref<216xf32, #tpu.memory_space<smem>>
    %515 = vector.broadcast %514 : f32 to vector<8x256xf32>
    %516 = arith.mulf %513, %515 : vector<8x256xf32>
    %517 = arith.addf %508, %516 : vector<8x256xf32>
    %c157 = arith.constant 157 : index
    %518 = memref.load %arg2[%c157] : memref<216xf32, #tpu.memory_space<smem>>
    %519 = vector.broadcast %518 : f32 to vector<8x256xf32>
    %520 = arith.mulf %513, %519 : vector<8x256xf32>
    %521 = arith.addf %512, %520 : vector<8x256xf32>
    %522 = vector.extract_strided_slice %473 {offsets = [0, 33], sizes = [8, 256], strides = [1, 1]} : vector<8x320xf32> to vector<8x256xf32>
    %523 = arith.mulf %522, %24 : vector<8x256xf32>
    %c50 = arith.constant 50 : index
    %524 = memref.load %arg2[%c50] : memref<216xf32, #tpu.memory_space<smem>>
    %525 = vector.broadcast %524 : f32 to vector<8x256xf32>
    %526 = arith.mulf %523, %525 : vector<8x256xf32>
    %527 = arith.addf %517, %526 : vector<8x256xf32>
    %c158 = arith.constant 158 : index
    %528 = memref.load %arg2[%c158] : memref<216xf32, #tpu.memory_space<smem>>
    %529 = vector.broadcast %528 : f32 to vector<8x256xf32>
    %530 = arith.mulf %523, %529 : vector<8x256xf32>
    %531 = arith.addf %521, %530 : vector<8x256xf32>
    %532 = vector.extract_strided_slice %473 {offsets = [0, 47], sizes = [8, 256], strides = [1, 1]} : vector<8x320xf32> to vector<8x256xf32>
    %533 = arith.mulf %532, %20 : vector<8x256xf32>
    %c51 = arith.constant 51 : index
    %534 = memref.load %arg2[%c51] : memref<216xf32, #tpu.memory_space<smem>>
    %535 = vector.broadcast %534 : f32 to vector<8x256xf32>
    %536 = arith.mulf %533, %535 : vector<8x256xf32>
    %537 = arith.addf %527, %536 : vector<8x256xf32>
    %c159 = arith.constant 159 : index
    %538 = memref.load %arg2[%c159] : memref<216xf32, #tpu.memory_space<smem>>
    %539 = vector.broadcast %538 : f32 to vector<8x256xf32>
    %540 = arith.mulf %533, %539 : vector<8x256xf32>
    %541 = arith.addf %531, %540 : vector<8x256xf32>
    %542 = vector.extract_strided_slice %473 {offsets = [0, 48], sizes = [8, 256], strides = [1, 1]} : vector<8x320xf32> to vector<8x256xf32>
    %c52 = arith.constant 52 : index
    %543 = memref.load %arg2[%c52] : memref<216xf32, #tpu.memory_space<smem>>
    %544 = vector.broadcast %543 : f32 to vector<8x256xf32>
    %545 = arith.mulf %542, %544 : vector<8x256xf32>
    %546 = arith.addf %537, %545 : vector<8x256xf32>
    %c160 = arith.constant 160 : index
    %547 = memref.load %arg2[%c160] : memref<216xf32, #tpu.memory_space<smem>>
    %548 = vector.broadcast %547 : f32 to vector<8x256xf32>
    %549 = arith.mulf %542, %548 : vector<8x256xf32>
    %550 = arith.addf %541, %549 : vector<8x256xf32>
    %551 = vector.extract_strided_slice %473 {offsets = [0, 49], sizes = [8, 256], strides = [1, 1]} : vector<8x320xf32> to vector<8x256xf32>
    %552 = arith.mulf %551, %24 : vector<8x256xf32>
    %c53 = arith.constant 53 : index
    %553 = memref.load %arg2[%c53] : memref<216xf32, #tpu.memory_space<smem>>
    %554 = vector.broadcast %553 : f32 to vector<8x256xf32>
    %555 = arith.mulf %552, %554 : vector<8x256xf32>
    %556 = arith.addf %546, %555 : vector<8x256xf32>
    %c161 = arith.constant 161 : index
    %557 = memref.load %arg2[%c161] : memref<216xf32, #tpu.memory_space<smem>>
    %558 = vector.broadcast %557 : f32 to vector<8x256xf32>
    %559 = arith.mulf %552, %558 : vector<8x256xf32>
    %560 = arith.addf %550, %559 : vector<8x256xf32>
    %c0_29 = arith.constant 0 : index
    %c2_30 = arith.constant 2 : index
    %c0_31 = arith.constant 0 : index
    %c0_32 = arith.constant 0 : index
    %561 = vector.load %arg1[%c0_29, %c2_30, %c0_31, %c0_32] : memref<1x4x10x320xf32, #tpu.memory_space<vmem>>, vector<1x1x8x320xf32>
    %562 = vector.shape_cast %561 : vector<1x1x8x320xf32> to vector<8x320xf32>
    %563 = vector.extract_strided_slice %562 {offsets = [0, 15], sizes = [8, 256], strides = [1, 1]} : vector<8x320xf32> to vector<8x256xf32>
    %564 = arith.mulf %563, %20 : vector<8x256xf32>
    %c54 = arith.constant 54 : index
    %565 = memref.load %arg2[%c54] : memref<216xf32, #tpu.memory_space<smem>>
    %566 = vector.broadcast %565 : f32 to vector<8x256xf32>
    %567 = arith.mulf %564, %566 : vector<8x256xf32>
    %568 = arith.addf %556, %567 : vector<8x256xf32>
    %c162 = arith.constant 162 : index
    %569 = memref.load %arg2[%c162] : memref<216xf32, #tpu.memory_space<smem>>
    %570 = vector.broadcast %569 : f32 to vector<8x256xf32>
    %571 = arith.mulf %564, %570 : vector<8x256xf32>
    %572 = arith.addf %560, %571 : vector<8x256xf32>
    %573 = vector.extract_strided_slice %562 {offsets = [0, 16], sizes = [8, 256], strides = [1, 1]} : vector<8x320xf32> to vector<8x256xf32>
    %c55 = arith.constant 55 : index
    %574 = memref.load %arg2[%c55] : memref<216xf32, #tpu.memory_space<smem>>
    %575 = vector.broadcast %574 : f32 to vector<8x256xf32>
    %576 = arith.mulf %573, %575 : vector<8x256xf32>
    %577 = arith.addf %568, %576 : vector<8x256xf32>
    %c163 = arith.constant 163 : index
    %578 = memref.load %arg2[%c163] : memref<216xf32, #tpu.memory_space<smem>>
    %579 = vector.broadcast %578 : f32 to vector<8x256xf32>
    %580 = arith.mulf %573, %579 : vector<8x256xf32>
    %581 = arith.addf %572, %580 : vector<8x256xf32>
    %582 = vector.extract_strided_slice %562 {offsets = [0, 17], sizes = [8, 256], strides = [1, 1]} : vector<8x320xf32> to vector<8x256xf32>
    %583 = arith.mulf %582, %24 : vector<8x256xf32>
    %c56 = arith.constant 56 : index
    %584 = memref.load %arg2[%c56] : memref<216xf32, #tpu.memory_space<smem>>
    %585 = vector.broadcast %584 : f32 to vector<8x256xf32>
    %586 = arith.mulf %583, %585 : vector<8x256xf32>
    %587 = arith.addf %577, %586 : vector<8x256xf32>
    %c164 = arith.constant 164 : index
    %588 = memref.load %arg2[%c164] : memref<216xf32, #tpu.memory_space<smem>>
    %589 = vector.broadcast %588 : f32 to vector<8x256xf32>
    %590 = arith.mulf %583, %589 : vector<8x256xf32>
    %591 = arith.addf %581, %590 : vector<8x256xf32>
    %592 = vector.extract_strided_slice %562 {offsets = [0, 31], sizes = [8, 256], strides = [1, 1]} : vector<8x320xf32> to vector<8x256xf32>
    %593 = arith.mulf %592, %20 : vector<8x256xf32>
    %c57 = arith.constant 57 : index
    %594 = memref.load %arg2[%c57] : memref<216xf32, #tpu.memory_space<smem>>
    %595 = vector.broadcast %594 : f32 to vector<8x256xf32>
    %596 = arith.mulf %593, %595 : vector<8x256xf32>
    %597 = arith.addf %587, %596 : vector<8x256xf32>
    %c165 = arith.constant 165 : index
    %598 = memref.load %arg2[%c165] : memref<216xf32, #tpu.memory_space<smem>>
    %599 = vector.broadcast %598 : f32 to vector<8x256xf32>
    %600 = arith.mulf %593, %599 : vector<8x256xf32>
    %601 = arith.addf %591, %600 : vector<8x256xf32>
    %602 = vector.extract_strided_slice %562 {offsets = [0, 32], sizes = [8, 256], strides = [1, 1]} : vector<8x320xf32> to vector<8x256xf32>
    %c58 = arith.constant 58 : index
    %603 = memref.load %arg2[%c58] : memref<216xf32, #tpu.memory_space<smem>>
    %604 = vector.broadcast %603 : f32 to vector<8x256xf32>
    %605 = arith.mulf %602, %604 : vector<8x256xf32>
    %606 = arith.addf %597, %605 : vector<8x256xf32>
    %c166 = arith.constant 166 : index
    %607 = memref.load %arg2[%c166] : memref<216xf32, #tpu.memory_space<smem>>
    %608 = vector.broadcast %607 : f32 to vector<8x256xf32>
    %609 = arith.mulf %602, %608 : vector<8x256xf32>
    %610 = arith.addf %601, %609 : vector<8x256xf32>
    %611 = vector.extract_strided_slice %562 {offsets = [0, 33], sizes = [8, 256], strides = [1, 1]} : vector<8x320xf32> to vector<8x256xf32>
    %612 = arith.mulf %611, %24 : vector<8x256xf32>
    %c59 = arith.constant 59 : index
    %613 = memref.load %arg2[%c59] : memref<216xf32, #tpu.memory_space<smem>>
    %614 = vector.broadcast %613 : f32 to vector<8x256xf32>
    %615 = arith.mulf %612, %614 : vector<8x256xf32>
    %616 = arith.addf %606, %615 : vector<8x256xf32>
    %c167 = arith.constant 167 : index
    %617 = memref.load %arg2[%c167] : memref<216xf32, #tpu.memory_space<smem>>
    %618 = vector.broadcast %617 : f32 to vector<8x256xf32>
    %619 = arith.mulf %612, %618 : vector<8x256xf32>
    %620 = arith.addf %610, %619 : vector<8x256xf32>
    %621 = vector.extract_strided_slice %562 {offsets = [0, 47], sizes = [8, 256], strides = [1, 1]} : vector<8x320xf32> to vector<8x256xf32>
    %622 = arith.mulf %621, %20 : vector<8x256xf32>
    %c60 = arith.constant 60 : index
    %623 = memref.load %arg2[%c60] : memref<216xf32, #tpu.memory_space<smem>>
    %624 = vector.broadcast %623 : f32 to vector<8x256xf32>
    %625 = arith.mulf %622, %624 : vector<8x256xf32>
    %626 = arith.addf %616, %625 : vector<8x256xf32>
    %c168 = arith.constant 168 : index
    %627 = memref.load %arg2[%c168] : memref<216xf32, #tpu.memory_space<smem>>
    %628 = vector.broadcast %627 : f32 to vector<8x256xf32>
    %629 = arith.mulf %622, %628 : vector<8x256xf32>
    %630 = arith.addf %620, %629 : vector<8x256xf32>
    %631 = vector.extract_strided_slice %562 {offsets = [0, 48], sizes = [8, 256], strides = [1, 1]} : vector<8x320xf32> to vector<8x256xf32>
    %c61 = arith.constant 61 : index
    %632 = memref.load %arg2[%c61] : memref<216xf32, #tpu.memory_space<smem>>
    %633 = vector.broadcast %632 : f32 to vector<8x256xf32>
    %634 = arith.mulf %631, %633 : vector<8x256xf32>
    %635 = arith.addf %626, %634 : vector<8x256xf32>
    %c169 = arith.constant 169 : index
    %636 = memref.load %arg2[%c169] : memref<216xf32, #tpu.memory_space<smem>>
    %637 = vector.broadcast %636 : f32 to vector<8x256xf32>
    %638 = arith.mulf %631, %637 : vector<8x256xf32>
    %639 = arith.addf %630, %638 : vector<8x256xf32>
    %640 = vector.extract_strided_slice %562 {offsets = [0, 49], sizes = [8, 256], strides = [1, 1]} : vector<8x320xf32> to vector<8x256xf32>
    %641 = arith.mulf %640, %24 : vector<8x256xf32>
    %c62 = arith.constant 62 : index
    %642 = memref.load %arg2[%c62] : memref<216xf32, #tpu.memory_space<smem>>
    %643 = vector.broadcast %642 : f32 to vector<8x256xf32>
    %644 = arith.mulf %641, %643 : vector<8x256xf32>
    %645 = arith.addf %635, %644 : vector<8x256xf32>
    %c170 = arith.constant 170 : index
    %646 = memref.load %arg2[%c170] : memref<216xf32, #tpu.memory_space<smem>>
    %647 = vector.broadcast %646 : f32 to vector<8x256xf32>
    %648 = arith.mulf %641, %647 : vector<8x256xf32>
    %649 = arith.addf %639, %648 : vector<8x256xf32>
    %c0_33 = arith.constant 0 : index
    %c2_34 = arith.constant 2 : index
    %c1_35 = arith.constant 1 : index
    %c0_36 = arith.constant 0 : index
    %650 = vector.load %arg1[%c0_33, %c2_34, %c1_35, %c0_36] : memref<1x4x10x320xf32, #tpu.memory_space<vmem>>, vector<1x1x8x320xf32>
    %651 = vector.shape_cast %650 : vector<1x1x8x320xf32> to vector<8x320xf32>
    %652 = vector.extract_strided_slice %651 {offsets = [0, 15], sizes = [8, 256], strides = [1, 1]} : vector<8x320xf32> to vector<8x256xf32>
    %653 = arith.mulf %652, %20 : vector<8x256xf32>
    %c63 = arith.constant 63 : index
    %654 = memref.load %arg2[%c63] : memref<216xf32, #tpu.memory_space<smem>>
    %655 = vector.broadcast %654 : f32 to vector<8x256xf32>
    %656 = arith.mulf %653, %655 : vector<8x256xf32>
    %657 = arith.addf %645, %656 : vector<8x256xf32>
    %c171 = arith.constant 171 : index
    %658 = memref.load %arg2[%c171] : memref<216xf32, #tpu.memory_space<smem>>
    %659 = vector.broadcast %658 : f32 to vector<8x256xf32>
    %660 = arith.mulf %653, %659 : vector<8x256xf32>
    %661 = arith.addf %649, %660 : vector<8x256xf32>
    %662 = vector.extract_strided_slice %651 {offsets = [0, 16], sizes = [8, 256], strides = [1, 1]} : vector<8x320xf32> to vector<8x256xf32>
    %c64 = arith.constant 64 : index
    %663 = memref.load %arg2[%c64] : memref<216xf32, #tpu.memory_space<smem>>
    %664 = vector.broadcast %663 : f32 to vector<8x256xf32>
    %665 = arith.mulf %662, %664 : vector<8x256xf32>
    %666 = arith.addf %657, %665 : vector<8x256xf32>
    %c172 = arith.constant 172 : index
    %667 = memref.load %arg2[%c172] : memref<216xf32, #tpu.memory_space<smem>>
    %668 = vector.broadcast %667 : f32 to vector<8x256xf32>
    %669 = arith.mulf %662, %668 : vector<8x256xf32>
    %670 = arith.addf %661, %669 : vector<8x256xf32>
    %671 = vector.extract_strided_slice %651 {offsets = [0, 17], sizes = [8, 256], strides = [1, 1]} : vector<8x320xf32> to vector<8x256xf32>
    %672 = arith.mulf %671, %24 : vector<8x256xf32>
    %c65 = arith.constant 65 : index
    %673 = memref.load %arg2[%c65] : memref<216xf32, #tpu.memory_space<smem>>
    %674 = vector.broadcast %673 : f32 to vector<8x256xf32>
    %675 = arith.mulf %672, %674 : vector<8x256xf32>
    %676 = arith.addf %666, %675 : vector<8x256xf32>
    %c173 = arith.constant 173 : index
    %677 = memref.load %arg2[%c173] : memref<216xf32, #tpu.memory_space<smem>>
    %678 = vector.broadcast %677 : f32 to vector<8x256xf32>
    %679 = arith.mulf %672, %678 : vector<8x256xf32>
    %680 = arith.addf %670, %679 : vector<8x256xf32>
    %681 = vector.extract_strided_slice %651 {offsets = [0, 31], sizes = [8, 256], strides = [1, 1]} : vector<8x320xf32> to vector<8x256xf32>
    %682 = arith.mulf %681, %20 : vector<8x256xf32>
    %c66 = arith.constant 66 : index
    %683 = memref.load %arg2[%c66] : memref<216xf32, #tpu.memory_space<smem>>
    %684 = vector.broadcast %683 : f32 to vector<8x256xf32>
    %685 = arith.mulf %682, %684 : vector<8x256xf32>
    %686 = arith.addf %676, %685 : vector<8x256xf32>
    %c174 = arith.constant 174 : index
    %687 = memref.load %arg2[%c174] : memref<216xf32, #tpu.memory_space<smem>>
    %688 = vector.broadcast %687 : f32 to vector<8x256xf32>
    %689 = arith.mulf %682, %688 : vector<8x256xf32>
    %690 = arith.addf %680, %689 : vector<8x256xf32>
    %691 = vector.extract_strided_slice %651 {offsets = [0, 32], sizes = [8, 256], strides = [1, 1]} : vector<8x320xf32> to vector<8x256xf32>
    %c67 = arith.constant 67 : index
    %692 = memref.load %arg2[%c67] : memref<216xf32, #tpu.memory_space<smem>>
    %693 = vector.broadcast %692 : f32 to vector<8x256xf32>
    %694 = arith.mulf %691, %693 : vector<8x256xf32>
    %695 = arith.addf %686, %694 : vector<8x256xf32>
    %c175 = arith.constant 175 : index
    %696 = memref.load %arg2[%c175] : memref<216xf32, #tpu.memory_space<smem>>
    %697 = vector.broadcast %696 : f32 to vector<8x256xf32>
    %698 = arith.mulf %691, %697 : vector<8x256xf32>
    %699 = arith.addf %690, %698 : vector<8x256xf32>
    %700 = vector.extract_strided_slice %651 {offsets = [0, 33], sizes = [8, 256], strides = [1, 1]} : vector<8x320xf32> to vector<8x256xf32>
    %701 = arith.mulf %700, %24 : vector<8x256xf32>
    %c68 = arith.constant 68 : index
    %702 = memref.load %arg2[%c68] : memref<216xf32, #tpu.memory_space<smem>>
    %703 = vector.broadcast %702 : f32 to vector<8x256xf32>
    %704 = arith.mulf %701, %703 : vector<8x256xf32>
    %705 = arith.addf %695, %704 : vector<8x256xf32>
    %c176 = arith.constant 176 : index
    %706 = memref.load %arg2[%c176] : memref<216xf32, #tpu.memory_space<smem>>
    %707 = vector.broadcast %706 : f32 to vector<8x256xf32>
    %708 = arith.mulf %701, %707 : vector<8x256xf32>
    %709 = arith.addf %699, %708 : vector<8x256xf32>
    %710 = vector.extract_strided_slice %651 {offsets = [0, 47], sizes = [8, 256], strides = [1, 1]} : vector<8x320xf32> to vector<8x256xf32>
    %711 = arith.mulf %710, %20 : vector<8x256xf32>
    %c69 = arith.constant 69 : index
    %712 = memref.load %arg2[%c69] : memref<216xf32, #tpu.memory_space<smem>>
    %713 = vector.broadcast %712 : f32 to vector<8x256xf32>
    %714 = arith.mulf %711, %713 : vector<8x256xf32>
    %715 = arith.addf %705, %714 : vector<8x256xf32>
    %c177 = arith.constant 177 : index
    %716 = memref.load %arg2[%c177] : memref<216xf32, #tpu.memory_space<smem>>
    %717 = vector.broadcast %716 : f32 to vector<8x256xf32>
    %718 = arith.mulf %711, %717 : vector<8x256xf32>
    %719 = arith.addf %709, %718 : vector<8x256xf32>
    %720 = vector.extract_strided_slice %651 {offsets = [0, 48], sizes = [8, 256], strides = [1, 1]} : vector<8x320xf32> to vector<8x256xf32>
    %c70 = arith.constant 70 : index
    %721 = memref.load %arg2[%c70] : memref<216xf32, #tpu.memory_space<smem>>
    %722 = vector.broadcast %721 : f32 to vector<8x256xf32>
    %723 = arith.mulf %720, %722 : vector<8x256xf32>
    %724 = arith.addf %715, %723 : vector<8x256xf32>
    %c178 = arith.constant 178 : index
    %725 = memref.load %arg2[%c178] : memref<216xf32, #tpu.memory_space<smem>>
    %726 = vector.broadcast %725 : f32 to vector<8x256xf32>
    %727 = arith.mulf %720, %726 : vector<8x256xf32>
    %728 = arith.addf %719, %727 : vector<8x256xf32>
    %729 = vector.extract_strided_slice %651 {offsets = [0, 49], sizes = [8, 256], strides = [1, 1]} : vector<8x320xf32> to vector<8x256xf32>
    %730 = arith.mulf %729, %24 : vector<8x256xf32>
    %c71 = arith.constant 71 : index
    %731 = memref.load %arg2[%c71] : memref<216xf32, #tpu.memory_space<smem>>
    %732 = vector.broadcast %731 : f32 to vector<8x256xf32>
    %733 = arith.mulf %730, %732 : vector<8x256xf32>
    %734 = arith.addf %724, %733 : vector<8x256xf32>
    %c179 = arith.constant 179 : index
    %735 = memref.load %arg2[%c179] : memref<216xf32, #tpu.memory_space<smem>>
    %736 = vector.broadcast %735 : f32 to vector<8x256xf32>
    %737 = arith.mulf %730, %736 : vector<8x256xf32>
    %738 = arith.addf %728, %737 : vector<8x256xf32>
    %c0_37 = arith.constant 0 : index
    %c2_38 = arith.constant 2 : index
    %c2_39 = arith.constant 2 : index
    %c0_40 = arith.constant 0 : index
    %739 = vector.load %arg1[%c0_37, %c2_38, %c2_39, %c0_40] : memref<1x4x10x320xf32, #tpu.memory_space<vmem>>, vector<1x1x8x320xf32>
    %740 = vector.shape_cast %739 : vector<1x1x8x320xf32> to vector<8x320xf32>
    %741 = vector.extract_strided_slice %740 {offsets = [0, 15], sizes = [8, 256], strides = [1, 1]} : vector<8x320xf32> to vector<8x256xf32>
    %742 = arith.mulf %741, %20 : vector<8x256xf32>
    %c72 = arith.constant 72 : index
    %743 = memref.load %arg2[%c72] : memref<216xf32, #tpu.memory_space<smem>>
    %744 = vector.broadcast %743 : f32 to vector<8x256xf32>
    %745 = arith.mulf %742, %744 : vector<8x256xf32>
    %746 = arith.addf %734, %745 : vector<8x256xf32>
    %c180 = arith.constant 180 : index
    %747 = memref.load %arg2[%c180] : memref<216xf32, #tpu.memory_space<smem>>
    %748 = vector.broadcast %747 : f32 to vector<8x256xf32>
    %749 = arith.mulf %742, %748 : vector<8x256xf32>
    %750 = arith.addf %738, %749 : vector<8x256xf32>
    %751 = vector.extract_strided_slice %740 {offsets = [0, 16], sizes = [8, 256], strides = [1, 1]} : vector<8x320xf32> to vector<8x256xf32>
    %c73 = arith.constant 73 : index
    %752 = memref.load %arg2[%c73] : memref<216xf32, #tpu.memory_space<smem>>
    %753 = vector.broadcast %752 : f32 to vector<8x256xf32>
    %754 = arith.mulf %751, %753 : vector<8x256xf32>
    %755 = arith.addf %746, %754 : vector<8x256xf32>
    %c181 = arith.constant 181 : index
    %756 = memref.load %arg2[%c181] : memref<216xf32, #tpu.memory_space<smem>>
    %757 = vector.broadcast %756 : f32 to vector<8x256xf32>
    %758 = arith.mulf %751, %757 : vector<8x256xf32>
    %759 = arith.addf %750, %758 : vector<8x256xf32>
    %760 = vector.extract_strided_slice %740 {offsets = [0, 17], sizes = [8, 256], strides = [1, 1]} : vector<8x320xf32> to vector<8x256xf32>
    %761 = arith.mulf %760, %24 : vector<8x256xf32>
    %c74 = arith.constant 74 : index
    %762 = memref.load %arg2[%c74] : memref<216xf32, #tpu.memory_space<smem>>
    %763 = vector.broadcast %762 : f32 to vector<8x256xf32>
    %764 = arith.mulf %761, %763 : vector<8x256xf32>
    %765 = arith.addf %755, %764 : vector<8x256xf32>
    %c182 = arith.constant 182 : index
    %766 = memref.load %arg2[%c182] : memref<216xf32, #tpu.memory_space<smem>>
    %767 = vector.broadcast %766 : f32 to vector<8x256xf32>
    %768 = arith.mulf %761, %767 : vector<8x256xf32>
    %769 = arith.addf %759, %768 : vector<8x256xf32>
    %770 = vector.extract_strided_slice %740 {offsets = [0, 31], sizes = [8, 256], strides = [1, 1]} : vector<8x320xf32> to vector<8x256xf32>
    %771 = arith.mulf %770, %20 : vector<8x256xf32>
    %c75 = arith.constant 75 : index
    %772 = memref.load %arg2[%c75] : memref<216xf32, #tpu.memory_space<smem>>
    %773 = vector.broadcast %772 : f32 to vector<8x256xf32>
    %774 = arith.mulf %771, %773 : vector<8x256xf32>
    %775 = arith.addf %765, %774 : vector<8x256xf32>
    %c183 = arith.constant 183 : index
    %776 = memref.load %arg2[%c183] : memref<216xf32, #tpu.memory_space<smem>>
    %777 = vector.broadcast %776 : f32 to vector<8x256xf32>
    %778 = arith.mulf %771, %777 : vector<8x256xf32>
    %779 = arith.addf %769, %778 : vector<8x256xf32>
    %780 = vector.extract_strided_slice %740 {offsets = [0, 32], sizes = [8, 256], strides = [1, 1]} : vector<8x320xf32> to vector<8x256xf32>
    %c76 = arith.constant 76 : index
    %781 = memref.load %arg2[%c76] : memref<216xf32, #tpu.memory_space<smem>>
    %782 = vector.broadcast %781 : f32 to vector<8x256xf32>
    %783 = arith.mulf %780, %782 : vector<8x256xf32>
    %784 = arith.addf %775, %783 : vector<8x256xf32>
    %c184 = arith.constant 184 : index
    %785 = memref.load %arg2[%c184] : memref<216xf32, #tpu.memory_space<smem>>
    %786 = vector.broadcast %785 : f32 to vector<8x256xf32>
    %787 = arith.mulf %780, %786 : vector<8x256xf32>
    %788 = arith.addf %779, %787 : vector<8x256xf32>
    %789 = vector.extract_strided_slice %740 {offsets = [0, 33], sizes = [8, 256], strides = [1, 1]} : vector<8x320xf32> to vector<8x256xf32>
    %790 = arith.mulf %789, %24 : vector<8x256xf32>
    %c77 = arith.constant 77 : index
    %791 = memref.load %arg2[%c77] : memref<216xf32, #tpu.memory_space<smem>>
    %792 = vector.broadcast %791 : f32 to vector<8x256xf32>
    %793 = arith.mulf %790, %792 : vector<8x256xf32>
    %794 = arith.addf %784, %793 : vector<8x256xf32>
    %c185 = arith.constant 185 : index
    %795 = memref.load %arg2[%c185] : memref<216xf32, #tpu.memory_space<smem>>
    %796 = vector.broadcast %795 : f32 to vector<8x256xf32>
    %797 = arith.mulf %790, %796 : vector<8x256xf32>
    %798 = arith.addf %788, %797 : vector<8x256xf32>
    %799 = vector.extract_strided_slice %740 {offsets = [0, 47], sizes = [8, 256], strides = [1, 1]} : vector<8x320xf32> to vector<8x256xf32>
    %800 = arith.mulf %799, %20 : vector<8x256xf32>
    %c78 = arith.constant 78 : index
    %801 = memref.load %arg2[%c78] : memref<216xf32, #tpu.memory_space<smem>>
    %802 = vector.broadcast %801 : f32 to vector<8x256xf32>
    %803 = arith.mulf %800, %802 : vector<8x256xf32>
    %804 = arith.addf %794, %803 : vector<8x256xf32>
    %c186 = arith.constant 186 : index
    %805 = memref.load %arg2[%c186] : memref<216xf32, #tpu.memory_space<smem>>
    %806 = vector.broadcast %805 : f32 to vector<8x256xf32>
    %807 = arith.mulf %800, %806 : vector<8x256xf32>
    %808 = arith.addf %798, %807 : vector<8x256xf32>
    %809 = vector.extract_strided_slice %740 {offsets = [0, 48], sizes = [8, 256], strides = [1, 1]} : vector<8x320xf32> to vector<8x256xf32>
    %c79 = arith.constant 79 : index
    %810 = memref.load %arg2[%c79] : memref<216xf32, #tpu.memory_space<smem>>
    %811 = vector.broadcast %810 : f32 to vector<8x256xf32>
    %812 = arith.mulf %809, %811 : vector<8x256xf32>
    %813 = arith.addf %804, %812 : vector<8x256xf32>
    %c187 = arith.constant 187 : index
    %814 = memref.load %arg2[%c187] : memref<216xf32, #tpu.memory_space<smem>>
    %815 = vector.broadcast %814 : f32 to vector<8x256xf32>
    %816 = arith.mulf %809, %815 : vector<8x256xf32>
    %817 = arith.addf %808, %816 : vector<8x256xf32>
    %818 = vector.extract_strided_slice %740 {offsets = [0, 49], sizes = [8, 256], strides = [1, 1]} : vector<8x320xf32> to vector<8x256xf32>
    %819 = arith.mulf %818, %24 : vector<8x256xf32>
    %c80 = arith.constant 80 : index
    %820 = memref.load %arg2[%c80] : memref<216xf32, #tpu.memory_space<smem>>
    %821 = vector.broadcast %820 : f32 to vector<8x256xf32>
    %822 = arith.mulf %819, %821 : vector<8x256xf32>
    %823 = arith.addf %813, %822 : vector<8x256xf32>
    %c188 = arith.constant 188 : index
    %824 = memref.load %arg2[%c188] : memref<216xf32, #tpu.memory_space<smem>>
    %825 = vector.broadcast %824 : f32 to vector<8x256xf32>
    %826 = arith.mulf %819, %825 : vector<8x256xf32>
    %827 = arith.addf %817, %826 : vector<8x256xf32>
    %c0_41 = arith.constant 0 : index
    %c3_42 = arith.constant 3 : index
    %c0_43 = arith.constant 0 : index
    %c0_44 = arith.constant 0 : index
    %828 = vector.load %arg1[%c0_41, %c3_42, %c0_43, %c0_44] : memref<1x4x10x320xf32, #tpu.memory_space<vmem>>, vector<1x1x8x320xf32>
    %829 = vector.shape_cast %828 : vector<1x1x8x320xf32> to vector<8x320xf32>
    %830 = vector.extract_strided_slice %829 {offsets = [0, 15], sizes = [8, 256], strides = [1, 1]} : vector<8x320xf32> to vector<8x256xf32>
    %831 = arith.mulf %830, %20 : vector<8x256xf32>
    %c81 = arith.constant 81 : index
    %832 = memref.load %arg2[%c81] : memref<216xf32, #tpu.memory_space<smem>>
    %833 = vector.broadcast %832 : f32 to vector<8x256xf32>
    %834 = arith.mulf %831, %833 : vector<8x256xf32>
    %835 = arith.addf %823, %834 : vector<8x256xf32>
    %c189 = arith.constant 189 : index
    %836 = memref.load %arg2[%c189] : memref<216xf32, #tpu.memory_space<smem>>
    %837 = vector.broadcast %836 : f32 to vector<8x256xf32>
    %838 = arith.mulf %831, %837 : vector<8x256xf32>
    %839 = arith.addf %827, %838 : vector<8x256xf32>
    %840 = vector.extract_strided_slice %829 {offsets = [0, 16], sizes = [8, 256], strides = [1, 1]} : vector<8x320xf32> to vector<8x256xf32>
    %c82 = arith.constant 82 : index
    %841 = memref.load %arg2[%c82] : memref<216xf32, #tpu.memory_space<smem>>
    %842 = vector.broadcast %841 : f32 to vector<8x256xf32>
    %843 = arith.mulf %840, %842 : vector<8x256xf32>
    %844 = arith.addf %835, %843 : vector<8x256xf32>
    %c190 = arith.constant 190 : index
    %845 = memref.load %arg2[%c190] : memref<216xf32, #tpu.memory_space<smem>>
    %846 = vector.broadcast %845 : f32 to vector<8x256xf32>
    %847 = arith.mulf %840, %846 : vector<8x256xf32>
    %848 = arith.addf %839, %847 : vector<8x256xf32>
    %849 = vector.extract_strided_slice %829 {offsets = [0, 17], sizes = [8, 256], strides = [1, 1]} : vector<8x320xf32> to vector<8x256xf32>
    %850 = arith.mulf %849, %24 : vector<8x256xf32>
    %c83 = arith.constant 83 : index
    %851 = memref.load %arg2[%c83] : memref<216xf32, #tpu.memory_space<smem>>
    %852 = vector.broadcast %851 : f32 to vector<8x256xf32>
    %853 = arith.mulf %850, %852 : vector<8x256xf32>
    %854 = arith.addf %844, %853 : vector<8x256xf32>
    %c191 = arith.constant 191 : index
    %855 = memref.load %arg2[%c191] : memref<216xf32, #tpu.memory_space<smem>>
    %856 = vector.broadcast %855 : f32 to vector<8x256xf32>
    %857 = arith.mulf %850, %856 : vector<8x256xf32>
    %858 = arith.addf %848, %857 : vector<8x256xf32>
    %859 = vector.extract_strided_slice %829 {offsets = [0, 31], sizes = [8, 256], strides = [1, 1]} : vector<8x320xf32> to vector<8x256xf32>
    %860 = arith.mulf %859, %20 : vector<8x256xf32>
    %c84 = arith.constant 84 : index
    %861 = memref.load %arg2[%c84] : memref<216xf32, #tpu.memory_space<smem>>
    %862 = vector.broadcast %861 : f32 to vector<8x256xf32>
    %863 = arith.mulf %860, %862 : vector<8x256xf32>
    %864 = arith.addf %854, %863 : vector<8x256xf32>
    %c192 = arith.constant 192 : index
    %865 = memref.load %arg2[%c192] : memref<216xf32, #tpu.memory_space<smem>>
    %866 = vector.broadcast %865 : f32 to vector<8x256xf32>
    %867 = arith.mulf %860, %866 : vector<8x256xf32>
    %868 = arith.addf %858, %867 : vector<8x256xf32>
    %869 = vector.extract_strided_slice %829 {offsets = [0, 32], sizes = [8, 256], strides = [1, 1]} : vector<8x320xf32> to vector<8x256xf32>
    %c85 = arith.constant 85 : index
    %870 = memref.load %arg2[%c85] : memref<216xf32, #tpu.memory_space<smem>>
    %871 = vector.broadcast %870 : f32 to vector<8x256xf32>
    %872 = arith.mulf %869, %871 : vector<8x256xf32>
    %873 = arith.addf %864, %872 : vector<8x256xf32>
    %c193 = arith.constant 193 : index
    %874 = memref.load %arg2[%c193] : memref<216xf32, #tpu.memory_space<smem>>
    %875 = vector.broadcast %874 : f32 to vector<8x256xf32>
    %876 = arith.mulf %869, %875 : vector<8x256xf32>
    %877 = arith.addf %868, %876 : vector<8x256xf32>
    %878 = vector.extract_strided_slice %829 {offsets = [0, 33], sizes = [8, 256], strides = [1, 1]} : vector<8x320xf32> to vector<8x256xf32>
    %879 = arith.mulf %878, %24 : vector<8x256xf32>
    %c86 = arith.constant 86 : index
    %880 = memref.load %arg2[%c86] : memref<216xf32, #tpu.memory_space<smem>>
    %881 = vector.broadcast %880 : f32 to vector<8x256xf32>
    %882 = arith.mulf %879, %881 : vector<8x256xf32>
    %883 = arith.addf %873, %882 : vector<8x256xf32>
    %c194 = arith.constant 194 : index
    %884 = memref.load %arg2[%c194] : memref<216xf32, #tpu.memory_space<smem>>
    %885 = vector.broadcast %884 : f32 to vector<8x256xf32>
    %886 = arith.mulf %879, %885 : vector<8x256xf32>
    %887 = arith.addf %877, %886 : vector<8x256xf32>
    %888 = vector.extract_strided_slice %829 {offsets = [0, 47], sizes = [8, 256], strides = [1, 1]} : vector<8x320xf32> to vector<8x256xf32>
    %889 = arith.mulf %888, %20 : vector<8x256xf32>
    %c87 = arith.constant 87 : index
    %890 = memref.load %arg2[%c87] : memref<216xf32, #tpu.memory_space<smem>>
    %891 = vector.broadcast %890 : f32 to vector<8x256xf32>
    %892 = arith.mulf %889, %891 : vector<8x256xf32>
    %893 = arith.addf %883, %892 : vector<8x256xf32>
    %c195 = arith.constant 195 : index
    %894 = memref.load %arg2[%c195] : memref<216xf32, #tpu.memory_space<smem>>
    %895 = vector.broadcast %894 : f32 to vector<8x256xf32>
    %896 = arith.mulf %889, %895 : vector<8x256xf32>
    %897 = arith.addf %887, %896 : vector<8x256xf32>
    %898 = vector.extract_strided_slice %829 {offsets = [0, 48], sizes = [8, 256], strides = [1, 1]} : vector<8x320xf32> to vector<8x256xf32>
    %c88 = arith.constant 88 : index
    %899 = memref.load %arg2[%c88] : memref<216xf32, #tpu.memory_space<smem>>
    %900 = vector.broadcast %899 : f32 to vector<8x256xf32>
    %901 = arith.mulf %898, %900 : vector<8x256xf32>
    %902 = arith.addf %893, %901 : vector<8x256xf32>
    %c196 = arith.constant 196 : index
    %903 = memref.load %arg2[%c196] : memref<216xf32, #tpu.memory_space<smem>>
    %904 = vector.broadcast %903 : f32 to vector<8x256xf32>
    %905 = arith.mulf %898, %904 : vector<8x256xf32>
    %906 = arith.addf %897, %905 : vector<8x256xf32>
    %907 = vector.extract_strided_slice %829 {offsets = [0, 49], sizes = [8, 256], strides = [1, 1]} : vector<8x320xf32> to vector<8x256xf32>
    %908 = arith.mulf %907, %24 : vector<8x256xf32>
    %c89 = arith.constant 89 : index
    %909 = memref.load %arg2[%c89] : memref<216xf32, #tpu.memory_space<smem>>
    %910 = vector.broadcast %909 : f32 to vector<8x256xf32>
    %911 = arith.mulf %908, %910 : vector<8x256xf32>
    %912 = arith.addf %902, %911 : vector<8x256xf32>
    %c197 = arith.constant 197 : index
    %913 = memref.load %arg2[%c197] : memref<216xf32, #tpu.memory_space<smem>>
    %914 = vector.broadcast %913 : f32 to vector<8x256xf32>
    %915 = arith.mulf %908, %914 : vector<8x256xf32>
    %916 = arith.addf %906, %915 : vector<8x256xf32>
    %c0_45 = arith.constant 0 : index
    %c3_46 = arith.constant 3 : index
    %c1_47 = arith.constant 1 : index
    %c0_48 = arith.constant 0 : index
    %917 = vector.load %arg1[%c0_45, %c3_46, %c1_47, %c0_48] : memref<1x4x10x320xf32, #tpu.memory_space<vmem>>, vector<1x1x8x320xf32>
    %918 = vector.shape_cast %917 : vector<1x1x8x320xf32> to vector<8x320xf32>
    %919 = vector.extract_strided_slice %918 {offsets = [0, 15], sizes = [8, 256], strides = [1, 1]} : vector<8x320xf32> to vector<8x256xf32>
    %920 = arith.mulf %919, %20 : vector<8x256xf32>
    %c90 = arith.constant 90 : index
    %921 = memref.load %arg2[%c90] : memref<216xf32, #tpu.memory_space<smem>>
    %922 = vector.broadcast %921 : f32 to vector<8x256xf32>
    %923 = arith.mulf %920, %922 : vector<8x256xf32>
    %924 = arith.addf %912, %923 : vector<8x256xf32>
    %c198 = arith.constant 198 : index
    %925 = memref.load %arg2[%c198] : memref<216xf32, #tpu.memory_space<smem>>
    %926 = vector.broadcast %925 : f32 to vector<8x256xf32>
    %927 = arith.mulf %920, %926 : vector<8x256xf32>
    %928 = arith.addf %916, %927 : vector<8x256xf32>
    %929 = vector.extract_strided_slice %918 {offsets = [0, 16], sizes = [8, 256], strides = [1, 1]} : vector<8x320xf32> to vector<8x256xf32>
    %c91 = arith.constant 91 : index
    %930 = memref.load %arg2[%c91] : memref<216xf32, #tpu.memory_space<smem>>
    %931 = vector.broadcast %930 : f32 to vector<8x256xf32>
    %932 = arith.mulf %929, %931 : vector<8x256xf32>
    %933 = arith.addf %924, %932 : vector<8x256xf32>
    %c199 = arith.constant 199 : index
    %934 = memref.load %arg2[%c199] : memref<216xf32, #tpu.memory_space<smem>>
    %935 = vector.broadcast %934 : f32 to vector<8x256xf32>
    %936 = arith.mulf %929, %935 : vector<8x256xf32>
    %937 = arith.addf %928, %936 : vector<8x256xf32>
    %938 = vector.extract_strided_slice %918 {offsets = [0, 17], sizes = [8, 256], strides = [1, 1]} : vector<8x320xf32> to vector<8x256xf32>
    %939 = arith.mulf %938, %24 : vector<8x256xf32>
    %c92 = arith.constant 92 : index
    %940 = memref.load %arg2[%c92] : memref<216xf32, #tpu.memory_space<smem>>
    %941 = vector.broadcast %940 : f32 to vector<8x256xf32>
    %942 = arith.mulf %939, %941 : vector<8x256xf32>
    %943 = arith.addf %933, %942 : vector<8x256xf32>
    %c200 = arith.constant 200 : index
    %944 = memref.load %arg2[%c200] : memref<216xf32, #tpu.memory_space<smem>>
    %945 = vector.broadcast %944 : f32 to vector<8x256xf32>
    %946 = arith.mulf %939, %945 : vector<8x256xf32>
    %947 = arith.addf %937, %946 : vector<8x256xf32>
    %948 = vector.extract_strided_slice %918 {offsets = [0, 31], sizes = [8, 256], strides = [1, 1]} : vector<8x320xf32> to vector<8x256xf32>
    %949 = arith.mulf %948, %20 : vector<8x256xf32>
    %c93 = arith.constant 93 : index
    %950 = memref.load %arg2[%c93] : memref<216xf32, #tpu.memory_space<smem>>
    %951 = vector.broadcast %950 : f32 to vector<8x256xf32>
    %952 = arith.mulf %949, %951 : vector<8x256xf32>
    %953 = arith.addf %943, %952 : vector<8x256xf32>
    %c201 = arith.constant 201 : index
    %954 = memref.load %arg2[%c201] : memref<216xf32, #tpu.memory_space<smem>>
    %955 = vector.broadcast %954 : f32 to vector<8x256xf32>
    %956 = arith.mulf %949, %955 : vector<8x256xf32>
    %957 = arith.addf %947, %956 : vector<8x256xf32>
    %958 = vector.extract_strided_slice %918 {offsets = [0, 32], sizes = [8, 256], strides = [1, 1]} : vector<8x320xf32> to vector<8x256xf32>
    %c94 = arith.constant 94 : index
    %959 = memref.load %arg2[%c94] : memref<216xf32, #tpu.memory_space<smem>>
    %960 = vector.broadcast %959 : f32 to vector<8x256xf32>
    %961 = arith.mulf %958, %960 : vector<8x256xf32>
    %962 = arith.addf %953, %961 : vector<8x256xf32>
    %c202 = arith.constant 202 : index
    %963 = memref.load %arg2[%c202] : memref<216xf32, #tpu.memory_space<smem>>
    %964 = vector.broadcast %963 : f32 to vector<8x256xf32>
    %965 = arith.mulf %958, %964 : vector<8x256xf32>
    %966 = arith.addf %957, %965 : vector<8x256xf32>
    %967 = vector.extract_strided_slice %918 {offsets = [0, 33], sizes = [8, 256], strides = [1, 1]} : vector<8x320xf32> to vector<8x256xf32>
    %968 = arith.mulf %967, %24 : vector<8x256xf32>
    %c95 = arith.constant 95 : index
    %969 = memref.load %arg2[%c95] : memref<216xf32, #tpu.memory_space<smem>>
    %970 = vector.broadcast %969 : f32 to vector<8x256xf32>
    %971 = arith.mulf %968, %970 : vector<8x256xf32>
    %972 = arith.addf %962, %971 : vector<8x256xf32>
    %c203 = arith.constant 203 : index
    %973 = memref.load %arg2[%c203] : memref<216xf32, #tpu.memory_space<smem>>
    %974 = vector.broadcast %973 : f32 to vector<8x256xf32>
    %975 = arith.mulf %968, %974 : vector<8x256xf32>
    %976 = arith.addf %966, %975 : vector<8x256xf32>
    %977 = vector.extract_strided_slice %918 {offsets = [0, 47], sizes = [8, 256], strides = [1, 1]} : vector<8x320xf32> to vector<8x256xf32>
    %978 = arith.mulf %977, %20 : vector<8x256xf32>
    %c96 = arith.constant 96 : index
    %979 = memref.load %arg2[%c96] : memref<216xf32, #tpu.memory_space<smem>>
    %980 = vector.broadcast %979 : f32 to vector<8x256xf32>
    %981 = arith.mulf %978, %980 : vector<8x256xf32>
    %982 = arith.addf %972, %981 : vector<8x256xf32>
    %c204 = arith.constant 204 : index
    %983 = memref.load %arg2[%c204] : memref<216xf32, #tpu.memory_space<smem>>
    %984 = vector.broadcast %983 : f32 to vector<8x256xf32>
    %985 = arith.mulf %978, %984 : vector<8x256xf32>
    %986 = arith.addf %976, %985 : vector<8x256xf32>
    %987 = vector.extract_strided_slice %918 {offsets = [0, 48], sizes = [8, 256], strides = [1, 1]} : vector<8x320xf32> to vector<8x256xf32>
    %c97 = arith.constant 97 : index
    %988 = memref.load %arg2[%c97] : memref<216xf32, #tpu.memory_space<smem>>
    %989 = vector.broadcast %988 : f32 to vector<8x256xf32>
    %990 = arith.mulf %987, %989 : vector<8x256xf32>
    %991 = arith.addf %982, %990 : vector<8x256xf32>
    %c205 = arith.constant 205 : index
    %992 = memref.load %arg2[%c205] : memref<216xf32, #tpu.memory_space<smem>>
    %993 = vector.broadcast %992 : f32 to vector<8x256xf32>
    %994 = arith.mulf %987, %993 : vector<8x256xf32>
    %995 = arith.addf %986, %994 : vector<8x256xf32>
    %996 = vector.extract_strided_slice %918 {offsets = [0, 49], sizes = [8, 256], strides = [1, 1]} : vector<8x320xf32> to vector<8x256xf32>
    %997 = arith.mulf %996, %24 : vector<8x256xf32>
    %c98 = arith.constant 98 : index
    %998 = memref.load %arg2[%c98] : memref<216xf32, #tpu.memory_space<smem>>
    %999 = vector.broadcast %998 : f32 to vector<8x256xf32>
    %1000 = arith.mulf %997, %999 : vector<8x256xf32>
    %1001 = arith.addf %991, %1000 : vector<8x256xf32>
    %c206 = arith.constant 206 : index
    %1002 = memref.load %arg2[%c206] : memref<216xf32, #tpu.memory_space<smem>>
    %1003 = vector.broadcast %1002 : f32 to vector<8x256xf32>
    %1004 = arith.mulf %997, %1003 : vector<8x256xf32>
    %1005 = arith.addf %995, %1004 : vector<8x256xf32>
    %c0_49 = arith.constant 0 : index
    %c3_50 = arith.constant 3 : index
    %c2_51 = arith.constant 2 : index
    %c0_52 = arith.constant 0 : index
    %1006 = vector.load %arg1[%c0_49, %c3_50, %c2_51, %c0_52] : memref<1x4x10x320xf32, #tpu.memory_space<vmem>>, vector<1x1x8x320xf32>
    %1007 = vector.shape_cast %1006 : vector<1x1x8x320xf32> to vector<8x320xf32>
    %1008 = vector.extract_strided_slice %1007 {offsets = [0, 15], sizes = [8, 256], strides = [1, 1]} : vector<8x320xf32> to vector<8x256xf32>
    %1009 = arith.mulf %1008, %20 : vector<8x256xf32>
    %c99 = arith.constant 99 : index
    %1010 = memref.load %arg2[%c99] : memref<216xf32, #tpu.memory_space<smem>>
    %1011 = vector.broadcast %1010 : f32 to vector<8x256xf32>
    %1012 = arith.mulf %1009, %1011 : vector<8x256xf32>
    %1013 = arith.addf %1001, %1012 : vector<8x256xf32>
    %c207 = arith.constant 207 : index
    %1014 = memref.load %arg2[%c207] : memref<216xf32, #tpu.memory_space<smem>>
    %1015 = vector.broadcast %1014 : f32 to vector<8x256xf32>
    %1016 = arith.mulf %1009, %1015 : vector<8x256xf32>
    %1017 = arith.addf %1005, %1016 : vector<8x256xf32>
    %1018 = vector.extract_strided_slice %1007 {offsets = [0, 16], sizes = [8, 256], strides = [1, 1]} : vector<8x320xf32> to vector<8x256xf32>
    %c100 = arith.constant 100 : index
    %1019 = memref.load %arg2[%c100] : memref<216xf32, #tpu.memory_space<smem>>
    %1020 = vector.broadcast %1019 : f32 to vector<8x256xf32>
    %1021 = arith.mulf %1018, %1020 : vector<8x256xf32>
    %1022 = arith.addf %1013, %1021 : vector<8x256xf32>
    %c208 = arith.constant 208 : index
    %1023 = memref.load %arg2[%c208] : memref<216xf32, #tpu.memory_space<smem>>
    %1024 = vector.broadcast %1023 : f32 to vector<8x256xf32>
    %1025 = arith.mulf %1018, %1024 : vector<8x256xf32>
    %1026 = arith.addf %1017, %1025 : vector<8x256xf32>
    %1027 = vector.extract_strided_slice %1007 {offsets = [0, 17], sizes = [8, 256], strides = [1, 1]} : vector<8x320xf32> to vector<8x256xf32>
    %1028 = arith.mulf %1027, %24 : vector<8x256xf32>
    %c101 = arith.constant 101 : index
    %1029 = memref.load %arg2[%c101] : memref<216xf32, #tpu.memory_space<smem>>
    %1030 = vector.broadcast %1029 : f32 to vector<8x256xf32>
    %1031 = arith.mulf %1028, %1030 : vector<8x256xf32>
    %1032 = arith.addf %1022, %1031 : vector<8x256xf32>
    %c209 = arith.constant 209 : index
    %1033 = memref.load %arg2[%c209] : memref<216xf32, #tpu.memory_space<smem>>
    %1034 = vector.broadcast %1033 : f32 to vector<8x256xf32>
    %1035 = arith.mulf %1028, %1034 : vector<8x256xf32>
    %1036 = arith.addf %1026, %1035 : vector<8x256xf32>
    %1037 = vector.extract_strided_slice %1007 {offsets = [0, 31], sizes = [8, 256], strides = [1, 1]} : vector<8x320xf32> to vector<8x256xf32>
    %1038 = arith.mulf %1037, %20 : vector<8x256xf32>
    %c102 = arith.constant 102 : index
    %1039 = memref.load %arg2[%c102] : memref<216xf32, #tpu.memory_space<smem>>
    %1040 = vector.broadcast %1039 : f32 to vector<8x256xf32>
    %1041 = arith.mulf %1038, %1040 : vector<8x256xf32>
    %1042 = arith.addf %1032, %1041 : vector<8x256xf32>
    %c210 = arith.constant 210 : index
    %1043 = memref.load %arg2[%c210] : memref<216xf32, #tpu.memory_space<smem>>
    %1044 = vector.broadcast %1043 : f32 to vector<8x256xf32>
    %1045 = arith.mulf %1038, %1044 : vector<8x256xf32>
    %1046 = arith.addf %1036, %1045 : vector<8x256xf32>
    %1047 = vector.extract_strided_slice %1007 {offsets = [0, 32], sizes = [8, 256], strides = [1, 1]} : vector<8x320xf32> to vector<8x256xf32>
    %c103 = arith.constant 103 : index
    %1048 = memref.load %arg2[%c103] : memref<216xf32, #tpu.memory_space<smem>>
    %1049 = vector.broadcast %1048 : f32 to vector<8x256xf32>
    %1050 = arith.mulf %1047, %1049 : vector<8x256xf32>
    %1051 = arith.addf %1042, %1050 : vector<8x256xf32>
    %c211 = arith.constant 211 : index
    %1052 = memref.load %arg2[%c211] : memref<216xf32, #tpu.memory_space<smem>>
    %1053 = vector.broadcast %1052 : f32 to vector<8x256xf32>
    %1054 = arith.mulf %1047, %1053 : vector<8x256xf32>
    %1055 = arith.addf %1046, %1054 : vector<8x256xf32>
    %1056 = vector.extract_strided_slice %1007 {offsets = [0, 33], sizes = [8, 256], strides = [1, 1]} : vector<8x320xf32> to vector<8x256xf32>
    %1057 = arith.mulf %1056, %24 : vector<8x256xf32>
    %c104 = arith.constant 104 : index
    %1058 = memref.load %arg2[%c104] : memref<216xf32, #tpu.memory_space<smem>>
    %1059 = vector.broadcast %1058 : f32 to vector<8x256xf32>
    %1060 = arith.mulf %1057, %1059 : vector<8x256xf32>
    %1061 = arith.addf %1051, %1060 : vector<8x256xf32>
    %c212 = arith.constant 212 : index
    %1062 = memref.load %arg2[%c212] : memref<216xf32, #tpu.memory_space<smem>>
    %1063 = vector.broadcast %1062 : f32 to vector<8x256xf32>
    %1064 = arith.mulf %1057, %1063 : vector<8x256xf32>
    %1065 = arith.addf %1055, %1064 : vector<8x256xf32>
    %1066 = vector.extract_strided_slice %1007 {offsets = [0, 47], sizes = [8, 256], strides = [1, 1]} : vector<8x320xf32> to vector<8x256xf32>
    %1067 = arith.mulf %1066, %20 : vector<8x256xf32>
    %c105 = arith.constant 105 : index
    %1068 = memref.load %arg2[%c105] : memref<216xf32, #tpu.memory_space<smem>>
    %1069 = vector.broadcast %1068 : f32 to vector<8x256xf32>
    %1070 = arith.mulf %1067, %1069 : vector<8x256xf32>
    %1071 = arith.addf %1061, %1070 : vector<8x256xf32>
    %c213 = arith.constant 213 : index
    %1072 = memref.load %arg2[%c213] : memref<216xf32, #tpu.memory_space<smem>>
    %1073 = vector.broadcast %1072 : f32 to vector<8x256xf32>
    %1074 = arith.mulf %1067, %1073 : vector<8x256xf32>
    %1075 = arith.addf %1065, %1074 : vector<8x256xf32>
    %1076 = vector.extract_strided_slice %1007 {offsets = [0, 48], sizes = [8, 256], strides = [1, 1]} : vector<8x320xf32> to vector<8x256xf32>
    %c106 = arith.constant 106 : index
    %1077 = memref.load %arg2[%c106] : memref<216xf32, #tpu.memory_space<smem>>
    %1078 = vector.broadcast %1077 : f32 to vector<8x256xf32>
    %1079 = arith.mulf %1076, %1078 : vector<8x256xf32>
    %1080 = arith.addf %1071, %1079 : vector<8x256xf32>
    %c214 = arith.constant 214 : index
    %1081 = memref.load %arg2[%c214] : memref<216xf32, #tpu.memory_space<smem>>
    %1082 = vector.broadcast %1081 : f32 to vector<8x256xf32>
    %1083 = arith.mulf %1076, %1082 : vector<8x256xf32>
    %1084 = arith.addf %1075, %1083 : vector<8x256xf32>
    %1085 = vector.extract_strided_slice %1007 {offsets = [0, 49], sizes = [8, 256], strides = [1, 1]} : vector<8x320xf32> to vector<8x256xf32>
    %1086 = arith.mulf %1085, %24 : vector<8x256xf32>
    %c107 = arith.constant 107 : index
    %1087 = memref.load %arg2[%c107] : memref<216xf32, #tpu.memory_space<smem>>
    %1088 = vector.broadcast %1087 : f32 to vector<8x256xf32>
    %1089 = arith.mulf %1086, %1088 : vector<8x256xf32>
    %1090 = arith.addf %1080, %1089 : vector<8x256xf32>
    %c215 = arith.constant 215 : index
    %1091 = memref.load %arg2[%c215] : memref<216xf32, #tpu.memory_space<smem>>
    %1092 = vector.broadcast %1091 : f32 to vector<8x256xf32>
    %1093 = arith.mulf %1086, %1092 : vector<8x256xf32>
    %1094 = arith.addf %1084, %1093 : vector<8x256xf32>
    %c0_53 = arith.constant 0 : index
    %1095 = memref.load %arg3[%c0_53] : memref<2xf32, #tpu.memory_space<smem>>
    %1096 = vector.broadcast %1095 : f32 to vector<8x256xf32>
    %1097 = arith.addf %1090, %1096 : vector<8x256xf32>
    %cst_54 = arith.constant 0.000000e+00 : f32
    %1098 = vector.broadcast %cst_54 : f32 to vector<8x256xf32>
    %1099 = arith.maximumf %1097, %1098 : vector<8x256xf32>
    %c1_55 = arith.constant 1 : index
    %1100 = memref.load %arg3[%c1_55] : memref<2xf32, #tpu.memory_space<smem>>
    %1101 = vector.broadcast %1100 : f32 to vector<8x256xf32>
    %1102 = arith.addf %1094, %1101 : vector<8x256xf32>
    %cst_56 = arith.constant 0.000000e+00 : f32
    %1103 = vector.broadcast %cst_56 : f32 to vector<8x256xf32>
    %1104 = arith.maximumf %1102, %1103 : vector<8x256xf32>
    %c0_57 = arith.constant 0 : index
    %1105 = memref.load %arg4[%c0_57] : memref<6xf32, #tpu.memory_space<smem>>
    %1106 = vector.broadcast %1105 : f32 to vector<8x256xf32>
    %1107 = arith.mulf %1099, %1106 : vector<8x256xf32>
    %c1_58 = arith.constant 1 : index
    %1108 = memref.load %arg4[%c1_58] : memref<6xf32, #tpu.memory_space<smem>>
    %1109 = vector.broadcast %1108 : f32 to vector<8x256xf32>
    %1110 = arith.mulf %1104, %1109 : vector<8x256xf32>
    %1111 = arith.addf %1107, %1110 : vector<8x256xf32>
    %c0_59 = arith.constant 0 : index
    %1112 = memref.load %arg5[%c0_59] : memref<3xf32, #tpu.memory_space<smem>>
    %1113 = vector.broadcast %1112 : f32 to vector<8x256xf32>
    %1114 = arith.addf %1111, %1113 : vector<8x256xf32>
    %c0_60 = arith.constant 0 : index
    %c0_61 = arith.constant 0 : index
    %c0_62 = arith.constant 0 : index
    %c0_63 = arith.constant 0 : index
    %1115 = vector.load %arg6[%c0_60, %c0_61, %c0_62, %c0_63] : memref<1x3x8x256xf32, #tpu.memory_space<vmem>>, vector<1x1x8x256xf32>
    %1116 = vector.shape_cast %1115 : vector<1x1x8x256xf32> to vector<8x256xf32>
    %1117 = vector.shape_cast %1114 : vector<8x256xf32> to vector<1x1x8x256xf32>
    tpu.vector_store %arg6[%c0_60, %c0_61, %c0_62, %c0_63], %1117 {strides = array<i32>} : memref<1x3x8x256xf32, #tpu.memory_space<vmem>>, vector<1x1x8x256xf32>,
    %c2_64 = arith.constant 2 : index
    %1118 = memref.load %arg4[%c2_64] : memref<6xf32, #tpu.memory_space<smem>>
    %1119 = vector.broadcast %1118 : f32 to vector<8x256xf32>
    %1120 = arith.mulf %1099, %1119 : vector<8x256xf32>
    %c3_65 = arith.constant 3 : index
    %1121 = memref.load %arg4[%c3_65] : memref<6xf32, #tpu.memory_space<smem>>
    %1122 = vector.broadcast %1121 : f32 to vector<8x256xf32>
    %1123 = arith.mulf %1104, %1122 : vector<8x256xf32>
    %1124 = arith.addf %1120, %1123 : vector<8x256xf32>
    %c1_66 = arith.constant 1 : index
    %1125 = memref.load %arg5[%c1_66] : memref<3xf32, #tpu.memory_space<smem>>
    %1126 = vector.broadcast %1125 : f32 to vector<8x256xf32>
    %1127 = arith.addf %1124, %1126 : vector<8x256xf32>
    %c0_67 = arith.constant 0 : index
    %c1_68 = arith.constant 1 : index
    %c0_69 = arith.constant 0 : index
    %c0_70 = arith.constant 0 : index
    %1128 = vector.load %arg6[%c0_67, %c1_68, %c0_69, %c0_70] : memref<1x3x8x256xf32, #tpu.memory_space<vmem>>, vector<1x1x8x256xf32>
    %1129 = vector.shape_cast %1128 : vector<1x1x8x256xf32> to vector<8x256xf32>
    %1130 = vector.shape_cast %1127 : vector<8x256xf32> to vector<1x1x8x256xf32>
    tpu.vector_store %arg6[%c0_67, %c1_68, %c0_69, %c0_70], %1130 {strides = array<i32>} : memref<1x3x8x256xf32, #tpu.memory_space<vmem>>, vector<1x1x8x256xf32>,
    %c4_71 = arith.constant 4 : index
    %1131 = memref.load %arg4[%c4_71] : memref<6xf32, #tpu.memory_space<smem>>
    %1132 = vector.broadcast %1131 : f32 to vector<8x256xf32>
    %1133 = arith.mulf %1099, %1132 : vector<8x256xf32>
    %c5_72 = arith.constant 5 : index
    %1134 = memref.load %arg4[%c5_72] : memref<6xf32, #tpu.memory_space<smem>>
    %1135 = vector.broadcast %1134 : f32 to vector<8x256xf32>
    %1136 = arith.mulf %1104, %1135 : vector<8x256xf32>
    %1137 = arith.addf %1133, %1136 : vector<8x256xf32>
    %c2_73 = arith.constant 2 : index
    %1138 = memref.load %arg5[%c2_73] : memref<3xf32, #tpu.memory_space<smem>>
    %1139 = vector.broadcast %1138 : f32 to vector<8x256xf32>
    %1140 = arith.addf %1137, %1139 : vector<8x256xf32>
    %c0_74 = arith.constant 0 : index
    %c2_75 = arith.constant 2 : index
    %c0_76 = arith.constant 0 : index
    %c0_77 = arith.constant 0 : index
    %1141 = vector.load %arg6[%c0_74, %c2_75, %c0_76, %c0_77] : memref<1x3x8x256xf32, #tpu.memory_space<vmem>>, vector<1x1x8x256xf32>
    %1142 = vector.shape_cast %1141 : vector<1x1x8x256xf32> to vector<8x256xf32>
    %1143 = vector.shape_cast %1140 : vector<8x256xf32> to vector<1x1x8x256xf32>
    tpu.vector_store %arg6[%c0_74, %c2_75, %c0_76, %c0_77], %1143 {strides = array<i32>} : memref<1x3x8x256xf32, #tpu.memory_space<vmem>>, vector<1x1x8x256xf32>,
    return
  }
  func.func @transform_0(%arg0: i32) -> (i32, i32, i32, i32) {
    %c0_i32 = arith.constant 0 : i32
    %c0_i32_0 = arith.constant 0 : i32
    %c0_i32_1 = arith.constant 0 : i32
    %c0_i32_2 = arith.constant 0 : i32
    return %arg0, %c0_i32, %c0_i32_0, %c0_i32_1 : i32, i32, i32, i32
  }
  func.func @transform_1(%arg0: i32) -> i32 {
    %c0_i32 = arith.constant 0 : i32
    %c0_i32_0 = arith.constant 0 : i32
    return %c0_i32 : i32
  }
  func.func @transform_2(%arg0: i32) -> i32 {
    %c0_i32 = arith.constant 0 : i32
    %c0_i32_0 = arith.constant 0 : i32
    return %c0_i32 : i32
  }
  func.func @transform_3(%arg0: i32) -> i32 {
    %c0_i32 = arith.constant 0 : i32
    %c0_i32_0 = arith.constant 0 : i32
    return %c0_i32 : i32
  }
  func.func @transform_4(%arg0: i32) -> i32 {
    %c0_i32 = arith.constant 0 : i32
    %c0_i32_0 = arith.constant 0 : i32
    return %c0_i32 : i32
  }
  func.func @transform_5(%arg0: i32) -> (i32, i32, i32, i32) {
    %c0_i32 = arith.constant 0 : i32
    %c0_i32_0 = arith.constant 0 : i32
    %c0_i32_1 = arith.constant 0 : i32
    %c0_i32_2 = arith.constant 0 : i32
    return %arg0, %c0_i32, %c0_i32_0, %c0_i32_1 : i32, i32, i32, i32
  }
}

</mosaic_0001>

<llo_original>
// kernel: tpu_custom_call.1
$region0: #{tpu_custom_call.1}
  #allocation0 [shape = 'u32[]', space=smem, size = 0x4, offset = 0x4, fixed_abs, tag = 'smem constant byte address 0x4 - core index']
  #allocation1 [shape = 'u32[144,128]{1,0:T(1,128)}', space=vmem, size = 0x12000, scoped, tag = 'internal scratch']
  %s0 = inlined_call_operand.vmem [shape: f32[2,4,10,320], index: 0, kind: input, shape index: {}]
  %s1 = inlined_call_operand.vmem [shape: f32[216], index: 1, kind: input, shape index: {}]
  %s2 = inlined_call_operand.vmem [shape: f32[2], index: 2, kind: input, shape index: {}]
  %s3 = inlined_call_operand.vmem [shape: f32[6], index: 3, kind: input, shape index: {}]
  %s4 = inlined_call_operand.vmem [shape: f32[3], index: 4, kind: input, shape index: {}]
  %s5 = inlined_call_operand.hbm [shape: f32[2,3,8,256], index: 5, kind: output, shape index: {}]
  %s6 = sld [smem:[#allocation0]]
  $region69: #{tpu_custom_call.1} parent=0
    _
  %s8 = ssub.s32 1, %s6
  %s9 = scalar_select 0, %s8, %s6
  $region1: #{tpu_custom_call.1} parent=0
    #allocation2 [shape = 'u8[1024]{0}', space=smem, size = 0x400, scoped, tag = 'input window, operand 1, single buffered']
    #allocation3 [shape = 's32[2]{0}', space=sflag, size = 0x8, scoped, tag = 'scoped memory for tpu_custom_call.1']
    #allocation4 [shape = 's32[2]{0}', space=sflag, size = 0x8, scoped, tag = 'scoped memory for tpu_custom_call.1']
    #allocation5 [shape = 'u8[512]{0}', space=smem, size = 0x200, scoped, tag = 'input window, operand 2, single buffered']
    #allocation6 [shape = 's32[1]{0}', space=sflag, size = 0x4, scoped, tag = 'scoped memory for tpu_custom_call.1']
    #allocation7 [shape = 'u8[512]{0}', space=smem, size = 0x200, scoped, tag = 'input window, operand 3, single buffered']
    #allocation8 [shape = 'u8[512]{0}', space=smem, size = 0x200, scoped, tag = 'input window, operand 4, single buffered']
    #allocation9 [shape = 's32[1]{0}', space=sflag, size = 0x4, scoped, tag = 'scoped memory for tpu_custom_call.1']
    #allocation10 [shape = 'u8[49152]{0}', space=vmem, size = 0xc000, scoped, tag = 'output window, operand 0']
    %10 = vsyncpa [#allocation4], 0
    %11 = vsyncpa [#allocation6], 0
    %12 = vsyncpa [#allocation9], 0
    %13 = vsyncpa [#allocation3], 0
    %s14 = scalar_lea.sflag [#allocation3], 1
    %15 = vsyncpa %s14, 0
    loop: start=0, step=1, limit=4
    $region2: #{tpu_custom_call.1} parent=1 // loop_pre_header
      _
    $region3: #{tpu_custom_call.1} parent=1 // loop_header
      %s17 = sphi 0, %s21
      %p18 = scmp.ge.s32.totalorder %s17, 4
      %s27 = sphi 0, %s29
      %s30 = sphi 0, %s27
      %s31 = sphi 0, %s30
      %s47 = sphi 0, %s31
      %s51 = sphi 0, %s51
      %s53 = sphi 0, %s51
      %s54 = sphi 0, %s53
      %s68 = sphi 0, %s54
      %s72 = sphi 0, %s72
      %s74 = sphi 0, %s72
      %s75 = sphi 0, %s74
      %s89 = sphi 0, %s75
      %s93 = sphi 0, %s93
      %s95 = sphi 0, %s93
      %s96 = sphi 0, %s95
      %s110 = sphi 0, %s96
      %s114 = sphi 0, %s114
      %s116 = sphi 0, %s114
      %s117 = sphi 0, %s116
      %s131 = sphi 0, %s117
      %s137 = sphi 0, %s139
      %s140 = sphi 0, %s137
      %s141 = sphi 0, %s140
      %s157 = sphi 0, %s141
    $region4: #{tpu_custom_call.1} parent=1 // loop_header_branch
      %20 = sbr.rel (%p18) target = $region8
    $region5: #{tpu_custom_call.1} parent=1 // loop_body
      %s22 = ssub.s32 %s17, 1
      %s23 = ssub.s32 %s17, 2
      %s24 = sadd.s32 %s17, 1
      %s25 = ssub.s32 %s17, %s24
      %p26 = scmp.eq.s32.totalorder %s25, 0
      %s28 = sadd.s32 %s27, 1
      %s29 = scalar_select %p26, %s27, %s28
      %p32 = pneg %p26
      %p33 = scmp.eq.s32.totalorder %s17, 1
      %p34 = por %p32, %p33
      %p35 = scmp.ne.s32.totalorder %s27, %s30
      %p36 = scmp.eq.s32.totalorder %s17, 0
      %p37 = por %p35, %p36
      %p38 = scmp.ne.s32.totalorder %s27, %s30
      %p39 = scmp.eq.s32.totalorder %s22, 1
      %p40 = por %p38, %p39
      %p41 = scmp.ne.s32.totalorder %s30, %s31
      %p42 = scmp.eq.s32.totalorder %s22, 0
      %p43 = por %p41, %p42
      %p44 = scmp.ne.s32.totalorder %s30, %s31
      %p45 = scmp.eq.s32.totalorder %s23, 1
      %p46 = por %p44, %p45
      %p48 = scmp.ne.s32.totalorder %s31, %s47
      %p49 = scmp.eq.s32.totalorder %s23, 0
      %p50 = por %p48, %p49
      %s52 = sadd.s32 %s51, 1
      %p55 = scmp.eq.s32.totalorder %s17, 1
      %p56 = scmp.ne.s32.totalorder %s51, %s53
      %p57 = scmp.eq.s32.totalorder %s17, 0
      %p58 = por %p56, %p57
      %p59 = scmp.ne.s32.totalorder %s51, %s53
      %p60 = scmp.eq.s32.totalorder %s22, 1
      %p61 = por %p59, %p60
      %p62 = scmp.ne.s32.totalorder %s53, %s54
      %p63 = scmp.eq.s32.totalorder %s22, 0
      %p64 = por %p62, %p63
      %p65 = scmp.ne.s32.totalorder %s53, %s54
      %p66 = scmp.eq.s32.totalorder %s23, 1
      %p67 = por %p65, %p66
      %p69 = scmp.ne.s32.totalorder %s54, %s68
      %p70 = scmp.eq.s32.totalorder %s23, 0
      %p71 = por %p69, %p70
      %s73 = sadd.s32 %s72, 1
      %p76 = scmp.eq.s32.totalorder %s17, 1
      %p77 = scmp.ne.s32.totalorder %s72, %s74
      %p78 = scmp.eq.s32.totalorder %s17, 0
      %p79 = por %p77, %p78
      %p80 = scmp.ne.s32.totalorder %s72, %s74
      %p81 = scmp.eq.s32.totalorder %s22, 1
      %p82 = por %p80, %p81
      %p83 = scmp.ne.s32.totalorder %s74, %s75
      %p84 = scmp.eq.s32.totalorder %s22, 0
      %p85 = por %p83, %p84
      %p86 = scmp.ne.s32.totalorder %s74, %s75
      %p87 = scmp.eq.s32.totalorder %s23, 1
      %p88 = por %p86, %p87
      %p90 = scmp.ne.s32.totalorder %s75, %s89
      %p91 = scmp.eq.s32.totalorder %s23, 0
      %p92 = por %p90, %p91
      %s94 = sadd.s32 %s93, 1
      %p97 = scmp.eq.s32.totalorder %s17, 1
      %p98 = scmp.ne.s32.totalorder %s93, %s95
      %p99 = scmp.eq.s32.totalorder %s17, 0
      %p100 = por %p98, %p99
      %p101 = scmp.ne.s32.totalorder %s93, %s95
      %p102 = scmp.eq.s32.totalorder %s22, 1
      %p103 = por %p101, %p102
      %p104 = scmp.ne.s32.totalorder %s95, %s96
      %p105 = scmp.eq.s32.totalorder %s22, 0
      %p106 = por %p104, %p105
      %p107 = scmp.ne.s32.totalorder %s95, %s96
      %p108 = scmp.eq.s32.totalorder %s23, 1
      %p109 = por %p107, %p108
      %p111 = scmp.ne.s32.totalorder %s96, %s110
      %p112 = scmp.eq.s32.totalorder %s23, 0
      %p113 = por %p111, %p112
      %s115 = sadd.s32 %s114, 1
      %p118 = scmp.eq.s32.totalorder %s17, 1
      %p119 = scmp.ne.s32.totalorder %s114, %s116
      %p120 = scmp.eq.s32.totalorder %s17, 0
      %p121 = por %p119, %p120
      %p122 = scmp.ne.s32.totalorder %s114, %s116
      %p123 = scmp.eq.s32.totalorder %s22, 1
      %p124 = por %p122, %p123
      %p125 = scmp.ne.s32.totalorder %s116, %s117
      %p126 = scmp.eq.s32.totalorder %s22, 0
      %p127 = por %p125, %p126
      %p128 = scmp.ne.s32.totalorder %s116, %s117
      %p129 = scmp.eq.s32.totalorder %s23, 1
      %p130 = por %p128, %p129
      %p132 = scmp.ne.s32.totalorder %s117, %s131
      %p133 = scmp.eq.s32.totalorder %s23, 0
      %p134 = por %p132, %p133
      %s135 = ssub.s32 %s17, %s24
      %p136 = scmp.eq.s32.totalorder %s135, 0
      %s138 = sadd.s32 %s137, 1
      %s139 = scalar_select %p136, %s137, %s138
      %p142 = pneg %p136
      %p143 = scmp.eq.s32.totalorder %s17, 1
      %p144 = por %p142, %p143
      %p145 = scmp.ne.s32.totalorder %s137, %s140
      %p146 = scmp.eq.s32.totalorder %s17, 0
      %p147 = por %p145, %p146
      %p148 = scmp.ne.s32.totalorder %s137, %s140
      %p149 = scmp.eq.s32.totalorder %s22, 1
      %p150 = por %p148, %p149
      %p151 = scmp.ne.s32.totalorder %s140, %s141
      %p152 = scmp.eq.s32.totalorder %s22, 0
      %p153 = por %p151, %p152
      %p154 = scmp.ne.s32.totalorder %s140, %s141
      %p155 = scmp.eq.s32.totalorder %s23, 1
      %p156 = por %p154, %p155
      %p158 = scmp.ne.s32.totalorder %s141, %s157
      %p159 = scmp.eq.s32.totalorder %s23, 0
      %p160 = por %p158, %p159
      %p161 = scmp.le.s32.totalorder 1, %s17
      %p162 = scmp.lt.s32.totalorder %s17, 3
      %p163 = pnand %p161, %p162
      %p164 = pneg %p163
      // Predicated region
      $region9: #{tpu_custom_call.1} parent=5 // pred_check
        _
      $region10: #{tpu_custom_call.1} parent=5 // pred_check_branch
        %166 = sbr.rel (%p163) target = $region12
      $region11: #{tpu_custom_call.1} parent=5 // pred_region
        %s167 = ssub.s32 %s17, 1
        // Predicated region
        $region13: #{tpu_custom_call.1} parent=11 // pred_check
          %p168 = pneg %p64
        $region14: #{tpu_custom_call.1} parent=11 // pred_check_branch
          %170 = sbr.rel (%p168) target = $region16
        $region15: #{tpu_custom_call.1} parent=11 // pred_region
          %s172 = ssub.s32 32, 32
          %173 = vsyncadd [#allocation4], %s172
          %s175 = sshll.u32 %s1, 4
          %s176 = int_to_ptr.vmem [resolvable:$true] %s175
          %178 = dma.vmem_to_smem %s176, 32, [#allocation2], [#allocation4]
        $region16: #{tpu_custom_call.1} parent=11 // pred_fallthru
          _
        // Predicated region
        $region17: #{tpu_custom_call.1} parent=11 // pred_check
          %p179 = pneg %p85
        $region18: #{tpu_custom_call.1} parent=11 // pred_check_branch
          %181 = sbr.rel (%p179) target = $region20
        $region19: #{tpu_custom_call.1} parent=11 // pred_region
          %s183 = ssub.s32 16, 16
          %184 = vsyncadd [#allocation6], %s183
          %s186 = sshll.u32 %s2, 4
          %s187 = int_to_ptr.vmem [resolvable:$true] %s186
          %189 = dma.vmem_to_smem %s187, 16, [#allocation5], [#allocation6]
        $region20: #{tpu_custom_call.1} parent=11 // pred_fallthru
          _
        // Predicated region
        $region21: #{tpu_custom_call.1} parent=11 // pred_check
          %p190 = pneg %p106
        $region22: #{tpu_custom_call.1} parent=11 // pred_check_branch
          %192 = sbr.rel (%p190) target = $region24
        $region23: #{tpu_custom_call.1} parent=11 // pred_region
          %s194 = ssub.s32 16, 16
          %195 = vsyncadd [#allocation6], %s194
          %s197 = sshll.u32 %s3, 4
          %s198 = int_to_ptr.vmem [resolvable:$true] %s197
          %200 = dma.vmem_to_smem %s198, 16, [#allocation7], [#allocation6]
        $region24: #{tpu_custom_call.1} parent=11 // pred_fallthru
          _
        // Predicated region
        $region25: #{tpu_custom_call.1} parent=11 // pred_check
          %p201 = pneg %p127
        $region26: #{tpu_custom_call.1} parent=11 // pred_check_branch
          %203 = sbr.rel (%p201) target = $region28
        $region27: #{tpu_custom_call.1} parent=11 // pred_region
          %s205 = ssub.s32 16, 16
          %206 = vsyncadd [#allocation9], %s205
          %s208 = sshll.u32 %s4, 4
          %s209 = int_to_ptr.vmem [resolvable:$true] %s208
          %211 = dma.vmem_to_smem %s209, 16, [#allocation8], [#allocation9]
        $region28: #{tpu_custom_call.1} parent=11 // pred_fallthru
          _
      $region12: #{tpu_custom_call.1} parent=5 // pred_fallthru
        _
      %p212 = scmp.lt.s32.totalorder %s17, 2
      // Predicated region
      $region29: #{tpu_custom_call.1} parent=5 // pred_check
        %p213 = pneg %p212
      $region30: #{tpu_custom_call.1} parent=5 // pred_check_branch
        %215 = sbr.rel (%p213) target = $region32
      $region31: #{tpu_custom_call.1} parent=5 // pred_region
        // Predicated region
        $region33: #{tpu_custom_call.1} parent=31 // pred_check
          %p216 = pneg %p37
        $region34: #{tpu_custom_call.1} parent=31 // pred_check_branch
          %218 = sbr.rel (%p216) target = $region36
        $region35: #{tpu_custom_call.1} parent=31 // pred_region
          %p219 = scmp.lt.s32.totalorder %s17, 1
          %s220 = scalar_select %p219, %s17, 1
          %s221 = smul.addr %s220, 24
          %s222 = smul.addr %s221, 8
          %s223 = scalar_lea.vmem %s0, %s222
        $region36: #{tpu_custom_call.1} parent=31 // pred_fallthru
          _
      $region32: #{tpu_custom_call.1} parent=5 // pred_fallthru
        _
      %p224 = scmp.le.s32.totalorder 1, %s17
      %p225 = scmp.lt.s32.totalorder %s17, 3
      %p226 = pnand %p224, %p225
      %p227 = pneg %p226
      // Predicated region
      $region37: #{tpu_custom_call.1} parent=5 // pred_check
        _
      $region38: #{tpu_custom_call.1} parent=5 // pred_check_branch
        %229 = sbr.rel (%p226) target = $region40
      $region39: #{tpu_custom_call.1} parent=5 // pred_region
        %s230 = ssub.s32 %s17, 1
        // Predicated region
        $region41: #{tpu_custom_call.1} parent=39 // pred_check
          %p231 = pneg %p64
        $region42: #{tpu_custom_call.1} parent=39 // pred_check_branch
          %233 = sbr.rel (%p231) target = $region44
        $region43: #{tpu_custom_call.1} parent=39 // pred_region
          %234 = dma.done [#allocation4], 32
        $region44: #{tpu_custom_call.1} parent=39 // pred_fallthru
          _
        // Predicated region
        $region45: #{tpu_custom_call.1} parent=39 // pred_check
          %p235 = pneg %p85
        $region46: #{tpu_custom_call.1} parent=39 // pred_check_branch
          %237 = sbr.rel (%p235) target = $region48
        $region47: #{tpu_custom_call.1} parent=39 // pred_region
          %238 = dma.done [#allocation6], 16
        $region48: #{tpu_custom_call.1} parent=39 // pred_fallthru
          _
        // Predicated region
        $region49: #{tpu_custom_call.1} parent=39 // pred_check
          %p239 = pneg %p106
        $region50: #{tpu_custom_call.1} parent=39 // pred_check_branch
          %241 = sbr.rel (%p239) target = $region52
        $region51: #{tpu_custom_call.1} parent=39 // pred_region
          %242 = dma.done [#allocation6], 16
        $region52: #{tpu_custom_call.1} parent=39 // pred_fallthru
          _
        // Predicated region
        $region53: #{tpu_custom_call.1} parent=39 // pred_check
          %p243 = pneg %p127
        $region54: #{tpu_custom_call.1} parent=39 // pred_check_branch
          %245 = sbr.rel (%p243) target = $region56
        $region55: #{tpu_custom_call.1} parent=39 // pred_region
          %246 = dma.done [#allocation9], 16
        $region56: #{tpu_custom_call.1} parent=39 // pred_fallthru
          _
        %247 = sfence
        %p248 = scmp.lt.s32.totalorder %s22, 1
        %s249 = scalar_select %p248, %s22, 1
        %s250 = smul.addr %s249, 24
        %s251 = smul.addr %s250, 8
        %s252 = scalar_lea.vmem %s0, %s251
        %p253 = pneg %p43
        %p254 = pneg %p40
        %p255 = pneg %p64
        %p256 = pneg %p61
        %p257 = pneg %p85
        %p258 = pneg %p82
        %p259 = pneg %p106
        %p260 = pneg %p103
        %p261 = pneg %p127
        %p262 = pneg %p124
        %p263 = pneg %p153
        %p264 = pneg %p150
        %s265 = sand.u32 %s140, 1
        %s266 = scalar_lea.sflag [#allocation3], %s265
        %s267 = sand.u32 %s140, 1
        %s268 = smul.addr %s267, 48
        %s269 = scalar_lea.vmem [#allocation10], %s268
        %p270 = scmp.lt.s32.totalorder %s22, 1
        %s271 = scalar_select %p270, %s22, 1
        %s272 = smul.addr %s271, 24
        %s273 = smul.addr %s272, 8
        %s274 = scalar_lea.vmem %s0, %s273
        %v275 = vlaneseq
        %v276 = vand.u32 %v275, 127
        %v277 = vadd.s32 %v276, 128
        %vm278 = vcmp.lt.s32.totalorder %v276, 0
        %v279 = vsub.s32 0, %v276
        %v280 = vsel %vm278, %v279, %v276
        %v281 = vshrl.u32 %v280, 4
        %v282 = vand.u32 %v280, 15
        %v283 = vsub.s32 0, %v282
        %v284 = vsel %vm278, %v283, %v282
        %vm285 = vcmp.lt.s32.totalorder %v277, 0
        %v286 = vsub.s32 0, %v277
        %v287 = vsel %vm285, %v286, %v277
        %v288 = vshrl.u32 %v287, 4
        %v289 = vand.u32 %v287, 15
        %v290 = vsub.s32 0, %v289
        %v291 = vsel %vm285, %v290, %v289
        %vm292 = vcmp.ne.s32.totalorder %v284, 0
        %vm293 = vcmp.ne.s32.totalorder %v291, 0
        %vm294 = vcmp.lt.s32.totalorder %v284, 0
        %vm295 = vcmp.lt.s32.totalorder %v291, 0
        %vm296 = vmand %vm294, %vm292
        %vm297 = vmand %vm295, %vm293
        %v298 = vadd.s32 %v284, 16
        %v299 = vadd.s32 %v291, 16
        %v300 = vsel %vm296, %v298, %v284
        %v301 = vsel %vm297, %v299, %v291
        %vm302 = vcmp.ne.s32.totalorder %v300, 0
        %vm303 = vcmp.ne.s32.totalorder %v301, 0
        %v304 = vsel %vm302, 1, 0
        %v305 = vsel %vm303, 1, 0
        %v306 = vcvt.s32.f32 %v304
        %v307 = vcvt.s32.f32 %v305
        %vm308 = vcmp.ne.s32.totalorder %v300, 15
        %vm309 = vcmp.ne.s32.totalorder %v301, 15
        %v310 = vsel %vm308, 1, 0
        %v311 = vsel %vm309, 1, 0
        %v312 = vcvt.s32.f32 %v310
        %v313 = vcvt.s32.f32 %v311
        %v314 = vld [vmem:[%s274] sm:$0xff]
        %v315 = vld [vmem:[%s274 + $0x8] sm:$0xff]
        %v316 = vld [vmem:[%s274 + $0x10] sm:$0xff]
        %319 = vrot.lane.b32.xlu0 %v306, 15
        %v320 = vpop.permute.xlu0 %319
        %321 = vrot.lane.b32.xlu0 %v307, 15
        %v322 = vpop.permute.xlu0 %321
        %vm323 = vcmask 121856
        %v324 = vsel %vm323, %v320, %v322
        %v328 = vmul.f32 %v314, %v320
        %v329 = vmul.f32 %v315, %v324
        %v330 = vmul.f32 %v316, %v322
        %s331 = sld [smem:[#allocation2]]
        %v332 = vstv %s331
        %v333 = vmul.f32 %v328, %v332
        %v334 = vmul.f32 %v329, %v332
        %v335 = vmul.f32 %v330, %v332
        %v336 = vadd.f32 %v333, 0.0
        %v337 = vadd.f32 %v334, 0.0
        %v338 = vadd.f32 %v335, 0.0
        %s339 = sld [smem:[#allocation2 + $0x6c]]
        %v340 = vstv %s339
        %v341 = vmul.f32 %v328, %v340
        %v342 = vmul.f32 %v329, %v340
        %v343 = vmul.f32 %v330, %v340
        %v344 = vadd.f32 %v341, 0.0
        %v345 = vadd.f32 %v342, 0.0
        %v346 = vadd.f32 %v343, 0.0
        %s347 = sld [smem:[#allocation2 + $0x1]]
        %v348 = vstv %s347
        %v349 = vmul.f32 %v314, %v348
        %v350 = vmul.f32 %v315, %v348
        %v351 = vmul.f32 %v316, %v348
        %355 = vrot.lane.b32.xlu0 %v349, 127
        %v356 = vpop.permute.xlu0 %355
        %357 = vrot.lane.b32.xlu0 %v350, 127
        %v358 = vpop.permute.xlu0 %357
        %359 = vrot.lane.b32.xlu0 %v351, 127
        %v360 = vpop.permute.xlu0 %359
        %vm361 = vcmask 1039360
        %v362 = vsel %vm361, %v356, %v358
        %v363 = vsel %vm361, %v358, %v360
        %v367 = vadd.f32 %v336, %v362
        %v368 = vadd.f32 %v337, %v363
        %v369 = vadd.f32 %v338, %v360
        %s370 = sld [smem:[#allocation2 + $0x6d]]
        %v371 = vstv %s370
        %v372 = vmul.f32 %v314, %v371
        %v373 = vmul.f32 %v315, %v371
        %v374 = vmul.f32 %v316, %v371
        %378 = vrot.lane.b32.xlu0 %v372, 127
        %v379 = vpop.permute.xlu0 %378
        %380 = vrot.lane.b32.xlu0 %v373, 127
        %v381 = vpop.permute.xlu0 %380
        %382 = vrot.lane.b32.xlu0 %v374, 127
        %v383 = vpop.permute.xlu0 %382
        %v384 = vsel %vm361, %v379, %v381
        %v385 = vsel %vm361, %v381, %v383
        %v389 = vadd.f32 %v344, %v384
        %v390 = vadd.f32 %v345, %v385
        %v391 = vadd.f32 %v346, %v383
        %394 = vrot.lane.b32.xlu0 %v312, 17
        %v395 = vpop.permute.xlu0 %394
        %396 = vrot.lane.b32.xlu0 %v313, 17
        %v397 = vpop.permute.xlu0 %396
        %vm398 = vcmask 138240
        %v399 = vsel %vm398, %v395, %v397
        %v403 = vmul.f32 %v314, %v395
        %v404 = vmul.f32 %v315, %v399
        %v405 = vmul.f32 %v316, %v397
        %s406 = sld [smem:[#allocation2 + $0x2]]
        %v407 = vstv %s406
        %v408 = vmul.f32 %v403, %v407
        %v409 = vmul.f32 %v404, %v407
        %v410 = vmul.f32 %v405, %v407
        %414 = vrot.lane.b32.xlu0 %v408, 126
        %v415 = vpop.permute.xlu0 %414
        %416 = vrot.lane.b32.xlu0 %v409, 126
        %v417 = vpop.permute.xlu0 %416
        %418 = vrot.lane.b32.xlu0 %v410, 126
        %v419 = vpop.permute.xlu0 %418
        %vm420 = vcmask 1031168
        %v421 = vsel %vm420, %v415, %v417
        %v422 = vsel %vm420, %v417, %v419
        %v426 = vadd.f32 %v367, %v421
        %v427 = vadd.f32 %v368, %v422
        %v428 = vadd.f32 %v369, %v419
        %s429 = sld [smem:[#allocation2 + $0x6e]]
        %v430 = vstv %s429
        %v431 = vmul.f32 %v403, %v430
        %v432 = vmul.f32 %v404, %v430
        %v433 = vmul.f32 %v405, %v430
        %437 = vrot.lane.b32.xlu0 %v431, 126
        %v438 = vpop.permute.xlu0 %437
        %439 = vrot.lane.b32.xlu0 %v432, 126
        %v440 = vpop.permute.xlu0 %439
        %441 = vrot.lane.b32.xlu0 %v433, 126
        %v442 = vpop.permute.xlu0 %441
        %v443 = vsel %vm420, %v438, %v440
        %v444 = vsel %vm420, %v440, %v442
        %v448 = vadd.f32 %v389, %v443
        %v449 = vadd.f32 %v390, %v444
        %v450 = vadd.f32 %v391, %v442
        %451 = vrot.lane.b32.xlu0 %v306, 31
        %v452 = vpop.permute.xlu0 %451
        %453 = vrot.lane.b32.xlu0 %v307, 31
        %v454 = vpop.permute.xlu0 %453
        %vm455 = vcmask 252928
        %v456 = vsel %vm455, %v452, %v454
        %v460 = vmul.f32 %v314, %v452
        %v461 = vmul.f32 %v315, %v456
        %v462 = vmul.f32 %v316, %v454
        %s463 = sld [smem:[#allocation2 + $0x3]]
        %v464 = vstv %s463
        %v465 = vmul.f32 %v460, %v464
        %v466 = vmul.f32 %v461, %v464
        %v467 = vmul.f32 %v462, %v464
        %471 = vrot.lane.b32.xlu0 %v465, 112
        %v472 = vpop.permute.xlu0 %471
        %473 = vrot.lane.b32.xlu0 %v466, 112
        %v474 = vpop.permute.xlu0 %473
        %475 = vrot.lane.b32.xlu0 %v467, 112
        %v476 = vpop.permute.xlu0 %475
        %vm477 = vcmask 916480
        %v478 = vsel %vm477, %v472, %v474
        %v479 = vsel %vm477, %v474, %v476
        %v483 = vadd.f32 %v426, %v478
        %v484 = vadd.f32 %v427, %v479
        %v485 = vadd.f32 %v428, %v476
        %s486 = sld [smem:[#allocation2 + $0x6f]]
        %v487 = vstv %s486
        %v488 = vmul.f32 %v460, %v487
        %v489 = vmul.f32 %v461, %v487
        %v490 = vmul.f32 %v462, %v487
        %494 = vrot.lane.b32.xlu0 %v488, 112
        %v495 = vpop.permute.xlu0 %494
        %496 = vrot.lane.b32.xlu0 %v489, 112
        %v497 = vpop.permute.xlu0 %496
        %498 = vrot.lane.b32.xlu0 %v490, 112
        %v499 = vpop.permute.xlu0 %498
        %v500 = vsel %vm477, %v495, %v497
        %v501 = vsel %vm477, %v497, %v499
        %v505 = vadd.f32 %v448, %v500
        %v506 = vadd.f32 %v449, %v501
        %v507 = vadd.f32 %v450, %v499
        %s508 = sld [smem:[#allocation2 + $0x4]]
        %v509 = vstv %s508
        %v510 = vmul.f32 %v314, %v509
        %v511 = vmul.f32 %v315, %v509
        %v512 = vmul.f32 %v316, %v509
        %516 = vrot.lane.b32.xlu0 %v510, 111
        %v517 = vpop.permute.xlu0 %516
        %518 = vrot.lane.b32.xlu0 %v511, 111
        %v519 = vpop.permute.xlu0 %518
        %520 = vrot.lane.b32.xlu0 %v512, 111
        %v521 = vpop.permute.xlu0 %520
        %vm522 = vcmask 908288
        %v523 = vsel %vm522, %v517, %v519
        %v524 = vsel %vm522, %v519, %v521
        %v528 = vadd.f32 %v483, %v523
        %v529 = vadd.f32 %v484, %v524
        %v530 = vadd.f32 %v485, %v521
        %s531 = sld [smem:[#allocation2 + $0x70]]
        %v532 = vstv %s531
        %v533 = vmul.f32 %v314, %v532
        %v534 = vmul.f32 %v315, %v532
        %v535 = vmul.f32 %v316, %v532
        %539 = vrot.lane.b32.xlu0 %v533, 111
        %v540 = vpop.permute.xlu0 %539
        %541 = vrot.lane.b32.xlu0 %v534, 111
        %v542 = vpop.permute.xlu0 %541
        %543 = vrot.lane.b32.xlu0 %v535, 111
        %v544 = vpop.permute.xlu0 %543
        %v545 = vsel %vm522, %v540, %v542
        %v546 = vsel %vm522, %v542, %v544
        %v550 = vadd.f32 %v505, %v545
        %v551 = vadd.f32 %v506, %v546
        %v552 = vadd.f32 %v507, %v544
        %553 = vrot.lane.b32.xlu0 %v312, 33
        %v554 = vpop.permute.xlu0 %553
        %555 = vrot.lane.b32.xlu0 %v313, 33
        %v556 = vpop.permute.xlu0 %555
        %vm557 = vcmask 269312
        %v558 = vsel %vm557, %v554, %v556
        %v562 = vmul.f32 %v314, %v554
        %v563 = vmul.f32 %v315, %v558
        %v564 = vmul.f32 %v316, %v556
        %s565 = sld [smem:[#allocation2 + $0x5]]
        %v566 = vstv %s565
        %v567 = vmul.f32 %v562, %v566
        %v568 = vmul.f32 %v563, %v566
        %v569 = vmul.f32 %v564, %v566
        %573 = vrot.lane.b32.xlu0 %v567, 110
        %v574 = vpop.permute.xlu0 %573
        %575 = vrot.lane.b32.xlu0 %v568, 110
        %v576 = vpop.permute.xlu0 %575
        %577 = vrot.lane.b32.xlu0 %v569, 110
        %v578 = vpop.permute.xlu0 %577
        %vm579 = vcmask 900096
        %v580 = vsel %vm579, %v574, %v576
        %v581 = vsel %vm579, %v576, %v578
        %v585 = vadd.f32 %v528, %v580
        %v586 = vadd.f32 %v529, %v581
        %v587 = vadd.f32 %v530, %v578
        %s588 = sld [smem:[#allocation2 + $0x71]]
        %v589 = vstv %s588
        %v590 = vmul.f32 %v562, %v589
        %v591 = vmul.f32 %v563, %v589
        %v592 = vmul.f32 %v564, %v589
        %596 = vrot.lane.b32.xlu0 %v590, 110
        %v597 = vpop.permute.xlu0 %596
        %598 = vrot.lane.b32.xlu0 %v591, 110
        %v599 = vpop.permute.xlu0 %598
        %600 = vrot.lane.b32.xlu0 %v592, 110
        %v601 = vpop.permute.xlu0 %600
        %v602 = vsel %vm579, %v597, %v599
        %v603 = vsel %vm579, %v599, %v601
        %v607 = vadd.f32 %v550, %v602
        %v608 = vadd.f32 %v551, %v603
        %v609 = vadd.f32 %v552, %v601
        %610 = vrot.lane.b32.xlu0 %v306, 47
        %v611 = vpop.permute.xlu0 %610
        %612 = vrot.lane.b32.xlu0 %v307, 47
        %v613 = vpop.permute.xlu0 %612
        %vm614 = vcmask 384000
        %v615 = vsel %vm614, %v611, %v613
        %v619 = vmul.f32 %v314, %v611
        %v620 = vmul.f32 %v315, %v615
        %v621 = vmul.f32 %v316, %v613
        %s622 = sld [smem:[#allocation2 + $0x6]]
        %v623 = vstv %s622
        %v624 = vmul.f32 %v619, %v623
        %v625 = vmul.f32 %v620, %v623
        %v626 = vmul.f32 %v621, %v623
        %630 = vrot.lane.b32.xlu0 %v624, 96
        %v631 = vpop.permute.xlu0 %630
        %632 = vrot.lane.b32.xlu0 %v625, 96
        %v633 = vpop.permute.xlu0 %632
        %634 = vrot.lane.b32.xlu0 %v626, 96
        %v635 = vpop.permute.xlu0 %634
        %vm636 = vcmask 785408
        %v637 = vsel %vm636, %v631, %v633
        %v638 = vsel %vm636, %v633, %v635
        %v642 = vadd.f32 %v585, %v637
        %v643 = vadd.f32 %v586, %v638
        %v644 = vadd.f32 %v587, %v635
        %s645 = sld [smem:[#allocation2 + $0x72]]
        %v646 = vstv %s645
        %v647 = vmul.f32 %v619, %v646
        %v648 = vmul.f32 %v620, %v646
        %v649 = vmul.f32 %v621, %v646
        %653 = vrot.lane.b32.xlu0 %v647, 96
        %v654 = vpop.permute.xlu0 %653
        %655 = vrot.lane.b32.xlu0 %v648, 96
        %v656 = vpop.permute.xlu0 %655
        %657 = vrot.lane.b32.xlu0 %v649, 96
        %v658 = vpop.permute.xlu0 %657
        %v659 = vsel %vm636, %v654, %v656
        %v660 = vsel %vm636, %v656, %v658
        %v664 = vadd.f32 %v607, %v659
        %v665 = vadd.f32 %v608, %v660
        %v666 = vadd.f32 %v609, %v658
        %s667 = sld [smem:[#allocation2 + $0x7]]
        %v668 = vstv %s667
        %v669 = vmul.f32 %v314, %v668
        %v670 = vmul.f32 %v315, %v668
        %v671 = vmul.f32 %v316, %v668
        %675 = vrot.lane.b32.xlu0 %v669, 95
        %v676 = vpop.permute.xlu0 %675
        %677 = vrot.lane.b32.xlu0 %v670, 95
        %v678 = vpop.permute.xlu0 %677
        %679 = vrot.lane.b32.xlu0 %v671, 95
        %v680 = vpop.permute.xlu0 %679
        %vm681 = vcmask 777216
        %v682 = vsel %vm681, %v676, %v678
        %v683 = vsel %vm681, %v678, %v680
        %v687 = vadd.f32 %v642, %v682
        %v688 = vadd.f32 %v643, %v683
        %v689 = vadd.f32 %v644, %v680
        %s690 = sld [smem:[#allocation2 + $0x73]]
        %v691 = vstv %s690
        %v692 = vmul.f32 %v314, %v691
        %v693 = vmul.f32 %v315, %v691
        %v694 = vmul.f32 %v316, %v691
        %698 = vrot.lane.b32.xlu0 %v692, 95
        %v699 = vpop.permute.xlu0 %698
        %700 = vrot.lane.b32.xlu0 %v693, 95
        %v701 = vpop.permute.xlu0 %700
        %702 = vrot.lane.b32.xlu0 %v694, 95
        %v703 = vpop.permute.xlu0 %702
        %v704 = vsel %vm681, %v699, %v701
        %v705 = vsel %vm681, %v701, %v703
        %v709 = vadd.f32 %v664, %v704
        %v710 = vadd.f32 %v665, %v705
        %v711 = vadd.f32 %v666, %v703
        %712 = vrot.lane.b32.xlu0 %v312, 49
        %v713 = vpop.permute.xlu0 %712
        %714 = vrot.lane.b32.xlu0 %v313, 49
        %v715 = vpop.permute.xlu0 %714
        %vm716 = vcmask 400384
        %v717 = vsel %vm716, %v713, %v715
        %v721 = vmul.f32 %v314, %v713
        %v722 = vmul.f32 %v315, %v717
        %v723 = vmul.f32 %v316, %v715
        %s724 = sld [smem:[#allocation2 + $0x8]]
        %v725 = vstv %s724
        %v726 = vmul.f32 %v721, %v725
        %v727 = vmul.f32 %v722, %v725
        %v728 = vmul.f32 %v723, %v725
        %732 = vrot.lane.b32.xlu0 %v726, 94
        %v733 = vpop.permute.xlu0 %732
        %734 = vrot.lane.b32.xlu0 %v727, 94
        %v735 = vpop.permute.xlu0 %734
        %736 = vrot.lane.b32.xlu0 %v728, 94
        %v737 = vpop.permute.xlu0 %736
        %vm738 = vcmask 769024
        %v739 = vsel %vm738, %v733, %v735
        %v740 = vsel %vm738, %v735, %v737
        %v744 = vadd.f32 %v687, %v739
        %v745 = vadd.f32 %v688, %v740
        %v746 = vadd.f32 %v689, %v737
        %s747 = sld [smem:[#allocation2 + $0x74]]
        %v748 = vstv %s747
        %v749 = vmul.f32 %v721, %v748
        %v750 = vmul.f32 %v722, %v748
        %v751 = vmul.f32 %v723, %v748
        %755 = vrot.lane.b32.xlu0 %v749, 94
        %v756 = vpop.permute.xlu0 %755
        %757 = vrot.lane.b32.xlu0 %v750, 94
        %v758 = vpop.permute.xlu0 %757
        %759 = vrot.lane.b32.xlu0 %v751, 94
        %v760 = vpop.permute.xlu0 %759
        %v761 = vsel %vm738, %v756, %v758
        %v762 = vsel %vm738, %v758, %v760
        %v766 = vadd.f32 %v709, %v761
        %v767 = vadd.f32 %v710, %v762
        %v768 = vadd.f32 %v711, %v760
        %v769 = vld [vmem:[%s274] sm:$0xfe]
        %v770 = vld [vmem:[%s274 + $0x8] sm:$0xfe]
        %v771 = vld [vmem:[%s274 + $0x10] sm:$0xfe]
        %v772 = vld [vmem:[%s274 + $0x18] sm:$0x1]
        %v773 = vld [vmem:[%s274 + $0x20] sm:$0x1]
        %v774 = vld [vmem:[%s274 + $0x28] sm:$0x1]
        %v775 = vmul.f32 %v769, %v320
        %v776 = vmul.f32 %v770, %v324
        %v777 = vmul.f32 %v771, %v322
        %v778 = vmul.f32 %v772, %v320
        %v779 = vmul.f32 %v773, %v324
        %v780 = vmul.f32 %v774, %v322
        %s781 = sld [smem:[#allocation2 + $0x9]]
        %v782 = vstv %s781
        %v783 = vmul.f32 %v775, %v782
        %v784 = vmul.f32 %v776, %v782
        %v785 = vmul.f32 %v777, %v782
        %v786 = vmul.f32 %v778, %v782
        %v787 = vmul.f32 %v779, %v782
        %v788 = vmul.f32 %v780, %v782
        %vm795 = vcmask 1046528
        %v796 = vrot.slane %v783, 1
        %v797 = vrot.slane %v786, 1
        %v798 = vsel %vm795, %v796, %v797
        %v799 = vrot.slane %v784, 1
        %v800 = vrot.slane %v787, 1
        %v801 = vsel %vm795, %v799, %v800
        %v802 = vrot.slane %v785, 1
        %v803 = vrot.slane %v788, 1
        %v804 = vsel %vm795, %v802, %v803
        %v808 = vadd.f32 %v744, %v798
        %v809 = vadd.f32 %v745, %v801
        %v810 = vadd.f32 %v746, %v804
        %s811 = sld [smem:[#allocation2 + $0x75]]
        %v812 = vstv %s811
        %v813 = vmul.f32 %v775, %v812
        %v814 = vmul.f32 %v776, %v812
        %v815 = vmul.f32 %v777, %v812
        %v816 = vmul.f32 %v778, %v812
        %v817 = vmul.f32 %v779, %v812
        %v818 = vmul.f32 %v780, %v812
        %v825 = vrot.slane %v813, 1
        %v826 = vrot.slane %v816, 1
        %v827 = vsel %vm795, %v825, %v826
        %v828 = vrot.slane %v814, 1
        %v829 = vrot.slane %v817, 1
        %v830 = vsel %vm795, %v828, %v829
        %v831 = vrot.slane %v815, 1
        %v832 = vrot.slane %v818, 1
        %v833 = vsel %vm795, %v831, %v832
        %v837 = vadd.f32 %v766, %v827
        %v838 = vadd.f32 %v767, %v830
        %v839 = vadd.f32 %v768, %v833
        %s840 = sld [smem:[#allocation2 + $0xa]]
        %v841 = vstv %s840
        %v842 = vmul.f32 %v769, %v841
        %v843 = vmul.f32 %v770, %v841
        %v844 = vmul.f32 %v771, %v841
        %v845 = vmul.f32 %v772, %v841
        %v846 = vmul.f32 %v773, %v841
        %v847 = vmul.f32 %v774, %v841
        %v854 = vrot.slane %v842, 1
        %v855 = vrot.slane %v845, 1
        %v856 = vsel %vm795, %v854, %v855
        %v857 = vrot.slane %v843, 1
        %v858 = vrot.slane %v846, 1
        %v859 = vsel %vm795, %v857, %v858
        %v860 = vrot.slane %v844, 1
        %v861 = vrot.slane %v847, 1
        %v862 = vsel %vm795, %v860, %v861
        %863 = vrot.lane.b32.xlu0 %v856, 127
        %v864 = vpop.permute.xlu0 %863
        %865 = vrot.lane.b32.xlu0 %v859, 127
        %v866 = vpop.permute.xlu0 %865
        %867 = vrot.lane.b32.xlu0 %v862, 127
        %v868 = vpop.permute.xlu0 %867
        %v869 = vsel %vm361, %v864, %v866
        %v870 = vsel %vm361, %v866, %v868
        %v874 = vadd.f32 %v808, %v869
        %v875 = vadd.f32 %v809, %v870
        %v876 = vadd.f32 %v810, %v868
        %s877 = sld [smem:[#allocation2 + $0x76]]
        %v878 = vstv %s877
        %v879 = vmul.f32 %v769, %v878
        %v880 = vmul.f32 %v770, %v878
        %v881 = vmul.f32 %v771, %v878
        %v882 = vmul.f32 %v772, %v878
        %v883 = vmul.f32 %v773, %v878
        %v884 = vmul.f32 %v774, %v878
        %v891 = vrot.slane %v879, 1
        %v892 = vrot.slane %v882, 1
        %v893 = vsel %vm795, %v891, %v892
        %v894 = vrot.slane %v880, 1
        %v895 = vrot.slane %v883, 1
        %v896 = vsel %vm795, %v894, %v895
        %v897 = vrot.slane %v881, 1
        %v898 = vrot.slane %v884, 1
        %v899 = vsel %vm795, %v897, %v898
        %900 = vrot.lane.b32.xlu0 %v893, 127
        %v901 = vpop.permute.xlu0 %900
        %902 = vrot.lane.b32.xlu0 %v896, 127
        %v903 = vpop.permute.xlu0 %902
        %904 = vrot.lane.b32.xlu0 %v899, 127
        %v905 = vpop.permute.xlu0 %904
        %v906 = vsel %vm361, %v901, %v903
        %v907 = vsel %vm361, %v903, %v905
        %v911 = vadd.f32 %v837, %v906
        %v912 = vadd.f32 %v838, %v907
        %v913 = vadd.f32 %v839, %v905
        %v914 = vmul.f32 %v769, %v395
        %v915 = vmul.f32 %v770, %v399
        %v916 = vmul.f32 %v771, %v397
        %v917 = vmul.f32 %v772, %v395
        %v918 = vmul.f32 %v773, %v399
        %v919 = vmul.f32 %v774, %v397
        %s920 = sld [smem:[#allocation2 + $0xb]]
        %v921 = vstv %s920
        %v922 = vmul.f32 %v914, %v921
        %v923 = vmul.f32 %v915, %v921
        %v924 = vmul.f32 %v916, %v921
        %v925 = vmul.f32 %v917, %v921
        %v926 = vmul.f32 %v918, %v921
        %v927 = vmul.f32 %v919, %v921
        %v934 = vrot.slane %v922, 1
        %v935 = vrot.slane %v925, 1
        %v936 = vsel %vm795, %v934, %v935
        %v937 = vrot.slane %v923, 1
        %v938 = vrot.slane %v926, 1
        %v939 = vsel %vm795, %v937, %v938
        %v940 = vrot.slane %v924, 1
        %v941 = vrot.slane %v927, 1
        %v942 = vsel %vm795, %v940, %v941
        %943 = vrot.lane.b32.xlu0 %v936, 126
        %v944 = vpop.permute.xlu0 %943
        %945 = vrot.lane.b32.xlu0 %v939, 126
        %v946 = vpop.permute.xlu0 %945
        %947 = vrot.lane.b32.xlu0 %v942, 126
        %v948 = vpop.permute.xlu0 %947
        %v949 = vsel %vm420, %v944, %v946
        %v950 = vsel %vm420, %v946, %v948
        %v954 = vadd.f32 %v874, %v949
        %v955 = vadd.f32 %v875, %v950
        %v956 = vadd.f32 %v876, %v948
        %s957 = sld [smem:[#allocation2 + $0x77]]
        %v958 = vstv %s957
        %v959 = vmul.f32 %v914, %v958
        %v960 = vmul.f32 %v915, %v958
        %v961 = vmul.f32 %v916, %v958
        %v962 = vmul.f32 %v917, %v958
        %v963 = vmul.f32 %v918, %v958
        %v964 = vmul.f32 %v919, %v958
        %v971 = vrot.slane %v959, 1
        %v972 = vrot.slane %v962, 1
        %v973 = vsel %vm795, %v971, %v972
        %v974 = vrot.slane %v960, 1
        %v975 = vrot.slane %v963, 1
        %v976 = vsel %vm795, %v974, %v975
        %v977 = vrot.slane %v961, 1
        %v978 = vrot.slane %v964, 1
        %v979 = vsel %vm795, %v977, %v978
        %980 = vrot.lane.b32.xlu0 %v973, 126
        %v981 = vpop.permute.xlu0 %980
        %982 = vrot.lane.b32.xlu0 %v976, 126
        %v983 = vpop.permute.xlu0 %982
        %984 = vrot.lane.b32.xlu0 %v979, 126
        %v985 = vpop.permute.xlu0 %984
        %v986 = vsel %vm420, %v981, %v983
        %v987 = vsel %vm420, %v983, %v985
        %v991 = vadd.f32 %v911, %v986
        %v992 = vadd.f32 %v912, %v987
        %v993 = vadd.f32 %v913, %v985
        %v994 = vmul.f32 %v769, %v452
        %v995 = vmul.f32 %v770, %v456
        %v996 = vmul.f32 %v771, %v454
        %v997 = vmul.f32 %v772, %v452
        %v998 = vmul.f32 %v773, %v456
        %v999 = vmul.f32 %v774, %v454
        %s1000 = sld [smem:[#allocation2 + $0xc]]
        %v1001 = vstv %s1000
        %v1002 = vmul.f32 %v994, %v1001
        %v1003 = vmul.f32 %v995, %v1001
        %v1004 = vmul.f32 %v996, %v1001
        %v1005 = vmul.f32 %v997, %v1001
        %v1006 = vmul.f32 %v998, %v1001
        %v1007 = vmul.f32 %v999, %v1001
        %v1014 = vrot.slane %v1002, 1
        %v1015 = vrot.slane %v1005, 1
        %v1016 = vsel %vm795, %v1014, %v1015
        %v1017 = vrot.slane %v1003, 1
        %v1018 = vrot.slane %v1006, 1
        %v1019 = vsel %vm795, %v1017, %v1018
        %v1020 = vrot.slane %v1004, 1
        %v1021 = vrot.slane %v1007, 1
        %v1022 = vsel %vm795, %v1020, %v1021
        %1023 = vrot.lane.b32.xlu0 %v1016, 112
        %v1024 = vpop.permute.xlu0 %1023
        %1025 = vrot.lane.b32.xlu0 %v1019, 112
        %v1026 = vpop.permute.xlu0 %1025
        %1027 = vrot.lane.b32.xlu0 %v1022, 112
        %v1028 = vpop.permute.xlu0 %1027
        %v1029 = vsel %vm477, %v1024, %v1026
        %v1030 = vsel %vm477, %v1026, %v1028
        %v1034 = vadd.f32 %v954, %v1029
        %v1035 = vadd.f32 %v955, %v1030
        %v1036 = vadd.f32 %v956, %v1028
        %s1037 = sld [smem:[#allocation2 + $0x78]]
        %v1038 = vstv %s1037
        %v1039 = vmul.f32 %v994, %v1038
        %v1040 = vmul.f32 %v995, %v1038
        %v1041 = vmul.f32 %v996, %v1038
        %v1042 = vmul.f32 %v997, %v1038
        %v1043 = vmul.f32 %v998, %v1038
        %v1044 = vmul.f32 %v999, %v1038
        %v1051 = vrot.slane %v1039, 1
        %v1052 = vrot.slane %v1042, 1
        %v1053 = vsel %vm795, %v1051, %v1052
        %v1054 = vrot.slane %v1040, 1
        %v1055 = vrot.slane %v1043, 1
        %v1056 = vsel %vm795, %v1054, %v1055
        %v1057 = vrot.slane %v1041, 1
        %v1058 = vrot.slane %v1044, 1
        %v1059 = vsel %vm795, %v1057, %v1058
        %1060 = vrot.lane.b32.xlu0 %v1053, 112
        %v1061 = vpop.permute.xlu0 %1060
        %1062 = vrot.lane.b32.xlu0 %v1056, 112
        %v1063 = vpop.permute.xlu0 %1062
        %1064 = vrot.lane.b32.xlu0 %v1059, 112
        %v1065 = vpop.permute.xlu0 %1064
        %v1066 = vsel %vm477, %v1061, %v1063
        %v1067 = vsel %vm477, %v1063, %v1065
        %v1071 = vadd.f32 %v991, %v1066
        %v1072 = vadd.f32 %v992, %v1067
        %v1073 = vadd.f32 %v993, %v1065
        %s1074 = sld [smem:[#allocation2 + $0xd]]
        %v1075 = vstv %s1074
        %v1076 = vmul.f32 %v769, %v1075
        %v1077 = vmul.f32 %v770, %v1075
        %v1078 = vmul.f32 %v771, %v1075
        %v1079 = vmul.f32 %v772, %v1075
        %v1080 = vmul.f32 %v773, %v1075
        %v1081 = vmul.f32 %v774, %v1075
        %v1088 = vrot.slane %v1076, 1
        %v1089 = vrot.slane %v1079, 1
        %v1090 = vsel %vm795, %v1088, %v1089
        %v1091 = vrot.slane %v1077, 1
        %v1092 = vrot.slane %v1080, 1
        %v1093 = vsel %vm795, %v1091, %v1092
        %v1094 = vrot.slane %v1078, 1
        %v1095 = vrot.slane %v1081, 1
        %v1096 = vsel %vm795, %v1094, %v1095
        %1097 = vrot.lane.b32.xlu0 %v1090, 111
        %v1098 = vpop.permute.xlu0 %1097
        %1099 = vrot.lane.b32.xlu0 %v1093, 111
        %v1100 = vpop.permute.xlu0 %1099
        %1101 = vrot.lane.b32.xlu0 %v1096, 111
        %v1102 = vpop.permute.xlu0 %1101
        %v1103 = vsel %vm522, %v1098, %v1100
        %v1104 = vsel %vm522, %v1100, %v1102
        %v1108 = vadd.f32 %v1034, %v1103
        %v1109 = vadd.f32 %v1035, %v1104
        %v1110 = vadd.f32 %v1036, %v1102
        %s1111 = sld [smem:[#allocation2 + $0x79]]
        %v1112 = vstv %s1111
        %v1113 = vmul.f32 %v769, %v1112
        %v1114 = vmul.f32 %v770, %v1112
        %v1115 = vmul.f32 %v771, %v1112
        %v1116 = vmul.f32 %v772, %v1112
        %v1117 = vmul.f32 %v773, %v1112
        %v1118 = vmul.f32 %v774, %v1112
        %v1125 = vrot.slane %v1113, 1
        %v1126 = vrot.slane %v1116, 1
        %v1127 = vsel %vm795, %v1125, %v1126
        %v1128 = vrot.slane %v1114, 1
        %v1129 = vrot.slane %v1117, 1
        %v1130 = vsel %vm795, %v1128, %v1129
        %v1131 = vrot.slane %v1115, 1
        %v1132 = vrot.slane %v1118, 1
        %v1133 = vsel %vm795, %v1131, %v1132
        %1134 = vrot.lane.b32.xlu0 %v1127, 111
        %v1135 = vpop.permute.xlu0 %1134
        %1136 = vrot.lane.b32.xlu0 %v1130, 111
        %v1137 = vpop.permute.xlu0 %1136
        %1138 = vrot.lane.b32.xlu0 %v1133, 111
        %v1139 = vpop.permute.xlu0 %1138
        %v1140 = vsel %vm522, %v1135, %v1137
        %v1141 = vsel %vm522, %v1137, %v1139
        %v1145 = vadd.f32 %v1071, %v1140
        %v1146 = vadd.f32 %v1072, %v1141
        %v1147 = vadd.f32 %v1073, %v1139
        %v1148 = vmul.f32 %v769, %v554
        %v1149 = vmul.f32 %v770, %v558
        %v1150 = vmul.f32 %v771, %v556
        %v1151 = vmul.f32 %v772, %v554
        %v1152 = vmul.f32 %v773, %v558
        %v1153 = vmul.f32 %v774, %v556
        %s1154 = sld [smem:[#allocation2 + $0xe]]
        %v1155 = vstv %s1154
        %v1156 = vmul.f32 %v1148, %v1155
        %v1157 = vmul.f32 %v1149, %v1155
        %v1158 = vmul.f32 %v1150, %v1155
        %v1159 = vmul.f32 %v1151, %v1155
        %v1160 = vmul.f32 %v1152, %v1155
        %v1161 = vmul.f32 %v1153, %v1155
        %v1168 = vrot.slane %v1156, 1
        %v1169 = vrot.slane %v1159, 1
        %v1170 = vsel %vm795, %v1168, %v1169
        %v1171 = vrot.slane %v1157, 1
        %v1172 = vrot.slane %v1160, 1
        %v1173 = vsel %vm795, %v1171, %v1172
        %v1174 = vrot.slane %v1158, 1
        %v1175 = vrot.slane %v1161, 1
        %v1176 = vsel %vm795, %v1174, %v1175
        %1177 = vrot.lane.b32.xlu0 %v1170, 110
        %v1178 = vpop.permute.xlu0 %1177
        %1179 = vrot.lane.b32.xlu0 %v1173, 110
        %v1180 = vpop.permute.xlu0 %1179
        %1181 = vrot.lane.b32.xlu0 %v1176, 110
        %v1182 = vpop.permute.xlu0 %1181
        %v1183 = vsel %vm579, %v1178, %v1180
        %v1184 = vsel %vm579, %v1180, %v1182
        %v1188 = vadd.f32 %v1108, %v1183
        %v1189 = vadd.f32 %v1109, %v1184
        %v1190 = vadd.f32 %v1110, %v1182
        %s1191 = sld [smem:[#allocation2 + $0x7a]]
        %v1192 = vstv %s1191
        %v1193 = vmul.f32 %v1148, %v1192
        %v1194 = vmul.f32 %v1149, %v1192
        %v1195 = vmul.f32 %v1150, %v1192
        %v1196 = vmul.f32 %v1151, %v1192
        %v1197 = vmul.f32 %v1152, %v1192
        %v1198 = vmul.f32 %v1153, %v1192
        %v1205 = vrot.slane %v1193, 1
        %v1206 = vrot.slane %v1196, 1
        %v1207 = vsel %vm795, %v1205, %v1206
        %v1208 = vrot.slane %v1194, 1
        %v1209 = vrot.slane %v1197, 1
        %v1210 = vsel %vm795, %v1208, %v1209
        %v1211 = vrot.slane %v1195, 1
        %v1212 = vrot.slane %v1198, 1
        %v1213 = vsel %vm795, %v1211, %v1212
        %1214 = vrot.lane.b32.xlu0 %v1207, 110
        %v1215 = vpop.permute.xlu0 %1214
        %1216 = vrot.lane.b32.xlu0 %v1210, 110
        %v1217 = vpop.permute.xlu0 %1216
        %1218 = vrot.lane.b32.xlu0 %v1213, 110
        %v1219 = vpop.permute.xlu0 %1218
        %v1220 = vsel %vm579, %v1215, %v1217
        %v1221 = vsel %vm579, %v1217, %v1219
        %v1225 = vadd.f32 %v1145, %v1220
        %v1226 = vadd.f32 %v1146, %v1221
        %v1227 = vadd.f32 %v1147, %v1219
        %v1228 = vmul.f32 %v769, %v611
        %v1229 = vmul.f32 %v770, %v615
        %v1230 = vmul.f32 %v771, %v613
        %v1231 = vmul.f32 %v772, %v611
        %v1232 = vmul.f32 %v773, %v615
        %v1233 = vmul.f32 %v774, %v613
        %s1234 = sld [smem:[#allocation2 + $0xf]]
        %v1235 = vstv %s1234
        %v1236 = vmul.f32 %v1228, %v1235
        %v1237 = vmul.f32 %v1229, %v1235
        %v1238 = vmul.f32 %v1230, %v1235
        %v1239 = vmul.f32 %v1231, %v1235
        %v1240 = vmul.f32 %v1232, %v1235
        %v1241 = vmul.f32 %v1233, %v1235
        %v1248 = vrot.slane %v1236, 1
        %v1249 = vrot.slane %v1239, 1
        %v1250 = vsel %vm795, %v1248, %v1249
        %v1251 = vrot.slane %v1237, 1
        %v1252 = vrot.slane %v1240, 1
        %v1253 = vsel %vm795, %v1251, %v1252
        %v1254 = vrot.slane %v1238, 1
        %v1255 = vrot.slane %v1241, 1
        %v1256 = vsel %vm795, %v1254, %v1255
        %1257 = vrot.lane.b32.xlu0 %v1250, 96
        %v1258 = vpop.permute.xlu0 %1257
        %1259 = vrot.lane.b32.xlu0 %v1253, 96
        %v1260 = vpop.permute.xlu0 %1259
        %1261 = vrot.lane.b32.xlu0 %v1256, 96
        %v1262 = vpop.permute.xlu0 %1261
        %v1263 = vsel %vm636, %v1258, %v1260
        %v1264 = vsel %vm636, %v1260, %v1262
        %v1268 = vadd.f32 %v1188, %v1263
        %v1269 = vadd.f32 %v1189, %v1264
        %v1270 = vadd.f32 %v1190, %v1262
        %s1271 = sld [smem:[#allocation2 + $0x7b]]
        %v1272 = vstv %s1271
        %v1273 = vmul.f32 %v1228, %v1272
        %v1274 = vmul.f32 %v1229, %v1272
        %v1275 = vmul.f32 %v1230, %v1272
        %v1276 = vmul.f32 %v1231, %v1272
        %v1277 = vmul.f32 %v1232, %v1272
        %v1278 = vmul.f32 %v1233, %v1272
        %v1285 = vrot.slane %v1273, 1
        %v1286 = vrot.slane %v1276, 1
        %v1287 = vsel %vm795, %v1285, %v1286
        %v1288 = vrot.slane %v1274, 1
        %v1289 = vrot.slane %v1277, 1
        %v1290 = vsel %vm795, %v1288, %v1289
        %v1291 = vrot.slane %v1275, 1
        %v1292 = vrot.slane %v1278, 1
        %v1293 = vsel %vm795, %v1291, %v1292
        %1294 = vrot.lane.b32.xlu0 %v1287, 96
        %v1295 = vpop.permute.xlu0 %1294
        %1296 = vrot.lane.b32.xlu0 %v1290, 96
        %v1297 = vpop.permute.xlu0 %1296
        %1298 = vrot.lane.b32.xlu0 %v1293, 96
        %v1299 = vpop.permute.xlu0 %1298
        %v1300 = vsel %vm636, %v1295, %v1297
        %v1301 = vsel %vm636, %v1297, %v1299
        %v1305 = vadd.f32 %v1225, %v1300
        %v1306 = vadd.f32 %v1226, %v1301
        %v1307 = vadd.f32 %v1227, %v1299
        %s1308 = sld [smem:[#allocation2 + $0x10]]
        %v1309 = vstv %s1308
        %v1310 = vmul.f32 %v769, %v1309
        %v1311 = vmul.f32 %v770, %v1309
        %v1312 = vmul.f32 %v771, %v1309
        %v1313 = vmul.f32 %v772, %v1309
        %v1314 = vmul.f32 %v773, %v1309
        %v1315 = vmul.f32 %v774, %v1309
        %v1322 = vrot.slane %v1310, 1
        %v1323 = vrot.slane %v1313, 1
        %v1324 = vsel %vm795, %v1322, %v1323
        %v1325 = vrot.slane %v1311, 1
        %v1326 = vrot.slane %v1314, 1
        %v1327 = vsel %vm795, %v1325, %v1326
        %v1328 = vrot.slane %v1312, 1
        %v1329 = vrot.slane %v1315, 1
        %v1330 = vsel %vm795, %v1328, %v1329
        %1331 = vrot.lane.b32.xlu0 %v1324, 95
        %v1332 = vpop.permute.xlu0 %1331
        %1333 = vrot.lane.b32.xlu0 %v1327, 95
        %v1334 = vpop.permute.xlu0 %1333
        %1335 = vrot.lane.b32.xlu0 %v1330, 95
        %v1336 = vpop.permute.xlu0 %1335
        %v1337 = vsel %vm681, %v1332, %v1334
        %v1338 = vsel %vm681, %v1334, %v1336
        %v1342 = vadd.f32 %v1268, %v1337
        %v1343 = vadd.f32 %v1269, %v1338
        %v1344 = vadd.f32 %v1270, %v1336
        %s1345 = sld [smem:[#allocation2 + $0x7c]]
        %v1346 = vstv %s1345
        %v1347 = vmul.f32 %v769, %v1346
        %v1348 = vmul.f32 %v770, %v1346
        %v1349 = vmul.f32 %v771, %v1346
        %v1350 = vmul.f32 %v772, %v1346
        %v1351 = vmul.f32 %v773, %v1346
        %v1352 = vmul.f32 %v774, %v1346
        %v1359 = vrot.slane %v1347, 1
        %v1360 = vrot.slane %v1350, 1
        %v1361 = vsel %vm795, %v1359, %v1360
        %v1362 = vrot.slane %v1348, 1
        %v1363 = vrot.slane %v1351, 1
        %v1364 = vsel %vm795, %v1362, %v1363
        %v1365 = vrot.slane %v1349, 1
        %v1366 = vrot.slane %v1352, 1
        %v1367 = vsel %vm795, %v1365, %v1366
        %1368 = vrot.lane.b32.xlu0 %v1361, 95
        %v1369 = vpop.permute.xlu0 %1368
        %1370 = vrot.lane.b32.xlu0 %v1364, 95
        %v1371 = vpop.permute.xlu0 %1370
        %1372 = vrot.lane.b32.xlu0 %v1367, 95
        %v1373 = vpop.permute.xlu0 %1372
        %v1374 = vsel %vm681, %v1369, %v1371
        %v1375 = vsel %vm681, %v1371, %v1373
        %v1379 = vadd.f32 %v1305, %v1374
        %v1380 = vadd.f32 %v1306, %v1375
        %v1381 = vadd.f32 %v1307, %v1373
        %v1382 = vmul.f32 %v769, %v713
        %v1383 = vmul.f32 %v770, %v717
        %v1384 = vmul.f32 %v771, %v715
        %v1385 = vmul.f32 %v772, %v713
        %v1386 = vmul.f32 %v773, %v717
        %v1387 = vmul.f32 %v774, %v715
        %s1388 = sld [smem:[#allocation2 + $0x11]]
        %v1389 = vstv %s1388
        %v1390 = vmul.f32 %v1382, %v1389
        %v1391 = vmul.f32 %v1383, %v1389
        %v1392 = vmul.f32 %v1384, %v1389
        %v1393 = vmul.f32 %v1385, %v1389
        %v1394 = vmul.f32 %v1386, %v1389
        %v1395 = vmul.f32 %v1387, %v1389
        %v1402 = vrot.slane %v1390, 1
        %v1403 = vrot.slane %v1393, 1
        %v1404 = vsel %vm795, %v1402, %v1403
        %v1405 = vrot.slane %v1391, 1
        %v1406 = vrot.slane %v1394, 1
        %v1407 = vsel %vm795, %v1405, %v1406
        %v1408 = vrot.slane %v1392, 1
        %v1409 = vrot.slane %v1395, 1
        %v1410 = vsel %vm795, %v1408, %v1409
        %1411 = vrot.lane.b32.xlu0 %v1404, 94
        %v1412 = vpop.permute.xlu0 %1411
        %1413 = vrot.lane.b32.xlu0 %v1407, 94
        %v1414 = vpop.permute.xlu0 %1413
        %1415 = vrot.lane.b32.xlu0 %v1410, 94
        %v1416 = vpop.permute.xlu0 %1415
        %v1417 = vsel %vm738, %v1412, %v1414
        %v1418 = vsel %vm738, %v1414, %v1416
        %v1422 = vadd.f32 %v1342, %v1417
        %v1423 = vadd.f32 %v1343, %v1418
        %v1424 = vadd.f32 %v1344, %v1416
        %s1425 = sld [smem:[#allocation2 + $0x7d]]
        %v1426 = vstv %s1425
        %v1427 = vmul.f32 %v1382, %v1426
        %v1428 = vmul.f32 %v1383, %v1426
        %v1429 = vmul.f32 %v1384, %v1426
        %v1430 = vmul.f32 %v1385, %v1426
        %v1431 = vmul.f32 %v1386, %v1426
        %v1432 = vmul.f32 %v1387, %v1426
        %v1439 = vrot.slane %v1427, 1
        %v1440 = vrot.slane %v1430, 1
        %v1441 = vsel %vm795, %v1439, %v1440
        %v1442 = vrot.slane %v1428, 1
        %v1443 = vrot.slane %v1431, 1
        %v1444 = vsel %vm795, %v1442, %v1443
        %v1445 = vrot.slane %v1429, 1
        %v1446 = vrot.slane %v1432, 1
        %v1447 = vsel %vm795, %v1445, %v1446
        %1448 = vrot.lane.b32.xlu0 %v1441, 94
        %v1449 = vpop.permute.xlu0 %1448
        %1450 = vrot.lane.b32.xlu0 %v1444, 94
        %v1451 = vpop.permute.xlu0 %1450
        %1452 = vrot.lane.b32.xlu0 %v1447, 94
        %v1453 = vpop.permute.xlu0 %1452
        %v1454 = vsel %vm738, %v1449, %v1451
        %v1455 = vsel %vm738, %v1451, %v1453
        %v1459 = vadd.f32 %v1379, %v1454
        %v1460 = vadd.f32 %v1380, %v1455
        %v1461 = vadd.f32 %v1381, %v1453
        %v1462 = vld [vmem:[%s274] sm:$0xfc]
        %v1463 = vld [vmem:[%s274 + $0x8] sm:$0xfc]
        %v1464 = vld [vmem:[%s274 + $0x10] sm:$0xfc]
        %v1465 = vld [vmem:[%s274 + $0x18] sm:$0x3]
        %v1466 = vld [vmem:[%s274 + $0x20] sm:$0x3]
        %v1467 = vld [vmem:[%s274 + $0x28] sm:$0x3]
        %v1468 = vmul.f32 %v1462, %v320
        %v1469 = vmul.f32 %v1463, %v324
        %v1470 = vmul.f32 %v1464, %v322
        %v1471 = vmul.f32 %v1465, %v320
        %v1472 = vmul.f32 %v1466, %v324
        %v1473 = vmul.f32 %v1467, %v322
        %s1474 = sld [smem:[#allocation2 + $0x12]]
        %v1475 = vstv %s1474
        %v1476 = vmul.f32 %v1468, %v1475
        %v1477 = vmul.f32 %v1469, %v1475
        %v1478 = vmul.f32 %v1470, %v1475
        %v1479 = vmul.f32 %v1471, %v1475
        %v1480 = vmul.f32 %v1472, %v1475
        %v1481 = vmul.f32 %v1473, %v1475
        %vm1488 = vcmask 1045504
        %v1489 = vrot.slane %v1476, 2
        %v1490 = vrot.slane %v1479, 2
        %v1491 = vsel %vm1488, %v1489, %v1490
        %v1492 = vrot.slane %v1477, 2
        %v1493 = vrot.slane %v1480, 2
        %v1494 = vsel %vm1488, %v1492, %v1493
        %v1495 = vrot.slane %v1478, 2
        %v1496 = vrot.slane %v1481, 2
        %v1497 = vsel %vm1488, %v1495, %v1496
        %v1501 = vadd.f32 %v1422, %v1491
        %v1502 = vadd.f32 %v1423, %v1494
        %v1503 = vadd.f32 %v1424, %v1497
        %s1504 = sld [smem:[#allocation2 + $0x7e]]
        %v1505 = vstv %s1504
        %v1506 = vmul.f32 %v1468, %v1505
        %v1507 = vmul.f32 %v1469, %v1505
        %v1508 = vmul.f32 %v1470, %v1505
        %v1509 = vmul.f32 %v1471, %v1505
        %v1510 = vmul.f32 %v1472, %v1505
        %v1511 = vmul.f32 %v1473, %v1505
        %v1518 = vrot.slane %v1506, 2
        %v1519 = vrot.slane %v1509, 2
        %v1520 = vsel %vm1488, %v1518, %v1519
        %v1521 = vrot.slane %v1507, 2
        %v1522 = vrot.slane %v1510, 2
        %v1523 = vsel %vm1488, %v1521, %v1522
        %v1524 = vrot.slane %v1508, 2
        %v1525 = vrot.slane %v1511, 2
        %v1526 = vsel %vm1488, %v1524, %v1525
        %v1530 = vadd.f32 %v1459, %v1520
        %v1531 = vadd.f32 %v1460, %v1523
        %v1532 = vadd.f32 %v1461, %v1526
        %s1533 = sld [smem:[#allocation2 + $0x13]]
        %v1534 = vstv %s1533
        %v1535 = vmul.f32 %v1462, %v1534
        %v1536 = vmul.f32 %v1463, %v1534
        %v1537 = vmul.f32 %v1464, %v1534
        %v1538 = vmul.f32 %v1465, %v1534
        %v1539 = vmul.f32 %v1466, %v1534
        %v1540 = vmul.f32 %v1467, %v1534
        %v1547 = vrot.slane %v1535, 2
        %v1548 = vrot.slane %v1538, 2
        %v1549 = vsel %vm1488, %v1547, %v1548
        %v1550 = vrot.slane %v1536, 2
        %v1551 = vrot.slane %v1539, 2
        %v1552 = vsel %vm1488, %v1550, %v1551
        %v1553 = vrot.slane %v1537, 2
        %v1554 = vrot.slane %v1540, 2
        %v1555 = vsel %vm1488, %v1553, %v1554
        %1556 = vrot.lane.b32.xlu0 %v1549, 127
        %v1557 = vpop.permute.xlu0 %1556
        %1558 = vrot.lane.b32.xlu0 %v1552, 127
        %v1559 = vpop.permute.xlu0 %1558
        %1560 = vrot.lane.b32.xlu0 %v1555, 127
        %v1561 = vpop.permute.xlu0 %1560
        %v1562 = vsel %vm361, %v1557, %v1559
        %v1563 = vsel %vm361, %v1559, %v1561
        %v1567 = vadd.f32 %v1501, %v1562
        %v1568 = vadd.f32 %v1502, %v1563
        %v1569 = vadd.f32 %v1503, %v1561
        %s1570 = sld [smem:[#allocation2 + $0x7f]]
        %v1571 = vstv %s1570
        %v1572 = vmul.f32 %v1462, %v1571
        %v1573 = vmul.f32 %v1463, %v1571
        %v1574 = vmul.f32 %v1464, %v1571
        %v1575 = vmul.f32 %v1465, %v1571
        %v1576 = vmul.f32 %v1466, %v1571
        %v1577 = vmul.f32 %v1467, %v1571
        %v1584 = vrot.slane %v1572, 2
        %v1585 = vrot.slane %v1575, 2
        %v1586 = vsel %vm1488, %v1584, %v1585
        %v1587 = vrot.slane %v1573, 2
        %v1588 = vrot.slane %v1576, 2
        %v1589 = vsel %vm1488, %v1587, %v1588
        %v1590 = vrot.slane %v1574, 2
        %v1591 = vrot.slane %v1577, 2
        %v1592 = vsel %vm1488, %v1590, %v1591
        %1593 = vrot.lane.b32.xlu0 %v1586, 127
        %v1594 = vpop.permute.xlu0 %1593
        %1595 = vrot.lane.b32.xlu0 %v1589, 127
        %v1596 = vpop.permute.xlu0 %1595
        %1597 = vrot.lane.b32.xlu0 %v1592, 127
        %v1598 = vpop.permute.xlu0 %1597
        %v1599 = vsel %vm361, %v1594, %v1596
        %v1600 = vsel %vm361, %v1596, %v1598
        %v1604 = vadd.f32 %v1530, %v1599
        %v1605 = vadd.f32 %v1531, %v1600
        %v1606 = vadd.f32 %v1532, %v1598
        %v1607 = vmul.f32 %v1462, %v395
        %v1608 = vmul.f32 %v1463, %v399
        %v1609 = vmul.f32 %v1464, %v397
        %v1610 = vmul.f32 %v1465, %v395
        %v1611 = vmul.f32 %v1466, %v399
        %v1612 = vmul.f32 %v1467, %v397
        %s1613 = sld [smem:[#allocation2 + $0x14]]
        %v1614 = vstv %s1613
        %v1615 = vmul.f32 %v1607, %v1614
        %v1616 = vmul.f32 %v1608, %v1614
        %v1617 = vmul.f32 %v1609, %v1614
        %v1618 = vmul.f32 %v1610, %v1614
        %v1619 = vmul.f32 %v1611, %v1614
        %v1620 = vmul.f32 %v1612, %v1614
        %v1627 = vrot.slane %v1615, 2
        %v1628 = vrot.slane %v1618, 2
        %v1629 = vsel %vm1488, %v1627, %v1628
        %v1630 = vrot.slane %v1616, 2
        %v1631 = vrot.slane %v1619, 2
        %v1632 = vsel %vm1488, %v1630, %v1631
        %v1633 = vrot.slane %v1617, 2
        %v1634 = vrot.slane %v1620, 2
        %v1635 = vsel %vm1488, %v1633, %v1634
        %1636 = vrot.lane.b32.xlu0 %v1629, 126
        %v1637 = vpop.permute.xlu0 %1636
        %1638 = vrot.lane.b32.xlu0 %v1632, 126
        %v1639 = vpop.permute.xlu0 %1638
        %1640 = vrot.lane.b32.xlu0 %v1635, 126
        %v1641 = vpop.permute.xlu0 %1640
        %v1642 = vsel %vm420, %v1637, %v1639
        %v1643 = vsel %vm420, %v1639, %v1641
        %v1647 = vadd.f32 %v1567, %v1642
        %v1648 = vadd.f32 %v1568, %v1643
        %v1649 = vadd.f32 %v1569, %v1641
        %s1650 = sld [smem:[#allocation2 + $0x80]]
        %v1651 = vstv %s1650
        %v1652 = vmul.f32 %v1607, %v1651
        %v1653 = vmul.f32 %v1608, %v1651
        %v1654 = vmul.f32 %v1609, %v1651
        %v1655 = vmul.f32 %v1610, %v1651
        %v1656 = vmul.f32 %v1611, %v1651
        %v1657 = vmul.f32 %v1612, %v1651
        %v1664 = vrot.slane %v1652, 2
        %v1665 = vrot.slane %v1655, 2
        %v1666 = vsel %vm1488, %v1664, %v1665
        %v1667 = vrot.slane %v1653, 2
        %v1668 = vrot.slane %v1656, 2
        %v1669 = vsel %vm1488, %v1667, %v1668
        %v1670 = vrot.slane %v1654, 2
        %v1671 = vrot.slane %v1657, 2
        %v1672 = vsel %vm1488, %v1670, %v1671
        %1673 = vrot.lane.b32.xlu0 %v1666, 126
        %v1674 = vpop.permute.xlu0 %1673
        %1675 = vrot.lane.b32.xlu0 %v1669, 126
        %v1676 = vpop.permute.xlu0 %1675
        %1677 = vrot.lane.b32.xlu0 %v1672, 126
        %v1678 = vpop.permute.xlu0 %1677
        %v1679 = vsel %vm420, %v1674, %v1676
        %v1680 = vsel %vm420, %v1676, %v1678
        %v1684 = vadd.f32 %v1604, %v1679
        %v1685 = vadd.f32 %v1605, %v1680
        %v1686 = vadd.f32 %v1606, %v1678
        %v1687 = vmul.f32 %v1462, %v452
        %v1688 = vmul.f32 %v1463, %v456
        %v1689 = vmul.f32 %v1464, %v454
        %v1690 = vmul.f32 %v1465, %v452
        %v1691 = vmul.f32 %v1466, %v456
        %v1692 = vmul.f32 %v1467, %v454
        %s1693 = sld [smem:[#allocation2 + $0x15]]
        %v1694 = vstv %s1693
        %v1695 = vmul.f32 %v1687, %v1694
        %v1696 = vmul.f32 %v1688, %v1694
        %v1697 = vmul.f32 %v1689, %v1694
        %v1698 = vmul.f32 %v1690, %v1694
        %v1699 = vmul.f32 %v1691, %v1694
        %v1700 = vmul.f32 %v1692, %v1694
        %v1707 = vrot.slane %v1695, 2
        %v1708 = vrot.slane %v1698, 2
        %v1709 = vsel %vm1488, %v1707, %v1708
        %v1710 = vrot.slane %v1696, 2
        %v1711 = vrot.slane %v1699, 2
        %v1712 = vsel %vm1488, %v1710, %v1711
        %v1713 = vrot.slane %v1697, 2
        %v1714 = vrot.slane %v1700, 2
        %v1715 = vsel %vm1488, %v1713, %v1714
        %1716 = vrot.lane.b32.xlu0 %v1709, 112
        %v1717 = vpop.permute.xlu0 %1716
        %1718 = vrot.lane.b32.xlu0 %v1712, 112
        %v1719 = vpop.permute.xlu0 %1718
        %1720 = vrot.lane.b32.xlu0 %v1715, 112
        %v1721 = vpop.permute.xlu0 %1720
        %v1722 = vsel %vm477, %v1717, %v1719
        %v1723 = vsel %vm477, %v1719, %v1721
        %v1727 = vadd.f32 %v1647, %v1722
        %v1728 = vadd.f32 %v1648, %v1723
        %v1729 = vadd.f32 %v1649, %v1721
        %s1730 = sld [smem:[#allocation2 + $0x81]]
        %v1731 = vstv %s1730
        %v1732 = vmul.f32 %v1687, %v1731
        %v1733 = vmul.f32 %v1688, %v1731
        %v1734 = vmul.f32 %v1689, %v1731
        %v1735 = vmul.f32 %v1690, %v1731
        %v1736 = vmul.f32 %v1691, %v1731
        %v1737 = vmul.f32 %v1692, %v1731
        %v1744 = vrot.slane %v1732, 2
        %v1745 = vrot.slane %v1735, 2
        %v1746 = vsel %vm1488, %v1744, %v1745
        %v1747 = vrot.slane %v1733, 2
        %v1748 = vrot.slane %v1736, 2
        %v1749 = vsel %vm1488, %v1747, %v1748
        %v1750 = vrot.slane %v1734, 2
        %v1751 = vrot.slane %v1737, 2
        %v1752 = vsel %vm1488, %v1750, %v1751
        %1753 = vrot.lane.b32.xlu0 %v1746, 112
        %v1754 = vpop.permute.xlu0 %1753
        %1755 = vrot.lane.b32.xlu0 %v1749, 112
        %v1756 = vpop.permute.xlu0 %1755
        %1757 = vrot.lane.b32.xlu0 %v1752, 112
        %v1758 = vpop.permute.xlu0 %1757
        %v1759 = vsel %vm477, %v1754, %v1756
        %v1760 = vsel %vm477, %v1756, %v1758
        %v1764 = vadd.f32 %v1684, %v1759
        %v1765 = vadd.f32 %v1685, %v1760
        %v1766 = vadd.f32 %v1686, %v1758
        %s1767 = sld [smem:[#allocation2 + $0x16]]
        %v1768 = vstv %s1767
        %v1769 = vmul.f32 %v1462, %v1768
        %v1770 = vmul.f32 %v1463, %v1768
        %v1771 = vmul.f32 %v1464, %v1768
        %v1772 = vmul.f32 %v1465, %v1768
        %v1773 = vmul.f32 %v1466, %v1768
        %v1774 = vmul.f32 %v1467, %v1768
        %v1781 = vrot.slane %v1769, 2
        %v1782 = vrot.slane %v1772, 2
        %v1783 = vsel %vm1488, %v1781, %v1782
        %v1784 = vrot.slane %v1770, 2
        %v1785 = vrot.slane %v1773, 2
        %v1786 = vsel %vm1488, %v1784, %v1785
        %v1787 = vrot.slane %v1771, 2
        %v1788 = vrot.slane %v1774, 2
        %v1789 = vsel %vm1488, %v1787, %v1788
        %1790 = vrot.lane.b32.xlu0 %v1783, 111
        %v1791 = vpop.permute.xlu0 %1790
        %1792 = vrot.lane.b32.xlu0 %v1786, 111
        %v1793 = vpop.permute.xlu0 %1792
        %1794 = vrot.lane.b32.xlu0 %v1789, 111
        %v1795 = vpop.permute.xlu0 %1794
        %v1796 = vsel %vm522, %v1791, %v1793
        %v1797 = vsel %vm522, %v1793, %v1795
        %v1801 = vadd.f32 %v1727, %v1796
        %v1802 = vadd.f32 %v1728, %v1797
        %v1803 = vadd.f32 %v1729, %v1795
        %s1804 = sld [smem:[#allocation2 + $0x82]]
        %v1805 = vstv %s1804
        %v1806 = vmul.f32 %v1462, %v1805
        %v1807 = vmul.f32 %v1463, %v1805
        %v1808 = vmul.f32 %v1464, %v1805
        %v1809 = vmul.f32 %v1465, %v1805
        %v1810 = vmul.f32 %v1466, %v1805
        %v1811 = vmul.f32 %v1467, %v1805
        %v1818 = vrot.slane %v1806, 2
        %v1819 = vrot.slane %v1809, 2
        %v1820 = vsel %vm1488, %v1818, %v1819
        %v1821 = vrot.slane %v1807, 2
        %v1822 = vrot.slane %v1810, 2
        %v1823 = vsel %vm1488, %v1821, %v1822
        %v1824 = vrot.slane %v1808, 2
        %v1825 = vrot.slane %v1811, 2
        %v1826 = vsel %vm1488, %v1824, %v1825
        %1827 = vrot.lane.b32.xlu0 %v1820, 111
        %v1828 = vpop.permute.xlu0 %1827
        %1829 = vrot.lane.b32.xlu0 %v1823, 111
        %v1830 = vpop.permute.xlu0 %1829
        %1831 = vrot.lane.b32.xlu0 %v1826, 111
        %v1832 = vpop.permute.xlu0 %1831
        %v1833 = vsel %vm522, %v1828, %v1830
        %v1834 = vsel %vm522, %v1830, %v1832
        %v1838 = vadd.f32 %v1764, %v1833
        %v1839 = vadd.f32 %v1765, %v1834
        %v1840 = vadd.f32 %v1766, %v1832
        %v1841 = vmul.f32 %v1462, %v554
        %v1842 = vmul.f32 %v1463, %v558
        %v1843 = vmul.f32 %v1464, %v556
        %v1844 = vmul.f32 %v1465, %v554
        %v1845 = vmul.f32 %v1466, %v558
        %v1846 = vmul.f32 %v1467, %v556
        %s1847 = sld [smem:[#allocation2 + $0x17]]
        %v1848 = vstv %s1847
        %v1849 = vmul.f32 %v1841, %v1848
        %v1850 = vmul.f32 %v1842, %v1848
        %v1851 = vmul.f32 %v1843, %v1848
        %v1852 = vmul.f32 %v1844, %v1848
        %v1853 = vmul.f32 %v1845, %v1848
        %v1854 = vmul.f32 %v1846, %v1848
        %v1861 = vrot.slane %v1849, 2
        %v1862 = vrot.slane %v1852, 2
        %v1863 = vsel %vm1488, %v1861, %v1862
        %v1864 = vrot.slane %v1850, 2
        %v1865 = vrot.slane %v1853, 2
        %v1866 = vsel %vm1488, %v1864, %v1865
        %v1867 = vrot.slane %v1851, 2
        %v1868 = vrot.slane %v1854, 2
        %v1869 = vsel %vm1488, %v1867, %v1868
        %1870 = vrot.lane.b32.xlu0 %v1863, 110
        %v1871 = vpop.permute.xlu0 %1870
        %1872 = vrot.lane.b32.xlu0 %v1866, 110
        %v1873 = vpop.permute.xlu0 %1872
        %1874 = vrot.lane.b32.xlu0 %v1869, 110
        %v1875 = vpop.permute.xlu0 %1874
        %v1876 = vsel %vm579, %v1871, %v1873
        %v1877 = vsel %vm579, %v1873, %v1875
        %v1881 = vadd.f32 %v1801, %v1876
        %v1882 = vadd.f32 %v1802, %v1877
        %v1883 = vadd.f32 %v1803, %v1875
        %s1884 = sld [smem:[#allocation2 + $0x83]]
        %v1885 = vstv %s1884
        %v1886 = vmul.f32 %v1841, %v1885
        %v1887 = vmul.f32 %v1842, %v1885
        %v1888 = vmul.f32 %v1843, %v1885
        %v1889 = vmul.f32 %v1844, %v1885
        %v1890 = vmul.f32 %v1845, %v1885
        %v1891 = vmul.f32 %v1846, %v1885
        %v1898 = vrot.slane %v1886, 2
        %v1899 = vrot.slane %v1889, 2
        %v1900 = vsel %vm1488, %v1898, %v1899
        %v1901 = vrot.slane %v1887, 2
        %v1902 = vrot.slane %v1890, 2
        %v1903 = vsel %vm1488, %v1901, %v1902
        %v1904 = vrot.slane %v1888, 2
        %v1905 = vrot.slane %v1891, 2
        %v1906 = vsel %vm1488, %v1904, %v1905
        %1907 = vrot.lane.b32.xlu0 %v1900, 110
        %v1908 = vpop.permute.xlu0 %1907
        %1909 = vrot.lane.b32.xlu0 %v1903, 110
        %v1910 = vpop.permute.xlu0 %1909
        %1911 = vrot.lane.b32.xlu0 %v1906, 110
        %v1912 = vpop.permute.xlu0 %1911
        %v1913 = vsel %vm579, %v1908, %v1910
        %v1914 = vsel %vm579, %v1910, %v1912
        %v1918 = vadd.f32 %v1838, %v1913
        %v1919 = vadd.f32 %v1839, %v1914
        %v1920 = vadd.f32 %v1840, %v1912
        %v1921 = vmul.f32 %v1462, %v611
        %v1922 = vmul.f32 %v1463, %v615
        %v1923 = vmul.f32 %v1464, %v613
        %v1924 = vmul.f32 %v1465, %v611
        %v1925 = vmul.f32 %v1466, %v615
        %v1926 = vmul.f32 %v1467, %v613
        %s1927 = sld [smem:[#allocation2 + $0x18]]
        %v1928 = vstv %s1927
        %v1929 = vmul.f32 %v1921, %v1928
        %v1930 = vmul.f32 %v1922, %v1928
        %v1931 = vmul.f32 %v1923, %v1928
        %v1932 = vmul.f32 %v1924, %v1928
        %v1933 = vmul.f32 %v1925, %v1928
        %v1934 = vmul.f32 %v1926, %v1928
        %v1941 = vrot.slane %v1929, 2
        %v1942 = vrot.slane %v1932, 2
        %v1943 = vsel %vm1488, %v1941, %v1942
        %v1944 = vrot.slane %v1930, 2
        %v1945 = vrot.slane %v1933, 2
        %v1946 = vsel %vm1488, %v1944, %v1945
        %v1947 = vrot.slane %v1931, 2
        %v1948 = vrot.slane %v1934, 2
        %v1949 = vsel %vm1488, %v1947, %v1948
        %1950 = vrot.lane.b32.xlu0 %v1943, 96
        %v1951 = vpop.permute.xlu0 %1950
        %1952 = vrot.lane.b32.xlu0 %v1946, 96
        %v1953 = vpop.permute.xlu0 %1952
        %1954 = vrot.lane.b32.xlu0 %v1949, 96
        %v1955 = vpop.permute.xlu0 %1954
        %v1956 = vsel %vm636, %v1951, %v1953
        %v1957 = vsel %vm636, %v1953, %v1955
        %v1961 = vadd.f32 %v1881, %v1956
        %v1962 = vadd.f32 %v1882, %v1957
        %v1963 = vadd.f32 %v1883, %v1955
        %s1964 = sld [smem:[#allocation2 + $0x84]]
        %v1965 = vstv %s1964
        %v1966 = vmul.f32 %v1921, %v1965
        %v1967 = vmul.f32 %v1922, %v1965
        %v1968 = vmul.f32 %v1923, %v1965
        %v1969 = vmul.f32 %v1924, %v1965
        %v1970 = vmul.f32 %v1925, %v1965
        %v1971 = vmul.f32 %v1926, %v1965
        %v1978 = vrot.slane %v1966, 2
        %v1979 = vrot.slane %v1969, 2
        %v1980 = vsel %vm1488, %v1978, %v1979
        %v1981 = vrot.slane %v1967, 2
        %v1982 = vrot.slane %v1970, 2
        %v1983 = vsel %vm1488, %v1981, %v1982
        %v1984 = vrot.slane %v1968, 2
        %v1985 = vrot.slane %v1971, 2
        %v1986 = vsel %vm1488, %v1984, %v1985
        %1987 = vrot.lane.b32.xlu0 %v1980, 96
        %v1988 = vpop.permute.xlu0 %1987
        %1989 = vrot.lane.b32.xlu0 %v1983, 96
        %v1990 = vpop.permute.xlu0 %1989
        %1991 = vrot.lane.b32.xlu0 %v1986, 96
        %v1992 = vpop.permute.xlu0 %1991
        %v1993 = vsel %vm636, %v1988, %v1990
        %v1994 = vsel %vm636, %v1990, %v1992
        %v1998 = vadd.f32 %v1918, %v1993
        %v1999 = vadd.f32 %v1919, %v1994
        %v2000 = vadd.f32 %v1920, %v1992
        %s2001 = sld [smem:[#allocation2 + $0x19]]
        %v2002 = vstv %s2001
        %v2003 = vmul.f32 %v1462, %v2002
        %v2004 = vmul.f32 %v1463, %v2002
        %v2005 = vmul.f32 %v1464, %v2002
        %v2006 = vmul.f32 %v1465, %v2002
        %v2007 = vmul.f32 %v1466, %v2002
        %v2008 = vmul.f32 %v1467, %v2002
        %v2015 = vrot.slane %v2003, 2
        %v2016 = vrot.slane %v2006, 2
        %v2017 = vsel %vm1488, %v2015, %v2016
        %v2018 = vrot.slane %v2004, 2
        %v2019 = vrot.slane %v2007, 2
        %v2020 = vsel %vm1488, %v2018, %v2019
        %v2021 = vrot.slane %v2005, 2
        %v2022 = vrot.slane %v2008, 2
        %v2023 = vsel %vm1488, %v2021, %v2022
        %2024 = vrot.lane.b32.xlu0 %v2017, 95
        %v2025 = vpop.permute.xlu0 %2024
        %2026 = vrot.lane.b32.xlu0 %v2020, 95
        %v2027 = vpop.permute.xlu0 %2026
        %2028 = vrot.lane.b32.xlu0 %v2023, 95
        %v2029 = vpop.permute.xlu0 %2028
        %v2030 = vsel %vm681, %v2025, %v2027
        %v2031 = vsel %vm681, %v2027, %v2029
        %v2035 = vadd.f32 %v1961, %v2030
        %v2036 = vadd.f32 %v1962, %v2031
        %v2037 = vadd.f32 %v1963, %v2029
        %s2038 = sld [smem:[#allocation2 + $0x85]]
        %v2039 = vstv %s2038
        %v2040 = vmul.f32 %v1462, %v2039
        %v2041 = vmul.f32 %v1463, %v2039
        %v2042 = vmul.f32 %v1464, %v2039
        %v2043 = vmul.f32 %v1465, %v2039
        %v2044 = vmul.f32 %v1466, %v2039
        %v2045 = vmul.f32 %v1467, %v2039
        %v2052 = vrot.slane %v2040, 2
        %v2053 = vrot.slane %v2043, 2
        %v2054 = vsel %vm1488, %v2052, %v2053
        %v2055 = vrot.slane %v2041, 2
        %v2056 = vrot.slane %v2044, 2
        %v2057 = vsel %vm1488, %v2055, %v2056
        %v2058 = vrot.slane %v2042, 2
        %v2059 = vrot.slane %v2045, 2
        %v2060 = vsel %vm1488, %v2058, %v2059
        %2061 = vrot.lane.b32.xlu0 %v2054, 95
        %v2062 = vpop.permute.xlu0 %2061
        %2063 = vrot.lane.b32.xlu0 %v2057, 95
        %v2064 = vpop.permute.xlu0 %2063
        %2065 = vrot.lane.b32.xlu0 %v2060, 95
        %v2066 = vpop.permute.xlu0 %2065
        %v2067 = vsel %vm681, %v2062, %v2064
        %v2068 = vsel %vm681, %v2064, %v2066
        %v2072 = vadd.f32 %v1998, %v2067
        %v2073 = vadd.f32 %v1999, %v2068
        %v2074 = vadd.f32 %v2000, %v2066
        %v2075 = vmul.f32 %v1462, %v713
        %v2076 = vmul.f32 %v1463, %v717
        %v2077 = vmul.f32 %v1464, %v715
        %v2078 = vmul.f32 %v1465, %v713
        %v2079 = vmul.f32 %v1466, %v717
        %v2080 = vmul.f32 %v1467, %v715
        %s2081 = sld [smem:[#allocation2 + $0x1a]]
        %v2082 = vstv %s2081
        %v2083 = vmul.f32 %v2075, %v2082
        %v2084 = vmul.f32 %v2076, %v2082
        %v2085 = vmul.f32 %v2077, %v2082
        %v2086 = vmul.f32 %v2078, %v2082
        %v2087 = vmul.f32 %v2079, %v2082
        %v2088 = vmul.f32 %v2080, %v2082
        %v2095 = vrot.slane %v2083, 2
        %v2096 = vrot.slane %v2086, 2
        %v2097 = vsel %vm1488, %v2095, %v2096
        %v2098 = vrot.slane %v2084, 2
        %v2099 = vrot.slane %v2087, 2
        %v2100 = vsel %vm1488, %v2098, %v2099
        %v2101 = vrot.slane %v2085, 2
        %v2102 = vrot.slane %v2088, 2
        %v2103 = vsel %vm1488, %v2101, %v2102
        %2104 = vrot.lane.b32.xlu0 %v2097, 94
        %v2105 = vpop.permute.xlu0 %2104
        %2106 = vrot.lane.b32.xlu0 %v2100, 94
        %v2107 = vpop.permute.xlu0 %2106
        %2108 = vrot.lane.b32.xlu0 %v2103, 94
        %v2109 = vpop.permute.xlu0 %2108
        %v2110 = vsel %vm738, %v2105, %v2107
        %v2111 = vsel %vm738, %v2107, %v2109
        %v2115 = vadd.f32 %v2035, %v2110
        %v2116 = vadd.f32 %v2036, %v2111
        %v2117 = vadd.f32 %v2037, %v2109
        %s2118 = sld [smem:[#allocation2 + $0x86]]
        %v2119 = vstv %s2118
        %v2120 = vmul.f32 %v2075, %v2119
        %v2121 = vmul.f32 %v2076, %v2119
        %v2122 = vmul.f32 %v2077, %v2119
        %v2123 = vmul.f32 %v2078, %v2119
        %v2124 = vmul.f32 %v2079, %v2119
        %v2125 = vmul.f32 %v2080, %v2119
        %v2132 = vrot.slane %v2120, 2
        %v2133 = vrot.slane %v2123, 2
        %v2134 = vsel %vm1488, %v2132, %v2133
        %v2135 = vrot.slane %v2121, 2
        %v2136 = vrot.slane %v2124, 2
        %v2137 = vsel %vm1488, %v2135, %v2136
        %v2138 = vrot.slane %v2122, 2
        %v2139 = vrot.slane %v2125, 2
        %v2140 = vsel %vm1488, %v2138, %v2139
        %2141 = vrot.lane.b32.xlu0 %v2134, 94
        %v2142 = vpop.permute.xlu0 %2141
        %2143 = vrot.lane.b32.xlu0 %v2137, 94
        %v2144 = vpop.permute.xlu0 %2143
        %2145 = vrot.lane.b32.xlu0 %v2140, 94
        %v2146 = vpop.permute.xlu0 %2145
        %v2147 = vsel %vm738, %v2142, %v2144
        %v2148 = vsel %vm738, %v2144, %v2146
        %v2152 = vadd.f32 %v2072, %v2147
        %v2153 = vadd.f32 %v2073, %v2148
        %v2154 = vadd.f32 %v2074, %v2146
        %s2155 = scalar_lea.vmem %s274, 48
        %v2156 = vld [vmem:[%s2155] sm:$0xff]
        %v2157 = vld [vmem:[%s2155 + $0x8] sm:$0xff]
        %v2158 = vld [vmem:[%s2155 + $0x10] sm:$0xff]
        %v2159 = vmul.f32 %v2156, %v320
        %v2160 = vmul.f32 %v2157, %v324
        %v2161 = vmul.f32 %v2158, %v322
        %s2162 = sld [smem:[#allocation2 + $0x1b]]
        %v2163 = vstv %s2162
        %v2164 = vmul.f32 %v2159, %v2163
        %v2165 = vmul.f32 %v2160, %v2163
        %v2166 = vmul.f32 %v2161, %v2163
        %v2167 = vadd.f32 %v2115, %v2164
        %v2168 = vadd.f32 %v2116, %v2165
        %v2169 = vadd.f32 %v2117, %v2166
        %s2170 = sld [smem:[#allocation2 + $0x87]]
        %v2171 = vstv %s2170
        %v2172 = vmul.f32 %v2159, %v2171
        %v2173 = vmul.f32 %v2160, %v2171
        %v2174 = vmul.f32 %v2161, %v2171
        %v2175 = vadd.f32 %v2152, %v2172
        %v2176 = vadd.f32 %v2153, %v2173
        %v2177 = vadd.f32 %v2154, %v2174
        %s2178 = sld [smem:[#allocation2 + $0x1c]]
        %v2179 = vstv %s2178
        %v2180 = vmul.f32 %v2156, %v2179
        %v2181 = vmul.f32 %v2157, %v2179
        %v2182 = vmul.f32 %v2158, %v2179
        %2186 = vrot.lane.b32.xlu0 %v2180, 127
        %v2187 = vpop.permute.xlu0 %2186
        %2188 = vrot.lane.b32.xlu0 %v2181, 127
        %v2189 = vpop.permute.xlu0 %2188
        %2190 = vrot.lane.b32.xlu0 %v2182, 127
        %v2191 = vpop.permute.xlu0 %2190
        %v2192 = vsel %vm361, %v2187, %v2189
        %v2193 = vsel %vm361, %v2189, %v2191
        %v2197 = vadd.f32 %v2167, %v2192
        %v2198 = vadd.f32 %v2168, %v2193
        %v2199 = vadd.f32 %v2169, %v2191
        %s2200 = sld [smem:[#allocation2 + $0x88]]
        %v2201 = vstv %s2200
        %v2202 = vmul.f32 %v2156, %v2201
        %v2203 = vmul.f32 %v2157, %v2201
        %v2204 = vmul.f32 %v2158, %v2201
        %2208 = vrot.lane.b32.xlu0 %v2202, 127
        %v2209 = vpop.permute.xlu0 %2208
        %2210 = vrot.lane.b32.xlu0 %v2203, 127
        %v2211 = vpop.permute.xlu0 %2210
        %2212 = vrot.lane.b32.xlu0 %v2204, 127
        %v2213 = vpop.permute.xlu0 %2212
        %v2214 = vsel %vm361, %v2209, %v2211
        %v2215 = vsel %vm361, %v2211, %v2213
        %v2219 = vadd.f32 %v2175, %v2214
        %v2220 = vadd.f32 %v2176, %v2215
        %v2221 = vadd.f32 %v2177, %v2213
        %v2222 = vmul.f32 %v2156, %v395
        %v2223 = vmul.f32 %v2157, %v399
        %v2224 = vmul.f32 %v2158, %v397
        %s2225 = sld [smem:[#allocation2 + $0x1d]]
        %v2226 = vstv %s2225
        %v2227 = vmul.f32 %v2222, %v2226
        %v2228 = vmul.f32 %v2223, %v2226
        %v2229 = vmul.f32 %v2224, %v2226
        %2233 = vrot.lane.b32.xlu0 %v2227, 126
        %v2234 = vpop.permute.xlu0 %2233
        %2235 = vrot.lane.b32.xlu0 %v2228, 126
        %v2236 = vpop.permute.xlu0 %2235
        %2237 = vrot.lane.b32.xlu0 %v2229, 126
        %v2238 = vpop.permute.xlu0 %2237
        %v2239 = vsel %vm420, %v2234, %v2236
        %v2240 = vsel %vm420, %v2236, %v2238
        %v2244 = vadd.f32 %v2197, %v2239
        %v2245 = vadd.f32 %v2198, %v2240
        %v2246 = vadd.f32 %v2199, %v2238
        %s2247 = sld [smem:[#allocation2 + $0x89]]
        %v2248 = vstv %s2247
        %v2249 = vmul.f32 %v2222, %v2248
        %v2250 = vmul.f32 %v2223, %v2248
        %v2251 = vmul.f32 %v2224, %v2248
        %2255 = vrot.lane.b32.xlu0 %v2249, 126
        %v2256 = vpop.permute.xlu0 %2255
        %2257 = vrot.lane.b32.xlu0 %v2250, 126
        %v2258 = vpop.permute.xlu0 %2257
        %2259 = vrot.lane.b32.xlu0 %v2251, 126
        %v2260 = vpop.permute.xlu0 %2259
        %v2261 = vsel %vm420, %v2256, %v2258
        %v2262 = vsel %vm420, %v2258, %v2260
        %v2266 = vadd.f32 %v2219, %v2261
        %v2267 = vadd.f32 %v2220, %v2262
        %v2268 = vadd.f32 %v2221, %v2260
        %v2269 = vmul.f32 %v2156, %v452
        %v2270 = vmul.f32 %v2157, %v456
        %v2271 = vmul.f32 %v2158, %v454
        %s2272 = sld [smem:[#allocation2 + $0x1e]]
        %v2273 = vstv %s2272
        %v2274 = vmul.f32 %v2269, %v2273
        %v2275 = vmul.f32 %v2270, %v2273
        %v2276 = vmul.f32 %v2271, %v2273
        %2280 = vrot.lane.b32.xlu0 %v2274, 112
        %v2281 = vpop.permute.xlu0 %2280
        %2282 = vrot.lane.b32.xlu0 %v2275, 112
        %v2283 = vpop.permute.xlu0 %2282
        %2284 = vrot.lane.b32.xlu0 %v2276, 112
        %v2285 = vpop.permute.xlu0 %2284
        %v2286 = vsel %vm477, %v2281, %v2283
        %v2287 = vsel %vm477, %v2283, %v2285
        %v2291 = vadd.f32 %v2244, %v2286
        %v2292 = vadd.f32 %v2245, %v2287
        %v2293 = vadd.f32 %v2246, %v2285
        %s2294 = sld [smem:[#allocation2 + $0x8a]]
        %v2295 = vstv %s2294
        %v2296 = vmul.f32 %v2269, %v2295
        %v2297 = vmul.f32 %v2270, %v2295
        %v2298 = vmul.f32 %v2271, %v2295
        %2302 = vrot.lane.b32.xlu0 %v2296, 112
        %v2303 = vpop.permute.xlu0 %2302
        %2304 = vrot.lane.b32.xlu0 %v2297, 112
        %v2305 = vpop.permute.xlu0 %2304
        %2306 = vrot.lane.b32.xlu0 %v2298, 112
        %v2307 = vpop.permute.xlu0 %2306
        %v2308 = vsel %vm477, %v2303, %v2305
        %v2309 = vsel %vm477, %v2305, %v2307
        %v2313 = vadd.f32 %v2266, %v2308
        %v2314 = vadd.f32 %v2267, %v2309
        %v2315 = vadd.f32 %v2268, %v2307
        %s2316 = sld [smem:[#allocation2 + $0x1f]]
        %v2317 = vstv %s2316
        %v2318 = vmul.f32 %v2156, %v2317
        %v2319 = vmul.f32 %v2157, %v2317
        %v2320 = vmul.f32 %v2158, %v2317
        %2324 = vrot.lane.b32.xlu0 %v2318, 111
        %v2325 = vpop.permute.xlu0 %2324
        %2326 = vrot.lane.b32.xlu0 %v2319, 111
        %v2327 = vpop.permute.xlu0 %2326
        %2328 = vrot.lane.b32.xlu0 %v2320, 111
        %v2329 = vpop.permute.xlu0 %2328
        %v2330 = vsel %vm522, %v2325, %v2327
        %v2331 = vsel %vm522, %v2327, %v2329
        %v2335 = vadd.f32 %v2291, %v2330
        %v2336 = vadd.f32 %v2292, %v2331
        %v2337 = vadd.f32 %v2293, %v2329
        %s2338 = sld [smem:[#allocation2 + $0x8b]]
        %v2339 = vstv %s2338
        %v2340 = vmul.f32 %v2156, %v2339
        %v2341 = vmul.f32 %v2157, %v2339
        %v2342 = vmul.f32 %v2158, %v2339
        %2346 = vrot.lane.b32.xlu0 %v2340, 111
        %v2347 = vpop.permute.xlu0 %2346
        %2348 = vrot.lane.b32.xlu0 %v2341, 111
        %v2349 = vpop.permute.xlu0 %2348
        %2350 = vrot.lane.b32.xlu0 %v2342, 111
        %v2351 = vpop.permute.xlu0 %2350
        %v2352 = vsel %vm522, %v2347, %v2349
        %v2353 = vsel %vm522, %v2349, %v2351
        %v2357 = vadd.f32 %v2313, %v2352
        %v2358 = vadd.f32 %v2314, %v2353
        %v2359 = vadd.f32 %v2315, %v2351
        %v2360 = vmul.f32 %v2156, %v554
        %v2361 = vmul.f32 %v2157, %v558
        %v2362 = vmul.f32 %v2158, %v556
        %s2363 = sld [smem:[#allocation2 + $0x20]]
        %v2364 = vstv %s2363
        %v2365 = vmul.f32 %v2360, %v2364
        %v2366 = vmul.f32 %v2361, %v2364
        %v2367 = vmul.f32 %v2362, %v2364
        %2371 = vrot.lane.b32.xlu0 %v2365, 110
        %v2372 = vpop.permute.xlu0 %2371
        %2373 = vrot.lane.b32.xlu0 %v2366, 110
        %v2374 = vpop.permute.xlu0 %2373
        %2375 = vrot.lane.b32.xlu0 %v2367, 110
        %v2376 = vpop.permute.xlu0 %2375
        %v2377 = vsel %vm579, %v2372, %v2374
        %v2378 = vsel %vm579, %v2374, %v2376
        %v2382 = vadd.f32 %v2335, %v2377
        %v2383 = vadd.f32 %v2336, %v2378
        %v2384 = vadd.f32 %v2337, %v2376
        %s2385 = sld [smem:[#allocation2 + $0x8c]]
        %v2386 = vstv %s2385
        %v2387 = vmul.f32 %v2360, %v2386
        %v2388 = vmul.f32 %v2361, %v2386
        %v2389 = vmul.f32 %v2362, %v2386
        %2393 = vrot.lane.b32.xlu0 %v2387, 110
        %v2394 = vpop.permute.xlu0 %2393
        %2395 = vrot.lane.b32.xlu0 %v2388, 110
        %v2396 = vpop.permute.xlu0 %2395
        %2397 = vrot.lane.b32.xlu0 %v2389, 110
        %v2398 = vpop.permute.xlu0 %2397
        %v2399 = vsel %vm579, %v2394, %v2396
        %v2400 = vsel %vm579, %v2396, %v2398
        %v2404 = vadd.f32 %v2357, %v2399
        %v2405 = vadd.f32 %v2358, %v2400
        %v2406 = vadd.f32 %v2359, %v2398
        %v2407 = vmul.f32 %v2156, %v611
        %v2408 = vmul.f32 %v2157, %v615
        %v2409 = vmul.f32 %v2158, %v613
        %s2410 = sld [smem:[#allocation2 + $0x21]]
        %v2411 = vstv %s2410
        %v2412 = vmul.f32 %v2407, %v2411
        %v2413 = vmul.f32 %v2408, %v2411
        %v2414 = vmul.f32 %v2409, %v2411
        %2418 = vrot.lane.b32.xlu0 %v2412, 96
        %v2419 = vpop.permute.xlu0 %2418
        %2420 = vrot.lane.b32.xlu0 %v2413, 96
        %v2421 = vpop.permute.xlu0 %2420
        %2422 = vrot.lane.b32.xlu0 %v2414, 96
        %v2423 = vpop.permute.xlu0 %2422
        %v2424 = vsel %vm636, %v2419, %v2421
        %v2425 = vsel %vm636, %v2421, %v2423
        %v2429 = vadd.f32 %v2382, %v2424
        %v2430 = vadd.f32 %v2383, %v2425
        %v2431 = vadd.f32 %v2384, %v2423
        %s2432 = sld [smem:[#allocation2 + $0x8d]]
        %v2433 = vstv %s2432
        %v2434 = vmul.f32 %v2407, %v2433
        %v2435 = vmul.f32 %v2408, %v2433
        %v2436 = vmul.f32 %v2409, %v2433
        %2440 = vrot.lane.b32.xlu0 %v2434, 96
        %v2441 = vpop.permute.xlu0 %2440
        %2442 = vrot.lane.b32.xlu0 %v2435, 96
        %v2443 = vpop.permute.xlu0 %2442
        %2444 = vrot.lane.b32.xlu0 %v2436, 96
        %v2445 = vpop.permute.xlu0 %2444
        %v2446 = vsel %vm636, %v2441, %v2443
        %v2447 = vsel %vm636, %v2443, %v2445
        %v2451 = vadd.f32 %v2404, %v2446
        %v2452 = vadd.f32 %v2405, %v2447
        %v2453 = vadd.f32 %v2406, %v2445
        %s2454 = sld [smem:[#allocation2 + $0x22]]
        %v2455 = vstv %s2454
        %v2456 = vmul.f32 %v2156, %v2455
        %v2457 = vmul.f32 %v2157, %v2455
        %v2458 = vmul.f32 %v2158, %v2455
        %2462 = vrot.lane.b32.xlu0 %v2456, 95
        %v2463 = vpop.permute.xlu0 %2462
        %2464 = vrot.lane.b32.xlu0 %v2457, 95
        %v2465 = vpop.permute.xlu0 %2464
        %2466 = vrot.lane.b32.xlu0 %v2458, 95
        %v2467 = vpop.permute.xlu0 %2466
        %v2468 = vsel %vm681, %v2463, %v2465
        %v2469 = vsel %vm681, %v2465, %v2467
        %v2473 = vadd.f32 %v2429, %v2468
        %v2474 = vadd.f32 %v2430, %v2469
        %v2475 = vadd.f32 %v2431, %v2467
        %s2476 = sld [smem:[#allocation2 + $0x8e]]
        %v2477 = vstv %s2476
        %v2478 = vmul.f32 %v2156, %v2477
        %v2479 = vmul.f32 %v2157, %v2477
        %v2480 = vmul.f32 %v2158, %v2477
        %2484 = vrot.lane.b32.xlu0 %v2478, 95
        %v2485 = vpop.permute.xlu0 %2484
        %2486 = vrot.lane.b32.xlu0 %v2479, 95
        %v2487 = vpop.permute.xlu0 %2486
        %2488 = vrot.lane.b32.xlu0 %v2480, 95
        %v2489 = vpop.permute.xlu0 %2488
        %v2490 = vsel %vm681, %v2485, %v2487
        %v2491 = vsel %vm681, %v2487, %v2489
        %v2495 = vadd.f32 %v2451, %v2490
        %v2496 = vadd.f32 %v2452, %v2491
        %v2497 = vadd.f32 %v2453, %v2489
        %v2498 = vmul.f32 %v2156, %v713
        %v2499 = vmul.f32 %v2157, %v717
        %v2500 = vmul.f32 %v2158, %v715
        %s2501 = sld [smem:[#allocation2 + $0x23]]
        %v2502 = vstv %s2501
        %v2503 = vmul.f32 %v2498, %v2502
        %v2504 = vmul.f32 %v2499, %v2502
        %v2505 = vmul.f32 %v2500, %v2502
        %2509 = vrot.lane.b32.xlu0 %v2503, 94
        %v2510 = vpop.permute.xlu0 %2509
        %2511 = vrot.lane.b32.xlu0 %v2504, 94
        %v2512 = vpop.permute.xlu0 %2511
        %2513 = vrot.lane.b32.xlu0 %v2505, 94
        %v2514 = vpop.permute.xlu0 %2513
        %v2515 = vsel %vm738, %v2510, %v2512
        %v2516 = vsel %vm738, %v2512, %v2514
        %v2520 = vadd.f32 %v2473, %v2515
        %v2521 = vadd.f32 %v2474, %v2516
        %v2522 = vadd.f32 %v2475, %v2514
        %s2523 = sld [smem:[#allocation2 + $0x8f]]
        %v2524 = vstv %s2523
        %v2525 = vmul.f32 %v2498, %v2524
        %v2526 = vmul.f32 %v2499, %v2524
        %v2527 = vmul.f32 %v2500, %v2524
        %2531 = vrot.lane.b32.xlu0 %v2525, 94
        %v2532 = vpop.permute.xlu0 %2531
        %2533 = vrot.lane.b32.xlu0 %v2526, 94
        %v2534 = vpop.permute.xlu0 %2533
        %2535 = vrot.lane.b32.xlu0 %v2527, 94
        %v2536 = vpop.permute.xlu0 %2535
        %v2537 = vsel %vm738, %v2532, %v2534
        %v2538 = vsel %vm738, %v2534, %v2536
        %v2542 = vadd.f32 %v2495, %v2537
        %v2543 = vadd.f32 %v2496, %v2538
        %v2544 = vadd.f32 %v2497, %v2536
        %v2545 = vld [vmem:[%s2155] sm:$0xfe]
        %v2546 = vld [vmem:[%s2155 + $0x8] sm:$0xfe]
        %v2547 = vld [vmem:[%s2155 + $0x10] sm:$0xfe]
        %v2548 = vld [vmem:[%s2155 + $0x18] sm:$0x1]
        %v2549 = vld [vmem:[%s2155 + $0x20] sm:$0x1]
        %v2550 = vld [vmem:[%s2155 + $0x28] sm:$0x1]
        %v2551 = vmul.f32 %v2545, %v320
        %v2552 = vmul.f32 %v2546, %v324
        %v2553 = vmul.f32 %v2547, %v322
        %v2554 = vmul.f32 %v2548, %v320
        %v2555 = vmul.f32 %v2549, %v324
        %v2556 = vmul.f32 %v2550, %v322
        %s2557 = sld [smem:[#allocation2 + $0x24]]
        %v2558 = vstv %s2557
        %v2559 = vmul.f32 %v2551, %v2558
        %v2560 = vmul.f32 %v2552, %v2558
        %v2561 = vmul.f32 %v2553, %v2558
        %v2562 = vmul.f32 %v2554, %v2558
        %v2563 = vmul.f32 %v2555, %v2558
        %v2564 = vmul.f32 %v2556, %v2558
        %v2571 = vrot.slane %v2559, 1
        %v2572 = vrot.slane %v2562, 1
        %v2573 = vsel %vm795, %v2571, %v2572
        %v2574 = vrot.slane %v2560, 1
        %v2575 = vrot.slane %v2563, 1
        %v2576 = vsel %vm795, %v2574, %v2575
        %v2577 = vrot.slane %v2561, 1
        %v2578 = vrot.slane %v2564, 1
        %v2579 = vsel %vm795, %v2577, %v2578
        %v2583 = vadd.f32 %v2520, %v2573
        %v2584 = vadd.f32 %v2521, %v2576
        %v2585 = vadd.f32 %v2522, %v2579
        %s2586 = sld [smem:[#allocation2 + $0x90]]
        %v2587 = vstv %s2586
        %v2588 = vmul.f32 %v2551, %v2587
        %v2589 = vmul.f32 %v2552, %v2587
        %v2590 = vmul.f32 %v2553, %v2587
        %v2591 = vmul.f32 %v2554, %v2587
        %v2592 = vmul.f32 %v2555, %v2587
        %v2593 = vmul.f32 %v2556, %v2587
        %v2600 = vrot.slane %v2588, 1
        %v2601 = vrot.slane %v2591, 1
        %v2602 = vsel %vm795, %v2600, %v2601
        %v2603 = vrot.slane %v2589, 1
        %v2604 = vrot.slane %v2592, 1
        %v2605 = vsel %vm795, %v2603, %v2604
        %v2606 = vrot.slane %v2590, 1
        %v2607 = vrot.slane %v2593, 1
        %v2608 = vsel %vm795, %v2606, %v2607
        %v2612 = vadd.f32 %v2542, %v2602
        %v2613 = vadd.f32 %v2543, %v2605
        %v2614 = vadd.f32 %v2544, %v2608
        %s2615 = sld [smem:[#allocation2 + $0x25]]
        %v2616 = vstv %s2615
        %v2617 = vmul.f32 %v2545, %v2616
        %v2618 = vmul.f32 %v2546, %v2616
        %v2619 = vmul.f32 %v2547, %v2616
        %v2620 = vmul.f32 %v2548, %v2616
        %v2621 = vmul.f32 %v2549, %v2616
        %v2622 = vmul.f32 %v2550, %v2616
        %v2629 = vrot.slane %v2617, 1
        %v2630 = vrot.slane %v2620, 1
        %v2631 = vsel %vm795, %v2629, %v2630
        %v2632 = vrot.slane %v2618, 1
        %v2633 = vrot.slane %v2621, 1
        %v2634 = vsel %vm795, %v2632, %v2633
        %v2635 = vrot.slane %v2619, 1
        %v2636 = vrot.slane %v2622, 1
        %v2637 = vsel %vm795, %v2635, %v2636
        %2638 = vrot.lane.b32.xlu0 %v2631, 127
        %v2639 = vpop.permute.xlu0 %2638
        %2640 = vrot.lane.b32.xlu0 %v2634, 127
        %v2641 = vpop.permute.xlu0 %2640
        %2642 = vrot.lane.b32.xlu0 %v2637, 127
        %v2643 = vpop.permute.xlu0 %2642
        %v2644 = vsel %vm361, %v2639, %v2641
        %v2645 = vsel %vm361, %v2641, %v2643
        %v2649 = vadd.f32 %v2583, %v2644
        %v2650 = vadd.f32 %v2584, %v2645
        %v2651 = vadd.f32 %v2585, %v2643
        %s2652 = sld [smem:[#allocation2 + $0x91]]
        %v2653 = vstv %s2652
        %v2654 = vmul.f32 %v2545, %v2653
        %v2655 = vmul.f32 %v2546, %v2653
        %v2656 = vmul.f32 %v2547, %v2653
        %v2657 = vmul.f32 %v2548, %v2653
        %v2658 = vmul.f32 %v2549, %v2653
        %v2659 = vmul.f32 %v2550, %v2653
        %v2666 = vrot.slane %v2654, 1
        %v2667 = vrot.slane %v2657, 1
        %v2668 = vsel %vm795, %v2666, %v2667
        %v2669 = vrot.slane %v2655, 1
        %v2670 = vrot.slane %v2658, 1
        %v2671 = vsel %vm795, %v2669, %v2670
        %v2672 = vrot.slane %v2656, 1
        %v2673 = vrot.slane %v2659, 1
        %v2674 = vsel %vm795, %v2672, %v2673
        %2675 = vrot.lane.b32.xlu0 %v2668, 127
        %v2676 = vpop.permute.xlu0 %2675
        %2677 = vrot.lane.b32.xlu0 %v2671, 127
        %v2678 = vpop.permute.xlu0 %2677
        %2679 = vrot.lane.b32.xlu0 %v2674, 127
        %v2680 = vpop.permute.xlu0 %2679
        %v2681 = vsel %vm361, %v2676, %v2678
        %v2682 = vsel %vm361, %v2678, %v2680
        %v2686 = vadd.f32 %v2612, %v2681
        %v2687 = vadd.f32 %v2613, %v2682
        %v2688 = vadd.f32 %v2614, %v2680
        %v2689 = vmul.f32 %v2545, %v395
        %v2690 = vmul.f32 %v2546, %v399
        %v2691 = vmul.f32 %v2547, %v397
        %v2692 = vmul.f32 %v2548, %v395
        %v2693 = vmul.f32 %v2549, %v399
        %v2694 = vmul.f32 %v2550, %v397
        %s2695 = sld [smem:[#allocation2 + $0x26]]
        %v2696 = vstv %s2695
        %v2697 = vmul.f32 %v2689, %v2696
        %v2698 = vmul.f32 %v2690, %v2696
        %v2699 = vmul.f32 %v2691, %v2696
        %v2700 = vmul.f32 %v2692, %v2696
        %v2701 = vmul.f32 %v2693, %v2696
        %v2702 = vmul.f32 %v2694, %v2696
        %v2709 = vrot.slane %v2697, 1
        %v2710 = vrot.slane %v2700, 1
        %v2711 = vsel %vm795, %v2709, %v2710
        %v2712 = vrot.slane %v2698, 1
        %v2713 = vrot.slane %v2701, 1
        %v2714 = vsel %vm795, %v2712, %v2713
        %v2715 = vrot.slane %v2699, 1
        %v2716 = vrot.slane %v2702, 1
        %v2717 = vsel %vm795, %v2715, %v2716
        %2718 = vrot.lane.b32.xlu0 %v2711, 126
        %v2719 = vpop.permute.xlu0 %2718
        %2720 = vrot.lane.b32.xlu0 %v2714, 126
        %v2721 = vpop.permute.xlu0 %2720
        %2722 = vrot.lane.b32.xlu0 %v2717, 126
        %v2723 = vpop.permute.xlu0 %2722
        %v2724 = vsel %vm420, %v2719, %v2721
        %v2725 = vsel %vm420, %v2721, %v2723
        %v2729 = vadd.f32 %v2649, %v2724
        %v2730 = vadd.f32 %v2650, %v2725
        %v2731 = vadd.f32 %v2651, %v2723
        %s2732 = sld [smem:[#allocation2 + $0x92]]
        %v2733 = vstv %s2732
        %v2734 = vmul.f32 %v2689, %v2733
        %v2735 = vmul.f32 %v2690, %v2733
        %v2736 = vmul.f32 %v2691, %v2733
        %v2737 = vmul.f32 %v2692, %v2733
        %v2738 = vmul.f32 %v2693, %v2733
        %v2739 = vmul.f32 %v2694, %v2733
        %v2746 = vrot.slane %v2734, 1
        %v2747 = vrot.slane %v2737, 1
        %v2748 = vsel %vm795, %v2746, %v2747
        %v2749 = vrot.slane %v2735, 1
        %v2750 = vrot.slane %v2738, 1
        %v2751 = vsel %vm795, %v2749, %v2750
        %v2752 = vrot.slane %v2736, 1
        %v2753 = vrot.slane %v2739, 1
        %v2754 = vsel %vm795, %v2752, %v2753
        %2755 = vrot.lane.b32.xlu0 %v2748, 126
        %v2756 = vpop.permute.xlu0 %2755
        %2757 = vrot.lane.b32.xlu0 %v2751, 126
        %v2758 = vpop.permute.xlu0 %2757
        %2759 = vrot.lane.b32.xlu0 %v2754, 126
        %v2760 = vpop.permute.xlu0 %2759
        %v2761 = vsel %vm420, %v2756, %v2758
        %v2762 = vsel %vm420, %v2758, %v2760
        %v2766 = vadd.f32 %v2686, %v2761
        %v2767 = vadd.f32 %v2687, %v2762
        %v2768 = vadd.f32 %v2688, %v2760
        %v2769 = vmul.f32 %v2545, %v452
        %v2770 = vmul.f32 %v2546, %v456
        %v2771 = vmul.f32 %v2547, %v454
        %v2772 = vmul.f32 %v2548, %v452
        %v2773 = vmul.f32 %v2549, %v456
        %v2774 = vmul.f32 %v2550, %v454
        %s2775 = sld [smem:[#allocation2 + $0x27]]
        %v2776 = vstv %s2775
        %v2777 = vmul.f32 %v2769, %v2776
        %v2778 = vmul.f32 %v2770, %v2776
        %v2779 = vmul.f32 %v2771, %v2776
        %v2780 = vmul.f32 %v2772, %v2776
        %v2781 = vmul.f32 %v2773, %v2776
        %v2782 = vmul.f32 %v2774, %v2776
        %v2789 = vrot.slane %v2777, 1
        %v2790 = vrot.slane %v2780, 1
        %v2791 = vsel %vm795, %v2789, %v2790
        %v2792 = vrot.slane %v2778, 1
        %v2793 = vrot.slane %v2781, 1
        %v2794 = vsel %vm795, %v2792, %v2793
        %v2795 = vrot.slane %v2779, 1
        %v2796 = vrot.slane %v2782, 1
        %v2797 = vsel %vm795, %v2795, %v2796
        %2798 = vrot.lane.b32.xlu0 %v2791, 112
        %v2799 = vpop.permute.xlu0 %2798
        %2800 = vrot.lane.b32.xlu0 %v2794, 112
        %v2801 = vpop.permute.xlu0 %2800
        %2802 = vrot.lane.b32.xlu0 %v2797, 112
        %v2803 = vpop.permute.xlu0 %2802
        %v2804 = vsel %vm477, %v2799, %v2801
        %v2805 = vsel %vm477, %v2801, %v2803
        %v2809 = vadd.f32 %v2729, %v2804
        %v2810 = vadd.f32 %v2730, %v2805
        %v2811 = vadd.f32 %v2731, %v2803
        %s2812 = sld [smem:[#allocation2 + $0x93]]
        %v2813 = vstv %s2812
        %v2814 = vmul.f32 %v2769, %v2813
        %v2815 = vmul.f32 %v2770, %v2813
        %v2816 = vmul.f32 %v2771, %v2813
        %v2817 = vmul.f32 %v2772, %v2813
        %v2818 = vmul.f32 %v2773, %v2813
        %v2819 = vmul.f32 %v2774, %v2813
        %v2826 = vrot.slane %v2814, 1
        %v2827 = vrot.slane %v2817, 1
        %v2828 = vsel %vm795, %v2826, %v2827
        %v2829 = vrot.slane %v2815, 1
        %v2830 = vrot.slane %v2818, 1
        %v2831 = vsel %vm795, %v2829, %v2830
        %v2832 = vrot.slane %v2816, 1
        %v2833 = vrot.slane %v2819, 1
        %v2834 = vsel %vm795, %v2832, %v2833
        %2835 = vrot.lane.b32.xlu0 %v2828, 112
        %v2836 = vpop.permute.xlu0 %2835
        %2837 = vrot.lane.b32.xlu0 %v2831, 112
        %v2838 = vpop.permute.xlu0 %2837
        %2839 = vrot.lane.b32.xlu0 %v2834, 112
        %v2840 = vpop.permute.xlu0 %2839
        %v2841 = vsel %vm477, %v2836, %v2838
        %v2842 = vsel %vm477, %v2838, %v2840
        %v2846 = vadd.f32 %v2766, %v2841
        %v2847 = vadd.f32 %v2767, %v2842
        %v2848 = vadd.f32 %v2768, %v2840
        %s2849 = sld [smem:[#allocation2 + $0x28]]
        %v2850 = vstv %s2849
        %v2851 = vmul.f32 %v2545, %v2850
        %v2852 = vmul.f32 %v2546, %v2850
        %v2853 = vmul.f32 %v2547, %v2850
        %v2854 = vmul.f32 %v2548, %v2850
        %v2855 = vmul.f32 %v2549, %v2850
        %v2856 = vmul.f32 %v2550, %v2850
        %v2863 = vrot.slane %v2851, 1
        %v2864 = vrot.slane %v2854, 1
        %v2865 = vsel %vm795, %v2863, %v2864
        %v2866 = vrot.slane %v2852, 1
        %v2867 = vrot.slane %v2855, 1
        %v2868 = vsel %vm795, %v2866, %v2867
        %v2869 = vrot.slane %v2853, 1
        %v2870 = vrot.slane %v2856, 1
        %v2871 = vsel %vm795, %v2869, %v2870
        %2872 = vrot.lane.b32.xlu0 %v2865, 111
        %v2873 = vpop.permute.xlu0 %2872
        %2874 = vrot.lane.b32.xlu0 %v2868, 111
        %v2875 = vpop.permute.xlu0 %2874
        %2876 = vrot.lane.b32.xlu0 %v2871, 111
        %v2877 = vpop.permute.xlu0 %2876
        %v2878 = vsel %vm522, %v2873, %v2875
        %v2879 = vsel %vm522, %v2875, %v2877
        %v2883 = vadd.f32 %v2809, %v2878
        %v2884 = vadd.f32 %v2810, %v2879
        %v2885 = vadd.f32 %v2811, %v2877
        %s2886 = sld [smem:[#allocation2 + $0x94]]
        %v2887 = vstv %s2886
        %v2888 = vmul.f32 %v2545, %v2887
        %v2889 = vmul.f32 %v2546, %v2887
        %v2890 = vmul.f32 %v2547, %v2887
        %v2891 = vmul.f32 %v2548, %v2887
        %v2892 = vmul.f32 %v2549, %v2887
        %v2893 = vmul.f32 %v2550, %v2887
        %v2900 = vrot.slane %v2888, 1
        %v2901 = vrot.slane %v2891, 1
        %v2902 = vsel %vm795, %v2900, %v2901
        %v2903 = vrot.slane %v2889, 1
        %v2904 = vrot.slane %v2892, 1
        %v2905 = vsel %vm795, %v2903, %v2904
        %v2906 = vrot.slane %v2890, 1
        %v2907 = vrot.slane %v2893, 1
        %v2908 = vsel %vm795, %v2906, %v2907
        %2909 = vrot.lane.b32.xlu0 %v2902, 111
        %v2910 = vpop.permute.xlu0 %2909
        %2911 = vrot.lane.b32.xlu0 %v2905, 111
        %v2912 = vpop.permute.xlu0 %2911
        %2913 = vrot.lane.b32.xlu0 %v2908, 111
        %v2914 = vpop.permute.xlu0 %2913
        %v2915 = vsel %vm522, %v2910, %v2912
        %v2916 = vsel %vm522, %v2912, %v2914
        %v2920 = vadd.f32 %v2846, %v2915
        %v2921 = vadd.f32 %v2847, %v2916
        %v2922 = vadd.f32 %v2848, %v2914
        %v2923 = vmul.f32 %v2545, %v554
        %v2924 = vmul.f32 %v2546, %v558
        %v2925 = vmul.f32 %v2547, %v556
        %v2926 = vmul.f32 %v2548, %v554
        %v2927 = vmul.f32 %v2549, %v558
        %v2928 = vmul.f32 %v2550, %v556
        %s2929 = sld [smem:[#allocation2 + $0x29]]
        %v2930 = vstv %s2929
        %v2931 = vmul.f32 %v2923, %v2930
        %v2932 = vmul.f32 %v2924, %v2930
        %v2933 = vmul.f32 %v2925, %v2930
        %v2934 = vmul.f32 %v2926, %v2930
        %v2935 = vmul.f32 %v2927, %v2930
        %v2936 = vmul.f32 %v2928, %v2930
        %v2943 = vrot.slane %v2931, 1
        %v2944 = vrot.slane %v2934, 1
        %v2945 = vsel %vm795, %v2943, %v2944
        %v2946 = vrot.slane %v2932, 1
        %v2947 = vrot.slane %v2935, 1
        %v2948 = vsel %vm795, %v2946, %v2947
        %v2949 = vrot.slane %v2933, 1
        %v2950 = vrot.slane %v2936, 1
        %v2951 = vsel %vm795, %v2949, %v2950
        %2952 = vrot.lane.b32.xlu0 %v2945, 110
        %v2953 = vpop.permute.xlu0 %2952
        %2954 = vrot.lane.b32.xlu0 %v2948, 110
        %v2955 = vpop.permute.xlu0 %2954
        %2956 = vrot.lane.b32.xlu0 %v2951, 110
        %v2957 = vpop.permute.xlu0 %2956
        %v2958 = vsel %vm579, %v2953, %v2955
        %v2959 = vsel %vm579, %v2955, %v2957
        %v2963 = vadd.f32 %v2883, %v2958
        %v2964 = vadd.f32 %v2884, %v2959
        %v2965 = vadd.f32 %v2885, %v2957
        %s2966 = sld [smem:[#allocation2 + $0x95]]
        %v2967 = vstv %s2966
        %v2968 = vmul.f32 %v2923, %v2967
        %v2969 = vmul.f32 %v2924, %v2967
        %v2970 = vmul.f32 %v2925, %v2967
        %v2971 = vmul.f32 %v2926, %v2967
        %v2972 = vmul.f32 %v2927, %v2967
        %v2973 = vmul.f32 %v2928, %v2967
        %v2980 = vrot.slane %v2968, 1
        %v2981 = vrot.slane %v2971, 1
        %v2982 = vsel %vm795, %v2980, %v2981
        %v2983 = vrot.slane %v2969, 1
        %v2984 = vrot.slane %v2972, 1
        %v2985 = vsel %vm795, %v2983, %v2984
        %v2986 = vrot.slane %v2970, 1
        %v2987 = vrot.slane %v2973, 1
        %v2988 = vsel %vm795, %v2986, %v2987
        %2989 = vrot.lane.b32.xlu0 %v2982, 110
        %v2990 = vpop.permute.xlu0 %2989
        %2991 = vrot.lane.b32.xlu0 %v2985, 110
        %v2992 = vpop.permute.xlu0 %2991
        %2993 = vrot.lane.b32.xlu0 %v2988, 110
        %v2994 = vpop.permute.xlu0 %2993
        %v2995 = vsel %vm579, %v2990, %v2992
        %v2996 = vsel %vm579, %v2992, %v2994
        %v3000 = vadd.f32 %v2920, %v2995
        %v3001 = vadd.f32 %v2921, %v2996
        %v3002 = vadd.f32 %v2922, %v2994
        %v3003 = vmul.f32 %v2545, %v611
        %v3004 = vmul.f32 %v2546, %v615
        %v3005 = vmul.f32 %v2547, %v613
        %v3006 = vmul.f32 %v2548, %v611
        %v3007 = vmul.f32 %v2549, %v615
        %v3008 = vmul.f32 %v2550, %v613
        %s3009 = sld [smem:[#allocation2 + $0x2a]]
        %v3010 = vstv %s3009
        %v3011 = vmul.f32 %v3003, %v3010
        %v3012 = vmul.f32 %v3004, %v3010
        %v3013 = vmul.f32 %v3005, %v3010
        %v3014 = vmul.f32 %v3006, %v3010
        %v3015 = vmul.f32 %v3007, %v3010
        %v3016 = vmul.f32 %v3008, %v3010
        %v3023 = vrot.slane %v3011, 1
        %v3024 = vrot.slane %v3014, 1
        %v3025 = vsel %vm795, %v3023, %v3024
        %v3026 = vrot.slane %v3012, 1
        %v3027 = vrot.slane %v3015, 1
        %v3028 = vsel %vm795, %v3026, %v3027
        %v3029 = vrot.slane %v3013, 1
        %v3030 = vrot.slane %v3016, 1
        %v3031 = vsel %vm795, %v3029, %v3030
        %3032 = vrot.lane.b32.xlu0 %v3025, 96
        %v3033 = vpop.permute.xlu0 %3032
        %3034 = vrot.lane.b32.xlu0 %v3028, 96
        %v3035 = vpop.permute.xlu0 %3034
        %3036 = vrot.lane.b32.xlu0 %v3031, 96
        %v3037 = vpop.permute.xlu0 %3036
        %v3038 = vsel %vm636, %v3033, %v3035
        %v3039 = vsel %vm636, %v3035, %v3037
        %v3043 = vadd.f32 %v2963, %v3038
        %v3044 = vadd.f32 %v2964, %v3039
        %v3045 = vadd.f32 %v2965, %v3037
        %s3046 = sld [smem:[#allocation2 + $0x96]]
        %v3047 = vstv %s3046
        %v3048 = vmul.f32 %v3003, %v3047
        %v3049 = vmul.f32 %v3004, %v3047
        %v3050 = vmul.f32 %v3005, %v3047
        %v3051 = vmul.f32 %v3006, %v3047
        %v3052 = vmul.f32 %v3007, %v3047
        %v3053 = vmul.f32 %v3008, %v3047
        %v3060 = vrot.slane %v3048, 1
        %v3061 = vrot.slane %v3051, 1
        %v3062 = vsel %vm795, %v3060, %v3061
        %v3063 = vrot.slane %v3049, 1
        %v3064 = vrot.slane %v3052, 1
        %v3065 = vsel %vm795, %v3063, %v3064
        %v3066 = vrot.slane %v3050, 1
        %v3067 = vrot.slane %v3053, 1
        %v3068 = vsel %vm795, %v3066, %v3067
        %3069 = vrot.lane.b32.xlu0 %v3062, 96
        %v3070 = vpop.permute.xlu0 %3069
        %3071 = vrot.lane.b32.xlu0 %v3065, 96
        %v3072 = vpop.permute.xlu0 %3071
        %3073 = vrot.lane.b32.xlu0 %v3068, 96
        %v3074 = vpop.permute.xlu0 %3073
        %v3075 = vsel %vm636, %v3070, %v3072
        %v3076 = vsel %vm636, %v3072, %v3074
        %v3080 = vadd.f32 %v3000, %v3075
        %v3081 = vadd.f32 %v3001, %v3076
        %v3082 = vadd.f32 %v3002, %v3074
        %s3083 = sld [smem:[#allocation2 + $0x2b]]
        %v3084 = vstv %s3083
        %v3085 = vmul.f32 %v2545, %v3084
        %v3086 = vmul.f32 %v2546, %v3084
        %v3087 = vmul.f32 %v2547, %v3084
        %v3088 = vmul.f32 %v2548, %v3084
        %v3089 = vmul.f32 %v2549, %v3084
        %v3090 = vmul.f32 %v2550, %v3084
        %v3097 = vrot.slane %v3085, 1
        %v3098 = vrot.slane %v3088, 1
        %v3099 = vsel %vm795, %v3097, %v3098
        %v3100 = vrot.slane %v3086, 1
        %v3101 = vrot.slane %v3089, 1
        %v3102 = vsel %vm795, %v3100, %v3101
        %v3103 = vrot.slane %v3087, 1
        %v3104 = vrot.slane %v3090, 1
        %v3105 = vsel %vm795, %v3103, %v3104
        %3106 = vrot.lane.b32.xlu0 %v3099, 95
        %v3107 = vpop.permute.xlu0 %3106
        %3108 = vrot.lane.b32.xlu0 %v3102, 95
        %v3109 = vpop.permute.xlu0 %3108
        %3110 = vrot.lane.b32.xlu0 %v3105, 95
        %v3111 = vpop.permute.xlu0 %3110
        %v3112 = vsel %vm681, %v3107, %v3109
        %v3113 = vsel %vm681, %v3109, %v3111
        %v3117 = vadd.f32 %v3043, %v3112
        %v3118 = vadd.f32 %v3044, %v3113
        %v3119 = vadd.f32 %v3045, %v3111
        %s3120 = sld [smem:[#allocation2 + $0x97]]
        %v3121 = vstv %s3120
        %v3122 = vmul.f32 %v2545, %v3121
        %v3123 = vmul.f32 %v2546, %v3121
        %v3124 = vmul.f32 %v2547, %v3121
        %v3125 = vmul.f32 %v2548, %v3121
        %v3126 = vmul.f32 %v2549, %v3121
        %v3127 = vmul.f32 %v2550, %v3121
        %v3134 = vrot.slane %v3122, 1
        %v3135 = vrot.slane %v3125, 1
        %v3136 = vsel %vm795, %v3134, %v3135
        %v3137 = vrot.slane %v3123, 1
        %v3138 = vrot.slane %v3126, 1
        %v3139 = vsel %vm795, %v3137, %v3138
        %v3140 = vrot.slane %v3124, 1
        %v3141 = vrot.slane %v3127, 1
        %v3142 = vsel %vm795, %v3140, %v3141
        %3143 = vrot.lane.b32.xlu0 %v3136, 95
        %v3144 = vpop.permute.xlu0 %3143
        %3145 = vrot.lane.b32.xlu0 %v3139, 95
        %v3146 = vpop.permute.xlu0 %3145
        %3147 = vrot.lane.b32.xlu0 %v3142, 95
        %v3148 = vpop.permute.xlu0 %3147
        %v3149 = vsel %vm681, %v3144, %v3146
        %v3150 = vsel %vm681, %v3146, %v3148
        %v3154 = vadd.f32 %v3080, %v3149
        %v3155 = vadd.f32 %v3081, %v3150
        %v3156 = vadd.f32 %v3082, %v3148
        %v3157 = vmul.f32 %v2545, %v713
        %v3158 = vmul.f32 %v2546, %v717
        %v3159 = vmul.f32 %v2547, %v715
        %v3160 = vmul.f32 %v2548, %v713
        %v3161 = vmul.f32 %v2549, %v717
        %v3162 = vmul.f32 %v2550, %v715
        %s3163 = sld [smem:[#allocation2 + $0x2c]]
        %v3164 = vstv %s3163
        %v3165 = vmul.f32 %v3157, %v3164
        %v3166 = vmul.f32 %v3158, %v3164
        %v3167 = vmul.f32 %v3159, %v3164
        %v3168 = vmul.f32 %v3160, %v3164
        %v3169 = vmul.f32 %v3161, %v3164
        %v3170 = vmul.f32 %v3162, %v3164
        %v3177 = vrot.slane %v3165, 1
        %v3178 = vrot.slane %v3168, 1
        %v3179 = vsel %vm795, %v3177, %v3178
        %v3180 = vrot.slane %v3166, 1
        %v3181 = vrot.slane %v3169, 1
        %v3182 = vsel %vm795, %v3180, %v3181
        %v3183 = vrot.slane %v3167, 1
        %v3184 = vrot.slane %v3170, 1
        %v3185 = vsel %vm795, %v3183, %v3184
        %3186 = vrot.lane.b32.xlu0 %v3179, 94
        %v3187 = vpop.permute.xlu0 %3186
        %3188 = vrot.lane.b32.xlu0 %v3182, 94
        %v3189 = vpop.permute.xlu0 %3188
        %3190 = vrot.lane.b32.xlu0 %v3185, 94
        %v3191 = vpop.permute.xlu0 %3190
        %v3192 = vsel %vm738, %v3187, %v3189
        %v3193 = vsel %vm738, %v3189, %v3191
        %v3197 = vadd.f32 %v3117, %v3192
        %v3198 = vadd.f32 %v3118, %v3193
        %v3199 = vadd.f32 %v3119, %v3191
        %s3200 = sld [smem:[#allocation2 + $0x98]]
        %v3201 = vstv %s3200
        %v3202 = vmul.f32 %v3157, %v3201
        %v3203 = vmul.f32 %v3158, %v3201
        %v3204 = vmul.f32 %v3159, %v3201
        %v3205 = vmul.f32 %v3160, %v3201
        %v3206 = vmul.f32 %v3161, %v3201
        %v3207 = vmul.f32 %v3162, %v3201
        %v3214 = vrot.slane %v3202, 1
        %v3215 = vrot.slane %v3205, 1
        %v3216 = vsel %vm795, %v3214, %v3215
        %v3217 = vrot.slane %v3203, 1
        %v3218 = vrot.slane %v3206, 1
        %v3219 = vsel %vm795, %v3217, %v3218
        %v3220 = vrot.slane %v3204, 1
        %v3221 = vrot.slane %v3207, 1
        %v3222 = vsel %vm795, %v3220, %v3221
        %3223 = vrot.lane.b32.xlu0 %v3216, 94
        %v3224 = vpop.permute.xlu0 %3223
        %3225 = vrot.lane.b32.xlu0 %v3219, 94
        %v3226 = vpop.permute.xlu0 %3225
        %3227 = vrot.lane.b32.xlu0 %v3222, 94
        %v3228 = vpop.permute.xlu0 %3227
        %v3229 = vsel %vm738, %v3224, %v3226
        %v3230 = vsel %vm738, %v3226, %v3228
        %v3234 = vadd.f32 %v3154, %v3229
        %v3235 = vadd.f32 %v3155, %v3230
        %v3236 = vadd.f32 %v3156, %v3228
        %v3237 = vld [vmem:[%s2155] sm:$0xfc]
        %v3238 = vld [vmem:[%s2155 + $0x8] sm:$0xfc]
        %v3239 = vld [vmem:[%s2155 + $0x10] sm:$0xfc]
        %v3240 = vld [vmem:[%s2155 + $0x18] sm:$0x3]
        %v3241 = vld [vmem:[%s2155 + $0x20] sm:$0x3]
        %v3242 = vld [vmem:[%s2155 + $0x28] sm:$0x3]
        %v3243 = vmul.f32 %v3237, %v320
        %v3244 = vmul.f32 %v3238, %v324
        %v3245 = vmul.f32 %v3239, %v322
        %v3246 = vmul.f32 %v3240, %v320
        %v3247 = vmul.f32 %v3241, %v324
        %v3248 = vmul.f32 %v3242, %v322
        %s3249 = sld [smem:[#allocation2 + $0x2d]]
        %v3250 = vstv %s3249
        %v3251 = vmul.f32 %v3243, %v3250
        %v3252 = vmul.f32 %v3244, %v3250
        %v3253 = vmul.f32 %v3245, %v3250
        %v3254 = vmul.f32 %v3246, %v3250
        %v3255 = vmul.f32 %v3247, %v3250
        %v3256 = vmul.f32 %v3248, %v3250
        %v3263 = vrot.slane %v3251, 2
        %v3264 = vrot.slane %v3254, 2
        %v3265 = vsel %vm1488, %v3263, %v3264
        %v3266 = vrot.slane %v3252, 2
        %v3267 = vrot.slane %v3255, 2
        %v3268 = vsel %vm1488, %v3266, %v3267
        %v3269 = vrot.slane %v3253, 2
        %v3270 = vrot.slane %v3256, 2
        %v3271 = vsel %vm1488, %v3269, %v3270
        %v3275 = vadd.f32 %v3197, %v3265
        %v3276 = vadd.f32 %v3198, %v3268
        %v3277 = vadd.f32 %v3199, %v3271
        %s3278 = sld [smem:[#allocation2 + $0x99]]
        %v3279 = vstv %s3278
        %v3280 = vmul.f32 %v3243, %v3279
        %v3281 = vmul.f32 %v3244, %v3279
        %v3282 = vmul.f32 %v3245, %v3279
        %v3283 = vmul.f32 %v3246, %v3279
        %v3284 = vmul.f32 %v3247, %v3279
        %v3285 = vmul.f32 %v3248, %v3279
        %v3292 = vrot.slane %v3280, 2
        %v3293 = vrot.slane %v3283, 2
        %v3294 = vsel %vm1488, %v3292, %v3293
        %v3295 = vrot.slane %v3281, 2
        %v3296 = vrot.slane %v3284, 2
        %v3297 = vsel %vm1488, %v3295, %v3296
        %v3298 = vrot.slane %v3282, 2
        %v3299 = vrot.slane %v3285, 2
        %v3300 = vsel %vm1488, %v3298, %v3299
        %v3304 = vadd.f32 %v3234, %v3294
        %v3305 = vadd.f32 %v3235, %v3297
        %v3306 = vadd.f32 %v3236, %v3300
        %s3307 = sld [smem:[#allocation2 + $0x2e]]
        %v3308 = vstv %s3307
        %v3309 = vmul.f32 %v3237, %v3308
        %v3310 = vmul.f32 %v3238, %v3308
        %v3311 = vmul.f32 %v3239, %v3308
        %v3312 = vmul.f32 %v3240, %v3308
        %v3313 = vmul.f32 %v3241, %v3308
        %v3314 = vmul.f32 %v3242, %v3308
        %v3321 = vrot.slane %v3309, 2
        %v3322 = vrot.slane %v3312, 2
        %v3323 = vsel %vm1488, %v3321, %v3322
        %v3324 = vrot.slane %v3310, 2
        %v3325 = vrot.slane %v3313, 2
        %v3326 = vsel %vm1488, %v3324, %v3325
        %v3327 = vrot.slane %v3311, 2
        %v3328 = vrot.slane %v3314, 2
        %v3329 = vsel %vm1488, %v3327, %v3328
        %3330 = vrot.lane.b32.xlu0 %v3323, 127
        %v3331 = vpop.permute.xlu0 %3330
        %3332 = vrot.lane.b32.xlu0 %v3326, 127
        %v3333 = vpop.permute.xlu0 %3332
        %3334 = vrot.lane.b32.xlu0 %v3329, 127
        %v3335 = vpop.permute.xlu0 %3334
        %v3336 = vsel %vm361, %v3331, %v3333
        %v3337 = vsel %vm361, %v3333, %v3335
        %v3341 = vadd.f32 %v3275, %v3336
        %v3342 = vadd.f32 %v3276, %v3337
        %v3343 = vadd.f32 %v3277, %v3335
        %s3344 = sld [smem:[#allocation2 + $0x9a]]
        %v3345 = vstv %s3344
        %v3346 = vmul.f32 %v3237, %v3345
        %v3347 = vmul.f32 %v3238, %v3345
        %v3348 = vmul.f32 %v3239, %v3345
        %v3349 = vmul.f32 %v3240, %v3345
        %v3350 = vmul.f32 %v3241, %v3345
        %v3351 = vmul.f32 %v3242, %v3345
        %v3358 = vrot.slane %v3346, 2
        %v3359 = vrot.slane %v3349, 2
        %v3360 = vsel %vm1488, %v3358, %v3359
        %v3361 = vrot.slane %v3347, 2
        %v3362 = vrot.slane %v3350, 2
        %v3363 = vsel %vm1488, %v3361, %v3362
        %v3364 = vrot.slane %v3348, 2
        %v3365 = vrot.slane %v3351, 2
        %v3366 = vsel %vm1488, %v3364, %v3365
        %3367 = vrot.lane.b32.xlu0 %v3360, 127
        %v3368 = vpop.permute.xlu0 %3367
        %3369 = vrot.lane.b32.xlu0 %v3363, 127
        %v3370 = vpop.permute.xlu0 %3369
        %3371 = vrot.lane.b32.xlu0 %v3366, 127
        %v3372 = vpop.permute.xlu0 %3371
        %v3373 = vsel %vm361, %v3368, %v3370
        %v3374 = vsel %vm361, %v3370, %v3372
        %v3378 = vadd.f32 %v3304, %v3373
        %v3379 = vadd.f32 %v3305, %v3374
        %v3380 = vadd.f32 %v3306, %v3372
        %v3381 = vmul.f32 %v3237, %v395
        %v3382 = vmul.f32 %v3238, %v399
        %v3383 = vmul.f32 %v3239, %v397
        %v3384 = vmul.f32 %v3240, %v395
        %v3385 = vmul.f32 %v3241, %v399
        %v3386 = vmul.f32 %v3242, %v397
        %s3387 = sld [smem:[#allocation2 + $0x2f]]
        %v3388 = vstv %s3387
        %v3389 = vmul.f32 %v3381, %v3388
        %v3390 = vmul.f32 %v3382, %v3388
        %v3391 = vmul.f32 %v3383, %v3388
        %v3392 = vmul.f32 %v3384, %v3388
        %v3393 = vmul.f32 %v3385, %v3388
        %v3394 = vmul.f32 %v3386, %v3388
        %v3401 = vrot.slane %v3389, 2
        %v3402 = vrot.slane %v3392, 2
        %v3403 = vsel %vm1488, %v3401, %v3402
        %v3404 = vrot.slane %v3390, 2
        %v3405 = vrot.slane %v3393, 2
        %v3406 = vsel %vm1488, %v3404, %v3405
        %v3407 = vrot.slane %v3391, 2
        %v3408 = vrot.slane %v3394, 2
        %v3409 = vsel %vm1488, %v3407, %v3408
        %3410 = vrot.lane.b32.xlu0 %v3403, 126
        %v3411 = vpop.permute.xlu0 %3410
        %3412 = vrot.lane.b32.xlu0 %v3406, 126
        %v3413 = vpop.permute.xlu0 %3412
        %3414 = vrot.lane.b32.xlu0 %v3409, 126
        %v3415 = vpop.permute.xlu0 %3414
        %v3416 = vsel %vm420, %v3411, %v3413
        %v3417 = vsel %vm420, %v3413, %v3415
        %v3421 = vadd.f32 %v3341, %v3416
        %v3422 = vadd.f32 %v3342, %v3417
        %v3423 = vadd.f32 %v3343, %v3415
        %s3424 = sld [smem:[#allocation2 + $0x9b]]
        %v3425 = vstv %s3424
        %v3426 = vmul.f32 %v3381, %v3425
        %v3427 = vmul.f32 %v3382, %v3425
        %v3428 = vmul.f32 %v3383, %v3425
        %v3429 = vmul.f32 %v3384, %v3425
        %v3430 = vmul.f32 %v3385, %v3425
        %v3431 = vmul.f32 %v3386, %v3425
        %v3438 = vrot.slane %v3426, 2
        %v3439 = vrot.slane %v3429, 2
        %v3440 = vsel %vm1488, %v3438, %v3439
        %v3441 = vrot.slane %v3427, 2
        %v3442 = vrot.slane %v3430, 2
        %v3443 = vsel %vm1488, %v3441, %v3442
        %v3444 = vrot.slane %v3428, 2
        %v3445 = vrot.slane %v3431, 2
        %v3446 = vsel %vm1488, %v3444, %v3445
        %3447 = vrot.lane.b32.xlu0 %v3440, 126
        %v3448 = vpop.permute.xlu0 %3447
        %3449 = vrot.lane.b32.xlu0 %v3443, 126
        %v3450 = vpop.permute.xlu0 %3449
        %3451 = vrot.lane.b32.xlu0 %v3446, 126
        %v3452 = vpop.permute.xlu0 %3451
        %v3453 = vsel %vm420, %v3448, %v3450
        %v3454 = vsel %vm420, %v3450, %v3452
        %v3458 = vadd.f32 %v3378, %v3453
        %v3459 = vadd.f32 %v3379, %v3454
        %v3460 = vadd.f32 %v3380, %v3452
        %v3461 = vmul.f32 %v3237, %v452
        %v3462 = vmul.f32 %v3238, %v456
        %v3463 = vmul.f32 %v3239, %v454
        %v3464 = vmul.f32 %v3240, %v452
        %v3465 = vmul.f32 %v3241, %v456
        %v3466 = vmul.f32 %v3242, %v454
        %s3467 = sld [smem:[#allocation2 + $0x30]]
        %v3468 = vstv %s3467
        %v3469 = vmul.f32 %v3461, %v3468
        %v3470 = vmul.f32 %v3462, %v3468
        %v3471 = vmul.f32 %v3463, %v3468
        %v3472 = vmul.f32 %v3464, %v3468
        %v3473 = vmul.f32 %v3465, %v3468
        %v3474 = vmul.f32 %v3466, %v3468
        %v3481 = vrot.slane %v3469, 2
        %v3482 = vrot.slane %v3472, 2
        %v3483 = vsel %vm1488, %v3481, %v3482
        %v3484 = vrot.slane %v3470, 2
        %v3485 = vrot.slane %v3473, 2
        %v3486 = vsel %vm1488, %v3484, %v3485
        %v3487 = vrot.slane %v3471, 2
        %v3488 = vrot.slane %v3474, 2
        %v3489 = vsel %vm1488, %v3487, %v3488
        %3490 = vrot.lane.b32.xlu0 %v3483, 112
        %v3491 = vpop.permute.xlu0 %3490
        %3492 = vrot.lane.b32.xlu0 %v3486, 112
        %v3493 = vpop.permute.xlu0 %3492
        %3494 = vrot.lane.b32.xlu0 %v3489, 112
        %v3495 = vpop.permute.xlu0 %3494
        %v3496 = vsel %vm477, %v3491, %v3493
        %v3497 = vsel %vm477, %v3493, %v3495
        %v3501 = vadd.f32 %v3421, %v3496
        %v3502 = vadd.f32 %v3422, %v3497
        %v3503 = vadd.f32 %v3423, %v3495
        %s3504 = sld [smem:[#allocation2 + $0x9c]]
        %v3505 = vstv %s3504
        %v3506 = vmul.f32 %v3461, %v3505
        %v3507 = vmul.f32 %v3462, %v3505
        %v3508 = vmul.f32 %v3463, %v3505
        %v3509 = vmul.f32 %v3464, %v3505
        %v3510 = vmul.f32 %v3465, %v3505
        %v3511 = vmul.f32 %v3466, %v3505
        %v3518 = vrot.slane %v3506, 2
        %v3519 = vrot.slane %v3509, 2
        %v3520 = vsel %vm1488, %v3518, %v3519
        %v3521 = vrot.slane %v3507, 2
        %v3522 = vrot.slane %v3510, 2
        %v3523 = vsel %vm1488, %v3521, %v3522
        %v3524 = vrot.slane %v3508, 2
        %v3525 = vrot.slane %v3511, 2
        %v3526 = vsel %vm1488, %v3524, %v3525
        %3527 = vrot.lane.b32.xlu0 %v3520, 112
        %v3528 = vpop.permute.xlu0 %3527
        %3529 = vrot.lane.b32.xlu0 %v3523, 112
        %v3530 = vpop.permute.xlu0 %3529
        %3531 = vrot.lane.b32.xlu0 %v3526, 112
        %v3532 = vpop.permute.xlu0 %3531
        %v3533 = vsel %vm477, %v3528, %v3530
        %v3534 = vsel %vm477, %v3530, %v3532
        %v3538 = vadd.f32 %v3458, %v3533
        %v3539 = vadd.f32 %v3459, %v3534
        %v3540 = vadd.f32 %v3460, %v3532
        %s3541 = sld [smem:[#allocation2 + $0x31]]
        %v3542 = vstv %s3541
        %v3543 = vmul.f32 %v3237, %v3542
        %v3544 = vmul.f32 %v3238, %v3542
        %v3545 = vmul.f32 %v3239, %v3542
        %v3546 = vmul.f32 %v3240, %v3542
        %v3547 = vmul.f32 %v3241, %v3542
        %v3548 = vmul.f32 %v3242, %v3542
        %v3555 = vrot.slane %v3543, 2
        %v3556 = vrot.slane %v3546, 2
        %v3557 = vsel %vm1488, %v3555, %v3556
        %v3558 = vrot.slane %v3544, 2
        %v3559 = vrot.slane %v3547, 2
        %v3560 = vsel %vm1488, %v3558, %v3559
        %v3561 = vrot.slane %v3545, 2
        %v3562 = vrot.slane %v3548, 2
        %v3563 = vsel %vm1488, %v3561, %v3562
        %3564 = vrot.lane.b32.xlu0 %v3557, 111
        %v3565 = vpop.permute.xlu0 %3564
        %3566 = vrot.lane.b32.xlu0 %v3560, 111
        %v3567 = vpop.permute.xlu0 %3566
        %3568 = vrot.lane.b32.xlu0 %v3563, 111
        %v3569 = vpop.permute.xlu0 %3568
        %v3570 = vsel %vm522, %v3565, %v3567
        %v3571 = vsel %vm522, %v3567, %v3569
        %v3575 = vadd.f32 %v3501, %v3570
        %v3576 = vadd.f32 %v3502, %v3571
        %v3577 = vadd.f32 %v3503, %v3569
        %s3578 = sld [smem:[#allocation2 + $0x9d]]
        %v3579 = vstv %s3578
        %v3580 = vmul.f32 %v3237, %v3579
        %v3581 = vmul.f32 %v3238, %v3579
        %v3582 = vmul.f32 %v3239, %v3579
        %v3583 = vmul.f32 %v3240, %v3579
        %v3584 = vmul.f32 %v3241, %v3579
        %v3585 = vmul.f32 %v3242, %v3579
        %v3592 = vrot.slane %v3580, 2
        %v3593 = vrot.slane %v3583, 2
        %v3594 = vsel %vm1488, %v3592, %v3593
        %v3595 = vrot.slane %v3581, 2
        %v3596 = vrot.slane %v3584, 2
        %v3597 = vsel %vm1488, %v3595, %v3596
        %v3598 = vrot.slane %v3582, 2
        %v3599 = vrot.slane %v3585, 2
        %v3600 = vsel %vm1488, %v3598, %v3599
        %3601 = vrot.lane.b32.xlu0 %v3594, 111
        %v3602 = vpop.permute.xlu0 %3601
        %3603 = vrot.lane.b32.xlu0 %v3597, 111
        %v3604 = vpop.permute.xlu0 %3603
        %3605 = vrot.lane.b32.xlu0 %v3600, 111
        %v3606 = vpop.permute.xlu0 %3605
        %v3607 = vsel %vm522, %v3602, %v3604
        %v3608 = vsel %vm522, %v3604, %v3606
        %v3612 = vadd.f32 %v3538, %v3607
        %v3613 = vadd.f32 %v3539, %v3608
        %v3614 = vadd.f32 %v3540, %v3606
        %v3615 = vmul.f32 %v3237, %v554
        %v3616 = vmul.f32 %v3238, %v558
        %v3617 = vmul.f32 %v3239, %v556
        %v3618 = vmul.f32 %v3240, %v554
        %v3619 = vmul.f32 %v3241, %v558
        %v3620 = vmul.f32 %v3242, %v556
        %s3621 = sld [smem:[#allocation2 + $0x32]]
        %v3622 = vstv %s3621
        %v3623 = vmul.f32 %v3615, %v3622
        %v3624 = vmul.f32 %v3616, %v3622
        %v3625 = vmul.f32 %v3617, %v3622
        %v3626 = vmul.f32 %v3618, %v3622
        %v3627 = vmul.f32 %v3619, %v3622
        %v3628 = vmul.f32 %v3620, %v3622
        %v3635 = vrot.slane %v3623, 2
        %v3636 = vrot.slane %v3626, 2
        %v3637 = vsel %vm1488, %v3635, %v3636
        %v3638 = vrot.slane %v3624, 2
        %v3639 = vrot.slane %v3627, 2
        %v3640 = vsel %vm1488, %v3638, %v3639
        %v3641 = vrot.slane %v3625, 2
        %v3642 = vrot.slane %v3628, 2
        %v3643 = vsel %vm1488, %v3641, %v3642
        %3644 = vrot.lane.b32.xlu0 %v3637, 110
        %v3645 = vpop.permute.xlu0 %3644
        %3646 = vrot.lane.b32.xlu0 %v3640, 110
        %v3647 = vpop.permute.xlu0 %3646
        %3648 = vrot.lane.b32.xlu0 %v3643, 110
        %v3649 = vpop.permute.xlu0 %3648
        %v3650 = vsel %vm579, %v3645, %v3647
        %v3651 = vsel %vm579, %v3647, %v3649
        %v3655 = vadd.f32 %v3575, %v3650
        %v3656 = vadd.f32 %v3576, %v3651
        %v3657 = vadd.f32 %v3577, %v3649
        %s3658 = sld [smem:[#allocation2 + $0x9e]]
        %v3659 = vstv %s3658
        %v3660 = vmul.f32 %v3615, %v3659
        %v3661 = vmul.f32 %v3616, %v3659
        %v3662 = vmul.f32 %v3617, %v3659
        %v3663 = vmul.f32 %v3618, %v3659
        %v3664 = vmul.f32 %v3619, %v3659
        %v3665 = vmul.f32 %v3620, %v3659
        %v3672 = vrot.slane %v3660, 2
        %v3673 = vrot.slane %v3663, 2
        %v3674 = vsel %vm1488, %v3672, %v3673
        %v3675 = vrot.slane %v3661, 2
        %v3676 = vrot.slane %v3664, 2
        %v3677 = vsel %vm1488, %v3675, %v3676
        %v3678 = vrot.slane %v3662, 2
        %v3679 = vrot.slane %v3665, 2
        %v3680 = vsel %vm1488, %v3678, %v3679
        %3681 = vrot.lane.b32.xlu0 %v3674, 110
        %v3682 = vpop.permute.xlu0 %3681
        %3683 = vrot.lane.b32.xlu0 %v3677, 110
        %v3684 = vpop.permute.xlu0 %3683
        %3685 = vrot.lane.b32.xlu0 %v3680, 110
        %v3686 = vpop.permute.xlu0 %3685
        %v3687 = vsel %vm579, %v3682, %v3684
        %v3688 = vsel %vm579, %v3684, %v3686
        %v3692 = vadd.f32 %v3612, %v3687
        %v3693 = vadd.f32 %v3613, %v3688
        %v3694 = vadd.f32 %v3614, %v3686
        %v3695 = vmul.f32 %v3237, %v611
        %v3696 = vmul.f32 %v3238, %v615
        %v3697 = vmul.f32 %v3239, %v613
        %v3698 = vmul.f32 %v3240, %v611
        %v3699 = vmul.f32 %v3241, %v615
        %v3700 = vmul.f32 %v3242, %v613
        %s3701 = sld [smem:[#allocation2 + $0x33]]
        %v3702 = vstv %s3701
        %v3703 = vmul.f32 %v3695, %v3702
        %v3704 = vmul.f32 %v3696, %v3702
        %v3705 = vmul.f32 %v3697, %v3702
        %v3706 = vmul.f32 %v3698, %v3702
        %v3707 = vmul.f32 %v3699, %v3702
        %v3708 = vmul.f32 %v3700, %v3702
        %v3715 = vrot.slane %v3703, 2
        %v3716 = vrot.slane %v3706, 2
        %v3717 = vsel %vm1488, %v3715, %v3716
        %v3718 = vrot.slane %v3704, 2
        %v3719 = vrot.slane %v3707, 2
        %v3720 = vsel %vm1488, %v3718, %v3719
        %v3721 = vrot.slane %v3705, 2
        %v3722 = vrot.slane %v3708, 2
        %v3723 = vsel %vm1488, %v3721, %v3722
        %3724 = vrot.lane.b32.xlu0 %v3717, 96
        %v3725 = vpop.permute.xlu0 %3724
        %3726 = vrot.lane.b32.xlu0 %v3720, 96
        %v3727 = vpop.permute.xlu0 %3726
        %3728 = vrot.lane.b32.xlu0 %v3723, 96
        %v3729 = vpop.permute.xlu0 %3728
        %v3730 = vsel %vm636, %v3725, %v3727
        %v3731 = vsel %vm636, %v3727, %v3729
        %v3735 = vadd.f32 %v3655, %v3730
        %v3736 = vadd.f32 %v3656, %v3731
        %v3737 = vadd.f32 %v3657, %v3729
        %s3738 = sld [smem:[#allocation2 + $0x9f]]
        %v3739 = vstv %s3738
        %v3740 = vmul.f32 %v3695, %v3739
        %v3741 = vmul.f32 %v3696, %v3739
        %v3742 = vmul.f32 %v3697, %v3739
        %v3743 = vmul.f32 %v3698, %v3739
        %v3744 = vmul.f32 %v3699, %v3739
        %v3745 = vmul.f32 %v3700, %v3739
        %v3752 = vrot.slane %v3740, 2
        %v3753 = vrot.slane %v3743, 2
        %v3754 = vsel %vm1488, %v3752, %v3753
        %v3755 = vrot.slane %v3741, 2
        %v3756 = vrot.slane %v3744, 2
        %v3757 = vsel %vm1488, %v3755, %v3756
        %v3758 = vrot.slane %v3742, 2
        %v3759 = vrot.slane %v3745, 2
        %v3760 = vsel %vm1488, %v3758, %v3759
        %3761 = vrot.lane.b32.xlu0 %v3754, 96
        %v3762 = vpop.permute.xlu0 %3761
        %3763 = vrot.lane.b32.xlu0 %v3757, 96
        %v3764 = vpop.permute.xlu0 %3763
        %3765 = vrot.lane.b32.xlu0 %v3760, 96
        %v3766 = vpop.permute.xlu0 %3765
        %v3767 = vsel %vm636, %v3762, %v3764
        %v3768 = vsel %vm636, %v3764, %v3766
        %v3772 = vadd.f32 %v3692, %v3767
        %v3773 = vadd.f32 %v3693, %v3768
        %v3774 = vadd.f32 %v3694, %v3766
        %s3775 = sld [smem:[#allocation2 + $0x34]]
        %v3776 = vstv %s3775
        %v3777 = vmul.f32 %v3237, %v3776
        %v3778 = vmul.f32 %v3238, %v3776
        %v3779 = vmul.f32 %v3239, %v3776
        %v3780 = vmul.f32 %v3240, %v3776
        %v3781 = vmul.f32 %v3241, %v3776
        %v3782 = vmul.f32 %v3242, %v3776
        %v3789 = vrot.slane %v3777, 2
        %v3790 = vrot.slane %v3780, 2
        %v3791 = vsel %vm1488, %v3789, %v3790
        %v3792 = vrot.slane %v3778, 2
        %v3793 = vrot.slane %v3781, 2
        %v3794 = vsel %vm1488, %v3792, %v3793
        %v3795 = vrot.slane %v3779, 2
        %v3796 = vrot.slane %v3782, 2
        %v3797 = vsel %vm1488, %v3795, %v3796
        %3798 = vrot.lane.b32.xlu0 %v3791, 95
        %v3799 = vpop.permute.xlu0 %3798
        %3800 = vrot.lane.b32.xlu0 %v3794, 95
        %v3801 = vpop.permute.xlu0 %3800
        %3802 = vrot.lane.b32.xlu0 %v3797, 95
        %v3803 = vpop.permute.xlu0 %3802
        %v3804 = vsel %vm681, %v3799, %v3801
        %v3805 = vsel %vm681, %v3801, %v3803
        %v3809 = vadd.f32 %v3735, %v3804
        %v3810 = vadd.f32 %v3736, %v3805
        %v3811 = vadd.f32 %v3737, %v3803
        %s3812 = sld [smem:[#allocation2 + $0xa0]]
        %v3813 = vstv %s3812
        %v3814 = vmul.f32 %v3237, %v3813
        %v3815 = vmul.f32 %v3238, %v3813
        %v3816 = vmul.f32 %v3239, %v3813
        %v3817 = vmul.f32 %v3240, %v3813
        %v3818 = vmul.f32 %v3241, %v3813
        %v3819 = vmul.f32 %v3242, %v3813
        %v3826 = vrot.slane %v3814, 2
        %v3827 = vrot.slane %v3817, 2
        %v3828 = vsel %vm1488, %v3826, %v3827
        %v3829 = vrot.slane %v3815, 2
        %v3830 = vrot.slane %v3818, 2
        %v3831 = vsel %vm1488, %v3829, %v3830
        %v3832 = vrot.slane %v3816, 2
        %v3833 = vrot.slane %v3819, 2
        %v3834 = vsel %vm1488, %v3832, %v3833
        %3835 = vrot.lane.b32.xlu0 %v3828, 95
        %v3836 = vpop.permute.xlu0 %3835
        %3837 = vrot.lane.b32.xlu0 %v3831, 95
        %v3838 = vpop.permute.xlu0 %3837
        %3839 = vrot.lane.b32.xlu0 %v3834, 95
        %v3840 = vpop.permute.xlu0 %3839
        %v3841 = vsel %vm681, %v3836, %v3838
        %v3842 = vsel %vm681, %v3838, %v3840
        %v3846 = vadd.f32 %v3772, %v3841
        %v3847 = vadd.f32 %v3773, %v3842
        %v3848 = vadd.f32 %v3774, %v3840
        %v3849 = vmul.f32 %v3237, %v713
        %v3850 = vmul.f32 %v3238, %v717
        %v3851 = vmul.f32 %v3239, %v715
        %v3852 = vmul.f32 %v3240, %v713
        %v3853 = vmul.f32 %v3241, %v717
        %v3854 = vmul.f32 %v3242, %v715
        %s3855 = sld [smem:[#allocation2 + $0x35]]
        %v3856 = vstv %s3855
        %v3857 = vmul.f32 %v3849, %v3856
        %v3858 = vmul.f32 %v3850, %v3856
        %v3859 = vmul.f32 %v3851, %v3856
        %v3860 = vmul.f32 %v3852, %v3856
        %v3861 = vmul.f32 %v3853, %v3856
        %v3862 = vmul.f32 %v3854, %v3856
        %v3869 = vrot.slane %v3857, 2
        %v3870 = vrot.slane %v3860, 2
        %v3871 = vsel %vm1488, %v3869, %v3870
        %v3872 = vrot.slane %v3858, 2
        %v3873 = vrot.slane %v3861, 2
        %v3874 = vsel %vm1488, %v3872, %v3873
        %v3875 = vrot.slane %v3859, 2
        %v3876 = vrot.slane %v3862, 2
        %v3877 = vsel %vm1488, %v3875, %v3876
        %3878 = vrot.lane.b32.xlu0 %v3871, 94
        %v3879 = vpop.permute.xlu0 %3878
        %3880 = vrot.lane.b32.xlu0 %v3874, 94
        %v3881 = vpop.permute.xlu0 %3880
        %3882 = vrot.lane.b32.xlu0 %v3877, 94
        %v3883 = vpop.permute.xlu0 %3882
        %v3884 = vsel %vm738, %v3879, %v3881
        %v3885 = vsel %vm738, %v3881, %v3883
        %v3889 = vadd.f32 %v3809, %v3884
        %v3890 = vadd.f32 %v3810, %v3885
        %v3891 = vadd.f32 %v3811, %v3883
        %s3892 = sld [smem:[#allocation2 + $0xa1]]
        %v3893 = vstv %s3892
        %v3894 = vmul.f32 %v3849, %v3893
        %v3895 = vmul.f32 %v3850, %v3893
        %v3896 = vmul.f32 %v3851, %v3893
        %v3897 = vmul.f32 %v3852, %v3893
        %v3898 = vmul.f32 %v3853, %v3893
        %v3899 = vmul.f32 %v3854, %v3893
        %v3906 = vrot.slane %v3894, 2
        %v3907 = vrot.slane %v3897, 2
        %v3908 = vsel %vm1488, %v3906, %v3907
        %v3909 = vrot.slane %v3895, 2
        %v3910 = vrot.slane %v3898, 2
        %v3911 = vsel %vm1488, %v3909, %v3910
        %v3912 = vrot.slane %v3896, 2
        %v3913 = vrot.slane %v3899, 2
        %v3914 = vsel %vm1488, %v3912, %v3913
        %3915 = vrot.lane.b32.xlu0 %v3908, 94
        %v3916 = vpop.permute.xlu0 %3915
        %3917 = vrot.lane.b32.xlu0 %v3911, 94
        %v3918 = vpop.permute.xlu0 %3917
        %3919 = vrot.lane.b32.xlu0 %v3914, 94
        %v3920 = vpop.permute.xlu0 %3919
        %v3921 = vsel %vm738, %v3916, %v3918
        %v3922 = vsel %vm738, %v3918, %v3920
        %v3926 = vadd.f32 %v3846, %v3921
        %v3927 = vadd.f32 %v3847, %v3922
        %v3928 = vadd.f32 %v3848, %v3920
        %s3929 = scalar_lea.vmem %s274, 96
        %v3930 = vld [vmem:[%s3929] sm:$0xff]
        %v3931 = vld [vmem:[%s3929 + $0x8] sm:$0xff]
        %v3932 = vld [vmem:[%s3929 + $0x10] sm:$0xff]
        %v3933 = vmul.f32 %v3930, %v320
        %v3934 = vmul.f32 %v3931, %v324
        %v3935 = vmul.f32 %v3932, %v322
        %s3936 = sld [smem:[#allocation2 + $0x36]]
        %v3937 = vstv %s3936
        %v3938 = vmul.f32 %v3933, %v3937
        %v3939 = vmul.f32 %v3934, %v3937
        %v3940 = vmul.f32 %v3935, %v3937
        %v3941 = vadd.f32 %v3889, %v3938
        %v3942 = vadd.f32 %v3890, %v3939
        %v3943 = vadd.f32 %v3891, %v3940
        %s3944 = sld [smem:[#allocation2 + $0xa2]]
        %v3945 = vstv %s3944
        %v3946 = vmul.f32 %v3933, %v3945
        %v3947 = vmul.f32 %v3934, %v3945
        %v3948 = vmul.f32 %v3935, %v3945
        %v3949 = vadd.f32 %v3926, %v3946
        %v3950 = vadd.f32 %v3927, %v3947
        %v3951 = vadd.f32 %v3928, %v3948
        %s3952 = sld [smem:[#allocation2 + $0x37]]
        %v3953 = vstv %s3952
        %v3954 = vmul.f32 %v3930, %v3953
        %v3955 = vmul.f32 %v3931, %v3953
        %v3956 = vmul.f32 %v3932, %v3953
        %3960 = vrot.lane.b32.xlu0 %v3954, 127
        %v3961 = vpop.permute.xlu0 %3960
        %3962 = vrot.lane.b32.xlu0 %v3955, 127
        %v3963 = vpop.permute.xlu0 %3962
        %3964 = vrot.lane.b32.xlu0 %v3956, 127
        %v3965 = vpop.permute.xlu0 %3964
        %v3966 = vsel %vm361, %v3961, %v3963
        %v3967 = vsel %vm361, %v3963, %v3965
        %v3971 = vadd.f32 %v3941, %v3966
        %v3972 = vadd.f32 %v3942, %v3967
        %v3973 = vadd.f32 %v3943, %v3965
        %s3974 = sld [smem:[#allocation2 + $0xa3]]
        %v3975 = vstv %s3974
        %v3976 = vmul.f32 %v3930, %v3975
        %v3977 = vmul.f32 %v3931, %v3975
        %v3978 = vmul.f32 %v3932, %v3975
        %3982 = vrot.lane.b32.xlu0 %v3976, 127
        %v3983 = vpop.permute.xlu0 %3982
        %3984 = vrot.lane.b32.xlu0 %v3977, 127
        %v3985 = vpop.permute.xlu0 %3984
        %3986 = vrot.lane.b32.xlu0 %v3978, 127
        %v3987 = vpop.permute.xlu0 %3986
        %v3988 = vsel %vm361, %v3983, %v3985
        %v3989 = vsel %vm361, %v3985, %v3987
        %v3993 = vadd.f32 %v3949, %v3988
        %v3994 = vadd.f32 %v3950, %v3989
        %v3995 = vadd.f32 %v3951, %v3987
        %v3996 = vmul.f32 %v3930, %v395
        %v3997 = vmul.f32 %v3931, %v399
        %v3998 = vmul.f32 %v3932, %v397
        %s3999 = sld [smem:[#allocation2 + $0x38]]
        %v4000 = vstv %s3999
        %v4001 = vmul.f32 %v3996, %v4000
        %v4002 = vmul.f32 %v3997, %v4000
        %v4003 = vmul.f32 %v3998, %v4000
        %4007 = vrot.lane.b32.xlu0 %v4001, 126
        %v4008 = vpop.permute.xlu0 %4007
        %4009 = vrot.lane.b32.xlu0 %v4002, 126
        %v4010 = vpop.permute.xlu0 %4009
        %4011 = vrot.lane.b32.xlu0 %v4003, 126
        %v4012 = vpop.permute.xlu0 %4011
        %v4013 = vsel %vm420, %v4008, %v4010
        %v4014 = vsel %vm420, %v4010, %v4012
        %v4018 = vadd.f32 %v3971, %v4013
        %v4019 = vadd.f32 %v3972, %v4014
        %v4020 = vadd.f32 %v3973, %v4012
        %s4021 = sld [smem:[#allocation2 + $0xa4]]
        %v4022 = vstv %s4021
        %v4023 = vmul.f32 %v3996, %v4022
        %v4024 = vmul.f32 %v3997, %v4022
        %v4025 = vmul.f32 %v3998, %v4022
        %4029 = vrot.lane.b32.xlu0 %v4023, 126
        %v4030 = vpop.permute.xlu0 %4029
        %4031 = vrot.lane.b32.xlu0 %v4024, 126
        %v4032 = vpop.permute.xlu0 %4031
        %4033 = vrot.lane.b32.xlu0 %v4025, 126
        %v4034 = vpop.permute.xlu0 %4033
        %v4035 = vsel %vm420, %v4030, %v4032
        %v4036 = vsel %vm420, %v4032, %v4034
        %v4040 = vadd.f32 %v3993, %v4035
        %v4041 = vadd.f32 %v3994, %v4036
        %v4042 = vadd.f32 %v3995, %v4034
        %v4043 = vmul.f32 %v3930, %v452
        %v4044 = vmul.f32 %v3931, %v456
        %v4045 = vmul.f32 %v3932, %v454
        %s4046 = sld [smem:[#allocation2 + $0x39]]
        %v4047 = vstv %s4046
        %v4048 = vmul.f32 %v4043, %v4047
        %v4049 = vmul.f32 %v4044, %v4047
        %v4050 = vmul.f32 %v4045, %v4047
        %4054 = vrot.lane.b32.xlu0 %v4048, 112
        %v4055 = vpop.permute.xlu0 %4054
        %4056 = vrot.lane.b32.xlu0 %v4049, 112
        %v4057 = vpop.permute.xlu0 %4056
        %4058 = vrot.lane.b32.xlu0 %v4050, 112
        %v4059 = vpop.permute.xlu0 %4058
        %v4060 = vsel %vm477, %v4055, %v4057
        %v4061 = vsel %vm477, %v4057, %v4059
        %v4065 = vadd.f32 %v4018, %v4060
        %v4066 = vadd.f32 %v4019, %v4061
        %v4067 = vadd.f32 %v4020, %v4059
        %s4068 = sld [smem:[#allocation2 + $0xa5]]
        %v4069 = vstv %s4068
        %v4070 = vmul.f32 %v4043, %v4069
        %v4071 = vmul.f32 %v4044, %v4069
        %v4072 = vmul.f32 %v4045, %v4069
        %4076 = vrot.lane.b32.xlu0 %v4070, 112
        %v4077 = vpop.permute.xlu0 %4076
        %4078 = vrot.lane.b32.xlu0 %v4071, 112
        %v4079 = vpop.permute.xlu0 %4078
        %4080 = vrot.lane.b32.xlu0 %v4072, 112
        %v4081 = vpop.permute.xlu0 %4080
        %v4082 = vsel %vm477, %v4077, %v4079
        %v4083 = vsel %vm477, %v4079, %v4081
        %v4087 = vadd.f32 %v4040, %v4082
        %v4088 = vadd.f32 %v4041, %v4083
        %v4089 = vadd.f32 %v4042, %v4081
        %s4090 = sld [smem:[#allocation2 + $0x3a]]
        %v4091 = vstv %s4090
        %v4092 = vmul.f32 %v3930, %v4091
        %v4093 = vmul.f32 %v3931, %v4091
        %v4094 = vmul.f32 %v3932, %v4091
        %4098 = vrot.lane.b32.xlu0 %v4092, 111
        %v4099 = vpop.permute.xlu0 %4098
        %4100 = vrot.lane.b32.xlu0 %v4093, 111
        %v4101 = vpop.permute.xlu0 %4100
        %4102 = vrot.lane.b32.xlu0 %v4094, 111
        %v4103 = vpop.permute.xlu0 %4102
        %v4104 = vsel %vm522, %v4099, %v4101
        %v4105 = vsel %vm522, %v4101, %v4103
        %v4109 = vadd.f32 %v4065, %v4104
        %v4110 = vadd.f32 %v4066, %v4105
        %v4111 = vadd.f32 %v4067, %v4103
        %s4112 = sld [smem:[#allocation2 + $0xa6]]
        %v4113 = vstv %s4112
        %v4114 = vmul.f32 %v3930, %v4113
        %v4115 = vmul.f32 %v3931, %v4113
        %v4116 = vmul.f32 %v3932, %v4113
        %4120 = vrot.lane.b32.xlu0 %v4114, 111
        %v4121 = vpop.permute.xlu0 %4120
        %4122 = vrot.lane.b32.xlu0 %v4115, 111
        %v4123 = vpop.permute.xlu0 %4122
        %4124 = vrot.lane.b32.xlu0 %v4116, 111
        %v4125 = vpop.permute.xlu0 %4124
        %v4126 = vsel %vm522, %v4121, %v4123
        %v4127 = vsel %vm522, %v4123, %v4125
        %v4131 = vadd.f32 %v4087, %v4126
        %v4132 = vadd.f32 %v4088, %v4127
        %v4133 = vadd.f32 %v4089, %v4125
        %v4134 = vmul.f32 %v3930, %v554
        %v4135 = vmul.f32 %v3931, %v558
        %v4136 = vmul.f32 %v3932, %v556
        %s4137 = sld [smem:[#allocation2 + $0x3b]]
        %v4138 = vstv %s4137
        %v4139 = vmul.f32 %v4134, %v4138
        %v4140 = vmul.f32 %v4135, %v4138
        %v4141 = vmul.f32 %v4136, %v4138
        %4145 = vrot.lane.b32.xlu0 %v4139, 110
        %v4146 = vpop.permute.xlu0 %4145
        %4147 = vrot.lane.b32.xlu0 %v4140, 110
        %v4148 = vpop.permute.xlu0 %4147
        %4149 = vrot.lane.b32.xlu0 %v4141, 110
        %v4150 = vpop.permute.xlu0 %4149
        %v4151 = vsel %vm579, %v4146, %v4148
        %v4152 = vsel %vm579, %v4148, %v4150
        %v4156 = vadd.f32 %v4109, %v4151
        %v4157 = vadd.f32 %v4110, %v4152
        %v4158 = vadd.f32 %v4111, %v4150
        %s4159 = sld [smem:[#allocation2 + $0xa7]]
        %v4160 = vstv %s4159
        %v4161 = vmul.f32 %v4134, %v4160
        %v4162 = vmul.f32 %v4135, %v4160
        %v4163 = vmul.f32 %v4136, %v4160
        %4167 = vrot.lane.b32.xlu0 %v4161, 110
        %v4168 = vpop.permute.xlu0 %4167
        %4169 = vrot.lane.b32.xlu0 %v4162, 110
        %v4170 = vpop.permute.xlu0 %4169
        %4171 = vrot.lane.b32.xlu0 %v4163, 110
        %v4172 = vpop.permute.xlu0 %4171
        %v4173 = vsel %vm579, %v4168, %v4170
        %v4174 = vsel %vm579, %v4170, %v4172
        %v4178 = vadd.f32 %v4131, %v4173
        %v4179 = vadd.f32 %v4132, %v4174
        %v4180 = vadd.f32 %v4133, %v4172
        %v4181 = vmul.f32 %v3930, %v611
        %v4182 = vmul.f32 %v3931, %v615
        %v4183 = vmul.f32 %v3932, %v613
        %s4184 = sld [smem:[#allocation2 + $0x3c]]
        %v4185 = vstv %s4184
        %v4186 = vmul.f32 %v4181, %v4185
        %v4187 = vmul.f32 %v4182, %v4185
        %v4188 = vmul.f32 %v4183, %v4185
        %4192 = vrot.lane.b32.xlu0 %v4186, 96
        %v4193 = vpop.permute.xlu0 %4192
        %4194 = vrot.lane.b32.xlu0 %v4187, 96
        %v4195 = vpop.permute.xlu0 %4194
        %4196 = vrot.lane.b32.xlu0 %v4188, 96
        %v4197 = vpop.permute.xlu0 %4196
        %v4198 = vsel %vm636, %v4193, %v4195
        %v4199 = vsel %vm636, %v4195, %v4197
        %v4203 = vadd.f32 %v4156, %v4198
        %v4204 = vadd.f32 %v4157, %v4199
        %v4205 = vadd.f32 %v4158, %v4197
        %s4206 = sld [smem:[#allocation2 + $0xa8]]
        %v4207 = vstv %s4206
        %v4208 = vmul.f32 %v4181, %v4207
        %v4209 = vmul.f32 %v4182, %v4207
        %v4210 = vmul.f32 %v4183, %v4207
        %4214 = vrot.lane.b32.xlu0 %v4208, 96
        %v4215 = vpop.permute.xlu0 %4214
        %4216 = vrot.lane.b32.xlu0 %v4209, 96
        %v4217 = vpop.permute.xlu0 %4216
        %4218 = vrot.lane.b32.xlu0 %v4210, 96
        %v4219 = vpop.permute.xlu0 %4218
        %v4220 = vsel %vm636, %v4215, %v4217
        %v4221 = vsel %vm636, %v4217, %v4219
        %v4225 = vadd.f32 %v4178, %v4220
        %v4226 = vadd.f32 %v4179, %v4221
        %v4227 = vadd.f32 %v4180, %v4219
        %s4228 = sld [smem:[#allocation2 + $0x3d]]
        %v4229 = vstv %s4228
        %v4230 = vmul.f32 %v3930, %v4229
        %v4231 = vmul.f32 %v3931, %v4229
        %v4232 = vmul.f32 %v3932, %v4229
        %4236 = vrot.lane.b32.xlu0 %v4230, 95
        %v4237 = vpop.permute.xlu0 %4236
        %4238 = vrot.lane.b32.xlu0 %v4231, 95
        %v4239 = vpop.permute.xlu0 %4238
        %4240 = vrot.lane.b32.xlu0 %v4232, 95
        %v4241 = vpop.permute.xlu0 %4240
        %v4242 = vsel %vm681, %v4237, %v4239
        %v4243 = vsel %vm681, %v4239, %v4241
        %v4247 = vadd.f32 %v4203, %v4242
        %v4248 = vadd.f32 %v4204, %v4243
        %v4249 = vadd.f32 %v4205, %v4241
        %s4250 = sld [smem:[#allocation2 + $0xa9]]
        %v4251 = vstv %s4250
        %v4252 = vmul.f32 %v3930, %v4251
        %v4253 = vmul.f32 %v3931, %v4251
        %v4254 = vmul.f32 %v3932, %v4251
        %4258 = vrot.lane.b32.xlu0 %v4252, 95
        %v4259 = vpop.permute.xlu0 %4258
        %4260 = vrot.lane.b32.xlu0 %v4253, 95
        %v4261 = vpop.permute.xlu0 %4260
        %4262 = vrot.lane.b32.xlu0 %v4254, 95
        %v4263 = vpop.permute.xlu0 %4262
        %v4264 = vsel %vm681, %v4259, %v4261
        %v4265 = vsel %vm681, %v4261, %v4263
        %v4269 = vadd.f32 %v4225, %v4264
        %v4270 = vadd.f32 %v4226, %v4265
        %v4271 = vadd.f32 %v4227, %v4263
        %v4272 = vmul.f32 %v3930, %v713
        %v4273 = vmul.f32 %v3931, %v717
        %v4274 = vmul.f32 %v3932, %v715
        %s4275 = sld [smem:[#allocation2 + $0x3e]]
        %v4276 = vstv %s4275
        %v4277 = vmul.f32 %v4272, %v4276
        %v4278 = vmul.f32 %v4273, %v4276
        %v4279 = vmul.f32 %v4274, %v4276
        %4283 = vrot.lane.b32.xlu0 %v4277, 94
        %v4284 = vpop.permute.xlu0 %4283
        %4285 = vrot.lane.b32.xlu0 %v4278, 94
        %v4286 = vpop.permute.xlu0 %4285
        %4287 = vrot.lane.b32.xlu0 %v4279, 94
        %v4288 = vpop.permute.xlu0 %4287
        %v4289 = vsel %vm738, %v4284, %v4286
        %v4290 = vsel %vm738, %v4286, %v4288
        %v4294 = vadd.f32 %v4247, %v4289
        %v4295 = vadd.f32 %v4248, %v4290
        %v4296 = vadd.f32 %v4249, %v4288
        %s4297 = sld [smem:[#allocation2 + $0xaa]]
        %v4298 = vstv %s4297
        %v4299 = vmul.f32 %v4272, %v4298
        %v4300 = vmul.f32 %v4273, %v4298
        %v4301 = vmul.f32 %v4274, %v4298
        %4305 = vrot.lane.b32.xlu0 %v4299, 94
        %v4306 = vpop.permute.xlu0 %4305
        %4307 = vrot.lane.b32.xlu0 %v4300, 94
        %v4308 = vpop.permute.xlu0 %4307
        %4309 = vrot.lane.b32.xlu0 %v4301, 94
        %v4310 = vpop.permute.xlu0 %4309
        %v4311 = vsel %vm738, %v4306, %v4308
        %v4312 = vsel %vm738, %v4308, %v4310
        %v4316 = vadd.f32 %v4269, %v4311
        %v4317 = vadd.f32 %v4270, %v4312
        %v4318 = vadd.f32 %v4271, %v4310
        %v4319 = vld [vmem:[%s3929] sm:$0xfe]
        %v4320 = vld [vmem:[%s3929 + $0x8] sm:$0xfe]
        %v4321 = vld [vmem:[%s3929 + $0x10] sm:$0xfe]
        %v4322 = vld [vmem:[%s3929 + $0x18] sm:$0x1]
        %v4323 = vld [vmem:[%s3929 + $0x20] sm:$0x1]
        %v4324 = vld [vmem:[%s3929 + $0x28] sm:$0x1]
        %v4325 = vmul.f32 %v4319, %v320
        %v4326 = vmul.f32 %v4320, %v324
        %v4327 = vmul.f32 %v4321, %v322
        %v4328 = vmul.f32 %v4322, %v320
        %v4329 = vmul.f32 %v4323, %v324
        %v4330 = vmul.f32 %v4324, %v322
        %s4331 = sld [smem:[#allocation2 + $0x3f]]
        %v4332 = vstv %s4331
        %v4333 = vmul.f32 %v4325, %v4332
        %v4334 = vmul.f32 %v4326, %v4332
        %v4335 = vmul.f32 %v4327, %v4332
        %v4336 = vmul.f32 %v4328, %v4332
        %v4337 = vmul.f32 %v4329, %v4332
        %v4338 = vmul.f32 %v4330, %v4332
        %v4345 = vrot.slane %v4333, 1
        %v4346 = vrot.slane %v4336, 1
        %v4347 = vsel %vm795, %v4345, %v4346
        %v4348 = vrot.slane %v4334, 1
        %v4349 = vrot.slane %v4337, 1
        %v4350 = vsel %vm795, %v4348, %v4349
        %v4351 = vrot.slane %v4335, 1
        %v4352 = vrot.slane %v4338, 1
        %v4353 = vsel %vm795, %v4351, %v4352
        %v4357 = vadd.f32 %v4294, %v4347
        %v4358 = vadd.f32 %v4295, %v4350
        %v4359 = vadd.f32 %v4296, %v4353
        %s4360 = sld [smem:[#allocation2 + $0xab]]
        %v4361 = vstv %s4360
        %v4362 = vmul.f32 %v4325, %v4361
        %v4363 = vmul.f32 %v4326, %v4361
        %v4364 = vmul.f32 %v4327, %v4361
        %v4365 = vmul.f32 %v4328, %v4361
        %v4366 = vmul.f32 %v4329, %v4361
        %v4367 = vmul.f32 %v4330, %v4361
        %v4374 = vrot.slane %v4362, 1
        %v4375 = vrot.slane %v4365, 1
        %v4376 = vsel %vm795, %v4374, %v4375
        %v4377 = vrot.slane %v4363, 1
        %v4378 = vrot.slane %v4366, 1
        %v4379 = vsel %vm795, %v4377, %v4378
        %v4380 = vrot.slane %v4364, 1
        %v4381 = vrot.slane %v4367, 1
        %v4382 = vsel %vm795, %v4380, %v4381
        %v4386 = vadd.f32 %v4316, %v4376
        %v4387 = vadd.f32 %v4317, %v4379
        %v4388 = vadd.f32 %v4318, %v4382
        %s4389 = sld [smem:[#allocation2 + $0x40]]
        %v4390 = vstv %s4389
        %v4391 = vmul.f32 %v4319, %v4390
        %v4392 = vmul.f32 %v4320, %v4390
        %v4393 = vmul.f32 %v4321, %v4390
        %v4394 = vmul.f32 %v4322, %v4390
        %v4395 = vmul.f32 %v4323, %v4390
        %v4396 = vmul.f32 %v4324, %v4390
        %v4403 = vrot.slane %v4391, 1
        %v4404 = vrot.slane %v4394, 1
        %v4405 = vsel %vm795, %v4403, %v4404
        %v4406 = vrot.slane %v4392, 1
        %v4407 = vrot.slane %v4395, 1
        %v4408 = vsel %vm795, %v4406, %v4407
        %v4409 = vrot.slane %v4393, 1
        %v4410 = vrot.slane %v4396, 1
        %v4411 = vsel %vm795, %v4409, %v4410
        %4412 = vrot.lane.b32.xlu0 %v4405, 127
        %v4413 = vpop.permute.xlu0 %4412
        %4414 = vrot.lane.b32.xlu0 %v4408, 127
        %v4415 = vpop.permute.xlu0 %4414
        %4416 = vrot.lane.b32.xlu0 %v4411, 127
        %v4417 = vpop.permute.xlu0 %4416
        %v4418 = vsel %vm361, %v4413, %v4415
        %v4419 = vsel %vm361, %v4415, %v4417
        %v4423 = vadd.f32 %v4357, %v4418
        %v4424 = vadd.f32 %v4358, %v4419
        %v4425 = vadd.f32 %v4359, %v4417
        %s4426 = sld [smem:[#allocation2 + $0xac]]
        %v4427 = vstv %s4426
        %v4428 = vmul.f32 %v4319, %v4427
        %v4429 = vmul.f32 %v4320, %v4427
        %v4430 = vmul.f32 %v4321, %v4427
        %v4431 = vmul.f32 %v4322, %v4427
        %v4432 = vmul.f32 %v4323, %v4427
        %v4433 = vmul.f32 %v4324, %v4427
        %v4440 = vrot.slane %v4428, 1
        %v4441 = vrot.slane %v4431, 1
        %v4442 = vsel %vm795, %v4440, %v4441
        %v4443 = vrot.slane %v4429, 1
        %v4444 = vrot.slane %v4432, 1
        %v4445 = vsel %vm795, %v4443, %v4444
        %v4446 = vrot.slane %v4430, 1
        %v4447 = vrot.slane %v4433, 1
        %v4448 = vsel %vm795, %v4446, %v4447
        %4449 = vrot.lane.b32.xlu0 %v4442, 127
        %v4450 = vpop.permute.xlu0 %4449
        %4451 = vrot.lane.b32.xlu0 %v4445, 127
        %v4452 = vpop.permute.xlu0 %4451
        %4453 = vrot.lane.b32.xlu0 %v4448, 127
        %v4454 = vpop.permute.xlu0 %4453
        %v4455 = vsel %vm361, %v4450, %v4452
        %v4456 = vsel %vm361, %v4452, %v4454
        %v4460 = vadd.f32 %v4386, %v4455
        %v4461 = vadd.f32 %v4387, %v4456
        %v4462 = vadd.f32 %v4388, %v4454
        %v4463 = vmul.f32 %v4319, %v395
        %v4464 = vmul.f32 %v4320, %v399
        %v4465 = vmul.f32 %v4321, %v397
        %v4466 = vmul.f32 %v4322, %v395
        %v4467 = vmul.f32 %v4323, %v399
        %v4468 = vmul.f32 %v4324, %v397
        %s4469 = sld [smem:[#allocation2 + $0x41]]
        %v4470 = vstv %s4469
        %v4471 = vmul.f32 %v4463, %v4470
        %v4472 = vmul.f32 %v4464, %v4470
        %v4473 = vmul.f32 %v4465, %v4470
        %v4474 = vmul.f32 %v4466, %v4470
        %v4475 = vmul.f32 %v4467, %v4470
        %v4476 = vmul.f32 %v4468, %v4470
        %v4483 = vrot.slane %v4471, 1
        %v4484 = vrot.slane %v4474, 1
        %v4485 = vsel %vm795, %v4483, %v4484
        %v4486 = vrot.slane %v4472, 1
        %v4487 = vrot.slane %v4475, 1
        %v4488 = vsel %vm795, %v4486, %v4487
        %v4489 = vrot.slane %v4473, 1
        %v4490 = vrot.slane %v4476, 1
        %v4491 = vsel %vm795, %v4489, %v4490
        %4492 = vrot.lane.b32.xlu0 %v4485, 126
        %v4493 = vpop.permute.xlu0 %4492
        %4494 = vrot.lane.b32.xlu0 %v4488, 126
        %v4495 = vpop.permute.xlu0 %4494
        %4496 = vrot.lane.b32.xlu0 %v4491, 126
        %v4497 = vpop.permute.xlu0 %4496
        %v4498 = vsel %vm420, %v4493, %v4495
        %v4499 = vsel %vm420, %v4495, %v4497
        %v4503 = vadd.f32 %v4423, %v4498
        %v4504 = vadd.f32 %v4424, %v4499
        %v4505 = vadd.f32 %v4425, %v4497
        %s4506 = sld [smem:[#allocation2 + $0xad]]
        %v4507 = vstv %s4506
        %v4508 = vmul.f32 %v4463, %v4507
        %v4509 = vmul.f32 %v4464, %v4507
        %v4510 = vmul.f32 %v4465, %v4507
        %v4511 = vmul.f32 %v4466, %v4507
        %v4512 = vmul.f32 %v4467, %v4507
        %v4513 = vmul.f32 %v4468, %v4507
        %v4520 = vrot.slane %v4508, 1
        %v4521 = vrot.slane %v4511, 1
        %v4522 = vsel %vm795, %v4520, %v4521
        %v4523 = vrot.slane %v4509, 1
        %v4524 = vrot.slane %v4512, 1
        %v4525 = vsel %vm795, %v4523, %v4524
        %v4526 = vrot.slane %v4510, 1
        %v4527 = vrot.slane %v4513, 1
        %v4528 = vsel %vm795, %v4526, %v4527
        %4529 = vrot.lane.b32.xlu0 %v4522, 126
        %v4530 = vpop.permute.xlu0 %4529
        %4531 = vrot.lane.b32.xlu0 %v4525, 126
        %v4532 = vpop.permute.xlu0 %4531
        %4533 = vrot.lane.b32.xlu0 %v4528, 126
        %v4534 = vpop.permute.xlu0 %4533
        %v4535 = vsel %vm420, %v4530, %v4532
        %v4536 = vsel %vm420, %v4532, %v4534
        %v4540 = vadd.f32 %v4460, %v4535
        %v4541 = vadd.f32 %v4461, %v4536
        %v4542 = vadd.f32 %v4462, %v4534
        %v4543 = vmul.f32 %v4319, %v452
        %v4544 = vmul.f32 %v4320, %v456
        %v4545 = vmul.f32 %v4321, %v454
        %v4546 = vmul.f32 %v4322, %v452
        %v4547 = vmul.f32 %v4323, %v456
        %v4548 = vmul.f32 %v4324, %v454
        %s4549 = sld [smem:[#allocation2 + $0x42]]
        %v4550 = vstv %s4549
        %v4551 = vmul.f32 %v4543, %v4550
        %v4552 = vmul.f32 %v4544, %v4550
        %v4553 = vmul.f32 %v4545, %v4550
        %v4554 = vmul.f32 %v4546, %v4550
        %v4555 = vmul.f32 %v4547, %v4550
        %v4556 = vmul.f32 %v4548, %v4550
        %v4563 = vrot.slane %v4551, 1
        %v4564 = vrot.slane %v4554, 1
        %v4565 = vsel %vm795, %v4563, %v4564
        %v4566 = vrot.slane %v4552, 1
        %v4567 = vrot.slane %v4555, 1
        %v4568 = vsel %vm795, %v4566, %v4567
        %v4569 = vrot.slane %v4553, 1
        %v4570 = vrot.slane %v4556, 1
        %v4571 = vsel %vm795, %v4569, %v4570
        %4572 = vrot.lane.b32.xlu0 %v4565, 112
        %v4573 = vpop.permute.xlu0 %4572
        %4574 = vrot.lane.b32.xlu0 %v4568, 112
        %v4575 = vpop.permute.xlu0 %4574
        %4576 = vrot.lane.b32.xlu0 %v4571, 112
        %v4577 = vpop.permute.xlu0 %4576
        %v4578 = vsel %vm477, %v4573, %v4575
        %v4579 = vsel %vm477, %v4575, %v4577
        %v4583 = vadd.f32 %v4503, %v4578
        %v4584 = vadd.f32 %v4504, %v4579
        %v4585 = vadd.f32 %v4505, %v4577
        %s4586 = sld [smem:[#allocation2 + $0xae]]
        %v4587 = vstv %s4586
        %v4588 = vmul.f32 %v4543, %v4587
        %v4589 = vmul.f32 %v4544, %v4587
        %v4590 = vmul.f32 %v4545, %v4587
        %v4591 = vmul.f32 %v4546, %v4587
        %v4592 = vmul.f32 %v4547, %v4587
        %v4593 = vmul.f32 %v4548, %v4587
        %v4600 = vrot.slane %v4588, 1
        %v4601 = vrot.slane %v4591, 1
        %v4602 = vsel %vm795, %v4600, %v4601
        %v4603 = vrot.slane %v4589, 1
        %v4604 = vrot.slane %v4592, 1
        %v4605 = vsel %vm795, %v4603, %v4604
        %v4606 = vrot.slane %v4590, 1
        %v4607 = vrot.slane %v4593, 1
        %v4608 = vsel %vm795, %v4606, %v4607
        %4609 = vrot.lane.b32.xlu0 %v4602, 112
        %v4610 = vpop.permute.xlu0 %4609
        %4611 = vrot.lane.b32.xlu0 %v4605, 112
        %v4612 = vpop.permute.xlu0 %4611
        %4613 = vrot.lane.b32.xlu0 %v4608, 112
        %v4614 = vpop.permute.xlu0 %4613
        %v4615 = vsel %vm477, %v4610, %v4612
        %v4616 = vsel %vm477, %v4612, %v4614
        %v4620 = vadd.f32 %v4540, %v4615
        %v4621 = vadd.f32 %v4541, %v4616
        %v4622 = vadd.f32 %v4542, %v4614
        %s4623 = sld [smem:[#allocation2 + $0x43]]
        %v4624 = vstv %s4623
        %v4625 = vmul.f32 %v4319, %v4624
        %v4626 = vmul.f32 %v4320, %v4624
        %v4627 = vmul.f32 %v4321, %v4624
        %v4628 = vmul.f32 %v4322, %v4624
        %v4629 = vmul.f32 %v4323, %v4624
        %v4630 = vmul.f32 %v4324, %v4624
        %v4637 = vrot.slane %v4625, 1
        %v4638 = vrot.slane %v4628, 1
        %v4639 = vsel %vm795, %v4637, %v4638
        %v4640 = vrot.slane %v4626, 1
        %v4641 = vrot.slane %v4629, 1
        %v4642 = vsel %vm795, %v4640, %v4641
        %v4643 = vrot.slane %v4627, 1
        %v4644 = vrot.slane %v4630, 1
        %v4645 = vsel %vm795, %v4643, %v4644
        %4646 = vrot.lane.b32.xlu0 %v4639, 111
        %v4647 = vpop.permute.xlu0 %4646
        %4648 = vrot.lane.b32.xlu0 %v4642, 111
        %v4649 = vpop.permute.xlu0 %4648
        %4650 = vrot.lane.b32.xlu0 %v4645, 111
        %v4651 = vpop.permute.xlu0 %4650
        %v4652 = vsel %vm522, %v4647, %v4649
        %v4653 = vsel %vm522, %v4649, %v4651
        %v4657 = vadd.f32 %v4583, %v4652
        %v4658 = vadd.f32 %v4584, %v4653
        %v4659 = vadd.f32 %v4585, %v4651
        %s4660 = sld [smem:[#allocation2 + $0xaf]]
        %v4661 = vstv %s4660
        %v4662 = vmul.f32 %v4319, %v4661
        %v4663 = vmul.f32 %v4320, %v4661
        %v4664 = vmul.f32 %v4321, %v4661
        %v4665 = vmul.f32 %v4322, %v4661
        %v4666 = vmul.f32 %v4323, %v4661
        %v4667 = vmul.f32 %v4324, %v4661
        %v4674 = vrot.slane %v4662, 1
        %v4675 = vrot.slane %v4665, 1
        %v4676 = vsel %vm795, %v4674, %v4675
        %v4677 = vrot.slane %v4663, 1
        %v4678 = vrot.slane %v4666, 1
        %v4679 = vsel %vm795, %v4677, %v4678
        %v4680 = vrot.slane %v4664, 1
        %v4681 = vrot.slane %v4667, 1
        %v4682 = vsel %vm795, %v4680, %v4681
        %4683 = vrot.lane.b32.xlu0 %v4676, 111
        %v4684 = vpop.permute.xlu0 %4683
        %4685 = vrot.lane.b32.xlu0 %v4679, 111
        %v4686 = vpop.permute.xlu0 %4685
        %4687 = vrot.lane.b32.xlu0 %v4682, 111
        %v4688 = vpop.permute.xlu0 %4687
        %v4689 = vsel %vm522, %v4684, %v4686
        %v4690 = vsel %vm522, %v4686, %v4688
        %v4694 = vadd.f32 %v4620, %v4689
        %v4695 = vadd.f32 %v4621, %v4690
        %v4696 = vadd.f32 %v4622, %v4688
        %v4697 = vmul.f32 %v4319, %v554
        %v4698 = vmul.f32 %v4320, %v558
        %v4699 = vmul.f32 %v4321, %v556
        %v4700 = vmul.f32 %v4322, %v554
        %v4701 = vmul.f32 %v4323, %v558
        %v4702 = vmul.f32 %v4324, %v556
        %s4703 = sld [smem:[#allocation2 + $0x44]]
        %v4704 = vstv %s4703
        %v4705 = vmul.f32 %v4697, %v4704
        %v4706 = vmul.f32 %v4698, %v4704
        %v4707 = vmul.f32 %v4699, %v4704
        %v4708 = vmul.f32 %v4700, %v4704
        %v4709 = vmul.f32 %v4701, %v4704
        %v4710 = vmul.f32 %v4702, %v4704
        %v4717 = vrot.slane %v4705, 1
        %v4718 = vrot.slane %v4708, 1
        %v4719 = vsel %vm795, %v4717, %v4718
        %v4720 = vrot.slane %v4706, 1
        %v4721 = vrot.slane %v4709, 1
        %v4722 = vsel %vm795, %v4720, %v4721
        %v4723 = vrot.slane %v4707, 1
        %v4724 = vrot.slane %v4710, 1
        %v4725 = vsel %vm795, %v4723, %v4724
        %4726 = vrot.lane.b32.xlu0 %v4719, 110
        %v4727 = vpop.permute.xlu0 %4726
        %4728 = vrot.lane.b32.xlu0 %v4722, 110
        %v4729 = vpop.permute.xlu0 %4728
        %4730 = vrot.lane.b32.xlu0 %v4725, 110
        %v4731 = vpop.permute.xlu0 %4730
        %v4732 = vsel %vm579, %v4727, %v4729
        %v4733 = vsel %vm579, %v4729, %v4731
        %v4737 = vadd.f32 %v4657, %v4732
        %v4738 = vadd.f32 %v4658, %v4733
        %v4739 = vadd.f32 %v4659, %v4731
        %s4740 = sld [smem:[#allocation2 + $0xb0]]
        %v4741 = vstv %s4740
        %v4742 = vmul.f32 %v4697, %v4741
        %v4743 = vmul.f32 %v4698, %v4741
        %v4744 = vmul.f32 %v4699, %v4741
        %v4745 = vmul.f32 %v4700, %v4741
        %v4746 = vmul.f32 %v4701, %v4741
        %v4747 = vmul.f32 %v4702, %v4741
        %v4754 = vrot.slane %v4742, 1
        %v4755 = vrot.slane %v4745, 1
        %v4756 = vsel %vm795, %v4754, %v4755
        %v4757 = vrot.slane %v4743, 1
        %v4758 = vrot.slane %v4746, 1
        %v4759 = vsel %vm795, %v4757, %v4758
        %v4760 = vrot.slane %v4744, 1
        %v4761 = vrot.slane %v4747, 1
        %v4762 = vsel %vm795, %v4760, %v4761
        %4763 = vrot.lane.b32.xlu0 %v4756, 110
        %v4764 = vpop.permute.xlu0 %4763
        %4765 = vrot.lane.b32.xlu0 %v4759, 110
        %v4766 = vpop.permute.xlu0 %4765
        %4767 = vrot.lane.b32.xlu0 %v4762, 110
        %v4768 = vpop.permute.xlu0 %4767
        %v4769 = vsel %vm579, %v4764, %v4766
        %v4770 = vsel %vm579, %v4766, %v4768
        %v4774 = vadd.f32 %v4694, %v4769
        %v4775 = vadd.f32 %v4695, %v4770
        %v4776 = vadd.f32 %v4696, %v4768
        %v4777 = vmul.f32 %v4319, %v611
        %v4778 = vmul.f32 %v4320, %v615
        %v4779 = vmul.f32 %v4321, %v613
        %v4780 = vmul.f32 %v4322, %v611
        %v4781 = vmul.f32 %v4323, %v615
        %v4782 = vmul.f32 %v4324, %v613
        %s4783 = sld [smem:[#allocation2 + $0x45]]
        %v4784 = vstv %s4783
        %v4785 = vmul.f32 %v4777, %v4784
        %v4786 = vmul.f32 %v4778, %v4784
        %v4787 = vmul.f32 %v4779, %v4784
        %v4788 = vmul.f32 %v4780, %v4784
        %v4789 = vmul.f32 %v4781, %v4784
        %v4790 = vmul.f32 %v4782, %v4784
        %v4797 = vrot.slane %v4785, 1
        %v4798 = vrot.slane %v4788, 1
        %v4799 = vsel %vm795, %v4797, %v4798
        %v4800 = vrot.slane %v4786, 1
        %v4801 = vrot.slane %v4789, 1
        %v4802 = vsel %vm795, %v4800, %v4801
        %v4803 = vrot.slane %v4787, 1
        %v4804 = vrot.slane %v4790, 1
        %v4805 = vsel %vm795, %v4803, %v4804
        %4806 = vrot.lane.b32.xlu0 %v4799, 96
        %v4807 = vpop.permute.xlu0 %4806
        %4808 = vrot.lane.b32.xlu0 %v4802, 96
        %v4809 = vpop.permute.xlu0 %4808
        %4810 = vrot.lane.b32.xlu0 %v4805, 96
        %v4811 = vpop.permute.xlu0 %4810
        %v4812 = vsel %vm636, %v4807, %v4809
        %v4813 = vsel %vm636, %v4809, %v4811
        %v4817 = vadd.f32 %v4737, %v4812
        %v4818 = vadd.f32 %v4738, %v4813
        %v4819 = vadd.f32 %v4739, %v4811
        %s4820 = sld [smem:[#allocation2 + $0xb1]]
        %v4821 = vstv %s4820
        %v4822 = vmul.f32 %v4777, %v4821
        %v4823 = vmul.f32 %v4778, %v4821
        %v4824 = vmul.f32 %v4779, %v4821
        %v4825 = vmul.f32 %v4780, %v4821
        %v4826 = vmul.f32 %v4781, %v4821
        %v4827 = vmul.f32 %v4782, %v4821
        %v4834 = vrot.slane %v4822, 1
        %v4835 = vrot.slane %v4825, 1
        %v4836 = vsel %vm795, %v4834, %v4835
        %v4837 = vrot.slane %v4823, 1
        %v4838 = vrot.slane %v4826, 1
        %v4839 = vsel %vm795, %v4837, %v4838
        %v4840 = vrot.slane %v4824, 1
        %v4841 = vrot.slane %v4827, 1
        %v4842 = vsel %vm795, %v4840, %v4841
        %4843 = vrot.lane.b32.xlu0 %v4836, 96
        %v4844 = vpop.permute.xlu0 %4843
        %4845 = vrot.lane.b32.xlu0 %v4839, 96
        %v4846 = vpop.permute.xlu0 %4845
        %4847 = vrot.lane.b32.xlu0 %v4842, 96
        %v4848 = vpop.permute.xlu0 %4847
        %v4849 = vsel %vm636, %v4844, %v4846
        %v4850 = vsel %vm636, %v4846, %v4848
        %v4854 = vadd.f32 %v4774, %v4849
        %v4855 = vadd.f32 %v4775, %v4850
        %v4856 = vadd.f32 %v4776, %v4848
        %s4857 = sld [smem:[#allocation2 + $0x46]]
        %v4858 = vstv %s4857
        %v4859 = vmul.f32 %v4319, %v4858
        %v4860 = vmul.f32 %v4320, %v4858
        %v4861 = vmul.f32 %v4321, %v4858
        %v4862 = vmul.f32 %v4322, %v4858
        %v4863 = vmul.f32 %v4323, %v4858
        %v4864 = vmul.f32 %v4324, %v4858
        %v4871 = vrot.slane %v4859, 1
        %v4872 = vrot.slane %v4862, 1
        %v4873 = vsel %vm795, %v4871, %v4872
        %v4874 = vrot.slane %v4860, 1
        %v4875 = vrot.slane %v4863, 1
        %v4876 = vsel %vm795, %v4874, %v4875
        %v4877 = vrot.slane %v4861, 1
        %v4878 = vrot.slane %v4864, 1
        %v4879 = vsel %vm795, %v4877, %v4878
        %4880 = vrot.lane.b32.xlu0 %v4873, 95
        %v4881 = vpop.permute.xlu0 %4880
        %4882 = vrot.lane.b32.xlu0 %v4876, 95
        %v4883 = vpop.permute.xlu0 %4882
        %4884 = vrot.lane.b32.xlu0 %v4879, 95
        %v4885 = vpop.permute.xlu0 %4884
        %v4886 = vsel %vm681, %v4881, %v4883
        %v4887 = vsel %vm681, %v4883, %v4885
        %v4891 = vadd.f32 %v4817, %v4886
        %v4892 = vadd.f32 %v4818, %v4887
        %v4893 = vadd.f32 %v4819, %v4885
        %s4894 = sld [smem:[#allocation2 + $0xb2]]
        %v4895 = vstv %s4894
        %v4896 = vmul.f32 %v4319, %v4895
        %v4897 = vmul.f32 %v4320, %v4895
        %v4898 = vmul.f32 %v4321, %v4895
        %v4899 = vmul.f32 %v4322, %v4895
        %v4900 = vmul.f32 %v4323, %v4895
        %v4901 = vmul.f32 %v4324, %v4895
        %v4908 = vrot.slane %v4896, 1
        %v4909 = vrot.slane %v4899, 1
        %v4910 = vsel %vm795, %v4908, %v4909
        %v4911 = vrot.slane %v4897, 1
        %v4912 = vrot.slane %v4900, 1
        %v4913 = vsel %vm795, %v4911, %v4912
        %v4914 = vrot.slane %v4898, 1
        %v4915 = vrot.slane %v4901, 1
        %v4916 = vsel %vm795, %v4914, %v4915
        %4917 = vrot.lane.b32.xlu0 %v4910, 95
        %v4918 = vpop.permute.xlu0 %4917
        %4919 = vrot.lane.b32.xlu0 %v4913, 95
        %v4920 = vpop.permute.xlu0 %4919
        %4921 = vrot.lane.b32.xlu0 %v4916, 95
        %v4922 = vpop.permute.xlu0 %4921
        %v4923 = vsel %vm681, %v4918, %v4920
        %v4924 = vsel %vm681, %v4920, %v4922
        %v4928 = vadd.f32 %v4854, %v4923
        %v4929 = vadd.f32 %v4855, %v4924
        %v4930 = vadd.f32 %v4856, %v4922
        %v4931 = vmul.f32 %v4319, %v713
        %v4932 = vmul.f32 %v4320, %v717
        %v4933 = vmul.f32 %v4321, %v715
        %v4934 = vmul.f32 %v4322, %v713
        %v4935 = vmul.f32 %v4323, %v717
        %v4936 = vmul.f32 %v4324, %v715
        %s4937 = sld [smem:[#allocation2 + $0x47]]
        %v4938 = vstv %s4937
        %v4939 = vmul.f32 %v4931, %v4938
        %v4940 = vmul.f32 %v4932, %v4938
        %v4941 = vmul.f32 %v4933, %v4938
        %v4942 = vmul.f32 %v4934, %v4938
        %v4943 = vmul.f32 %v4935, %v4938
        %v4944 = vmul.f32 %v4936, %v4938
        %v4951 = vrot.slane %v4939, 1
        %v4952 = vrot.slane %v4942, 1
        %v4953 = vsel %vm795, %v4951, %v4952
        %v4954 = vrot.slane %v4940, 1
        %v4955 = vrot.slane %v4943, 1
        %v4956 = vsel %vm795, %v4954, %v4955
        %v4957 = vrot.slane %v4941, 1
        %v4958 = vrot.slane %v4944, 1
        %v4959 = vsel %vm795, %v4957, %v4958
        %4960 = vrot.lane.b32.xlu0 %v4953, 94
        %v4961 = vpop.permute.xlu0 %4960
        %4962 = vrot.lane.b32.xlu0 %v4956, 94
        %v4963 = vpop.permute.xlu0 %4962
        %4964 = vrot.lane.b32.xlu0 %v4959, 94
        %v4965 = vpop.permute.xlu0 %4964
        %v4966 = vsel %vm738, %v4961, %v4963
        %v4967 = vsel %vm738, %v4963, %v4965
        %v4971 = vadd.f32 %v4891, %v4966
        %v4972 = vadd.f32 %v4892, %v4967
        %v4973 = vadd.f32 %v4893, %v4965
        %s4974 = sld [smem:[#allocation2 + $0xb3]]
        %v4975 = vstv %s4974
        %v4976 = vmul.f32 %v4931, %v4975
        %v4977 = vmul.f32 %v4932, %v4975
        %v4978 = vmul.f32 %v4933, %v4975
        %v4979 = vmul.f32 %v4934, %v4975
        %v4980 = vmul.f32 %v4935, %v4975
        %v4981 = vmul.f32 %v4936, %v4975
        %v4988 = vrot.slane %v4976, 1
        %v4989 = vrot.slane %v4979, 1
        %v4990 = vsel %vm795, %v4988, %v4989
        %v4991 = vrot.slane %v4977, 1
        %v4992 = vrot.slane %v4980, 1
        %v4993 = vsel %vm795, %v4991, %v4992
        %v4994 = vrot.slane %v4978, 1
        %v4995 = vrot.slane %v4981, 1
        %v4996 = vsel %vm795, %v4994, %v4995
        %4997 = vrot.lane.b32.xlu0 %v4990, 94
        %v4998 = vpop.permute.xlu0 %4997
        %4999 = vrot.lane.b32.xlu0 %v4993, 94
        %v5000 = vpop.permute.xlu0 %4999
        %5001 = vrot.lane.b32.xlu0 %v4996, 94
        %v5002 = vpop.permute.xlu0 %5001
        %v5003 = vsel %vm738, %v4998, %v5000
        %v5004 = vsel %vm738, %v5000, %v5002
        %v5008 = vadd.f32 %v4928, %v5003
        %v5009 = vadd.f32 %v4929, %v5004
        %v5010 = vadd.f32 %v4930, %v5002
        %v5011 = vld [vmem:[%s3929] sm:$0xfc]
        %v5012 = vld [vmem:[%s3929 + $0x8] sm:$0xfc]
        %v5013 = vld [vmem:[%s3929 + $0x10] sm:$0xfc]
        %v5014 = vld [vmem:[%s3929 + $0x18] sm:$0x3]
        %v5015 = vld [vmem:[%s3929 + $0x20] sm:$0x3]
        %v5016 = vld [vmem:[%s3929 + $0x28] sm:$0x3]
        %v5017 = vmul.f32 %v5011, %v320
        %v5018 = vmul.f32 %v5012, %v324
        %v5019 = vmul.f32 %v5013, %v322
        %v5020 = vmul.f32 %v5014, %v320
        %v5021 = vmul.f32 %v5015, %v324
        %v5022 = vmul.f32 %v5016, %v322
        %s5023 = sld [smem:[#allocation2 + $0x48]]
        %v5024 = vstv %s5023
        %v5025 = vmul.f32 %v5017, %v5024
        %v5026 = vmul.f32 %v5018, %v5024
        %v5027 = vmul.f32 %v5019, %v5024
        %v5028 = vmul.f32 %v5020, %v5024
        %v5029 = vmul.f32 %v5021, %v5024
        %v5030 = vmul.f32 %v5022, %v5024
        %v5037 = vrot.slane %v5025, 2
        %v5038 = vrot.slane %v5028, 2
        %v5039 = vsel %vm1488, %v5037, %v5038
        %v5040 = vrot.slane %v5026, 2
        %v5041 = vrot.slane %v5029, 2
        %v5042 = vsel %vm1488, %v5040, %v5041
        %v5043 = vrot.slane %v5027, 2
        %v5044 = vrot.slane %v5030, 2
        %v5045 = vsel %vm1488, %v5043, %v5044
        %v5049 = vadd.f32 %v4971, %v5039
        %v5050 = vadd.f32 %v4972, %v5042
        %v5051 = vadd.f32 %v4973, %v5045
        %s5052 = sld [smem:[#allocation2 + $0xb4]]
        %v5053 = vstv %s5052
        %v5054 = vmul.f32 %v5017, %v5053
        %v5055 = vmul.f32 %v5018, %v5053
        %v5056 = vmul.f32 %v5019, %v5053
        %v5057 = vmul.f32 %v5020, %v5053
        %v5058 = vmul.f32 %v5021, %v5053
        %v5059 = vmul.f32 %v5022, %v5053
        %v5066 = vrot.slane %v5054, 2
        %v5067 = vrot.slane %v5057, 2
        %v5068 = vsel %vm1488, %v5066, %v5067
        %v5069 = vrot.slane %v5055, 2
        %v5070 = vrot.slane %v5058, 2
        %v5071 = vsel %vm1488, %v5069, %v5070
        %v5072 = vrot.slane %v5056, 2
        %v5073 = vrot.slane %v5059, 2
        %v5074 = vsel %vm1488, %v5072, %v5073
        %v5078 = vadd.f32 %v5008, %v5068
        %v5079 = vadd.f32 %v5009, %v5071
        %v5080 = vadd.f32 %v5010, %v5074
        %s5081 = sld [smem:[#allocation2 + $0x49]]
        %v5082 = vstv %s5081
        %v5083 = vmul.f32 %v5011, %v5082
        %v5084 = vmul.f32 %v5012, %v5082
        %v5085 = vmul.f32 %v5013, %v5082
        %v5086 = vmul.f32 %v5014, %v5082
        %v5087 = vmul.f32 %v5015, %v5082
        %v5088 = vmul.f32 %v5016, %v5082
        %v5095 = vrot.slane %v5083, 2
        %v5096 = vrot.slane %v5086, 2
        %v5097 = vsel %vm1488, %v5095, %v5096
        %v5098 = vrot.slane %v5084, 2
        %v5099 = vrot.slane %v5087, 2
        %v5100 = vsel %vm1488, %v5098, %v5099
        %v5101 = vrot.slane %v5085, 2
        %v5102 = vrot.slane %v5088, 2
        %v5103 = vsel %vm1488, %v5101, %v5102
        %5104 = vrot.lane.b32.xlu0 %v5097, 127
        %v5105 = vpop.permute.xlu0 %5104
        %5106 = vrot.lane.b32.xlu0 %v5100, 127
        %v5107 = vpop.permute.xlu0 %5106
        %5108 = vrot.lane.b32.xlu0 %v5103, 127
        %v5109 = vpop.permute.xlu0 %5108
        %v5110 = vsel %vm361, %v5105, %v5107
        %v5111 = vsel %vm361, %v5107, %v5109
        %v5115 = vadd.f32 %v5049, %v5110
        %v5116 = vadd.f32 %v5050, %v5111
        %v5117 = vadd.f32 %v5051, %v5109
        %s5118 = sld [smem:[#allocation2 + $0xb5]]
        %v5119 = vstv %s5118
        %v5120 = vmul.f32 %v5011, %v5119
        %v5121 = vmul.f32 %v5012, %v5119
        %v5122 = vmul.f32 %v5013, %v5119
        %v5123 = vmul.f32 %v5014, %v5119
        %v5124 = vmul.f32 %v5015, %v5119
        %v5125 = vmul.f32 %v5016, %v5119
        %v5132 = vrot.slane %v5120, 2
        %v5133 = vrot.slane %v5123, 2
        %v5134 = vsel %vm1488, %v5132, %v5133
        %v5135 = vrot.slane %v5121, 2
        %v5136 = vrot.slane %v5124, 2
        %v5137 = vsel %vm1488, %v5135, %v5136
        %v5138 = vrot.slane %v5122, 2
        %v5139 = vrot.slane %v5125, 2
        %v5140 = vsel %vm1488, %v5138, %v5139
        %5141 = vrot.lane.b32.xlu0 %v5134, 127
        %v5142 = vpop.permute.xlu0 %5141
        %5143 = vrot.lane.b32.xlu0 %v5137, 127
        %v5144 = vpop.permute.xlu0 %5143
        %5145 = vrot.lane.b32.xlu0 %v5140, 127
        %v5146 = vpop.permute.xlu0 %5145
        %v5147 = vsel %vm361, %v5142, %v5144
        %v5148 = vsel %vm361, %v5144, %v5146
        %v5152 = vadd.f32 %v5078, %v5147
        %v5153 = vadd.f32 %v5079, %v5148
        %v5154 = vadd.f32 %v5080, %v5146
        %v5155 = vmul.f32 %v5011, %v395
        %v5156 = vmul.f32 %v5012, %v399
        %v5157 = vmul.f32 %v5013, %v397
        %v5158 = vmul.f32 %v5014, %v395
        %v5159 = vmul.f32 %v5015, %v399
        %v5160 = vmul.f32 %v5016, %v397
        %s5161 = sld [smem:[#allocation2 + $0x4a]]
        %v5162 = vstv %s5161
        %v5163 = vmul.f32 %v5155, %v5162
        %v5164 = vmul.f32 %v5156, %v5162
        %v5165 = vmul.f32 %v5157, %v5162
        %v5166 = vmul.f32 %v5158, %v5162
        %v5167 = vmul.f32 %v5159, %v5162
        %v5168 = vmul.f32 %v5160, %v5162
        %v5175 = vrot.slane %v5163, 2
        %v5176 = vrot.slane %v5166, 2
        %v5177 = vsel %vm1488, %v5175, %v5176
        %v5178 = vrot.slane %v5164, 2
        %v5179 = vrot.slane %v5167, 2
        %v5180 = vsel %vm1488, %v5178, %v5179
        %v5181 = vrot.slane %v5165, 2
        %v5182 = vrot.slane %v5168, 2
        %v5183 = vsel %vm1488, %v5181, %v5182
        %5184 = vrot.lane.b32.xlu0 %v5177, 126
        %v5185 = vpop.permute.xlu0 %5184
        %5186 = vrot.lane.b32.xlu0 %v5180, 126
        %v5187 = vpop.permute.xlu0 %5186
        %5188 = vrot.lane.b32.xlu0 %v5183, 126
        %v5189 = vpop.permute.xlu0 %5188
        %v5190 = vsel %vm420, %v5185, %v5187
        %v5191 = vsel %vm420, %v5187, %v5189
        %v5195 = vadd.f32 %v5115, %v5190
        %v5196 = vadd.f32 %v5116, %v5191
        %v5197 = vadd.f32 %v5117, %v5189
        %s5198 = sld [smem:[#allocation2 + $0xb6]]
        %v5199 = vstv %s5198
        %v5200 = vmul.f32 %v5155, %v5199
        %v5201 = vmul.f32 %v5156, %v5199
        %v5202 = vmul.f32 %v5157, %v5199
        %v5203 = vmul.f32 %v5158, %v5199
        %v5204 = vmul.f32 %v5159, %v5199
        %v5205 = vmul.f32 %v5160, %v5199
        %v5212 = vrot.slane %v5200, 2
        %v5213 = vrot.slane %v5203, 2
        %v5214 = vsel %vm1488, %v5212, %v5213
        %v5215 = vrot.slane %v5201, 2
        %v5216 = vrot.slane %v5204, 2
        %v5217 = vsel %vm1488, %v5215, %v5216
        %v5218 = vrot.slane %v5202, 2
        %v5219 = vrot.slane %v5205, 2
        %v5220 = vsel %vm1488, %v5218, %v5219
        %5221 = vrot.lane.b32.xlu0 %v5214, 126
        %v5222 = vpop.permute.xlu0 %5221
        %5223 = vrot.lane.b32.xlu0 %v5217, 126
        %v5224 = vpop.permute.xlu0 %5223
        %5225 = vrot.lane.b32.xlu0 %v5220, 126
        %v5226 = vpop.permute.xlu0 %5225
        %v5227 = vsel %vm420, %v5222, %v5224
        %v5228 = vsel %vm420, %v5224, %v5226
        %v5232 = vadd.f32 %v5152, %v5227
        %v5233 = vadd.f32 %v5153, %v5228
        %v5234 = vadd.f32 %v5154, %v5226
        %v5235 = vmul.f32 %v5011, %v452
        %v5236 = vmul.f32 %v5012, %v456
        %v5237 = vmul.f32 %v5013, %v454
        %v5238 = vmul.f32 %v5014, %v452
        %v5239 = vmul.f32 %v5015, %v456
        %v5240 = vmul.f32 %v5016, %v454
        %s5241 = sld [smem:[#allocation2 + $0x4b]]
        %v5242 = vstv %s5241
        %v5243 = vmul.f32 %v5235, %v5242
        %v5244 = vmul.f32 %v5236, %v5242
        %v5245 = vmul.f32 %v5237, %v5242
        %v5246 = vmul.f32 %v5238, %v5242
        %v5247 = vmul.f32 %v5239, %v5242
        %v5248 = vmul.f32 %v5240, %v5242
        %v5255 = vrot.slane %v5243, 2
        %v5256 = vrot.slane %v5246, 2
        %v5257 = vsel %vm1488, %v5255, %v5256
        %v5258 = vrot.slane %v5244, 2
        %v5259 = vrot.slane %v5247, 2
        %v5260 = vsel %vm1488, %v5258, %v5259
        %v5261 = vrot.slane %v5245, 2
        %v5262 = vrot.slane %v5248, 2
        %v5263 = vsel %vm1488, %v5261, %v5262
        %5264 = vrot.lane.b32.xlu0 %v5257, 112
        %v5265 = vpop.permute.xlu0 %5264
        %5266 = vrot.lane.b32.xlu0 %v5260, 112
        %v5267 = vpop.permute.xlu0 %5266
        %5268 = vrot.lane.b32.xlu0 %v5263, 112
        %v5269 = vpop.permute.xlu0 %5268
        %v5270 = vsel %vm477, %v5265, %v5267
        %v5271 = vsel %vm477, %v5267, %v5269
        %v5275 = vadd.f32 %v5195, %v5270
        %v5276 = vadd.f32 %v5196, %v5271
        %v5277 = vadd.f32 %v5197, %v5269
        %s5278 = sld [smem:[#allocation2 + $0xb7]]
        %v5279 = vstv %s5278
        %v5280 = vmul.f32 %v5235, %v5279
        %v5281 = vmul.f32 %v5236, %v5279
        %v5282 = vmul.f32 %v5237, %v5279
        %v5283 = vmul.f32 %v5238, %v5279
        %v5284 = vmul.f32 %v5239, %v5279
        %v5285 = vmul.f32 %v5240, %v5279
        %v5292 = vrot.slane %v5280, 2
        %v5293 = vrot.slane %v5283, 2
        %v5294 = vsel %vm1488, %v5292, %v5293
        %v5295 = vrot.slane %v5281, 2
        %v5296 = vrot.slane %v5284, 2
        %v5297 = vsel %vm1488, %v5295, %v5296
        %v5298 = vrot.slane %v5282, 2
        %v5299 = vrot.slane %v5285, 2
        %v5300 = vsel %vm1488, %v5298, %v5299
        %5301 = vrot.lane.b32.xlu0 %v5294, 112
        %v5302 = vpop.permute.xlu0 %5301
        %5303 = vrot.lane.b32.xlu0 %v5297, 112
        %v5304 = vpop.permute.xlu0 %5303
        %5305 = vrot.lane.b32.xlu0 %v5300, 112
        %v5306 = vpop.permute.xlu0 %5305
        %v5307 = vsel %vm477, %v5302, %v5304
        %v5308 = vsel %vm477, %v5304, %v5306
        %v5312 = vadd.f32 %v5232, %v5307
        %v5313 = vadd.f32 %v5233, %v5308
        %v5314 = vadd.f32 %v5234, %v5306
        %s5315 = sld [smem:[#allocation2 + $0x4c]]
        %v5316 = vstv %s5315
        %v5317 = vmul.f32 %v5011, %v5316
        %v5318 = vmul.f32 %v5012, %v5316
        %v5319 = vmul.f32 %v5013, %v5316
        %v5320 = vmul.f32 %v5014, %v5316
        %v5321 = vmul.f32 %v5015, %v5316
        %v5322 = vmul.f32 %v5016, %v5316
        %v5329 = vrot.slane %v5317, 2
        %v5330 = vrot.slane %v5320, 2
        %v5331 = vsel %vm1488, %v5329, %v5330
        %v5332 = vrot.slane %v5318, 2
        %v5333 = vrot.slane %v5321, 2
        %v5334 = vsel %vm1488, %v5332, %v5333
        %v5335 = vrot.slane %v5319, 2
        %v5336 = vrot.slane %v5322, 2
        %v5337 = vsel %vm1488, %v5335, %v5336
        %5338 = vrot.lane.b32.xlu0 %v5331, 111
        %v5339 = vpop.permute.xlu0 %5338
        %5340 = vrot.lane.b32.xlu0 %v5334, 111
        %v5341 = vpop.permute.xlu0 %5340
        %5342 = vrot.lane.b32.xlu0 %v5337, 111
        %v5343 = vpop.permute.xlu0 %5342
        %v5344 = vsel %vm522, %v5339, %v5341
        %v5345 = vsel %vm522, %v5341, %v5343
        %v5349 = vadd.f32 %v5275, %v5344
        %v5350 = vadd.f32 %v5276, %v5345
        %v5351 = vadd.f32 %v5277, %v5343
        %s5352 = sld [smem:[#allocation2 + $0xb8]]
        %v5353 = vstv %s5352
        %v5354 = vmul.f32 %v5011, %v5353
        %v5355 = vmul.f32 %v5012, %v5353
        %v5356 = vmul.f32 %v5013, %v5353
        %v5357 = vmul.f32 %v5014, %v5353
        %v5358 = vmul.f32 %v5015, %v5353
        %v5359 = vmul.f32 %v5016, %v5353
        %v5366 = vrot.slane %v5354, 2
        %v5367 = vrot.slane %v5357, 2
        %v5368 = vsel %vm1488, %v5366, %v5367
        %v5369 = vrot.slane %v5355, 2
        %v5370 = vrot.slane %v5358, 2
        %v5371 = vsel %vm1488, %v5369, %v5370
        %v5372 = vrot.slane %v5356, 2
        %v5373 = vrot.slane %v5359, 2
        %v5374 = vsel %vm1488, %v5372, %v5373
        %5375 = vrot.lane.b32.xlu0 %v5368, 111
        %v5376 = vpop.permute.xlu0 %5375
        %5377 = vrot.lane.b32.xlu0 %v5371, 111
        %v5378 = vpop.permute.xlu0 %5377
        %5379 = vrot.lane.b32.xlu0 %v5374, 111
        %v5380 = vpop.permute.xlu0 %5379
        %v5381 = vsel %vm522, %v5376, %v5378
        %v5382 = vsel %vm522, %v5378, %v5380
        %v5386 = vadd.f32 %v5312, %v5381
        %v5387 = vadd.f32 %v5313, %v5382
        %v5388 = vadd.f32 %v5314, %v5380
        %v5389 = vmul.f32 %v5011, %v554
        %v5390 = vmul.f32 %v5012, %v558
        %v5391 = vmul.f32 %v5013, %v556
        %v5392 = vmul.f32 %v5014, %v554
        %v5393 = vmul.f32 %v5015, %v558
        %v5394 = vmul.f32 %v5016, %v556
        %s5395 = sld [smem:[#allocation2 + $0x4d]]
        %v5396 = vstv %s5395
        %v5397 = vmul.f32 %v5389, %v5396
        %v5398 = vmul.f32 %v5390, %v5396
        %v5399 = vmul.f32 %v5391, %v5396
        %v5400 = vmul.f32 %v5392, %v5396
        %v5401 = vmul.f32 %v5393, %v5396
        %v5402 = vmul.f32 %v5394, %v5396
        %v5409 = vrot.slane %v5397, 2
        %v5410 = vrot.slane %v5400, 2
        %v5411 = vsel %vm1488, %v5409, %v5410
        %v5412 = vrot.slane %v5398, 2
        %v5413 = vrot.slane %v5401, 2
        %v5414 = vsel %vm1488, %v5412, %v5413
        %v5415 = vrot.slane %v5399, 2
        %v5416 = vrot.slane %v5402, 2
        %v5417 = vsel %vm1488, %v5415, %v5416
        %5418 = vrot.lane.b32.xlu0 %v5411, 110
        %v5419 = vpop.permute.xlu0 %5418
        %5420 = vrot.lane.b32.xlu0 %v5414, 110
        %v5421 = vpop.permute.xlu0 %5420
        %5422 = vrot.lane.b32.xlu0 %v5417, 110
        %v5423 = vpop.permute.xlu0 %5422
        %v5424 = vsel %vm579, %v5419, %v5421
        %v5425 = vsel %vm579, %v5421, %v5423
        %v5429 = vadd.f32 %v5349, %v5424
        %v5430 = vadd.f32 %v5350, %v5425
        %v5431 = vadd.f32 %v5351, %v5423
        %s5432 = sld [smem:[#allocation2 + $0xb9]]
        %v5433 = vstv %s5432
        %v5434 = vmul.f32 %v5389, %v5433
        %v5435 = vmul.f32 %v5390, %v5433
        %v5436 = vmul.f32 %v5391, %v5433
        %v5437 = vmul.f32 %v5392, %v5433
        %v5438 = vmul.f32 %v5393, %v5433
        %v5439 = vmul.f32 %v5394, %v5433
        %v5446 = vrot.slane %v5434, 2
        %v5447 = vrot.slane %v5437, 2
        %v5448 = vsel %vm1488, %v5446, %v5447
        %v5449 = vrot.slane %v5435, 2
        %v5450 = vrot.slane %v5438, 2
        %v5451 = vsel %vm1488, %v5449, %v5450
        %v5452 = vrot.slane %v5436, 2
        %v5453 = vrot.slane %v5439, 2
        %v5454 = vsel %vm1488, %v5452, %v5453
        %5455 = vrot.lane.b32.xlu0 %v5448, 110
        %v5456 = vpop.permute.xlu0 %5455
        %5457 = vrot.lane.b32.xlu0 %v5451, 110
        %v5458 = vpop.permute.xlu0 %5457
        %5459 = vrot.lane.b32.xlu0 %v5454, 110
        %v5460 = vpop.permute.xlu0 %5459
        %v5461 = vsel %vm579, %v5456, %v5458
        %v5462 = vsel %vm579, %v5458, %v5460
        %v5466 = vadd.f32 %v5386, %v5461
        %v5467 = vadd.f32 %v5387, %v5462
        %v5468 = vadd.f32 %v5388, %v5460
        %v5469 = vmul.f32 %v5011, %v611
        %v5470 = vmul.f32 %v5012, %v615
        %v5471 = vmul.f32 %v5013, %v613
        %v5472 = vmul.f32 %v5014, %v611
        %v5473 = vmul.f32 %v5015, %v615
        %v5474 = vmul.f32 %v5016, %v613
        %s5475 = sld [smem:[#allocation2 + $0x4e]]
        %v5476 = vstv %s5475
        %v5477 = vmul.f32 %v5469, %v5476
        %v5478 = vmul.f32 %v5470, %v5476
        %v5479 = vmul.f32 %v5471, %v5476
        %v5480 = vmul.f32 %v5472, %v5476
        %v5481 = vmul.f32 %v5473, %v5476
        %v5482 = vmul.f32 %v5474, %v5476
        %v5489 = vrot.slane %v5477, 2
        %v5490 = vrot.slane %v5480, 2
        %v5491 = vsel %vm1488, %v5489, %v5490
        %v5492 = vrot.slane %v5478, 2
        %v5493 = vrot.slane %v5481, 2
        %v5494 = vsel %vm1488, %v5492, %v5493
        %v5495 = vrot.slane %v5479, 2
        %v5496 = vrot.slane %v5482, 2
        %v5497 = vsel %vm1488, %v5495, %v5496
        %5498 = vrot.lane.b32.xlu0 %v5491, 96
        %v5499 = vpop.permute.xlu0 %5498
        %5500 = vrot.lane.b32.xlu0 %v5494, 96
        %v5501 = vpop.permute.xlu0 %5500
        %5502 = vrot.lane.b32.xlu0 %v5497, 96
        %v5503 = vpop.permute.xlu0 %5502
        %v5504 = vsel %vm636, %v5499, %v5501
        %v5505 = vsel %vm636, %v5501, %v5503
        %v5509 = vadd.f32 %v5429, %v5504
        %v5510 = vadd.f32 %v5430, %v5505
        %v5511 = vadd.f32 %v5431, %v5503
        %s5512 = sld [smem:[#allocation2 + $0xba]]
        %v5513 = vstv %s5512
        %v5514 = vmul.f32 %v5469, %v5513
        %v5515 = vmul.f32 %v5470, %v5513
        %v5516 = vmul.f32 %v5471, %v5513
        %v5517 = vmul.f32 %v5472, %v5513
        %v5518 = vmul.f32 %v5473, %v5513
        %v5519 = vmul.f32 %v5474, %v5513
        %v5526 = vrot.slane %v5514, 2
        %v5527 = vrot.slane %v5517, 2
        %v5528 = vsel %vm1488, %v5526, %v5527
        %v5529 = vrot.slane %v5515, 2
        %v5530 = vrot.slane %v5518, 2
        %v5531 = vsel %vm1488, %v5529, %v5530
        %v5532 = vrot.slane %v5516, 2
        %v5533 = vrot.slane %v5519, 2
        %v5534 = vsel %vm1488, %v5532, %v5533
        %5535 = vrot.lane.b32.xlu0 %v5528, 96
        %v5536 = vpop.permute.xlu0 %5535
        %5537 = vrot.lane.b32.xlu0 %v5531, 96
        %v5538 = vpop.permute.xlu0 %5537
        %5539 = vrot.lane.b32.xlu0 %v5534, 96
        %v5540 = vpop.permute.xlu0 %5539
        %v5541 = vsel %vm636, %v5536, %v5538
        %v5542 = vsel %vm636, %v5538, %v5540
        %v5546 = vadd.f32 %v5466, %v5541
        %v5547 = vadd.f32 %v5467, %v5542
        %v5548 = vadd.f32 %v5468, %v5540
        %s5549 = sld [smem:[#allocation2 + $0x4f]]
        %v5550 = vstv %s5549
        %v5551 = vmul.f32 %v5011, %v5550
        %v5552 = vmul.f32 %v5012, %v5550
        %v5553 = vmul.f32 %v5013, %v5550
        %v5554 = vmul.f32 %v5014, %v5550
        %v5555 = vmul.f32 %v5015, %v5550
        %v5556 = vmul.f32 %v5016, %v5550
        %v5563 = vrot.slane %v5551, 2
        %v5564 = vrot.slane %v5554, 2
        %v5565 = vsel %vm1488, %v5563, %v5564
        %v5566 = vrot.slane %v5552, 2
        %v5567 = vrot.slane %v5555, 2
        %v5568 = vsel %vm1488, %v5566, %v5567
        %v5569 = vrot.slane %v5553, 2
        %v5570 = vrot.slane %v5556, 2
        %v5571 = vsel %vm1488, %v5569, %v5570
        %5572 = vrot.lane.b32.xlu0 %v5565, 95
        %v5573 = vpop.permute.xlu0 %5572
        %5574 = vrot.lane.b32.xlu0 %v5568, 95
        %v5575 = vpop.permute.xlu0 %5574
        %5576 = vrot.lane.b32.xlu0 %v5571, 95
        %v5577 = vpop.permute.xlu0 %5576
        %v5578 = vsel %vm681, %v5573, %v5575
        %v5579 = vsel %vm681, %v5575, %v5577
        %v5583 = vadd.f32 %v5509, %v5578
        %v5584 = vadd.f32 %v5510, %v5579
        %v5585 = vadd.f32 %v5511, %v5577
        %s5586 = sld [smem:[#allocation2 + $0xbb]]
        %v5587 = vstv %s5586
        %v5588 = vmul.f32 %v5011, %v5587
        %v5589 = vmul.f32 %v5012, %v5587
        %v5590 = vmul.f32 %v5013, %v5587
        %v5591 = vmul.f32 %v5014, %v5587
        %v5592 = vmul.f32 %v5015, %v5587
        %v5593 = vmul.f32 %v5016, %v5587
        %v5600 = vrot.slane %v5588, 2
        %v5601 = vrot.slane %v5591, 2
        %v5602 = vsel %vm1488, %v5600, %v5601
        %v5603 = vrot.slane %v5589, 2
        %v5604 = vrot.slane %v5592, 2
        %v5605 = vsel %vm1488, %v5603, %v5604
        %v5606 = vrot.slane %v5590, 2
        %v5607 = vrot.slane %v5593, 2
        %v5608 = vsel %vm1488, %v5606, %v5607
        %5609 = vrot.lane.b32.xlu0 %v5602, 95
        %v5610 = vpop.permute.xlu0 %5609
        %5611 = vrot.lane.b32.xlu0 %v5605, 95
        %v5612 = vpop.permute.xlu0 %5611
        %5613 = vrot.lane.b32.xlu0 %v5608, 95
        %v5614 = vpop.permute.xlu0 %5613
        %v5615 = vsel %vm681, %v5610, %v5612
        %v5616 = vsel %vm681, %v5612, %v5614
        %v5620 = vadd.f32 %v5546, %v5615
        %v5621 = vadd.f32 %v5547, %v5616
        %v5622 = vadd.f32 %v5548, %v5614
        %v5623 = vmul.f32 %v5011, %v713
        %v5624 = vmul.f32 %v5012, %v717
        %v5625 = vmul.f32 %v5013, %v715
        %v5626 = vmul.f32 %v5014, %v713
        %v5627 = vmul.f32 %v5015, %v717
        %v5628 = vmul.f32 %v5016, %v715
        %s5629 = sld [smem:[#allocation2 + $0x50]]
        %v5630 = vstv %s5629
        %v5631 = vmul.f32 %v5623, %v5630
        %v5632 = vmul.f32 %v5624, %v5630
        %v5633 = vmul.f32 %v5625, %v5630
        %v5634 = vmul.f32 %v5626, %v5630
        %v5635 = vmul.f32 %v5627, %v5630
        %v5636 = vmul.f32 %v5628, %v5630
        %v5643 = vrot.slane %v5631, 2
        %v5644 = vrot.slane %v5634, 2
        %v5645 = vsel %vm1488, %v5643, %v5644
        %v5646 = vrot.slane %v5632, 2
        %v5647 = vrot.slane %v5635, 2
        %v5648 = vsel %vm1488, %v5646, %v5647
        %v5649 = vrot.slane %v5633, 2
        %v5650 = vrot.slane %v5636, 2
        %v5651 = vsel %vm1488, %v5649, %v5650
        %5652 = vrot.lane.b32.xlu0 %v5645, 94
        %v5653 = vpop.permute.xlu0 %5652
        %5654 = vrot.lane.b32.xlu0 %v5648, 94
        %v5655 = vpop.permute.xlu0 %5654
        %5656 = vrot.lane.b32.xlu0 %v5651, 94
        %v5657 = vpop.permute.xlu0 %5656
        %v5658 = vsel %vm738, %v5653, %v5655
        %v5659 = vsel %vm738, %v5655, %v5657
        %v5663 = vadd.f32 %v5583, %v5658
        %v5664 = vadd.f32 %v5584, %v5659
        %v5665 = vadd.f32 %v5585, %v5657
        %s5666 = sld [smem:[#allocation2 + $0xbc]]
        %v5667 = vstv %s5666
        %v5668 = vmul.f32 %v5623, %v5667
        %v5669 = vmul.f32 %v5624, %v5667
        %v5670 = vmul.f32 %v5625, %v5667
        %v5671 = vmul.f32 %v5626, %v5667
        %v5672 = vmul.f32 %v5627, %v5667
        %v5673 = vmul.f32 %v5628, %v5667
        %v5680 = vrot.slane %v5668, 2
        %v5681 = vrot.slane %v5671, 2
        %v5682 = vsel %vm1488, %v5680, %v5681
        %v5683 = vrot.slane %v5669, 2
        %v5684 = vrot.slane %v5672, 2
        %v5685 = vsel %vm1488, %v5683, %v5684
        %v5686 = vrot.slane %v5670, 2
        %v5687 = vrot.slane %v5673, 2
        %v5688 = vsel %vm1488, %v5686, %v5687
        %5689 = vrot.lane.b32.xlu0 %v5682, 94
        %v5690 = vpop.permute.xlu0 %5689
        %5691 = vrot.lane.b32.xlu0 %v5685, 94
        %v5692 = vpop.permute.xlu0 %5691
        %5693 = vrot.lane.b32.xlu0 %v5688, 94
        %v5694 = vpop.permute.xlu0 %5693
        %v5695 = vsel %vm738, %v5690, %v5692
        %v5696 = vsel %vm738, %v5692, %v5694
        %v5700 = vadd.f32 %v5620, %v5695
        %v5701 = vadd.f32 %v5621, %v5696
        %v5702 = vadd.f32 %v5622, %v5694
        %s5703 = scalar_lea.vmem %s274, 144
        %v5704 = vld [vmem:[%s5703] sm:$0xff]
        %v5705 = vld [vmem:[%s5703 + $0x8] sm:$0xff]
        %v5706 = vld [vmem:[%s5703 + $0x10] sm:$0xff]
        %v5707 = vmul.f32 %v5704, %v320
        %v5708 = vmul.f32 %v5705, %v324
        %v5709 = vmul.f32 %v5706, %v322
        %s5710 = sld [smem:[#allocation2 + $0x51]]
        %v5711 = vstv %s5710
        %v5712 = vmul.f32 %v5707, %v5711
        %v5713 = vmul.f32 %v5708, %v5711
        %v5714 = vmul.f32 %v5709, %v5711
        %v5715 = vadd.f32 %v5663, %v5712
        %v5716 = vadd.f32 %v5664, %v5713
        %v5717 = vadd.f32 %v5665, %v5714
        %s5718 = sld [smem:[#allocation2 + $0xbd]]
        %v5719 = vstv %s5718
        %v5720 = vmul.f32 %v5707, %v5719
        %v5721 = vmul.f32 %v5708, %v5719
        %v5722 = vmul.f32 %v5709, %v5719
        %v5723 = vadd.f32 %v5700, %v5720
        %v5724 = vadd.f32 %v5701, %v5721
        %v5725 = vadd.f32 %v5702, %v5722
        %s5726 = sld [smem:[#allocation2 + $0x52]]
        %v5727 = vstv %s5726
        %v5728 = vmul.f32 %v5704, %v5727
        %v5729 = vmul.f32 %v5705, %v5727
        %v5730 = vmul.f32 %v5706, %v5727
        %5734 = vrot.lane.b32.xlu0 %v5728, 127
        %v5735 = vpop.permute.xlu0 %5734
        %5736 = vrot.lane.b32.xlu0 %v5729, 127
        %v5737 = vpop.permute.xlu0 %5736
        %5738 = vrot.lane.b32.xlu0 %v5730, 127
        %v5739 = vpop.permute.xlu0 %5738
        %v5740 = vsel %vm361, %v5735, %v5737
        %v5741 = vsel %vm361, %v5737, %v5739
        %v5745 = vadd.f32 %v5715, %v5740
        %v5746 = vadd.f32 %v5716, %v5741
        %v5747 = vadd.f32 %v5717, %v5739
        %s5748 = sld [smem:[#allocation2 + $0xbe]]
        %v5749 = vstv %s5748
        %v5750 = vmul.f32 %v5704, %v5749
        %v5751 = vmul.f32 %v5705, %v5749
        %v5752 = vmul.f32 %v5706, %v5749
        %5756 = vrot.lane.b32.xlu0 %v5750, 127
        %v5757 = vpop.permute.xlu0 %5756
        %5758 = vrot.lane.b32.xlu0 %v5751, 127
        %v5759 = vpop.permute.xlu0 %5758
        %5760 = vrot.lane.b32.xlu0 %v5752, 127
        %v5761 = vpop.permute.xlu0 %5760
        %v5762 = vsel %vm361, %v5757, %v5759
        %v5763 = vsel %vm361, %v5759, %v5761
        %v5767 = vadd.f32 %v5723, %v5762
        %v5768 = vadd.f32 %v5724, %v5763
        %v5769 = vadd.f32 %v5725, %v5761
        %v5770 = vmul.f32 %v5704, %v395
        %v5771 = vmul.f32 %v5705, %v399
        %v5772 = vmul.f32 %v5706, %v397
        %s5773 = sld [smem:[#allocation2 + $0x53]]
        %v5774 = vstv %s5773
        %v5775 = vmul.f32 %v5770, %v5774
        %v5776 = vmul.f32 %v5771, %v5774
        %v5777 = vmul.f32 %v5772, %v5774
        %5781 = vrot.lane.b32.xlu0 %v5775, 126
        %v5782 = vpop.permute.xlu0 %5781
        %5783 = vrot.lane.b32.xlu0 %v5776, 126
        %v5784 = vpop.permute.xlu0 %5783
        %5785 = vrot.lane.b32.xlu0 %v5777, 126
        %v5786 = vpop.permute.xlu0 %5785
        %v5787 = vsel %vm420, %v5782, %v5784
        %v5788 = vsel %vm420, %v5784, %v5786
        %v5792 = vadd.f32 %v5745, %v5787
        %v5793 = vadd.f32 %v5746, %v5788
        %v5794 = vadd.f32 %v5747, %v5786
        %s5795 = sld [smem:[#allocation2 + $0xbf]]
        %v5796 = vstv %s5795
        %v5797 = vmul.f32 %v5770, %v5796
        %v5798 = vmul.f32 %v5771, %v5796
        %v5799 = vmul.f32 %v5772, %v5796
        %5803 = vrot.lane.b32.xlu0 %v5797, 126
        %v5804 = vpop.permute.xlu0 %5803
        %5805 = vrot.lane.b32.xlu0 %v5798, 126
        %v5806 = vpop.permute.xlu0 %5805
        %5807 = vrot.lane.b32.xlu0 %v5799, 126
        %v5808 = vpop.permute.xlu0 %5807
        %v5809 = vsel %vm420, %v5804, %v5806
        %v5810 = vsel %vm420, %v5806, %v5808
        %v5814 = vadd.f32 %v5767, %v5809
        %v5815 = vadd.f32 %v5768, %v5810
        %v5816 = vadd.f32 %v5769, %v5808
        %v5817 = vmul.f32 %v5704, %v452
        %v5818 = vmul.f32 %v5705, %v456
        %v5819 = vmul.f32 %v5706, %v454
        %s5820 = sld [smem:[#allocation2 + $0x54]]
        %v5821 = vstv %s5820
        %v5822 = vmul.f32 %v5817, %v5821
        %v5823 = vmul.f32 %v5818, %v5821
        %v5824 = vmul.f32 %v5819, %v5821
        %5828 = vrot.lane.b32.xlu0 %v5822, 112
        %v5829 = vpop.permute.xlu0 %5828
        %5830 = vrot.lane.b32.xlu0 %v5823, 112
        %v5831 = vpop.permute.xlu0 %5830
        %5832 = vrot.lane.b32.xlu0 %v5824, 112
        %v5833 = vpop.permute.xlu0 %5832
        %v5834 = vsel %vm477, %v5829, %v5831
        %v5835 = vsel %vm477, %v5831, %v5833
        %v5839 = vadd.f32 %v5792, %v5834
        %v5840 = vadd.f32 %v5793, %v5835
        %v5841 = vadd.f32 %v5794, %v5833
        %s5842 = sld [smem:[#allocation2 + $0xc0]]
        %v5843 = vstv %s5842
        %v5844 = vmul.f32 %v5817, %v5843
        %v5845 = vmul.f32 %v5818, %v5843
        %v5846 = vmul.f32 %v5819, %v5843
        %5850 = vrot.lane.b32.xlu0 %v5844, 112
        %v5851 = vpop.permute.xlu0 %5850
        %5852 = vrot.lane.b32.xlu0 %v5845, 112
        %v5853 = vpop.permute.xlu0 %5852
        %5854 = vrot.lane.b32.xlu0 %v5846, 112
        %v5855 = vpop.permute.xlu0 %5854
        %v5856 = vsel %vm477, %v5851, %v5853
        %v5857 = vsel %vm477, %v5853, %v5855
        %v5861 = vadd.f32 %v5814, %v5856
        %v5862 = vadd.f32 %v5815, %v5857
        %v5863 = vadd.f32 %v5816, %v5855
        %s5864 = sld [smem:[#allocation2 + $0x55]]
        %v5865 = vstv %s5864
        %v5866 = vmul.f32 %v5704, %v5865
        %v5867 = vmul.f32 %v5705, %v5865
        %v5868 = vmul.f32 %v5706, %v5865
        %5872 = vrot.lane.b32.xlu0 %v5866, 111
        %v5873 = vpop.permute.xlu0 %5872
        %5874 = vrot.lane.b32.xlu0 %v5867, 111
        %v5875 = vpop.permute.xlu0 %5874
        %5876 = vrot.lane.b32.xlu0 %v5868, 111
        %v5877 = vpop.permute.xlu0 %5876
        %v5878 = vsel %vm522, %v5873, %v5875
        %v5879 = vsel %vm522, %v5875, %v5877
        %v5883 = vadd.f32 %v5839, %v5878
        %v5884 = vadd.f32 %v5840, %v5879
        %v5885 = vadd.f32 %v5841, %v5877
        %s5886 = sld [smem:[#allocation2 + $0xc1]]
        %v5887 = vstv %s5886
        %v5888 = vmul.f32 %v5704, %v5887
        %v5889 = vmul.f32 %v5705, %v5887
        %v5890 = vmul.f32 %v5706, %v5887
        %5894 = vrot.lane.b32.xlu0 %v5888, 111
        %v5895 = vpop.permute.xlu0 %5894
        %5896 = vrot.lane.b32.xlu0 %v5889, 111
        %v5897 = vpop.permute.xlu0 %5896
        %5898 = vrot.lane.b32.xlu0 %v5890, 111
        %v5899 = vpop.permute.xlu0 %5898
        %v5900 = vsel %vm522, %v5895, %v5897
        %v5901 = vsel %vm522, %v5897, %v5899
        %v5905 = vadd.f32 %v5861, %v5900
        %v5906 = vadd.f32 %v5862, %v5901
        %v5907 = vadd.f32 %v5863, %v5899
        %v5908 = vmul.f32 %v5704, %v554
        %v5909 = vmul.f32 %v5705, %v558
        %v5910 = vmul.f32 %v5706, %v556
        %s5911 = sld [smem:[#allocation2 + $0x56]]
        %v5912 = vstv %s5911
        %v5913 = vmul.f32 %v5908, %v5912
        %v5914 = vmul.f32 %v5909, %v5912
        %v5915 = vmul.f32 %v5910, %v5912
        %5919 = vrot.lane.b32.xlu0 %v5913, 110
        %v5920 = vpop.permute.xlu0 %5919
        %5921 = vrot.lane.b32.xlu0 %v5914, 110
        %v5922 = vpop.permute.xlu0 %5921
        %5923 = vrot.lane.b32.xlu0 %v5915, 110
        %v5924 = vpop.permute.xlu0 %5923
        %v5925 = vsel %vm579, %v5920, %v5922
        %v5926 = vsel %vm579, %v5922, %v5924
        %v5930 = vadd.f32 %v5883, %v5925
        %v5931 = vadd.f32 %v5884, %v5926
        %v5932 = vadd.f32 %v5885, %v5924
        %s5933 = sld [smem:[#allocation2 + $0xc2]]
        %v5934 = vstv %s5933
        %v5935 = vmul.f32 %v5908, %v5934
        %v5936 = vmul.f32 %v5909, %v5934
        %v5937 = vmul.f32 %v5910, %v5934
        %5941 = vrot.lane.b32.xlu0 %v5935, 110
        %v5942 = vpop.permute.xlu0 %5941
        %5943 = vrot.lane.b32.xlu0 %v5936, 110
        %v5944 = vpop.permute.xlu0 %5943
        %5945 = vrot.lane.b32.xlu0 %v5937, 110
        %v5946 = vpop.permute.xlu0 %5945
        %v5947 = vsel %vm579, %v5942, %v5944
        %v5948 = vsel %vm579, %v5944, %v5946
        %v5952 = vadd.f32 %v5905, %v5947
        %v5953 = vadd.f32 %v5906, %v5948
        %v5954 = vadd.f32 %v5907, %v5946
        %v5955 = vmul.f32 %v5704, %v611
        %v5956 = vmul.f32 %v5705, %v615
        %v5957 = vmul.f32 %v5706, %v613
        %s5958 = sld [smem:[#allocation2 + $0x57]]
        %v5959 = vstv %s5958
        %v5960 = vmul.f32 %v5955, %v5959
        %v5961 = vmul.f32 %v5956, %v5959
        %v5962 = vmul.f32 %v5957, %v5959
        %5966 = vrot.lane.b32.xlu0 %v5960, 96
        %v5967 = vpop.permute.xlu0 %5966
        %5968 = vrot.lane.b32.xlu0 %v5961, 96
        %v5969 = vpop.permute.xlu0 %5968
        %5970 = vrot.lane.b32.xlu0 %v5962, 96
        %v5971 = vpop.permute.xlu0 %5970
        %v5972 = vsel %vm636, %v5967, %v5969
        %v5973 = vsel %vm636, %v5969, %v5971
        %v5977 = vadd.f32 %v5930, %v5972
        %v5978 = vadd.f32 %v5931, %v5973
        %v5979 = vadd.f32 %v5932, %v5971
        %s5980 = sld [smem:[#allocation2 + $0xc3]]
        %v5981 = vstv %s5980
        %v5982 = vmul.f32 %v5955, %v5981
        %v5983 = vmul.f32 %v5956, %v5981
        %v5984 = vmul.f32 %v5957, %v5981
        %5988 = vrot.lane.b32.xlu0 %v5982, 96
        %v5989 = vpop.permute.xlu0 %5988
        %5990 = vrot.lane.b32.xlu0 %v5983, 96
        %v5991 = vpop.permute.xlu0 %5990
        %5992 = vrot.lane.b32.xlu0 %v5984, 96
        %v5993 = vpop.permute.xlu0 %5992
        %v5994 = vsel %vm636, %v5989, %v5991
        %v5995 = vsel %vm636, %v5991, %v5993
        %v5999 = vadd.f32 %v5952, %v5994
        %v6000 = vadd.f32 %v5953, %v5995
        %v6001 = vadd.f32 %v5954, %v5993
        %s6002 = sld [smem:[#allocation2 + $0x58]]
        %v6003 = vstv %s6002
        %v6004 = vmul.f32 %v5704, %v6003
        %v6005 = vmul.f32 %v5705, %v6003
        %v6006 = vmul.f32 %v5706, %v6003
        %6010 = vrot.lane.b32.xlu0 %v6004, 95
        %v6011 = vpop.permute.xlu0 %6010
        %6012 = vrot.lane.b32.xlu0 %v6005, 95
        %v6013 = vpop.permute.xlu0 %6012
        %6014 = vrot.lane.b32.xlu0 %v6006, 95
        %v6015 = vpop.permute.xlu0 %6014
        %v6016 = vsel %vm681, %v6011, %v6013
        %v6017 = vsel %vm681, %v6013, %v6015
        %v6021 = vadd.f32 %v5977, %v6016
        %v6022 = vadd.f32 %v5978, %v6017
        %v6023 = vadd.f32 %v5979, %v6015
        %s6024 = sld [smem:[#allocation2 + $0xc4]]
        %v6025 = vstv %s6024
        %v6026 = vmul.f32 %v5704, %v6025
        %v6027 = vmul.f32 %v5705, %v6025
        %v6028 = vmul.f32 %v5706, %v6025
        %6032 = vrot.lane.b32.xlu0 %v6026, 95
        %v6033 = vpop.permute.xlu0 %6032
        %6034 = vrot.lane.b32.xlu0 %v6027, 95
        %v6035 = vpop.permute.xlu0 %6034
        %6036 = vrot.lane.b32.xlu0 %v6028, 95
        %v6037 = vpop.permute.xlu0 %6036
        %v6038 = vsel %vm681, %v6033, %v6035
        %v6039 = vsel %vm681, %v6035, %v6037
        %v6043 = vadd.f32 %v5999, %v6038
        %v6044 = vadd.f32 %v6000, %v6039
        %v6045 = vadd.f32 %v6001, %v6037
        %v6046 = vmul.f32 %v5704, %v713
        %v6047 = vmul.f32 %v5705, %v717
        %v6048 = vmul.f32 %v5706, %v715
        %s6049 = sld [smem:[#allocation2 + $0x59]]
        %v6050 = vstv %s6049
        %v6051 = vmul.f32 %v6046, %v6050
        %v6052 = vmul.f32 %v6047, %v6050
        %v6053 = vmul.f32 %v6048, %v6050
        %6057 = vrot.lane.b32.xlu0 %v6051, 94
        %v6058 = vpop.permute.xlu0 %6057
        %6059 = vrot.lane.b32.xlu0 %v6052, 94
        %v6060 = vpop.permute.xlu0 %6059
        %6061 = vrot.lane.b32.xlu0 %v6053, 94
        %v6062 = vpop.permute.xlu0 %6061
        %v6063 = vsel %vm738, %v6058, %v6060
        %v6064 = vsel %vm738, %v6060, %v6062
        %v6068 = vadd.f32 %v6021, %v6063
        %v6069 = vadd.f32 %v6022, %v6064
        %v6070 = vadd.f32 %v6023, %v6062
        %s6071 = sld [smem:[#allocation2 + $0xc5]]
        %v6072 = vstv %s6071
        %v6073 = vmul.f32 %v6046, %v6072
        %v6074 = vmul.f32 %v6047, %v6072
        %v6075 = vmul.f32 %v6048, %v6072
        %6079 = vrot.lane.b32.xlu0 %v6073, 94
        %v6080 = vpop.permute.xlu0 %6079
        %6081 = vrot.lane.b32.xlu0 %v6074, 94
        %v6082 = vpop.permute.xlu0 %6081
        %6083 = vrot.lane.b32.xlu0 %v6075, 94
        %v6084 = vpop.permute.xlu0 %6083
        %v6085 = vsel %vm738, %v6080, %v6082
        %v6086 = vsel %vm738, %v6082, %v6084
        %v6090 = vadd.f32 %v6043, %v6085
        %v6091 = vadd.f32 %v6044, %v6086
        %v6092 = vadd.f32 %v6045, %v6084
        %v6093 = vld [vmem:[%s5703] sm:$0xfe]
        %v6094 = vld [vmem:[%s5703 + $0x8] sm:$0xfe]
        %v6095 = vld [vmem:[%s5703 + $0x10] sm:$0xfe]
        %v6096 = vld [vmem:[%s5703 + $0x18] sm:$0x1]
        %v6097 = vld [vmem:[%s5703 + $0x20] sm:$0x1]
        %v6098 = vld [vmem:[%s5703 + $0x28] sm:$0x1]
        %v6099 = vmul.f32 %v6093, %v320
        %v6100 = vmul.f32 %v6094, %v324
        %v6101 = vmul.f32 %v6095, %v322
        %v6102 = vmul.f32 %v6096, %v320
        %v6103 = vmul.f32 %v6097, %v324
        %v6104 = vmul.f32 %v6098, %v322
        %s6105 = sld [smem:[#allocation2 + $0x5a]]
        %v6106 = vstv %s6105
        %v6107 = vmul.f32 %v6099, %v6106
        %v6108 = vmul.f32 %v6100, %v6106
        %v6109 = vmul.f32 %v6101, %v6106
        %v6110 = vmul.f32 %v6102, %v6106
        %v6111 = vmul.f32 %v6103, %v6106
        %v6112 = vmul.f32 %v6104, %v6106
        %v6119 = vrot.slane %v6107, 1
        %v6120 = vrot.slane %v6110, 1
        %v6121 = vsel %vm795, %v6119, %v6120
        %v6122 = vrot.slane %v6108, 1
        %v6123 = vrot.slane %v6111, 1
        %v6124 = vsel %vm795, %v6122, %v6123
        %v6125 = vrot.slane %v6109, 1
        %v6126 = vrot.slane %v6112, 1
        %v6127 = vsel %vm795, %v6125, %v6126
        %v6131 = vadd.f32 %v6068, %v6121
        %v6132 = vadd.f32 %v6069, %v6124
        %v6133 = vadd.f32 %v6070, %v6127
        %s6134 = sld [smem:[#allocation2 + $0xc6]]
        %v6135 = vstv %s6134
        %v6136 = vmul.f32 %v6099, %v6135
        %v6137 = vmul.f32 %v6100, %v6135
        %v6138 = vmul.f32 %v6101, %v6135
        %v6139 = vmul.f32 %v6102, %v6135
        %v6140 = vmul.f32 %v6103, %v6135
        %v6141 = vmul.f32 %v6104, %v6135
        %v6148 = vrot.slane %v6136, 1
        %v6149 = vrot.slane %v6139, 1
        %v6150 = vsel %vm795, %v6148, %v6149
        %v6151 = vrot.slane %v6137, 1
        %v6152 = vrot.slane %v6140, 1
        %v6153 = vsel %vm795, %v6151, %v6152
        %v6154 = vrot.slane %v6138, 1
        %v6155 = vrot.slane %v6141, 1
        %v6156 = vsel %vm795, %v6154, %v6155
        %v6160 = vadd.f32 %v6090, %v6150
        %v6161 = vadd.f32 %v6091, %v6153
        %v6162 = vadd.f32 %v6092, %v6156
        %s6163 = sld [smem:[#allocation2 + $0x5b]]
        %v6164 = vstv %s6163
        %v6165 = vmul.f32 %v6093, %v6164
        %v6166 = vmul.f32 %v6094, %v6164
        %v6167 = vmul.f32 %v6095, %v6164
        %v6168 = vmul.f32 %v6096, %v6164
        %v6169 = vmul.f32 %v6097, %v6164
        %v6170 = vmul.f32 %v6098, %v6164
        %v6177 = vrot.slane %v6165, 1
        %v6178 = vrot.slane %v6168, 1
        %v6179 = vsel %vm795, %v6177, %v6178
        %v6180 = vrot.slane %v6166, 1
        %v6181 = vrot.slane %v6169, 1
        %v6182 = vsel %vm795, %v6180, %v6181
        %v6183 = vrot.slane %v6167, 1
        %v6184 = vrot.slane %v6170, 1
        %v6185 = vsel %vm795, %v6183, %v6184
        %6186 = vrot.lane.b32.xlu0 %v6179, 127
        %v6187 = vpop.permute.xlu0 %6186
        %6188 = vrot.lane.b32.xlu0 %v6182, 127
        %v6189 = vpop.permute.xlu0 %6188
        %6190 = vrot.lane.b32.xlu0 %v6185, 127
        %v6191 = vpop.permute.xlu0 %6190
        %v6192 = vsel %vm361, %v6187, %v6189
        %v6193 = vsel %vm361, %v6189, %v6191
        %v6197 = vadd.f32 %v6131, %v6192
        %v6198 = vadd.f32 %v6132, %v6193
        %v6199 = vadd.f32 %v6133, %v6191
        %s6200 = sld [smem:[#allocation2 + $0xc7]]
        %v6201 = vstv %s6200
        %v6202 = vmul.f32 %v6093, %v6201
        %v6203 = vmul.f32 %v6094, %v6201
        %v6204 = vmul.f32 %v6095, %v6201
        %v6205 = vmul.f32 %v6096, %v6201
        %v6206 = vmul.f32 %v6097, %v6201
        %v6207 = vmul.f32 %v6098, %v6201
        %v6214 = vrot.slane %v6202, 1
        %v6215 = vrot.slane %v6205, 1
        %v6216 = vsel %vm795, %v6214, %v6215
        %v6217 = vrot.slane %v6203, 1
        %v6218 = vrot.slane %v6206, 1
        %v6219 = vsel %vm795, %v6217, %v6218
        %v6220 = vrot.slane %v6204, 1
        %v6221 = vrot.slane %v6207, 1
        %v6222 = vsel %vm795, %v6220, %v6221
        %6223 = vrot.lane.b32.xlu0 %v6216, 127
        %v6224 = vpop.permute.xlu0 %6223
        %6225 = vrot.lane.b32.xlu0 %v6219, 127
        %v6226 = vpop.permute.xlu0 %6225
        %6227 = vrot.lane.b32.xlu0 %v6222, 127
        %v6228 = vpop.permute.xlu0 %6227
        %v6229 = vsel %vm361, %v6224, %v6226
        %v6230 = vsel %vm361, %v6226, %v6228
        %v6234 = vadd.f32 %v6160, %v6229
        %v6235 = vadd.f32 %v6161, %v6230
        %v6236 = vadd.f32 %v6162, %v6228
        %v6237 = vmul.f32 %v6093, %v395
        %v6238 = vmul.f32 %v6094, %v399
        %v6239 = vmul.f32 %v6095, %v397
        %v6240 = vmul.f32 %v6096, %v395
        %v6241 = vmul.f32 %v6097, %v399
        %v6242 = vmul.f32 %v6098, %v397
        %s6243 = sld [smem:[#allocation2 + $0x5c]]
        %v6244 = vstv %s6243
        %v6245 = vmul.f32 %v6237, %v6244
        %v6246 = vmul.f32 %v6238, %v6244
        %v6247 = vmul.f32 %v6239, %v6244
        %v6248 = vmul.f32 %v6240, %v6244
        %v6249 = vmul.f32 %v6241, %v6244
        %v6250 = vmul.f32 %v6242, %v6244
        %v6257 = vrot.slane %v6245, 1
        %v6258 = vrot.slane %v6248, 1
        %v6259 = vsel %vm795, %v6257, %v6258
        %v6260 = vrot.slane %v6246, 1
        %v6261 = vrot.slane %v6249, 1
        %v6262 = vsel %vm795, %v6260, %v6261
        %v6263 = vrot.slane %v6247, 1
        %v6264 = vrot.slane %v6250, 1
        %v6265 = vsel %vm795, %v6263, %v6264
        %6266 = vrot.lane.b32.xlu0 %v6259, 126
        %v6267 = vpop.permute.xlu0 %6266
        %6268 = vrot.lane.b32.xlu0 %v6262, 126
        %v6269 = vpop.permute.xlu0 %6268
        %6270 = vrot.lane.b32.xlu0 %v6265, 126
        %v6271 = vpop.permute.xlu0 %6270
        %v6272 = vsel %vm420, %v6267, %v6269
        %v6273 = vsel %vm420, %v6269, %v6271
        %v6277 = vadd.f32 %v6197, %v6272
        %v6278 = vadd.f32 %v6198, %v6273
        %v6279 = vadd.f32 %v6199, %v6271
        %s6280 = sld [smem:[#allocation2 + $0xc8]]
        %v6281 = vstv %s6280
        %v6282 = vmul.f32 %v6237, %v6281
        %v6283 = vmul.f32 %v6238, %v6281
        %v6284 = vmul.f32 %v6239, %v6281
        %v6285 = vmul.f32 %v6240, %v6281
        %v6286 = vmul.f32 %v6241, %v6281
        %v6287 = vmul.f32 %v6242, %v6281
        %v6294 = vrot.slane %v6282, 1
        %v6295 = vrot.slane %v6285, 1
        %v6296 = vsel %vm795, %v6294, %v6295
        %v6297 = vrot.slane %v6283, 1
        %v6298 = vrot.slane %v6286, 1
        %v6299 = vsel %vm795, %v6297, %v6298
        %v6300 = vrot.slane %v6284, 1
        %v6301 = vrot.slane %v6287, 1
        %v6302 = vsel %vm795, %v6300, %v6301
        %6303 = vrot.lane.b32.xlu0 %v6296, 126
        %v6304 = vpop.permute.xlu0 %6303
        %6305 = vrot.lane.b32.xlu0 %v6299, 126
        %v6306 = vpop.permute.xlu0 %6305
        %6307 = vrot.lane.b32.xlu0 %v6302, 126
        %v6308 = vpop.permute.xlu0 %6307
        %v6309 = vsel %vm420, %v6304, %v6306
        %v6310 = vsel %vm420, %v6306, %v6308
        %v6314 = vadd.f32 %v6234, %v6309
        %v6315 = vadd.f32 %v6235, %v6310
        %v6316 = vadd.f32 %v6236, %v6308
        %v6317 = vmul.f32 %v6093, %v452
        %v6318 = vmul.f32 %v6094, %v456
        %v6319 = vmul.f32 %v6095, %v454
        %v6320 = vmul.f32 %v6096, %v452
        %v6321 = vmul.f32 %v6097, %v456
        %v6322 = vmul.f32 %v6098, %v454
        %s6323 = sld [smem:[#allocation2 + $0x5d]]
        %v6324 = vstv %s6323
        %v6325 = vmul.f32 %v6317, %v6324
        %v6326 = vmul.f32 %v6318, %v6324
        %v6327 = vmul.f32 %v6319, %v6324
        %v6328 = vmul.f32 %v6320, %v6324
        %v6329 = vmul.f32 %v6321, %v6324
        %v6330 = vmul.f32 %v6322, %v6324
        %v6337 = vrot.slane %v6325, 1
        %v6338 = vrot.slane %v6328, 1
        %v6339 = vsel %vm795, %v6337, %v6338
        %v6340 = vrot.slane %v6326, 1
        %v6341 = vrot.slane %v6329, 1
        %v6342 = vsel %vm795, %v6340, %v6341
        %v6343 = vrot.slane %v6327, 1
        %v6344 = vrot.slane %v6330, 1
        %v6345 = vsel %vm795, %v6343, %v6344
        %6346 = vrot.lane.b32.xlu0 %v6339, 112
        %v6347 = vpop.permute.xlu0 %6346
        %6348 = vrot.lane.b32.xlu0 %v6342, 112
        %v6349 = vpop.permute.xlu0 %6348
        %6350 = vrot.lane.b32.xlu0 %v6345, 112
        %v6351 = vpop.permute.xlu0 %6350
        %v6352 = vsel %vm477, %v6347, %v6349
        %v6353 = vsel %vm477, %v6349, %v6351
        %v6357 = vadd.f32 %v6277, %v6352
        %v6358 = vadd.f32 %v6278, %v6353
        %v6359 = vadd.f32 %v6279, %v6351
        %s6360 = sld [smem:[#allocation2 + $0xc9]]
        %v6361 = vstv %s6360
        %v6362 = vmul.f32 %v6317, %v6361
        %v6363 = vmul.f32 %v6318, %v6361
        %v6364 = vmul.f32 %v6319, %v6361
        %v6365 = vmul.f32 %v6320, %v6361
        %v6366 = vmul.f32 %v6321, %v6361
        %v6367 = vmul.f32 %v6322, %v6361
        %v6374 = vrot.slane %v6362, 1
        %v6375 = vrot.slane %v6365, 1
        %v6376 = vsel %vm795, %v6374, %v6375
        %v6377 = vrot.slane %v6363, 1
        %v6378 = vrot.slane %v6366, 1
        %v6379 = vsel %vm795, %v6377, %v6378
        %v6380 = vrot.slane %v6364, 1
        %v6381 = vrot.slane %v6367, 1
        %v6382 = vsel %vm795, %v6380, %v6381
        %6383 = vrot.lane.b32.xlu0 %v6376, 112
        %v6384 = vpop.permute.xlu0 %6383
        %6385 = vrot.lane.b32.xlu0 %v6379, 112
        %v6386 = vpop.permute.xlu0 %6385
        %6387 = vrot.lane.b32.xlu0 %v6382, 112
        %v6388 = vpop.permute.xlu0 %6387
        %v6389 = vsel %vm477, %v6384, %v6386
        %v6390 = vsel %vm477, %v6386, %v6388
        %v6394 = vadd.f32 %v6314, %v6389
        %v6395 = vadd.f32 %v6315, %v6390
        %v6396 = vadd.f32 %v6316, %v6388
        %s6397 = sld [smem:[#allocation2 + $0x5e]]
        %v6398 = vstv %s6397
        %v6399 = vmul.f32 %v6093, %v6398
        %v6400 = vmul.f32 %v6094, %v6398
        %v6401 = vmul.f32 %v6095, %v6398
        %v6402 = vmul.f32 %v6096, %v6398
        %v6403 = vmul.f32 %v6097, %v6398
        %v6404 = vmul.f32 %v6098, %v6398
        %v6411 = vrot.slane %v6399, 1
        %v6412 = vrot.slane %v6402, 1
        %v6413 = vsel %vm795, %v6411, %v6412
        %v6414 = vrot.slane %v6400, 1
        %v6415 = vrot.slane %v6403, 1
        %v6416 = vsel %vm795, %v6414, %v6415
        %v6417 = vrot.slane %v6401, 1
        %v6418 = vrot.slane %v6404, 1
        %v6419 = vsel %vm795, %v6417, %v6418
        %6420 = vrot.lane.b32.xlu0 %v6413, 111
        %v6421 = vpop.permute.xlu0 %6420
        %6422 = vrot.lane.b32.xlu0 %v6416, 111
        %v6423 = vpop.permute.xlu0 %6422
        %6424 = vrot.lane.b32.xlu0 %v6419, 111
        %v6425 = vpop.permute.xlu0 %6424
        %v6426 = vsel %vm522, %v6421, %v6423
        %v6427 = vsel %vm522, %v6423, %v6425
        %v6431 = vadd.f32 %v6357, %v6426
        %v6432 = vadd.f32 %v6358, %v6427
        %v6433 = vadd.f32 %v6359, %v6425
        %s6434 = sld [smem:[#allocation2 + $0xca]]
        %v6435 = vstv %s6434
        %v6436 = vmul.f32 %v6093, %v6435
        %v6437 = vmul.f32 %v6094, %v6435
        %v6438 = vmul.f32 %v6095, %v6435
        %v6439 = vmul.f32 %v6096, %v6435
        %v6440 = vmul.f32 %v6097, %v6435
        %v6441 = vmul.f32 %v6098, %v6435
        %v6448 = vrot.slane %v6436, 1
        %v6449 = vrot.slane %v6439, 1
        %v6450 = vsel %vm795, %v6448, %v6449
        %v6451 = vrot.slane %v6437, 1
        %v6452 = vrot.slane %v6440, 1
        %v6453 = vsel %vm795, %v6451, %v6452
        %v6454 = vrot.slane %v6438, 1
        %v6455 = vrot.slane %v6441, 1
        %v6456 = vsel %vm795, %v6454, %v6455
        %6457 = vrot.lane.b32.xlu0 %v6450, 111
        %v6458 = vpop.permute.xlu0 %6457
        %6459 = vrot.lane.b32.xlu0 %v6453, 111
        %v6460 = vpop.permute.xlu0 %6459
        %6461 = vrot.lane.b32.xlu0 %v6456, 111
        %v6462 = vpop.permute.xlu0 %6461
        %v6463 = vsel %vm522, %v6458, %v6460
        %v6464 = vsel %vm522, %v6460, %v6462
        %v6468 = vadd.f32 %v6394, %v6463
        %v6469 = vadd.f32 %v6395, %v6464
        %v6470 = vadd.f32 %v6396, %v6462
        %v6471 = vmul.f32 %v6093, %v554
        %v6472 = vmul.f32 %v6094, %v558
        %v6473 = vmul.f32 %v6095, %v556
        %v6474 = vmul.f32 %v6096, %v554
        %v6475 = vmul.f32 %v6097, %v558
        %v6476 = vmul.f32 %v6098, %v556
        %s6477 = sld [smem:[#allocation2 + $0x5f]]
        %v6478 = vstv %s6477
        %v6479 = vmul.f32 %v6471, %v6478
        %v6480 = vmul.f32 %v6472, %v6478
        %v6481 = vmul.f32 %v6473, %v6478
        %v6482 = vmul.f32 %v6474, %v6478
        %v6483 = vmul.f32 %v6475, %v6478
        %v6484 = vmul.f32 %v6476, %v6478
        %v6491 = vrot.slane %v6479, 1
        %v6492 = vrot.slane %v6482, 1
        %v6493 = vsel %vm795, %v6491, %v6492
        %v6494 = vrot.slane %v6480, 1
        %v6495 = vrot.slane %v6483, 1
        %v6496 = vsel %vm795, %v6494, %v6495
        %v6497 = vrot.slane %v6481, 1
        %v6498 = vrot.slane %v6484, 1
        %v6499 = vsel %vm795, %v6497, %v6498
        %6500 = vrot.lane.b32.xlu0 %v6493, 110
        %v6501 = vpop.permute.xlu0 %6500
        %6502 = vrot.lane.b32.xlu0 %v6496, 110
        %v6503 = vpop.permute.xlu0 %6502
        %6504 = vrot.lane.b32.xlu0 %v6499, 110
        %v6505 = vpop.permute.xlu0 %6504
        %v6506 = vsel %vm579, %v6501, %v6503
        %v6507 = vsel %vm579, %v6503, %v6505
        %v6511 = vadd.f32 %v6431, %v6506
        %v6512 = vadd.f32 %v6432, %v6507
        %v6513 = vadd.f32 %v6433, %v6505
        %s6514 = sld [smem:[#allocation2 + $0xcb]]
        %v6515 = vstv %s6514
        %v6516 = vmul.f32 %v6471, %v6515
        %v6517 = vmul.f32 %v6472, %v6515
        %v6518 = vmul.f32 %v6473, %v6515
        %v6519 = vmul.f32 %v6474, %v6515
        %v6520 = vmul.f32 %v6475, %v6515
        %v6521 = vmul.f32 %v6476, %v6515
        %v6528 = vrot.slane %v6516, 1
        %v6529 = vrot.slane %v6519, 1
        %v6530 = vsel %vm795, %v6528, %v6529
        %v6531 = vrot.slane %v6517, 1
        %v6532 = vrot.slane %v6520, 1
        %v6533 = vsel %vm795, %v6531, %v6532
        %v6534 = vrot.slane %v6518, 1
        %v6535 = vrot.slane %v6521, 1
        %v6536 = vsel %vm795, %v6534, %v6535
        %6537 = vrot.lane.b32.xlu0 %v6530, 110
        %v6538 = vpop.permute.xlu0 %6537
        %6539 = vrot.lane.b32.xlu0 %v6533, 110
        %v6540 = vpop.permute.xlu0 %6539
        %6541 = vrot.lane.b32.xlu0 %v6536, 110
        %v6542 = vpop.permute.xlu0 %6541
        %v6543 = vsel %vm579, %v6538, %v6540
        %v6544 = vsel %vm579, %v6540, %v6542
        %v6548 = vadd.f32 %v6468, %v6543
        %v6549 = vadd.f32 %v6469, %v6544
        %v6550 = vadd.f32 %v6470, %v6542
        %v6551 = vmul.f32 %v6093, %v611
        %v6552 = vmul.f32 %v6094, %v615
        %v6553 = vmul.f32 %v6095, %v613
        %v6554 = vmul.f32 %v6096, %v611
        %v6555 = vmul.f32 %v6097, %v615
        %v6556 = vmul.f32 %v6098, %v613
        %s6557 = sld [smem:[#allocation2 + $0x60]]
        %v6558 = vstv %s6557
        %v6559 = vmul.f32 %v6551, %v6558
        %v6560 = vmul.f32 %v6552, %v6558
        %v6561 = vmul.f32 %v6553, %v6558
        %v6562 = vmul.f32 %v6554, %v6558
        %v6563 = vmul.f32 %v6555, %v6558
        %v6564 = vmul.f32 %v6556, %v6558
        %v6571 = vrot.slane %v6559, 1
        %v6572 = vrot.slane %v6562, 1
        %v6573 = vsel %vm795, %v6571, %v6572
        %v6574 = vrot.slane %v6560, 1
        %v6575 = vrot.slane %v6563, 1
        %v6576 = vsel %vm795, %v6574, %v6575
        %v6577 = vrot.slane %v6561, 1
        %v6578 = vrot.slane %v6564, 1
        %v6579 = vsel %vm795, %v6577, %v6578
        %6580 = vrot.lane.b32.xlu0 %v6573, 96
        %v6581 = vpop.permute.xlu0 %6580
        %6582 = vrot.lane.b32.xlu0 %v6576, 96
        %v6583 = vpop.permute.xlu0 %6582
        %6584 = vrot.lane.b32.xlu0 %v6579, 96
        %v6585 = vpop.permute.xlu0 %6584
        %v6586 = vsel %vm636, %v6581, %v6583
        %v6587 = vsel %vm636, %v6583, %v6585
        %v6591 = vadd.f32 %v6511, %v6586
        %v6592 = vadd.f32 %v6512, %v6587
        %v6593 = vadd.f32 %v6513, %v6585
        %s6594 = sld [smem:[#allocation2 + $0xcc]]
        %v6595 = vstv %s6594
        %v6596 = vmul.f32 %v6551, %v6595
        %v6597 = vmul.f32 %v6552, %v6595
        %v6598 = vmul.f32 %v6553, %v6595
        %v6599 = vmul.f32 %v6554, %v6595
        %v6600 = vmul.f32 %v6555, %v6595
        %v6601 = vmul.f32 %v6556, %v6595
        %v6608 = vrot.slane %v6596, 1
        %v6609 = vrot.slane %v6599, 1
        %v6610 = vsel %vm795, %v6608, %v6609
        %v6611 = vrot.slane %v6597, 1
        %v6612 = vrot.slane %v6600, 1
        %v6613 = vsel %vm795, %v6611, %v6612
        %v6614 = vrot.slane %v6598, 1
        %v6615 = vrot.slane %v6601, 1
        %v6616 = vsel %vm795, %v6614, %v6615
        %6617 = vrot.lane.b32.xlu0 %v6610, 96
        %v6618 = vpop.permute.xlu0 %6617
        %6619 = vrot.lane.b32.xlu0 %v6613, 96
        %v6620 = vpop.permute.xlu0 %6619
        %6621 = vrot.lane.b32.xlu0 %v6616, 96
        %v6622 = vpop.permute.xlu0 %6621
        %v6623 = vsel %vm636, %v6618, %v6620
        %v6624 = vsel %vm636, %v6620, %v6622
        %v6628 = vadd.f32 %v6548, %v6623
        %v6629 = vadd.f32 %v6549, %v6624
        %v6630 = vadd.f32 %v6550, %v6622
        %s6631 = sld [smem:[#allocation2 + $0x61]]
        %v6632 = vstv %s6631
        %v6633 = vmul.f32 %v6093, %v6632
        %v6634 = vmul.f32 %v6094, %v6632
        %v6635 = vmul.f32 %v6095, %v6632
        %v6636 = vmul.f32 %v6096, %v6632
        %v6637 = vmul.f32 %v6097, %v6632
        %v6638 = vmul.f32 %v6098, %v6632
        %v6645 = vrot.slane %v6633, 1
        %v6646 = vrot.slane %v6636, 1
        %v6647 = vsel %vm795, %v6645, %v6646
        %v6648 = vrot.slane %v6634, 1
        %v6649 = vrot.slane %v6637, 1
        %v6650 = vsel %vm795, %v6648, %v6649
        %v6651 = vrot.slane %v6635, 1
        %v6652 = vrot.slane %v6638, 1
        %v6653 = vsel %vm795, %v6651, %v6652
        %6654 = vrot.lane.b32.xlu0 %v6647, 95
        %v6655 = vpop.permute.xlu0 %6654
        %6656 = vrot.lane.b32.xlu0 %v6650, 95
        %v6657 = vpop.permute.xlu0 %6656
        %6658 = vrot.lane.b32.xlu0 %v6653, 95
        %v6659 = vpop.permute.xlu0 %6658
        %v6660 = vsel %vm681, %v6655, %v6657
        %v6661 = vsel %vm681, %v6657, %v6659
        %v6665 = vadd.f32 %v6591, %v6660
        %v6666 = vadd.f32 %v6592, %v6661
        %v6667 = vadd.f32 %v6593, %v6659
        %s6668 = sld [smem:[#allocation2 + $0xcd]]
        %v6669 = vstv %s6668
        %v6670 = vmul.f32 %v6093, %v6669
        %v6671 = vmul.f32 %v6094, %v6669
        %v6672 = vmul.f32 %v6095, %v6669
        %v6673 = vmul.f32 %v6096, %v6669
        %v6674 = vmul.f32 %v6097, %v6669
        %v6675 = vmul.f32 %v6098, %v6669
        %v6682 = vrot.slane %v6670, 1
        %v6683 = vrot.slane %v6673, 1
        %v6684 = vsel %vm795, %v6682, %v6683
        %v6685 = vrot.slane %v6671, 1
        %v6686 = vrot.slane %v6674, 1
        %v6687 = vsel %vm795, %v6685, %v6686
        %v6688 = vrot.slane %v6672, 1
        %v6689 = vrot.slane %v6675, 1
        %v6690 = vsel %vm795, %v6688, %v6689
        %6691 = vrot.lane.b32.xlu0 %v6684, 95
        %v6692 = vpop.permute.xlu0 %6691
        %6693 = vrot.lane.b32.xlu0 %v6687, 95
        %v6694 = vpop.permute.xlu0 %6693
        %6695 = vrot.lane.b32.xlu0 %v6690, 95
        %v6696 = vpop.permute.xlu0 %6695
        %v6697 = vsel %vm681, %v6692, %v6694
        %v6698 = vsel %vm681, %v6694, %v6696
        %v6702 = vadd.f32 %v6628, %v6697
        %v6703 = vadd.f32 %v6629, %v6698
        %v6704 = vadd.f32 %v6630, %v6696
        %v6705 = vmul.f32 %v6093, %v713
        %v6706 = vmul.f32 %v6094, %v717
        %v6707 = vmul.f32 %v6095, %v715
        %v6708 = vmul.f32 %v6096, %v713
        %v6709 = vmul.f32 %v6097, %v717
        %v6710 = vmul.f32 %v6098, %v715
        %s6711 = sld [smem:[#allocation2 + $0x62]]
        %v6712 = vstv %s6711
        %v6713 = vmul.f32 %v6705, %v6712
        %v6714 = vmul.f32 %v6706, %v6712
        %v6715 = vmul.f32 %v6707, %v6712
        %v6716 = vmul.f32 %v6708, %v6712
        %v6717 = vmul.f32 %v6709, %v6712
        %v6718 = vmul.f32 %v6710, %v6712
        %v6725 = vrot.slane %v6713, 1
        %v6726 = vrot.slane %v6716, 1
        %v6727 = vsel %vm795, %v6725, %v6726
        %v6728 = vrot.slane %v6714, 1
        %v6729 = vrot.slane %v6717, 1
        %v6730 = vsel %vm795, %v6728, %v6729
        %v6731 = vrot.slane %v6715, 1
        %v6732 = vrot.slane %v6718, 1
        %v6733 = vsel %vm795, %v6731, %v6732
        %6734 = vrot.lane.b32.xlu0 %v6727, 94
        %v6735 = vpop.permute.xlu0 %6734
        %6736 = vrot.lane.b32.xlu0 %v6730, 94
        %v6737 = vpop.permute.xlu0 %6736
        %6738 = vrot.lane.b32.xlu0 %v6733, 94
        %v6739 = vpop.permute.xlu0 %6738
        %v6740 = vsel %vm738, %v6735, %v6737
        %v6741 = vsel %vm738, %v6737, %v6739
        %v6745 = vadd.f32 %v6665, %v6740
        %v6746 = vadd.f32 %v6666, %v6741
        %v6747 = vadd.f32 %v6667, %v6739
        %s6748 = sld [smem:[#allocation2 + $0xce]]
        %v6749 = vstv %s6748
        %v6750 = vmul.f32 %v6705, %v6749
        %v6751 = vmul.f32 %v6706, %v6749
        %v6752 = vmul.f32 %v6707, %v6749
        %v6753 = vmul.f32 %v6708, %v6749
        %v6754 = vmul.f32 %v6709, %v6749
        %v6755 = vmul.f32 %v6710, %v6749
        %v6762 = vrot.slane %v6750, 1
        %v6763 = vrot.slane %v6753, 1
        %v6764 = vsel %vm795, %v6762, %v6763
        %v6765 = vrot.slane %v6751, 1
        %v6766 = vrot.slane %v6754, 1
        %v6767 = vsel %vm795, %v6765, %v6766
        %v6768 = vrot.slane %v6752, 1
        %v6769 = vrot.slane %v6755, 1
        %v6770 = vsel %vm795, %v6768, %v6769
        %6771 = vrot.lane.b32.xlu0 %v6764, 94
        %v6772 = vpop.permute.xlu0 %6771
        %6773 = vrot.lane.b32.xlu0 %v6767, 94
        %v6774 = vpop.permute.xlu0 %6773
        %6775 = vrot.lane.b32.xlu0 %v6770, 94
        %v6776 = vpop.permute.xlu0 %6775
        %v6777 = vsel %vm738, %v6772, %v6774
        %v6778 = vsel %vm738, %v6774, %v6776
        %v6782 = vadd.f32 %v6702, %v6777
        %v6783 = vadd.f32 %v6703, %v6778
        %v6784 = vadd.f32 %v6704, %v6776
        %v6785 = vld [vmem:[%s5703] sm:$0xfc]
        %v6786 = vld [vmem:[%s5703 + $0x8] sm:$0xfc]
        %v6787 = vld [vmem:[%s5703 + $0x10] sm:$0xfc]
        %v6788 = vld [vmem:[%s5703 + $0x18] sm:$0x3]
        %v6789 = vld [vmem:[%s5703 + $0x20] sm:$0x3]
        %v6790 = vld [vmem:[%s5703 + $0x28] sm:$0x3]
        %v6791 = vmul.f32 %v6785, %v320
        %v6792 = vmul.f32 %v6786, %v324
        %v6793 = vmul.f32 %v6787, %v322
        %v6794 = vmul.f32 %v6788, %v320
        %v6795 = vmul.f32 %v6789, %v324
        %v6796 = vmul.f32 %v6790, %v322
        %s6797 = sld [smem:[#allocation2 + $0x63]]
        %v6798 = vstv %s6797
        %v6799 = vmul.f32 %v6791, %v6798
        %v6800 = vmul.f32 %v6792, %v6798
        %v6801 = vmul.f32 %v6793, %v6798
        %v6802 = vmul.f32 %v6794, %v6798
        %v6803 = vmul.f32 %v6795, %v6798
        %v6804 = vmul.f32 %v6796, %v6798
        %v6811 = vrot.slane %v6799, 2
        %v6812 = vrot.slane %v6802, 2
        %v6813 = vsel %vm1488, %v6811, %v6812
        %v6814 = vrot.slane %v6800, 2
        %v6815 = vrot.slane %v6803, 2
        %v6816 = vsel %vm1488, %v6814, %v6815
        %v6817 = vrot.slane %v6801, 2
        %v6818 = vrot.slane %v6804, 2
        %v6819 = vsel %vm1488, %v6817, %v6818
        %v6823 = vadd.f32 %v6745, %v6813
        %v6824 = vadd.f32 %v6746, %v6816
        %v6825 = vadd.f32 %v6747, %v6819
        %s6826 = sld [smem:[#allocation2 + $0xcf]]
        %v6827 = vstv %s6826
        %v6828 = vmul.f32 %v6791, %v6827
        %v6829 = vmul.f32 %v6792, %v6827
        %v6830 = vmul.f32 %v6793, %v6827
        %v6831 = vmul.f32 %v6794, %v6827
        %v6832 = vmul.f32 %v6795, %v6827
        %v6833 = vmul.f32 %v6796, %v6827
        %v6840 = vrot.slane %v6828, 2
        %v6841 = vrot.slane %v6831, 2
        %v6842 = vsel %vm1488, %v6840, %v6841
        %v6843 = vrot.slane %v6829, 2
        %v6844 = vrot.slane %v6832, 2
        %v6845 = vsel %vm1488, %v6843, %v6844
        %v6846 = vrot.slane %v6830, 2
        %v6847 = vrot.slane %v6833, 2
        %v6848 = vsel %vm1488, %v6846, %v6847
        %v6852 = vadd.f32 %v6782, %v6842
        %v6853 = vadd.f32 %v6783, %v6845
        %v6854 = vadd.f32 %v6784, %v6848
        %s6855 = sld [smem:[#allocation2 + $0x64]]
        %v6856 = vstv %s6855
        %v6857 = vmul.f32 %v6785, %v6856
        %v6858 = vmul.f32 %v6786, %v6856
        %v6859 = vmul.f32 %v6787, %v6856
        %v6860 = vmul.f32 %v6788, %v6856
        %v6861 = vmul.f32 %v6789, %v6856
        %v6862 = vmul.f32 %v6790, %v6856
        %v6869 = vrot.slane %v6857, 2
        %v6870 = vrot.slane %v6860, 2
        %v6871 = vsel %vm1488, %v6869, %v6870
        %v6872 = vrot.slane %v6858, 2
        %v6873 = vrot.slane %v6861, 2
        %v6874 = vsel %vm1488, %v6872, %v6873
        %v6875 = vrot.slane %v6859, 2
        %v6876 = vrot.slane %v6862, 2
        %v6877 = vsel %vm1488, %v6875, %v6876
        %6878 = vrot.lane.b32.xlu0 %v6871, 127
        %v6879 = vpop.permute.xlu0 %6878
        %6880 = vrot.lane.b32.xlu0 %v6874, 127
        %v6881 = vpop.permute.xlu0 %6880
        %6882 = vrot.lane.b32.xlu0 %v6877, 127
        %v6883 = vpop.permute.xlu0 %6882
        %v6884 = vsel %vm361, %v6879, %v6881
        %v6885 = vsel %vm361, %v6881, %v6883
        %v6889 = vadd.f32 %v6823, %v6884
        %v6890 = vadd.f32 %v6824, %v6885
        %v6891 = vadd.f32 %v6825, %v6883
        %s6892 = sld [smem:[#allocation2 + $0xd0]]
        %v6893 = vstv %s6892
        %v6894 = vmul.f32 %v6785, %v6893
        %v6895 = vmul.f32 %v6786, %v6893
        %v6896 = vmul.f32 %v6787, %v6893
        %v6897 = vmul.f32 %v6788, %v6893
        %v6898 = vmul.f32 %v6789, %v6893
        %v6899 = vmul.f32 %v6790, %v6893
        %v6906 = vrot.slane %v6894, 2
        %v6907 = vrot.slane %v6897, 2
        %v6908 = vsel %vm1488, %v6906, %v6907
        %v6909 = vrot.slane %v6895, 2
        %v6910 = vrot.slane %v6898, 2
        %v6911 = vsel %vm1488, %v6909, %v6910
        %v6912 = vrot.slane %v6896, 2
        %v6913 = vrot.slane %v6899, 2
        %v6914 = vsel %vm1488, %v6912, %v6913
        %6915 = vrot.lane.b32.xlu0 %v6908, 127
        %v6916 = vpop.permute.xlu0 %6915
        %6917 = vrot.lane.b32.xlu0 %v6911, 127
        %v6918 = vpop.permute.xlu0 %6917
        %6919 = vrot.lane.b32.xlu0 %v6914, 127
        %v6920 = vpop.permute.xlu0 %6919
        %v6921 = vsel %vm361, %v6916, %v6918
        %v6922 = vsel %vm361, %v6918, %v6920
        %v6926 = vadd.f32 %v6852, %v6921
        %v6927 = vadd.f32 %v6853, %v6922
        %v6928 = vadd.f32 %v6854, %v6920
        %v6929 = vmul.f32 %v6785, %v395
        %v6930 = vmul.f32 %v6786, %v399
        %v6931 = vmul.f32 %v6787, %v397
        %v6932 = vmul.f32 %v6788, %v395
        %v6933 = vmul.f32 %v6789, %v399
        %v6934 = vmul.f32 %v6790, %v397
        %s6935 = sld [smem:[#allocation2 + $0x65]]
        %v6936 = vstv %s6935
        %v6937 = vmul.f32 %v6929, %v6936
        %v6938 = vmul.f32 %v6930, %v6936
        %v6939 = vmul.f32 %v6931, %v6936
        %v6940 = vmul.f32 %v6932, %v6936
        %v6941 = vmul.f32 %v6933, %v6936
        %v6942 = vmul.f32 %v6934, %v6936
        %v6949 = vrot.slane %v6937, 2
        %v6950 = vrot.slane %v6940, 2
        %v6951 = vsel %vm1488, %v6949, %v6950
        %v6952 = vrot.slane %v6938, 2
        %v6953 = vrot.slane %v6941, 2
        %v6954 = vsel %vm1488, %v6952, %v6953
        %v6955 = vrot.slane %v6939, 2
        %v6956 = vrot.slane %v6942, 2
        %v6957 = vsel %vm1488, %v6955, %v6956
        %6958 = vrot.lane.b32.xlu0 %v6951, 126
        %v6959 = vpop.permute.xlu0 %6958
        %6960 = vrot.lane.b32.xlu0 %v6954, 126
        %v6961 = vpop.permute.xlu0 %6960
        %6962 = vrot.lane.b32.xlu0 %v6957, 126
        %v6963 = vpop.permute.xlu0 %6962
        %v6964 = vsel %vm420, %v6959, %v6961
        %v6965 = vsel %vm420, %v6961, %v6963
        %v6969 = vadd.f32 %v6889, %v6964
        %v6970 = vadd.f32 %v6890, %v6965
        %v6971 = vadd.f32 %v6891, %v6963
        %s6972 = sld [smem:[#allocation2 + $0xd1]]
        %v6973 = vstv %s6972
        %v6974 = vmul.f32 %v6929, %v6973
        %v6975 = vmul.f32 %v6930, %v6973
        %v6976 = vmul.f32 %v6931, %v6973
        %v6977 = vmul.f32 %v6932, %v6973
        %v6978 = vmul.f32 %v6933, %v6973
        %v6979 = vmul.f32 %v6934, %v6973
        %v6986 = vrot.slane %v6974, 2
        %v6987 = vrot.slane %v6977, 2
        %v6988 = vsel %vm1488, %v6986, %v6987
        %v6989 = vrot.slane %v6975, 2
        %v6990 = vrot.slane %v6978, 2
        %v6991 = vsel %vm1488, %v6989, %v6990
        %v6992 = vrot.slane %v6976, 2
        %v6993 = vrot.slane %v6979, 2
        %v6994 = vsel %vm1488, %v6992, %v6993
        %6995 = vrot.lane.b32.xlu0 %v6988, 126
        %v6996 = vpop.permute.xlu0 %6995
        %6997 = vrot.lane.b32.xlu0 %v6991, 126
        %v6998 = vpop.permute.xlu0 %6997
        %6999 = vrot.lane.b32.xlu0 %v6994, 126
        %v7000 = vpop.permute.xlu0 %6999
        %v7001 = vsel %vm420, %v6996, %v6998
        %v7002 = vsel %vm420, %v6998, %v7000
        %v7006 = vadd.f32 %v6926, %v7001
        %v7007 = vadd.f32 %v6927, %v7002
        %v7008 = vadd.f32 %v6928, %v7000
        %v7009 = vmul.f32 %v6785, %v452
        %v7010 = vmul.f32 %v6786, %v456
        %v7011 = vmul.f32 %v6787, %v454
        %v7012 = vmul.f32 %v6788, %v452
        %v7013 = vmul.f32 %v6789, %v456
        %v7014 = vmul.f32 %v6790, %v454
        %s7015 = sld [smem:[#allocation2 + $0x66]]
        %v7016 = vstv %s7015
        %v7017 = vmul.f32 %v7009, %v7016
        %v7018 = vmul.f32 %v7010, %v7016
        %v7019 = vmul.f32 %v7011, %v7016
        %v7020 = vmul.f32 %v7012, %v7016
        %v7021 = vmul.f32 %v7013, %v7016
        %v7022 = vmul.f32 %v7014, %v7016
        %v7029 = vrot.slane %v7017, 2
        %v7030 = vrot.slane %v7020, 2
        %v7031 = vsel %vm1488, %v7029, %v7030
        %v7032 = vrot.slane %v7018, 2
        %v7033 = vrot.slane %v7021, 2
        %v7034 = vsel %vm1488, %v7032, %v7033
        %v7035 = vrot.slane %v7019, 2
        %v7036 = vrot.slane %v7022, 2
        %v7037 = vsel %vm1488, %v7035, %v7036
        %7038 = vrot.lane.b32.xlu0 %v7031, 112
        %v7039 = vpop.permute.xlu0 %7038
        %7040 = vrot.lane.b32.xlu0 %v7034, 112
        %v7041 = vpop.permute.xlu0 %7040
        %7042 = vrot.lane.b32.xlu0 %v7037, 112
        %v7043 = vpop.permute.xlu0 %7042
        %v7044 = vsel %vm477, %v7039, %v7041
        %v7045 = vsel %vm477, %v7041, %v7043
        %v7049 = vadd.f32 %v6969, %v7044
        %v7050 = vadd.f32 %v6970, %v7045
        %v7051 = vadd.f32 %v6971, %v7043
        %s7052 = sld [smem:[#allocation2 + $0xd2]]
        %v7053 = vstv %s7052
        %v7054 = vmul.f32 %v7009, %v7053
        %v7055 = vmul.f32 %v7010, %v7053
        %v7056 = vmul.f32 %v7011, %v7053
        %v7057 = vmul.f32 %v7012, %v7053
        %v7058 = vmul.f32 %v7013, %v7053
        %v7059 = vmul.f32 %v7014, %v7053
        %v7066 = vrot.slane %v7054, 2
        %v7067 = vrot.slane %v7057, 2
        %v7068 = vsel %vm1488, %v7066, %v7067
        %v7069 = vrot.slane %v7055, 2
        %v7070 = vrot.slane %v7058, 2
        %v7071 = vsel %vm1488, %v7069, %v7070
        %v7072 = vrot.slane %v7056, 2
        %v7073 = vrot.slane %v7059, 2
        %v7074 = vsel %vm1488, %v7072, %v7073
        %7075 = vrot.lane.b32.xlu0 %v7068, 112
        %v7076 = vpop.permute.xlu0 %7075
        %7077 = vrot.lane.b32.xlu0 %v7071, 112
        %v7078 = vpop.permute.xlu0 %7077
        %7079 = vrot.lane.b32.xlu0 %v7074, 112
        %v7080 = vpop.permute.xlu0 %7079
        %v7081 = vsel %vm477, %v7076, %v7078
        %v7082 = vsel %vm477, %v7078, %v7080
        %v7086 = vadd.f32 %v7006, %v7081
        %v7087 = vadd.f32 %v7007, %v7082
        %v7088 = vadd.f32 %v7008, %v7080
        %s7089 = sld [smem:[#allocation2 + $0x67]]
        %v7090 = vstv %s7089
        %v7091 = vmul.f32 %v6785, %v7090
        %v7092 = vmul.f32 %v6786, %v7090
        %v7093 = vmul.f32 %v6787, %v7090
        %v7094 = vmul.f32 %v6788, %v7090
        %v7095 = vmul.f32 %v6789, %v7090
        %v7096 = vmul.f32 %v6790, %v7090
        %v7103 = vrot.slane %v7091, 2
        %v7104 = vrot.slane %v7094, 2
        %v7105 = vsel %vm1488, %v7103, %v7104
        %v7106 = vrot.slane %v7092, 2
        %v7107 = vrot.slane %v7095, 2
        %v7108 = vsel %vm1488, %v7106, %v7107
        %v7109 = vrot.slane %v7093, 2
        %v7110 = vrot.slane %v7096, 2
        %v7111 = vsel %vm1488, %v7109, %v7110
        %7112 = vrot.lane.b32.xlu0 %v7105, 111
        %v7113 = vpop.permute.xlu0 %7112
        %7114 = vrot.lane.b32.xlu0 %v7108, 111
        %v7115 = vpop.permute.xlu0 %7114
        %7116 = vrot.lane.b32.xlu0 %v7111, 111
        %v7117 = vpop.permute.xlu0 %7116
        %v7118 = vsel %vm522, %v7113, %v7115
        %v7119 = vsel %vm522, %v7115, %v7117
        %v7123 = vadd.f32 %v7049, %v7118
        %v7124 = vadd.f32 %v7050, %v7119
        %v7125 = vadd.f32 %v7051, %v7117
        %s7126 = sld [smem:[#allocation2 + $0xd3]]
        %v7127 = vstv %s7126
        %v7128 = vmul.f32 %v6785, %v7127
        %v7129 = vmul.f32 %v6786, %v7127
        %v7130 = vmul.f32 %v6787, %v7127
        %v7131 = vmul.f32 %v6788, %v7127
        %v7132 = vmul.f32 %v6789, %v7127
        %v7133 = vmul.f32 %v6790, %v7127
        %v7140 = vrot.slane %v7128, 2
        %v7141 = vrot.slane %v7131, 2
        %v7142 = vsel %vm1488, %v7140, %v7141
        %v7143 = vrot.slane %v7129, 2
        %v7144 = vrot.slane %v7132, 2
        %v7145 = vsel %vm1488, %v7143, %v7144
        %v7146 = vrot.slane %v7130, 2
        %v7147 = vrot.slane %v7133, 2
        %v7148 = vsel %vm1488, %v7146, %v7147
        %7149 = vrot.lane.b32.xlu0 %v7142, 111
        %v7150 = vpop.permute.xlu0 %7149
        %7151 = vrot.lane.b32.xlu0 %v7145, 111
        %v7152 = vpop.permute.xlu0 %7151
        %7153 = vrot.lane.b32.xlu0 %v7148, 111
        %v7154 = vpop.permute.xlu0 %7153
        %v7155 = vsel %vm522, %v7150, %v7152
        %v7156 = vsel %vm522, %v7152, %v7154
        %v7160 = vadd.f32 %v7086, %v7155
        %v7161 = vadd.f32 %v7087, %v7156
        %v7162 = vadd.f32 %v7088, %v7154
        %v7163 = vmul.f32 %v6785, %v554
        %v7164 = vmul.f32 %v6786, %v558
        %v7165 = vmul.f32 %v6787, %v556
        %v7166 = vmul.f32 %v6788, %v554
        %v7167 = vmul.f32 %v6789, %v558
        %v7168 = vmul.f32 %v6790, %v556
        %s7169 = sld [smem:[#allocation2 + $0x68]]
        %v7170 = vstv %s7169
        %v7171 = vmul.f32 %v7163, %v7170
        %v7172 = vmul.f32 %v7164, %v7170
        %v7173 = vmul.f32 %v7165, %v7170
        %v7174 = vmul.f32 %v7166, %v7170
        %v7175 = vmul.f32 %v7167, %v7170
        %v7176 = vmul.f32 %v7168, %v7170
        %v7183 = vrot.slane %v7171, 2
        %v7184 = vrot.slane %v7174, 2
        %v7185 = vsel %vm1488, %v7183, %v7184
        %v7186 = vrot.slane %v7172, 2
        %v7187 = vrot.slane %v7175, 2
        %v7188 = vsel %vm1488, %v7186, %v7187
        %v7189 = vrot.slane %v7173, 2
        %v7190 = vrot.slane %v7176, 2
        %v7191 = vsel %vm1488, %v7189, %v7190
        %7192 = vrot.lane.b32.xlu0 %v7185, 110
        %v7193 = vpop.permute.xlu0 %7192
        %7194 = vrot.lane.b32.xlu0 %v7188, 110
        %v7195 = vpop.permute.xlu0 %7194
        %7196 = vrot.lane.b32.xlu0 %v7191, 110
        %v7197 = vpop.permute.xlu0 %7196
        %v7198 = vsel %vm579, %v7193, %v7195
        %v7199 = vsel %vm579, %v7195, %v7197
        %v7203 = vadd.f32 %v7123, %v7198
        %v7204 = vadd.f32 %v7124, %v7199
        %v7205 = vadd.f32 %v7125, %v7197
        %s7206 = sld [smem:[#allocation2 + $0xd4]]
        %v7207 = vstv %s7206
        %v7208 = vmul.f32 %v7163, %v7207
        %v7209 = vmul.f32 %v7164, %v7207
        %v7210 = vmul.f32 %v7165, %v7207
        %v7211 = vmul.f32 %v7166, %v7207
        %v7212 = vmul.f32 %v7167, %v7207
        %v7213 = vmul.f32 %v7168, %v7207
        %v7220 = vrot.slane %v7208, 2
        %v7221 = vrot.slane %v7211, 2
        %v7222 = vsel %vm1488, %v7220, %v7221
        %v7223 = vrot.slane %v7209, 2
        %v7224 = vrot.slane %v7212, 2
        %v7225 = vsel %vm1488, %v7223, %v7224
        %v7226 = vrot.slane %v7210, 2
        %v7227 = vrot.slane %v7213, 2
        %v7228 = vsel %vm1488, %v7226, %v7227
        %7229 = vrot.lane.b32.xlu0 %v7222, 110
        %v7230 = vpop.permute.xlu0 %7229
        %7231 = vrot.lane.b32.xlu0 %v7225, 110
        %v7232 = vpop.permute.xlu0 %7231
        %7233 = vrot.lane.b32.xlu0 %v7228, 110
        %v7234 = vpop.permute.xlu0 %7233
        %v7235 = vsel %vm579, %v7230, %v7232
        %v7236 = vsel %vm579, %v7232, %v7234
        %v7240 = vadd.f32 %v7160, %v7235
        %v7241 = vadd.f32 %v7161, %v7236
        %v7242 = vadd.f32 %v7162, %v7234
        %v7243 = vmul.f32 %v6785, %v611
        %v7244 = vmul.f32 %v6786, %v615
        %v7245 = vmul.f32 %v6787, %v613
        %v7246 = vmul.f32 %v6788, %v611
        %v7247 = vmul.f32 %v6789, %v615
        %v7248 = vmul.f32 %v6790, %v613
        %s7249 = sld [smem:[#allocation2 + $0x69]]
        %v7250 = vstv %s7249
        %v7251 = vmul.f32 %v7243, %v7250
        %v7252 = vmul.f32 %v7244, %v7250
        %v7253 = vmul.f32 %v7245, %v7250
        %v7254 = vmul.f32 %v7246, %v7250
        %v7255 = vmul.f32 %v7247, %v7250
        %v7256 = vmul.f32 %v7248, %v7250
        %v7263 = vrot.slane %v7251, 2
        %v7264 = vrot.slane %v7254, 2
        %v7265 = vsel %vm1488, %v7263, %v7264
        %v7266 = vrot.slane %v7252, 2
        %v7267 = vrot.slane %v7255, 2
        %v7268 = vsel %vm1488, %v7266, %v7267
        %v7269 = vrot.slane %v7253, 2
        %v7270 = vrot.slane %v7256, 2
        %v7271 = vsel %vm1488, %v7269, %v7270
        %7272 = vrot.lane.b32.xlu0 %v7265, 96
        %v7273 = vpop.permute.xlu0 %7272
        %7274 = vrot.lane.b32.xlu0 %v7268, 96
        %v7275 = vpop.permute.xlu0 %7274
        %7276 = vrot.lane.b32.xlu0 %v7271, 96
        %v7277 = vpop.permute.xlu0 %7276
        %v7278 = vsel %vm636, %v7273, %v7275
        %v7279 = vsel %vm636, %v7275, %v7277
        %v7283 = vadd.f32 %v7203, %v7278
        %v7284 = vadd.f32 %v7204, %v7279
        %v7285 = vadd.f32 %v7205, %v7277
        %s7286 = sld [smem:[#allocation2 + $0xd5]]
        %v7287 = vstv %s7286
        %v7288 = vmul.f32 %v7243, %v7287
        %v7289 = vmul.f32 %v7244, %v7287
        %v7290 = vmul.f32 %v7245, %v7287
        %v7291 = vmul.f32 %v7246, %v7287
        %v7292 = vmul.f32 %v7247, %v7287
        %v7293 = vmul.f32 %v7248, %v7287
        %v7300 = vrot.slane %v7288, 2
        %v7301 = vrot.slane %v7291, 2
        %v7302 = vsel %vm1488, %v7300, %v7301
        %v7303 = vrot.slane %v7289, 2
        %v7304 = vrot.slane %v7292, 2
        %v7305 = vsel %vm1488, %v7303, %v7304
        %v7306 = vrot.slane %v7290, 2
        %v7307 = vrot.slane %v7293, 2
        %v7308 = vsel %vm1488, %v7306, %v7307
        %7309 = vrot.lane.b32.xlu0 %v7302, 96
        %v7310 = vpop.permute.xlu0 %7309
        %7311 = vrot.lane.b32.xlu0 %v7305, 96
        %v7312 = vpop.permute.xlu0 %7311
        %7313 = vrot.lane.b32.xlu0 %v7308, 96
        %v7314 = vpop.permute.xlu0 %7313
        %v7315 = vsel %vm636, %v7310, %v7312
        %v7316 = vsel %vm636, %v7312, %v7314
        %v7320 = vadd.f32 %v7240, %v7315
        %v7321 = vadd.f32 %v7241, %v7316
        %v7322 = vadd.f32 %v7242, %v7314
        %s7323 = sld [smem:[#allocation2 + $0x6a]]
        %v7324 = vstv %s7323
        %v7325 = vmul.f32 %v6785, %v7324
        %v7326 = vmul.f32 %v6786, %v7324
        %v7327 = vmul.f32 %v6787, %v7324
        %v7328 = vmul.f32 %v6788, %v7324
        %v7329 = vmul.f32 %v6789, %v7324
        %v7330 = vmul.f32 %v6790, %v7324
        %v7337 = vrot.slane %v7325, 2
        %v7338 = vrot.slane %v7328, 2
        %v7339 = vsel %vm1488, %v7337, %v7338
        %v7340 = vrot.slane %v7326, 2
        %v7341 = vrot.slane %v7329, 2
        %v7342 = vsel %vm1488, %v7340, %v7341
        %v7343 = vrot.slane %v7327, 2
        %v7344 = vrot.slane %v7330, 2
        %v7345 = vsel %vm1488, %v7343, %v7344
        %7346 = vrot.lane.b32.xlu0 %v7339, 95
        %v7347 = vpop.permute.xlu0 %7346
        %7348 = vrot.lane.b32.xlu0 %v7342, 95
        %v7349 = vpop.permute.xlu0 %7348
        %7350 = vrot.lane.b32.xlu0 %v7345, 95
        %v7351 = vpop.permute.xlu0 %7350
        %v7352 = vsel %vm681, %v7347, %v7349
        %v7353 = vsel %vm681, %v7349, %v7351
        %v7357 = vadd.f32 %v7283, %v7352
        %v7358 = vadd.f32 %v7284, %v7353
        %v7359 = vadd.f32 %v7285, %v7351
        %s7360 = sld [smem:[#allocation2 + $0xd6]]
        %v7361 = vstv %s7360
        %v7362 = vmul.f32 %v6785, %v7361
        %v7363 = vmul.f32 %v6786, %v7361
        %v7364 = vmul.f32 %v6787, %v7361
        %v7365 = vmul.f32 %v6788, %v7361
        %v7366 = vmul.f32 %v6789, %v7361
        %v7367 = vmul.f32 %v6790, %v7361
        %v7374 = vrot.slane %v7362, 2
        %v7375 = vrot.slane %v7365, 2
        %v7376 = vsel %vm1488, %v7374, %v7375
        %v7377 = vrot.slane %v7363, 2
        %v7378 = vrot.slane %v7366, 2
        %v7379 = vsel %vm1488, %v7377, %v7378
        %v7380 = vrot.slane %v7364, 2
        %v7381 = vrot.slane %v7367, 2
        %v7382 = vsel %vm1488, %v7380, %v7381
        %7383 = vrot.lane.b32.xlu0 %v7376, 95
        %v7384 = vpop.permute.xlu0 %7383
        %7385 = vrot.lane.b32.xlu0 %v7379, 95
        %v7386 = vpop.permute.xlu0 %7385
        %7387 = vrot.lane.b32.xlu0 %v7382, 95
        %v7388 = vpop.permute.xlu0 %7387
        %v7389 = vsel %vm681, %v7384, %v7386
        %v7390 = vsel %vm681, %v7386, %v7388
        %v7394 = vadd.f32 %v7320, %v7389
        %v7395 = vadd.f32 %v7321, %v7390
        %v7396 = vadd.f32 %v7322, %v7388
        %v7397 = vmul.f32 %v6785, %v713
        %v7398 = vmul.f32 %v6786, %v717
        %v7399 = vmul.f32 %v6787, %v715
        %v7400 = vmul.f32 %v6788, %v713
        %v7401 = vmul.f32 %v6789, %v717
        %v7402 = vmul.f32 %v6790, %v715
        %s7403 = sld [smem:[#allocation2 + $0x6b]]
        %v7404 = vstv %s7403
        %v7405 = vmul.f32 %v7397, %v7404
        %v7406 = vmul.f32 %v7398, %v7404
        %v7407 = vmul.f32 %v7399, %v7404
        %v7408 = vmul.f32 %v7400, %v7404
        %v7409 = vmul.f32 %v7401, %v7404
        %v7410 = vmul.f32 %v7402, %v7404
        %v7417 = vrot.slane %v7405, 2
        %v7418 = vrot.slane %v7408, 2
        %v7419 = vsel %vm1488, %v7417, %v7418
        %v7420 = vrot.slane %v7406, 2
        %v7421 = vrot.slane %v7409, 2
        %v7422 = vsel %vm1488, %v7420, %v7421
        %v7423 = vrot.slane %v7407, 2
        %v7424 = vrot.slane %v7410, 2
        %v7425 = vsel %vm1488, %v7423, %v7424
        %7426 = vrot.lane.b32.xlu0 %v7419, 94
        %v7427 = vpop.permute.xlu0 %7426
        %7428 = vrot.lane.b32.xlu0 %v7422, 94
        %v7429 = vpop.permute.xlu0 %7428
        %7430 = vrot.lane.b32.xlu0 %v7425, 94
        %v7431 = vpop.permute.xlu0 %7430
        %v7432 = vsel %vm738, %v7427, %v7429
        %v7433 = vsel %vm738, %v7429, %v7431
        %v7437 = vadd.f32 %v7357, %v7432
        %v7438 = vadd.f32 %v7358, %v7433
        %v7439 = vadd.f32 %v7359, %v7431
        %s7440 = sld [smem:[#allocation2 + $0xd7]]
        %v7441 = vstv %s7440
        %v7442 = vmul.f32 %v7397, %v7441
        %v7443 = vmul.f32 %v7398, %v7441
        %v7444 = vmul.f32 %v7399, %v7441
        %v7445 = vmul.f32 %v7400, %v7441
        %v7446 = vmul.f32 %v7401, %v7441
        %v7447 = vmul.f32 %v7402, %v7441
        %v7454 = vrot.slane %v7442, 2
        %v7455 = vrot.slane %v7445, 2
        %v7456 = vsel %vm1488, %v7454, %v7455
        %v7457 = vrot.slane %v7443, 2
        %v7458 = vrot.slane %v7446, 2
        %v7459 = vsel %vm1488, %v7457, %v7458
        %v7460 = vrot.slane %v7444, 2
        %v7461 = vrot.slane %v7447, 2
        %v7462 = vsel %vm1488, %v7460, %v7461
        %7463 = vrot.lane.b32.xlu0 %v7456, 94
        %v7464 = vpop.permute.xlu0 %7463
        %7465 = vrot.lane.b32.xlu0 %v7459, 94
        %v7466 = vpop.permute.xlu0 %7465
        %7467 = vrot.lane.b32.xlu0 %v7462, 94
        %v7468 = vpop.permute.xlu0 %7467
        %v7469 = vsel %vm738, %v7464, %v7466
        %v7470 = vsel %vm738, %v7466, %v7468
        %v7474 = vadd.f32 %v7394, %v7469
        %v7475 = vadd.f32 %v7395, %v7470
        %v7476 = vadd.f32 %v7396, %v7468
        %s7477 = sld [smem:[#allocation5]]
        %v7478 = vstv %s7477
        %v7479 = vadd.f32 %v7437, %v7478
        %v7480 = vadd.f32 %v7438, %v7478
        %v7481 = vadd.f32 %v7439, %v7478
        %v7482 = vmax.f32 %v7479, 0.0
        %v7483 = vmax.f32 %v7480, 0.0
        %v7484 = vmax.f32 %v7481, 0.0
        %s7485 = sld [smem:[#allocation5 + $0x1]]
        %v7486 = vstv %s7485
        %v7487 = vadd.f32 %v7474, %v7486
        %v7488 = vadd.f32 %v7475, %v7486
        %v7489 = vadd.f32 %v7476, %v7486
        %v7490 = vmax.f32 %v7487, 0.0
        %v7491 = vmax.f32 %v7488, 0.0
        %v7492 = vmax.f32 %v7489, 0.0
        %s7493 = sld [smem:[#allocation7]]
        %v7494 = vstv %s7493
        %v7495 = vmul.f32 %v7482, %v7494
        %v7496 = vmul.f32 %v7483, %v7494
        %v7497 = vmul.f32 %v7484, %v7494
        %s7498 = sld [smem:[#allocation7 + $0x1]]
        %v7499 = vstv %s7498
        %v7500 = vmul.f32 %v7490, %v7499
        %v7501 = vmul.f32 %v7491, %v7499
        %v7502 = vmul.f32 %v7492, %v7499
        %v7503 = vadd.f32 %v7495, %v7500
        %v7504 = vadd.f32 %v7496, %v7501
        %v7505 = vadd.f32 %v7497, %v7502
        %s7506 = sld [smem:[#allocation8]]
        %v7507 = vstv %s7506
        %v7508 = vadd.f32 %v7503, %v7507
        %v7509 = vadd.f32 %v7504, %v7507
        %v7510 = vadd.f32 %v7505, %v7507
        %7514 = vrot.lane.b32.xlu0 %v7508, 113
        %v7515 = vpop.permute.xlu0 %7514
        %7516 = vrot.lane.b32.xlu0 %v7509, 113
        %v7517 = vpop.permute.xlu0 %7516
        %7518 = vrot.lane.b32.xlu0 %v7510, 113
        %v7519 = vpop.permute.xlu0 %7518
        %vm7520 = vcmask 924672
        %v7521 = vsel %vm7520, %v7515, %v7517
        %v7522 = vsel %vm7520, %v7517, %v7519
        %7525 = vst [vmem:[%s269] sm:$0xff] %v7521
        %7526 = vst [vmem:[%s269 + $0x8] sm:$0xff] %v7522
        %s7527 = sld [smem:[#allocation7 + $0x2]]
        %v7528 = vstv %s7527
        %v7529 = vmul.f32 %v7482, %v7528
        %v7530 = vmul.f32 %v7483, %v7528
        %v7531 = vmul.f32 %v7484, %v7528
        %s7532 = sld [smem:[#allocation7 + $0x3]]
        %v7533 = vstv %s7532
        %v7534 = vmul.f32 %v7490, %v7533
        %v7535 = vmul.f32 %v7491, %v7533
        %v7536 = vmul.f32 %v7492, %v7533
        %v7537 = vadd.f32 %v7529, %v7534
        %v7538 = vadd.f32 %v7530, %v7535
        %v7539 = vadd.f32 %v7531, %v7536
        %s7540 = sld [smem:[#allocation8 + $0x1]]
        %v7541 = vstv %s7540
        %v7542 = vadd.f32 %v7537, %v7541
        %v7543 = vadd.f32 %v7538, %v7541
        %v7544 = vadd.f32 %v7539, %v7541
        %7548 = vrot.lane.b32.xlu0 %v7542, 113
        %v7549 = vpop.permute.xlu0 %7548
        %7550 = vrot.lane.b32.xlu0 %v7543, 113
        %v7551 = vpop.permute.xlu0 %7550
        %7552 = vrot.lane.b32.xlu0 %v7544, 113
        %v7553 = vpop.permute.xlu0 %7552
        %v7554 = vsel %vm7520, %v7549, %v7551
        %v7555 = vsel %vm7520, %v7551, %v7553
        %s7558 = scalar_lea.vmem %s269, 16 [#allocation10]
        %7559 = vst [vmem:[%s7558] sm:$0xff] %v7554
        %7560 = vst [vmem:[%s7558 + $0x8] sm:$0xff] %v7555
        %s7561 = sld [smem:[#allocation7 + $0x4]]
        %v7562 = vstv %s7561
        %v7563 = vmul.f32 %v7482, %v7562
        %v7564 = vmul.f32 %v7483, %v7562
        %v7565 = vmul.f32 %v7484, %v7562
        %s7566 = sld [smem:[#allocation7 + $0x5]]
        %v7567 = vstv %s7566
        %v7568 = vmul.f32 %v7490, %v7567
        %v7569 = vmul.f32 %v7491, %v7567
        %v7570 = vmul.f32 %v7492, %v7567
        %v7571 = vadd.f32 %v7563, %v7568
        %v7572 = vadd.f32 %v7564, %v7569
        %v7573 = vadd.f32 %v7565, %v7570
        %s7574 = sld [smem:[#allocation8 + $0x2]]
        %v7575 = vstv %s7574
        %v7576 = vadd.f32 %v7571, %v7575
        %v7577 = vadd.f32 %v7572, %v7575
        %v7578 = vadd.f32 %v7573, %v7575
        %7582 = vrot.lane.b32.xlu0 %v7576, 113
        %v7583 = vpop.permute.xlu0 %7582
        %7584 = vrot.lane.b32.xlu0 %v7577, 113
        %v7585 = vpop.permute.xlu0 %7584
        %7586 = vrot.lane.b32.xlu0 %v7578, 113
        %v7587 = vpop.permute.xlu0 %7586
        %v7588 = vsel %vm7520, %v7583, %v7585
        %v7589 = vsel %vm7520, %v7585, %v7587
        %s7592 = scalar_lea.vmem %s269, 32 [#allocation10]
        %7593 = vst [vmem:[%s7592] sm:$0xff] %v7588
        %7594 = vst [vmem:[%s7592 + $0x8] sm:$0xff] %v7589
        %s7595 = sand.u32 %s140, 1
        %s7596 = scalar_lea.sflag [#allocation3], %s7595
        %s7597 = sand.u32 %s140, 1
        %s7598 = smul.addr %s7597, 48
        %s7599 = scalar_lea.vmem [#allocation10], %s7598
        // Predicated region
        $region57: #{tpu_custom_call.1} parent=39 // pred_check
          %p7600 = pneg %p150
        $region58: #{tpu_custom_call.1} parent=39 // pred_check_branch
          %7602 = sbr.rel (%p7600) target = $region60
        $region59: #{tpu_custom_call.1} parent=39 // pred_region
          %s7604 = ssub.s32 768, 768
          %7605 = vsyncadd %s7596, %s7604
          %s7606 = smul.addr %s22, 6
          %s7607 = smul.addr %s7606, 128
          %s7608 = scalar_lea.hbm %s5, %s7607
          %s7609 = sshll.u32 %s7599, 4
          %s7610 = int_to_ptr.vmem [resolvable:$true] %s7609
          %7615 = dma.vmem_to_hbm [thread:$0]  %s7610, 768, %s7608, %s7596, 256, 256, 16
        $region60: #{tpu_custom_call.1} parent=39 // pred_fallthru
          _
      $region40: #{tpu_custom_call.1} parent=5 // pred_fallthru
        _
      %p7616 = scmp.le.s32.totalorder 2, %s17
      // Predicated region
      $region61: #{tpu_custom_call.1} parent=5 // pred_check
        %p7617 = pneg %p7616
      $region62: #{tpu_custom_call.1} parent=5 // pred_check_branch
        %7619 = sbr.rel (%p7617) target = $region64
      $region63: #{tpu_custom_call.1} parent=5 // pred_region
        %s7620 = ssub.s32 %s17, 2
        // Predicated region
        $region65: #{tpu_custom_call.1} parent=63 // pred_check
          %p7621 = pneg %p156
        $region66: #{tpu_custom_call.1} parent=63 // pred_check_branch
          %7623 = sbr.rel (%p7621) target = $region68
        $region67: #{tpu_custom_call.1} parent=63 // pred_region
          %s7624 = sand.u32 %s141, 1
          %s7625 = scalar_lea.sflag [#allocation3], %s7624
          %s7626 = sand.u32 %s141, 1
          %s7627 = smul.addr %s7626, 48
          %s7628 = scalar_lea.vmem [#allocation10], %s7627
          %7629 = dma.done %s7625, 768
        $region68: #{tpu_custom_call.1} parent=63 // pred_fallthru
          _
      $region64: #{tpu_custom_call.1} parent=5 // pred_fallthru
        _
    $region6: #{tpu_custom_call.1} parent=1 // loop_footer
      %s21 = sadd.s32 1, %s17
    $region7: #{tpu_custom_call.1} parent=1 // loop_footer_branch
      %16 = sbr.rel target = $region3
    $region8: #{tpu_custom_call.1} parent=1 // loop_exit
      _
    %7630 = vsyncpa [#allocation3], 1
    %s7631 = scalar_lea.sflag [#allocation3], 1
    %7632 = vsyncpa %s7631, 1
    %7633 = vsyncpa [#allocation4], 1
    %s7634 = scalar_lea.sflag [#allocation4], 1
    %7635 = vsyncpa %s7634, 1
    %7636 = vsyncpa [#allocation6], 1
    %7637 = vsyncpa [#allocation9], 1

</llo_original>
